<compile_context>
chip_gen: v7x
topology: tpu7x:2x2x1
jax: 0.10.0
libtpu: 0.0.40
codegen_flags: <defaults>
</compile_context>

<pallas_src>
import functools

import jax
import jax.numpy as jnp
import numpy as np
from jax.experimental import pallas as pl
from jax.experimental.pallas import tpu as pltpu


def _round_up(x, m):
    return (x + m - 1) // m * m


def _pick_tb(B, N, target_rows=512, min_grid=2):
    """Rows per block ~= target_rows, but keep the grid length >= min_grid so
    both v7x TensorCores get work (a parallel grid of length 1 wastes one)."""
    tb = max(1, target_rows // max(N, 1))
    if B > 1:
        tb = min(tb, _round_up(B, min_grid) // min_grid)
    return max(1, min(tb, B))


def _vmem_limit_bytes(tb, n, dp, fw, inner, heads):
    """Derive the VMEM budget from actual buffer sizes (not a blanket number)."""
    f32 = 4
    x_blk = tb * n * dp * f32                       # input block
    o_blk = tb * n * dp * f32                       # output block
    w_bytes = dp * fw * 2 + inner * dp * 2 + (3 * dp + inner) * f32
    rows = tb * n
    interm = rows * (fw + 2 * inner + dp) * f32 + tb * heads * n * n * 2 * f32
    need = 2 * (x_blk + o_blk + w_bytes) + interm   # double-buffered in/out/weights
    # 2x headroom for compiler scratch / spills; clamp to stay well inside
    # v7x's 64 MiB physical VMEM (also fine on v5e/v6e's 128 MiB).
    return int(min(max(2 * need, 16 * 2**20), 40 * 2**20))


def _make_kernel(*, heads, dim_head, inner, true_d, tb, n, dp, eps=1e-5):
    inv_d = 1.0 / float(true_d)
    rows = tb * n

    def kernel(x_ref, g_ref, be_ref, wf_ref, bg_ref, wo_ref, bo_ref, o_ref):
        # ---- flatten the TB sequences into one (rows, Dp) slab ----
        x = x_ref[...].reshape(rows, dp).astype(jnp.float32)

        # ---- LayerNorm over the true feature dim (two-pass variance) ----
        mu = jnp.sum(x, axis=-1, keepdims=True) * inv_d
        xc = x - mu
        if dp != true_d:
            # zero the padding lanes so they don't bias the variance
            lane = jax.lax.broadcasted_iota(jnp.int32, (1, dp), 1)
            xc = jnp.where(lane < true_d, xc, 0.0)
        var = jnp.sum(xc * xc, axis=-1, keepdims=True) * inv_d
        xn = xc * jax.lax.rsqrt(var + eps)
        xn = xn * g_ref[...] + be_ref[...]          # padded lanes -> 0 (gamma=beta=0)

        # ---- fused, packed [Q*scale | K | V | gate] projection (bf16 MXU, f32 acc)
        proj = jnp.dot(xn.astype(jnp.bfloat16), wf_ref[...],
                       preferred_element_type=jnp.float32)            # (rows, FW)

        # gating activations over the true `inner` lanes only
        gates = jax.nn.sigmoid(proj[:, 3 * inner:4 * inner] + bg_ref[...])  # (rows, inner)

        # ---- per-head attention, TB-batched 3-D einsums ----
        # TODO(synk): batching heads into the einsum batch dim ((tb*heads, n, dh))
        # would raise MXU occupancy further, but needs a 4-D (0,2,1,3) relayout
        # whose Mosaic lowering is not guaranteed; keep the verified per-head loop.
        head_outs = []
        for h in range(heads):
            lo = h * dim_head
            hi = lo + dim_head
            q3 = proj[:, lo:hi].reshape(tb, n, dim_head).astype(jnp.bfloat16)
            k3 = proj[:, inner + lo:inner + hi].reshape(tb, n, dim_head).astype(jnp.bfloat16)
            v3 = proj[:, 2 * inner + lo:2 * inner + hi].reshape(tb, n, dim_head).astype(jnp.bfloat16)

            dots = jnp.einsum('bnd,bmd->bnm', q3, k3,
                              preferred_element_type=jnp.float32)      # (tb, n, n)
            dots = dots - jnp.max(dots, axis=-1, keepdims=True)
            p = jnp.exp(dots)
            # EUP approx reciprocal (separate issue slot, ~free); ~1e-3 rel err.
            attn = p * pl.reciprocal(jnp.sum(p, axis=-1, keepdims=True), approx=True)

            oh = jnp.einsum('bnm,bmd->bnd', attn.astype(jnp.bfloat16), v3,
                            preferred_element_type=jnp.float32)        # (tb, n, dh)
            head_outs.append(oh.reshape(rows, dim_head))

        # ---- gate all heads, then ONE output-projection matmul (K = inner) ----
        o_all = jnp.concatenate(head_outs, axis=-1)                    # (rows, inner)
        og = (o_all * gates).astype(jnp.bfloat16)
        y = jnp.dot(og, wo_ref[...], preferred_element_type=jnp.float32)  # (rows, Dp)
        y = y + bo_ref[...]
        o_ref[...] = y.reshape(tb, n, dp).astype(o_ref.dtype)

    return kernel


def axial_attention_pallas(x, params, *, heads, dim_head, row_attn=True,
                           eps=1e-5, lane_align=128):
    """x: (b, h, w, d) float32. Returns (b, h, w, d). Default forward path only."""
    b, H, W, d = x.shape
    inner = heads * dim_head

    # fold the non-attended spatial axis into the batch
    if row_attn:
        xf = x.reshape(b * H, W, d)
    else:  # column attention
        xf = jnp.transpose(x, (0, 2, 1, 3)).reshape(b * W, H, d)
    B, N, D = xf.shape

    # NOTE: lane_align=256 can help on v6e/v7x when D, inner >= 256;
    # 128 is optimal for v5e and for the small dims used here.
    Dp = _round_up(D, lane_align)             # lane-dense feature dim
    FW = _round_up(4 * inner, lane_align)     # packed [Q|K|V|G] total width
    scale = dim_head ** -0.5

    TB = _pick_tb(B, N)
    Bp = _round_up(B, TB)                     # pad batch to a whole number of blocks
    grid = (Bp // TB,)

    # --- pad activations / parameters to lane / block multiples (zeros) ---
    xp = xf
    if (Bp, Dp) != (B, D):
        xp = jnp.pad(xf, ((0, Bp - B), (0, 0), (0, Dp - D)))

    gamma = jnp.pad(params["ln_gamma"], (0, Dp - D)).reshape(1, Dp).astype(jnp.float32)
    beta = jnp.pad(params["ln_beta"], (0, Dp - D)).reshape(1, Dp).astype(jnp.float32)
    wf = jnp.concatenate([params["wq"] * scale, params["wk"],
                          params["wv"], params["wg"]], axis=1)          # (D, 4*inner)
    wf = jnp.pad(wf, ((0, Dp - D), (0, FW - 4 * inner))).astype(jnp.bfloat16)
    bg = params["bg"].reshape(1, inner).astype(jnp.float32)
    wo = jnp.pad(params["wo"], ((0, 0), (0, Dp - D))).astype(jnp.bfloat16)   # (inner, Dp)
    bo = jnp.pad(params["bo"], (0, Dp - D)).reshape(1, Dp).astype(jnp.float32)

    kernel = _make_kernel(heads=heads, dim_head=dim_head, inner=inner, true_d=D,
                          tb=TB, n=N, dp=Dp, eps=eps)

    # Constant-index weight blocks: fetched once per step and reused.
    # TODO(synk): on v7x, add pipeline_mode=pl.Buffered(1) to these specs to drop
    # the redundant second pipeline buffer once validated on the target jax build.
    const = lambda shape: pl.BlockSpec(shape, lambda i, _s=shape: tuple(0 for _ in _s))

    out = pl.pallas_call(
        kernel,
        out_shape=jax.ShapeDtypeStruct((Bp, N, Dp), x.dtype),
        grid_spec=pltpu.PrefetchScalarGridSpec(
            num_scalar_prefetch=0,
            grid=grid,
            in_specs=[
                pl.BlockSpec((TB, N, Dp), lambda i: (i, 0, 0)),   # x block
                const((1, Dp)),                                   # ln gamma
                const((1, Dp)),                                   # ln beta
                const((Dp, FW)),                                  # packed [Q|K|V|G] W
                const((1, inner)),                                # gate bias
                const((inner, Dp)),                               # W_out (2-D)
                const((1, Dp)),                                   # b_out
            ],
            out_specs=pl.BlockSpec((TB, N, Dp), lambda i: (i, 0, 0)),
        ),
        compiler_params=pltpu.CompilerParams(
            dimension_semantics=("parallel",),
            vmem_limit_bytes=_vmem_limit_bytes(TB, N, Dp, FW, inner, heads)),
    )(xp, gamma, beta, wf, bg, wo, bo)

    out = out[:B, :, :D]
    if row_attn:
        return out.reshape(b, H, W, d)
    return jnp.transpose(out.reshape(b, W, H, d), (0, 2, 1, 3))


def axial_attention_ref(x, params, *, heads, dim_head, row_attn=True):
    """Pure-JAX (f32) reference mirroring the PyTorch forward (default branch)."""
    b, H, W, d = x.shape
    if row_attn:
        xf = x.reshape(b * H, W, d)
    else:
        xf = jnp.transpose(x, (0, 2, 1, 3)).reshape(b * W, H, d)

    mu = jnp.mean(xf, axis=-1, keepdims=True)
    var = jnp.mean((xf - mu) ** 2, axis=-1, keepdims=True)
    xn = (xf - mu) / jnp.sqrt(var + 1e-5)
    xn = xn * params["ln_gamma"] + params["ln_beta"]

    scale = dim_head ** -0.5
    B, N, D = xn.shape
    q = (xn @ params["wq"]) * scale
    k = xn @ params["wk"]
    v = xn @ params["wv"]
    rs = lambda t: t.reshape(B, N, heads, dim_head).transpose(0, 2, 1, 3)
    q, k, v = rs(q), rs(k), rs(v)
    dots = jnp.einsum("bhid,bhjd->bhij", q, k)
    attn = jax.nn.softmax(dots, axis=-1)
    out = jnp.einsum("bhij,bhjd->bhid", attn, v)
    out = out.transpose(0, 2, 1, 3).reshape(B, N, heads * dim_head)
    gates = xn @ params["wg"] + params["bg"]
    out = out * jax.nn.sigmoid(gates)
    out = out @ params["wo"] + params["bo"]

    if row_attn:
        return out.reshape(b, H, W, d)
    return jnp.transpose(out.reshape(b, W, H, d), (0, 2, 1, 3))


def init_params(key, dim, heads, dim_head):
    inner = heads * dim_head
    keys = jax.random.split(key, 8)
    s = 0.1
    return {
        "ln_gamma": jnp.ones((dim,), jnp.float32),
        "ln_beta": jnp.zeros((dim,), jnp.float32),
        "wq": s * jax.random.normal(keys[0], (dim, inner), jnp.float32),
        "wk": s * jax.random.normal(keys[1], (dim, inner), jnp.float32),
        "wv": s * jax.random.normal(keys[2], (dim, inner), jnp.float32),
        # NOTE: PyTorch inits gating weight=0, bias=1 and to_out to zero; random
        # values are used here so the full computation path is exercised.
        "wg": s * jax.random.normal(keys[3], (dim, inner), jnp.float32),
        "bg": s * jax.random.normal(keys[4], (inner,), jnp.float32),
        "wo": s * jax.random.normal(keys[5], (inner, dim), jnp.float32),
        "bo": s * jax.random.normal(keys[6], (dim,), jnp.float32),
    }


if __name__ == "__main__":
    key = jax.random.PRNGKey(0)
    k_x, k_p = jax.random.split(key)

    b, H, W, d = 2, 16, 16, 32      # (batch, height, width, dim)
    heads, dim_head = 4, 8          # inner_dim = 32

    x = jax.random.normal(k_x, (b, H, W, d), jnp.float32)
    params = init_params(k_p, d, heads, dim_head)

    # row attention
    run_row = functools.partial(axial_attention_pallas, heads=heads,
                                dim_head=dim_head, row_attn=True)
    out_row = jax.block_until_ready(jax.jit(run_row)(x, params))
    ref_row = axial_attention_ref(x, params, heads=heads, dim_head=dim_head,
                                  row_attn=True)
    assert out_row.shape == (b, H, W, d)
    # bf16 MXU inputs + approx softmax reciprocal -> slightly looser tolerance
    # than a pure-f32 kernel (intentional).
    np.testing.assert_allclose(np.asarray(out_row), np.asarray(ref_row),
                               rtol=2e-2, atol=2e-2)

    # column attention (same kernel, axis folded outside)
    run_col = functools.partial(axial_attention_pallas, heads=heads,
                                dim_head=dim_head, row_attn=False)
    out_col = jax.block_until_ready(jax.jit(run_col)(x, params))
    ref_col = axial_attention_ref(x, params, heads=heads, dim_head=dim_head,
                                  row_attn=False)
    np.testing.assert_allclose(np.asarray(out_col), np.asarray(ref_col),
                               rtol=2e-2, atol=2e-2)

    print("KERNEL_OK")
</pallas_src>

<mosaic_0001>
module attributes {stable_mosaic.version = 11 : i64} {
  func.func @kernel(%arg0: i32, %arg1: memref<16x16x128xf32, #tpu.memory_space<vmem>>, %arg2: memref<1x128xf32, #tpu.memory_space<vmem>>, %arg3: memref<1x128xf32, #tpu.memory_space<vmem>>, %arg4: memref<128x128xbf16, #tpu.memory_space<vmem>>, %arg5: memref<1x32xf32, #tpu.memory_space<vmem>>, %arg6: memref<32x128xbf16, #tpu.memory_space<vmem>>, %arg7: memref<1x128xf32, #tpu.memory_space<vmem>>, %arg8: memref<16x16x128xf32, #tpu.memory_space<vmem>>) attributes {dimension_semantics = [#tpu.dimension_semantics<parallel>], iteration_bounds = array<i64: 2>, scalar_prefetch = 0 : i64, scratch_operands = 0 : i64, tpu.core_type = #tpu.core_type<tc>, window_params = [{transform_indices = @transform_0, window_bounds = array<i64: 16, 16, 128>}, {pipeline_mode = #tpu.pipeline_mode<synchronous>, transform_indices = @transform_1, window_bounds = array<i64: 1, 128>}, {pipeline_mode = #tpu.pipeline_mode<synchronous>, transform_indices = @transform_2, window_bounds = array<i64: 1, 128>}, {pipeline_mode = #tpu.pipeline_mode<synchronous>, transform_indices = @transform_3, window_bounds = array<i64: 128, 128>}, {pipeline_mode = #tpu.pipeline_mode<synchronous>, transform_indices = @transform_4, window_bounds = array<i64: 1, 32>}, {pipeline_mode = #tpu.pipeline_mode<synchronous>, transform_indices = @transform_5, window_bounds = array<i64: 32, 128>}, {pipeline_mode = #tpu.pipeline_mode<synchronous>, transform_indices = @transform_6, window_bounds = array<i64: 1, 128>}, {transform_indices = @transform_7, window_bounds = array<i64: 16, 16, 128>}]} {
    %c0 = arith.constant 0 : index
    %c0_0 = arith.constant 0 : index
    %c0_1 = arith.constant 0 : index
    %0 = vector.load %arg1[%c0, %c0_0, %c0_1] : memref<16x16x128xf32, #tpu.memory_space<vmem>>, vector<16x16x128xf32>
    %1 = vector.shape_cast %0 : vector<16x16x128xf32> to vector<256x128xf32>
    %cst = arith.constant dense<0.000000e+00> : vector<256xf32>
    %2 = vector.multi_reduction <add>, %1, %cst [1] : vector<256x128xf32> to vector<256xf32>
    %3 = vector.shape_cast %2 : vector<256xf32> to vector<256x1xf32>
    %cst_2 = arith.constant 3.125000e-02 : f32
    %4 = vector.broadcast %cst_2 : f32 to vector<256x1xf32>
    %5 = arith.mulf %3, %4 : vector<256x1xf32>
    %6 = vector.broadcast %5 : vector<256x1xf32> to vector<256x128xf32>
    %7 = arith.subf %1, %6 : vector<256x128xf32>
    %8 = tpu.iota {dimensions = array<i32: 1>} : vector<1x128xi32>
    %c32_i32 = arith.constant 32 : i32
    %9 = vector.broadcast %c32_i32 : i32 to vector<1x128xi32>
    %10 = arith.cmpi slt, %8, %9 : vector<1x128xi32>
    %cst_3 = arith.constant 0.000000e+00 : f32
    %11 = vector.shape_cast %10 : vector<1x128xi1> to vector<1x128xi1>
    %12 = vector.broadcast %11 : vector<1x128xi1> to vector<256x128xi1>
    %13 = vector.broadcast %cst_3 : f32 to vector<256x128xf32>
    %14 = arith.select %12, %7, %13 : vector<256x128xi1>, vector<256x128xf32>
    %15 = arith.mulf %14, %14 : vector<256x128xf32>
    %cst_4 = arith.constant dense<0.000000e+00> : vector<256xf32>
    %16 = vector.multi_reduction <add>, %15, %cst_4 [1] : vector<256x128xf32> to vector<256xf32>
    %17 = vector.shape_cast %16 : vector<256xf32> to vector<256x1xf32>
    %cst_5 = arith.constant 3.125000e-02 : f32
    %18 = vector.broadcast %cst_5 : f32 to vector<256x1xf32>
    %19 = arith.mulf %17, %18 : vector<256x1xf32>
    %cst_6 = arith.constant 9.99999974E-6 : f32
    %20 = vector.broadcast %cst_6 : f32 to vector<256x1xf32>
    %21 = arith.addf %19, %20 : vector<256x1xf32>
    %22 = math.rsqrt %21 : vector<256x1xf32>
    %23 = vector.broadcast %22 : vector<256x1xf32> to vector<256x128xf32>
    %24 = arith.mulf %14, %23 : vector<256x128xf32>
    %c0_7 = arith.constant 0 : index
    %c0_8 = arith.constant 0 : index
    %25 = vector.load %arg2[%c0_7, %c0_8] : memref<1x128xf32, #tpu.memory_space<vmem>>, vector<1x128xf32>
    %26 = vector.broadcast %25 : vector<1x128xf32> to vector<256x128xf32>
    %27 = arith.mulf %24, %26 : vector<256x128xf32>
    %c0_9 = arith.constant 0 : index
    %c0_10 = arith.constant 0 : index
    %28 = vector.load %arg3[%c0_9, %c0_10] : memref<1x128xf32, #tpu.memory_space<vmem>>, vector<1x128xf32>
    %29 = vector.broadcast %28 : vector<1x128xf32> to vector<256x128xf32>
    %30 = arith.addf %27, %29 : vector<256x128xf32>
    %31 = arith.truncf %30 : vector<256x128xf32> to vector<256x128xbf16>
    %c0_11 = arith.constant 0 : index
    %c0_12 = arith.constant 0 : index
    %32 = vector.load %arg4[%c0_11, %c0_12] : memref<128x128xbf16, #tpu.memory_space<vmem>>, vector<128x128xbf16>
    %cst_13 = arith.constant dense<0.000000e+00> : vector<256x128xf32>
    %33 = tpu.matmul %31, %32, %cst_13 {dimension_numbers = #tpu.dot_dimension_numbers<[1], [0], [0], [1], [0, 0, 1, 1], [], []>} : vector<256x128xbf16>, vector<128x128xbf16>, vector<256x128xf32> -> vector<256x128xf32>
    %34 = vector.extract_strided_slice %33 {offsets = [0, 96], sizes = [256, 32], strides = [1, 1]} : vector<256x128xf32> to vector<256x32xf32>
    %c0_14 = arith.constant 0 : index
    %c0_15 = arith.constant 0 : index
    %35 = vector.load %arg5[%c0_14, %c0_15] : memref<1x32xf32, #tpu.memory_space<vmem>>, vector<1x32xf32>
    %36 = vector.broadcast %35 : vector<1x32xf32> to vector<256x32xf32>
    %37 = arith.addf %34, %36 : vector<256x32xf32>
    %38 = arith.negf %37 : vector<256x32xf32>
    %39 = math.exp %38 : vector<256x32xf32>
    %cst_16 = arith.constant 1.000000e+00 : f32
    %40 = vector.broadcast %cst_16 : f32 to vector<256x32xf32>
    %41 = arith.addf %40, %39 : vector<256x32xf32>
    %42 = arith.divf %40, %41 : vector<256x32xf32>
    %43 = vector.extract_strided_slice %33 {offsets = [0, 0], sizes = [256, 8], strides = [1, 1]} : vector<256x128xf32> to vector<256x8xf32>
    %44 = vector.shape_cast %43 : vector<256x8xf32> to vector<16x16x8xf32>
    %45 = arith.truncf %44 : vector<16x16x8xf32> to vector<16x16x8xbf16>
    %46 = vector.extract_strided_slice %33 {offsets = [0, 32], sizes = [256, 8], strides = [1, 1]} : vector<256x128xf32> to vector<256x8xf32>
    %47 = vector.shape_cast %46 : vector<256x8xf32> to vector<16x16x8xf32>
    %48 = arith.truncf %47 : vector<16x16x8xf32> to vector<16x16x8xbf16>
    %49 = vector.extract_strided_slice %33 {offsets = [0, 64], sizes = [256, 8], strides = [1, 1]} : vector<256x128xf32> to vector<256x8xf32>
    %50 = vector.shape_cast %49 : vector<256x8xf32> to vector<16x16x8xf32>
    %51 = arith.truncf %50 : vector<16x16x8xf32> to vector<16x16x8xbf16>
    "tpu.trace_start"() <{level = 10 : i32, message = "bnd,bmd->bnm"}> : () -> ()
    %cst_17 = arith.constant dense<0.000000e+00> : vector<16x16x16xf32>
    %52 = tpu.matmul %45, %48, %cst_17 {dimension_numbers = #tpu.dot_dimension_numbers<[2], [2], [1], [1], [0, 0, 0, 1, 1, 1], [0], [0]>} : vector<16x16x8xbf16>, vector<16x16x8xbf16>, vector<16x16x16xf32> -> vector<16x16x16xf32>
    "tpu.trace_stop"() : () -> ()
    %cst_18 = arith.constant dense<0xFF800000> : vector<16x16xf32>
    %53 = vector.multi_reduction <maximumf>, %52, %cst_18 [2] : vector<16x16x16xf32> to vector<16x16xf32>
    %54 = vector.shape_cast %53 : vector<16x16xf32> to vector<16x16x1xf32>
    %55 = vector.broadcast %54 : vector<16x16x1xf32> to vector<16x16x16xf32>
    %56 = arith.subf %52, %55 : vector<16x16x16xf32>
    %57 = math.exp %56 : vector<16x16x16xf32>
    %cst_19 = arith.constant dense<0.000000e+00> : vector<16x16xf32>
    %58 = vector.multi_reduction <add>, %57, %cst_19 [2] : vector<16x16x16xf32> to vector<16x16xf32>
    %59 = vector.shape_cast %58 : vector<16x16xf32> to vector<16x16x1xf32>
    %60 = tpu.reciprocal %59 {approx = true} : vector<16x16x1xf32> -> vector<16x16x1xf32>
    %61 = vector.broadcast %60 : vector<16x16x1xf32> to vector<16x16x16xf32>
    %62 = arith.mulf %57, %61 : vector<16x16x16xf32>
    %63 = arith.truncf %62 : vector<16x16x16xf32> to vector<16x16x16xbf16>
    "tpu.trace_start"() <{level = 10 : i32, message = "bnm,bmd->bnd"}> : () -> ()
    %cst_20 = arith.constant dense<0.000000e+00> : vector<16x16x8xf32>
    %64 = tpu.matmul %63, %51, %cst_20 {dimension_numbers = #tpu.dot_dimension_numbers<[2], [1], [1], [2], [0, 0, 0, 1, 1, 2], [0], [0]>} : vector<16x16x16xbf16>, vector<16x16x8xbf16>, vector<16x16x8xf32> -> vector<16x16x8xf32>
    "tpu.trace_stop"() : () -> ()
    %65 = vector.shape_cast %64 : vector<16x16x8xf32> to vector<256x8xf32>
    %66 = vector.extract_strided_slice %33 {offsets = [0, 8], sizes = [256, 8], strides = [1, 1]} : vector<256x128xf32> to vector<256x8xf32>
    %67 = vector.shape_cast %66 : vector<256x8xf32> to vector<16x16x8xf32>
    %68 = arith.truncf %67 : vector<16x16x8xf32> to vector<16x16x8xbf16>
    %69 = vector.extract_strided_slice %33 {offsets = [0, 40], sizes = [256, 8], strides = [1, 1]} : vector<256x128xf32> to vector<256x8xf32>
    %70 = vector.shape_cast %69 : vector<256x8xf32> to vector<16x16x8xf32>
    %71 = arith.truncf %70 : vector<16x16x8xf32> to vector<16x16x8xbf16>
    %72 = vector.extract_strided_slice %33 {offsets = [0, 72], sizes = [256, 8], strides = [1, 1]} : vector<256x128xf32> to vector<256x8xf32>
    %73 = vector.shape_cast %72 : vector<256x8xf32> to vector<16x16x8xf32>
    %74 = arith.truncf %73 : vector<16x16x8xf32> to vector<16x16x8xbf16>
    "tpu.trace_start"() <{level = 10 : i32, message = "bnd,bmd->bnm"}> : () -> ()
    %cst_21 = arith.constant dense<0.000000e+00> : vector<16x16x16xf32>
    %75 = tpu.matmul %68, %71, %cst_21 {dimension_numbers = #tpu.dot_dimension_numbers<[2], [2], [1], [1], [0, 0, 0, 1, 1, 1], [0], [0]>} : vector<16x16x8xbf16>, vector<16x16x8xbf16>, vector<16x16x16xf32> -> vector<16x16x16xf32>
    "tpu.trace_stop"() : () -> ()
    %cst_22 = arith.constant dense<0xFF800000> : vector<16x16xf32>
    %76 = vector.multi_reduction <maximumf>, %75, %cst_22 [2] : vector<16x16x16xf32> to vector<16x16xf32>
    %77 = vector.shape_cast %76 : vector<16x16xf32> to vector<16x16x1xf32>
    %78 = vector.broadcast %77 : vector<16x16x1xf32> to vector<16x16x16xf32>
    %79 = arith.subf %75, %78 : vector<16x16x16xf32>
    %80 = math.exp %79 : vector<16x16x16xf32>
    %cst_23 = arith.constant dense<0.000000e+00> : vector<16x16xf32>
    %81 = vector.multi_reduction <add>, %80, %cst_23 [2] : vector<16x16x16xf32> to vector<16x16xf32>
    %82 = vector.shape_cast %81 : vector<16x16xf32> to vector<16x16x1xf32>
    %83 = tpu.reciprocal %82 {approx = true} : vector<16x16x1xf32> -> vector<16x16x1xf32>
    %84 = vector.broadcast %83 : vector<16x16x1xf32> to vector<16x16x16xf32>
    %85 = arith.mulf %80, %84 : vector<16x16x16xf32>
    %86 = arith.truncf %85 : vector<16x16x16xf32> to vector<16x16x16xbf16>
    "tpu.trace_start"() <{level = 10 : i32, message = "bnm,bmd->bnd"}> : () -> ()
    %cst_24 = arith.constant dense<0.000000e+00> : vector<16x16x8xf32>
    %87 = tpu.matmul %86, %74, %cst_24 {dimension_numbers = #tpu.dot_dimension_numbers<[2], [1], [1], [2], [0, 0, 0, 1, 1, 2], [0], [0]>} : vector<16x16x16xbf16>, vector<16x16x8xbf16>, vector<16x16x8xf32> -> vector<16x16x8xf32>
    "tpu.trace_stop"() : () -> ()
    %88 = vector.shape_cast %87 : vector<16x16x8xf32> to vector<256x8xf32>
    %89 = vector.extract_strided_slice %33 {offsets = [0, 16], sizes = [256, 8], strides = [1, 1]} : vector<256x128xf32> to vector<256x8xf32>
    %90 = vector.shape_cast %89 : vector<256x8xf32> to vector<16x16x8xf32>
    %91 = arith.truncf %90 : vector<16x16x8xf32> to vector<16x16x8xbf16>
    %92 = vector.extract_strided_slice %33 {offsets = [0, 48], sizes = [256, 8], strides = [1, 1]} : vector<256x128xf32> to vector<256x8xf32>
    %93 = vector.shape_cast %92 : vector<256x8xf32> to vector<16x16x8xf32>
    %94 = arith.truncf %93 : vector<16x16x8xf32> to vector<16x16x8xbf16>
    %95 = vector.extract_strided_slice %33 {offsets = [0, 80], sizes = [256, 8], strides = [1, 1]} : vector<256x128xf32> to vector<256x8xf32>
    %96 = vector.shape_cast %95 : vector<256x8xf32> to vector<16x16x8xf32>
    %97 = arith.truncf %96 : vector<16x16x8xf32> to vector<16x16x8xbf16>
    "tpu.trace_start"() <{level = 10 : i32, message = "bnd,bmd->bnm"}> : () -> ()
    %cst_25 = arith.constant dense<0.000000e+00> : vector<16x16x16xf32>
    %98 = tpu.matmul %91, %94, %cst_25 {dimension_numbers = #tpu.dot_dimension_numbers<[2], [2], [1], [1], [0, 0, 0, 1, 1, 1], [0], [0]>} : vector<16x16x8xbf16>, vector<16x16x8xbf16>, vector<16x16x16xf32> -> vector<16x16x16xf32>
    "tpu.trace_stop"() : () -> ()
    %cst_26 = arith.constant dense<0xFF800000> : vector<16x16xf32>
    %99 = vector.multi_reduction <maximumf>, %98, %cst_26 [2] : vector<16x16x16xf32> to vector<16x16xf32>
    %100 = vector.shape_cast %99 : vector<16x16xf32> to vector<16x16x1xf32>
    %101 = vector.broadcast %100 : vector<16x16x1xf32> to vector<16x16x16xf32>
    %102 = arith.subf %98, %101 : vector<16x16x16xf32>
    %103 = math.exp %102 : vector<16x16x16xf32>
    %cst_27 = arith.constant dense<0.000000e+00> : vector<16x16xf32>
    %104 = vector.multi_reduction <add>, %103, %cst_27 [2] : vector<16x16x16xf32> to vector<16x16xf32>
    %105 = vector.shape_cast %104 : vector<16x16xf32> to vector<16x16x1xf32>
    %106 = tpu.reciprocal %105 {approx = true} : vector<16x16x1xf32> -> vector<16x16x1xf32>
    %107 = vector.broadcast %106 : vector<16x16x1xf32> to vector<16x16x16xf32>
    %108 = arith.mulf %103, %107 : vector<16x16x16xf32>
    %109 = arith.truncf %108 : vector<16x16x16xf32> to vector<16x16x16xbf16>
    "tpu.trace_start"() <{level = 10 : i32, message = "bnm,bmd->bnd"}> : () -> ()
    %cst_28 = arith.constant dense<0.000000e+00> : vector<16x16x8xf32>
    %110 = tpu.matmul %109, %97, %cst_28 {dimension_numbers = #tpu.dot_dimension_numbers<[2], [1], [1], [2], [0, 0, 0, 1, 1, 2], [0], [0]>} : vector<16x16x16xbf16>, vector<16x16x8xbf16>, vector<16x16x8xf32> -> vector<16x16x8xf32>
    "tpu.trace_stop"() : () -> ()
    %111 = vector.shape_cast %110 : vector<16x16x8xf32> to vector<256x8xf32>
    %112 = vector.extract_strided_slice %33 {offsets = [0, 24], sizes = [256, 8], strides = [1, 1]} : vector<256x128xf32> to vector<256x8xf32>
    %113 = vector.shape_cast %112 : vector<256x8xf32> to vector<16x16x8xf32>
    %114 = arith.truncf %113 : vector<16x16x8xf32> to vector<16x16x8xbf16>
    %115 = vector.extract_strided_slice %33 {offsets = [0, 56], sizes = [256, 8], strides = [1, 1]} : vector<256x128xf32> to vector<256x8xf32>
    %116 = vector.shape_cast %115 : vector<256x8xf32> to vector<16x16x8xf32>
    %117 = arith.truncf %116 : vector<16x16x8xf32> to vector<16x16x8xbf16>
    %118 = vector.extract_strided_slice %33 {offsets = [0, 88], sizes = [256, 8], strides = [1, 1]} : vector<256x128xf32> to vector<256x8xf32>
    %119 = vector.shape_cast %118 : vector<256x8xf32> to vector<16x16x8xf32>
    %120 = arith.truncf %119 : vector<16x16x8xf32> to vector<16x16x8xbf16>
    "tpu.trace_start"() <{level = 10 : i32, message = "bnd,bmd->bnm"}> : () -> ()
    %cst_29 = arith.constant dense<0.000000e+00> : vector<16x16x16xf32>
    %121 = tpu.matmul %114, %117, %cst_29 {dimension_numbers = #tpu.dot_dimension_numbers<[2], [2], [1], [1], [0, 0, 0, 1, 1, 1], [0], [0]>} : vector<16x16x8xbf16>, vector<16x16x8xbf16>, vector<16x16x16xf32> -> vector<16x16x16xf32>
    "tpu.trace_stop"() : () -> ()
    %cst_30 = arith.constant dense<0xFF800000> : vector<16x16xf32>
    %122 = vector.multi_reduction <maximumf>, %121, %cst_30 [2] : vector<16x16x16xf32> to vector<16x16xf32>
    %123 = vector.shape_cast %122 : vector<16x16xf32> to vector<16x16x1xf32>
    %124 = vector.broadcast %123 : vector<16x16x1xf32> to vector<16x16x16xf32>
    %125 = arith.subf %121, %124 : vector<16x16x16xf32>
    %126 = math.exp %125 : vector<16x16x16xf32>
    %cst_31 = arith.constant dense<0.000000e+00> : vector<16x16xf32>
    %127 = vector.multi_reduction <add>, %126, %cst_31 [2] : vector<16x16x16xf32> to vector<16x16xf32>
    %128 = vector.shape_cast %127 : vector<16x16xf32> to vector<16x16x1xf32>
    %129 = tpu.reciprocal %128 {approx = true} : vector<16x16x1xf32> -> vector<16x16x1xf32>
    %130 = vector.broadcast %129 : vector<16x16x1xf32> to vector<16x16x16xf32>
    %131 = arith.mulf %126, %130 : vector<16x16x16xf32>
    %132 = arith.truncf %131 : vector<16x16x16xf32> to vector<16x16x16xbf16>
    "tpu.trace_start"() <{level = 10 : i32, message = "bnm,bmd->bnd"}> : () -> ()
    %cst_32 = arith.constant dense<0.000000e+00> : vector<16x16x8xf32>
    %133 = tpu.matmul %132, %120, %cst_32 {dimension_numbers = #tpu.dot_dimension_numbers<[2], [1], [1], [2], [0, 0, 0, 1, 1, 2], [0], [0]>} : vector<16x16x16xbf16>, vector<16x16x8xbf16>, vector<16x16x8xf32> -> vector<16x16x8xf32>
    "tpu.trace_stop"() : () -> ()
    %134 = vector.shape_cast %133 : vector<16x16x8xf32> to vector<256x8xf32>
    %135 = tpu.concatenate %65, %88, %111, %134 in 1 : vector<256x8xf32>, vector<256x8xf32>, vector<256x8xf32>, vector<256x8xf32> -> vector<256x32xf32>
    %136 = arith.mulf %135, %42 : vector<256x32xf32>
    %137 = arith.truncf %136 : vector<256x32xf32> to vector<256x32xbf16>
    %c0_33 = arith.constant 0 : index
    %c0_34 = arith.constant 0 : index
    %138 = vector.load %arg6[%c0_33, %c0_34] : memref<32x128xbf16, #tpu.memory_space<vmem>>, vector<32x128xbf16>
    %cst_35 = arith.constant dense<0.000000e+00> : vector<256x128xf32>
    %139 = tpu.matmul %137, %138, %cst_35 {dimension_numbers = #tpu.dot_dimension_numbers<[1], [0], [0], [1], [0, 0, 1, 1], [], []>} : vector<256x32xbf16>, vector<32x128xbf16>, vector<256x128xf32> -> vector<256x128xf32>
    %c0_36 = arith.constant 0 : index
    %c0_37 = arith.constant 0 : index
    %140 = vector.load %arg7[%c0_36, %c0_37] : memref<1x128xf32, #tpu.memory_space<vmem>>, vector<1x128xf32>
    %141 = vector.broadcast %140 : vector<1x128xf32> to vector<256x128xf32>
    %142 = arith.addf %139, %141 : vector<256x128xf32>
    %143 = vector.shape_cast %142 : vector<256x128xf32> to vector<16x16x128xf32>
    %c0_38 = arith.constant 0 : index
    %c0_39 = arith.constant 0 : index
    %c0_40 = arith.constant 0 : index
    %144 = vector.load %arg8[%c0_38, %c0_39, %c0_40] : memref<16x16x128xf32, #tpu.memory_space<vmem>>, vector<16x16x128xf32>
    tpu.vector_store %arg8[%c0_38, %c0_39, %c0_40], %143 {strides = array<i32>} : memref<16x16x128xf32, #tpu.memory_space<vmem>>, vector<16x16x128xf32>,
    return
  }
  func.func @transform_0(%arg0: i32) -> (i32, i32, i32) {
    %c0_i32 = arith.constant 0 : i32
    %c0_i32_0 = arith.constant 0 : i32
    %c0_i32_1 = arith.constant 0 : i32
    return %arg0, %c0_i32, %c0_i32_0 : i32, i32, i32
  }
  func.func @transform_1(%arg0: i32) -> (i32, i32) {
    %c0_i32 = arith.constant 0 : i32
    %c0_i32_0 = arith.constant 0 : i32
    %c0_i32_1 = arith.constant 0 : i32
    return %c0_i32, %c0_i32_0 : i32, i32
  }
  func.func @transform_2(%arg0: i32) -> (i32, i32) {
    %c0_i32 = arith.constant 0 : i32
    %c0_i32_0 = arith.constant 0 : i32
    %c0_i32_1 = arith.constant 0 : i32
    return %c0_i32, %c0_i32_0 : i32, i32
  }
  func.func @transform_3(%arg0: i32) -> (i32, i32) {
    %c0_i32 = arith.constant 0 : i32
    %c0_i32_0 = arith.constant 0 : i32
    %c0_i32_1 = arith.constant 0 : i32
    return %c0_i32, %c0_i32_0 : i32, i32
  }
  func.func @transform_4(%arg0: i32) -> (i32, i32) {
    %c0_i32 = arith.constant 0 : i32
    %c0_i32_0 = arith.constant 0 : i32
    %c0_i32_1 = arith.constant 0 : i32
    return %c0_i32, %c0_i32_0 : i32, i32
  }
  func.func @transform_5(%arg0: i32) -> (i32, i32) {
    %c0_i32 = arith.constant 0 : i32
    %c0_i32_0 = arith.constant 0 : i32
    %c0_i32_1 = arith.constant 0 : i32
    return %c0_i32, %c0_i32_0 : i32, i32
  }
  func.func @transform_6(%arg0: i32) -> (i32, i32) {
    %c0_i32 = arith.constant 0 : i32
    %c0_i32_0 = arith.constant 0 : i32
    %c0_i32_1 = arith.constant 0 : i32
    return %c0_i32, %c0_i32_0 : i32, i32
  }
  func.func @transform_7(%arg0: i32) -> (i32, i32, i32) {
    %c0_i32 = arith.constant 0 : i32
    %c0_i32_0 = arith.constant 0 : i32
    %c0_i32_1 = arith.constant 0 : i32
    return %arg0, %c0_i32, %c0_i32_0 : i32, i32, i32
  }
}

</mosaic_0001>

<llo_original>
// kernel: axial_attention_pallas.1
$region0: #{axial_attention_pallas.1}
  #allocation0 [shape = 'u32[]', space=smem, size = 0x4, offset = 0x4, fixed_abs, tag = 'smem constant byte address 0x4 - core index']
  #allocation1 [shape = 'u32[144,128]{1,0:T(1,128)}', space=vmem, size = 0x12000, scoped, tag = 'internal scratch']
  %s0 = inlined_call_operand.vmem [shape: f32[32,16,128], index: 0, kind: input, shape index: {}]
  %s1 = inlined_call_operand.vmem [shape: f32[1,128], index: 1, kind: input, shape index: {}]
  %s2 = inlined_call_operand.vmem [shape: f32[1,128], index: 2, kind: input, shape index: {}]
  %s3 = inlined_call_operand.vmem [shape: bf16[128,128], index: 3, kind: input, shape index: {}]
  %s4 = inlined_call_operand.vmem [shape: f32[1,32], index: 4, kind: input, shape index: {}]
  %s5 = inlined_call_operand.vmem [shape: bf16[32,128], index: 5, kind: input, shape index: {}]
  %s6 = inlined_call_operand.vmem [shape: f32[1,128], index: 6, kind: input, shape index: {}]
  %s7 = inlined_call_operand.hbm [shape: f32[32,16,128], index: 7, kind: output, shape index: {}]
  %s8 = sld [smem:[#allocation0]]
  $region61: #{axial_attention_pallas.1} parent=0
    _
  %s10 = ssub.s32 1, %s8
  %s11 = scalar_select 0, %s10, %s8
  $region1: #{axial_attention_pallas.1} parent=0
    #allocation2 [shape = 'u8[262144]{0}', space=vmem, size = 0x40000, scoped, tag = 'output window, operand 0']
    #allocation3 [shape = 's32[2]{0}', space=sflag, size = 0x8, scoped, tag = 'scoped memory for axial_attention_pallas.1']
    %12 = vsyncpa [#allocation3], 0
    %s13 = scalar_lea.sflag [#allocation3], 1
    %14 = vsyncpa %s13, 0
    loop: start=0, step=1, limit=4
    $region2: #{axial_attention_pallas.1} parent=1 // loop_pre_header
      _
    $region3: #{axial_attention_pallas.1} parent=1 // loop_header
      %s16 = sphi 0, %s20
      %p17 = scmp.ge.s32.totalorder %s16, 4
      %s26 = sphi 0, %s28
      %s29 = sphi 0, %s26
      %s30 = sphi 0, %s29
      %s46 = sphi 0, %s30
      %s50 = sphi 0, %s50
      %s52 = sphi 0, %s50
      %s53 = sphi 0, %s52
      %s67 = sphi 0, %s53
      %s71 = sphi 0, %s71
      %s73 = sphi 0, %s71
      %s74 = sphi 0, %s73
      %s88 = sphi 0, %s74
      %s92 = sphi 0, %s92
      %s94 = sphi 0, %s92
      %s95 = sphi 0, %s94
      %s109 = sphi 0, %s95
      %s113 = sphi 0, %s113
      %s115 = sphi 0, %s113
      %s116 = sphi 0, %s115
      %s130 = sphi 0, %s116
      %s134 = sphi 0, %s134
      %s136 = sphi 0, %s134
      %s137 = sphi 0, %s136
      %s151 = sphi 0, %s137
      %s155 = sphi 0, %s155
      %s157 = sphi 0, %s155
      %s158 = sphi 0, %s157
      %s172 = sphi 0, %s158
      %s178 = sphi 0, %s180
      %s181 = sphi 0, %s178
      %s182 = sphi 0, %s181
      %s198 = sphi 0, %s182
    $region4: #{axial_attention_pallas.1} parent=1 // loop_header_branch
      %19 = sbr.rel (%p17) target = $region8
    $region5: #{axial_attention_pallas.1} parent=1 // loop_body
      %s21 = ssub.s32 %s16, 1
      %s22 = ssub.s32 %s16, 2
      %s23 = sadd.s32 %s16, 1
      %s24 = ssub.s32 %s16, %s23
      %p25 = scmp.eq.s32.totalorder %s24, 0
      %s27 = sadd.s32 %s26, 1
      %s28 = scalar_select %p25, %s26, %s27
      %p31 = pneg %p25
      %p32 = scmp.eq.s32.totalorder %s16, 1
      %p33 = por %p31, %p32
      %p34 = scmp.ne.s32.totalorder %s26, %s29
      %p35 = scmp.eq.s32.totalorder %s16, 0
      %p36 = por %p34, %p35
      %p37 = scmp.ne.s32.totalorder %s26, %s29
      %p38 = scmp.eq.s32.totalorder %s21, 1
      %p39 = por %p37, %p38
      %p40 = scmp.ne.s32.totalorder %s29, %s30
      %p41 = scmp.eq.s32.totalorder %s21, 0
      %p42 = por %p40, %p41
      %p43 = scmp.ne.s32.totalorder %s29, %s30
      %p44 = scmp.eq.s32.totalorder %s22, 1
      %p45 = por %p43, %p44
      %p47 = scmp.ne.s32.totalorder %s30, %s46
      %p48 = scmp.eq.s32.totalorder %s22, 0
      %p49 = por %p47, %p48
      %s51 = sadd.s32 %s50, 1
      %p54 = scmp.eq.s32.totalorder %s16, 1
      %p55 = scmp.ne.s32.totalorder %s50, %s52
      %p56 = scmp.eq.s32.totalorder %s16, 0
      %p57 = por %p55, %p56
      %p58 = scmp.ne.s32.totalorder %s50, %s52
      %p59 = scmp.eq.s32.totalorder %s21, 1
      %p60 = por %p58, %p59
      %p61 = scmp.ne.s32.totalorder %s52, %s53
      %p62 = scmp.eq.s32.totalorder %s21, 0
      %p63 = por %p61, %p62
      %p64 = scmp.ne.s32.totalorder %s52, %s53
      %p65 = scmp.eq.s32.totalorder %s22, 1
      %p66 = por %p64, %p65
      %p68 = scmp.ne.s32.totalorder %s53, %s67
      %p69 = scmp.eq.s32.totalorder %s22, 0
      %p70 = por %p68, %p69
      %s72 = sadd.s32 %s71, 1
      %p75 = scmp.eq.s32.totalorder %s16, 1
      %p76 = scmp.ne.s32.totalorder %s71, %s73
      %p77 = scmp.eq.s32.totalorder %s16, 0
      %p78 = por %p76, %p77
      %p79 = scmp.ne.s32.totalorder %s71, %s73
      %p80 = scmp.eq.s32.totalorder %s21, 1
      %p81 = por %p79, %p80
      %p82 = scmp.ne.s32.totalorder %s73, %s74
      %p83 = scmp.eq.s32.totalorder %s21, 0
      %p84 = por %p82, %p83
      %p85 = scmp.ne.s32.totalorder %s73, %s74
      %p86 = scmp.eq.s32.totalorder %s22, 1
      %p87 = por %p85, %p86
      %p89 = scmp.ne.s32.totalorder %s74, %s88
      %p90 = scmp.eq.s32.totalorder %s22, 0
      %p91 = por %p89, %p90
      %s93 = sadd.s32 %s92, 1
      %p96 = scmp.eq.s32.totalorder %s16, 1
      %p97 = scmp.ne.s32.totalorder %s92, %s94
      %p98 = scmp.eq.s32.totalorder %s16, 0
      %p99 = por %p97, %p98
      %p100 = scmp.ne.s32.totalorder %s92, %s94
      %p101 = scmp.eq.s32.totalorder %s21, 1
      %p102 = por %p100, %p101
      %p103 = scmp.ne.s32.totalorder %s94, %s95
      %p104 = scmp.eq.s32.totalorder %s21, 0
      %p105 = por %p103, %p104
      %p106 = scmp.ne.s32.totalorder %s94, %s95
      %p107 = scmp.eq.s32.totalorder %s22, 1
      %p108 = por %p106, %p107
      %p110 = scmp.ne.s32.totalorder %s95, %s109
      %p111 = scmp.eq.s32.totalorder %s22, 0
      %p112 = por %p110, %p111
      %s114 = sadd.s32 %s113, 1
      %p117 = scmp.eq.s32.totalorder %s16, 1
      %p118 = scmp.ne.s32.totalorder %s113, %s115
      %p119 = scmp.eq.s32.totalorder %s16, 0
      %p120 = por %p118, %p119
      %p121 = scmp.ne.s32.totalorder %s113, %s115
      %p122 = scmp.eq.s32.totalorder %s21, 1
      %p123 = por %p121, %p122
      %p124 = scmp.ne.s32.totalorder %s115, %s116
      %p125 = scmp.eq.s32.totalorder %s21, 0
      %p126 = por %p124, %p125
      %p127 = scmp.ne.s32.totalorder %s115, %s116
      %p128 = scmp.eq.s32.totalorder %s22, 1
      %p129 = por %p127, %p128
      %p131 = scmp.ne.s32.totalorder %s116, %s130
      %p132 = scmp.eq.s32.totalorder %s22, 0
      %p133 = por %p131, %p132
      %s135 = sadd.s32 %s134, 1
      %p138 = scmp.eq.s32.totalorder %s16, 1
      %p139 = scmp.ne.s32.totalorder %s134, %s136
      %p140 = scmp.eq.s32.totalorder %s16, 0
      %p141 = por %p139, %p140
      %p142 = scmp.ne.s32.totalorder %s134, %s136
      %p143 = scmp.eq.s32.totalorder %s21, 1
      %p144 = por %p142, %p143
      %p145 = scmp.ne.s32.totalorder %s136, %s137
      %p146 = scmp.eq.s32.totalorder %s21, 0
      %p147 = por %p145, %p146
      %p148 = scmp.ne.s32.totalorder %s136, %s137
      %p149 = scmp.eq.s32.totalorder %s22, 1
      %p150 = por %p148, %p149
      %p152 = scmp.ne.s32.totalorder %s137, %s151
      %p153 = scmp.eq.s32.totalorder %s22, 0
      %p154 = por %p152, %p153
      %s156 = sadd.s32 %s155, 1
      %p159 = scmp.eq.s32.totalorder %s16, 1
      %p160 = scmp.ne.s32.totalorder %s155, %s157
      %p161 = scmp.eq.s32.totalorder %s16, 0
      %p162 = por %p160, %p161
      %p163 = scmp.ne.s32.totalorder %s155, %s157
      %p164 = scmp.eq.s32.totalorder %s21, 1
      %p165 = por %p163, %p164
      %p166 = scmp.ne.s32.totalorder %s157, %s158
      %p167 = scmp.eq.s32.totalorder %s21, 0
      %p168 = por %p166, %p167
      %p169 = scmp.ne.s32.totalorder %s157, %s158
      %p170 = scmp.eq.s32.totalorder %s22, 1
      %p171 = por %p169, %p170
      %p173 = scmp.ne.s32.totalorder %s158, %s172
      %p174 = scmp.eq.s32.totalorder %s22, 0
      %p175 = por %p173, %p174
      %s176 = ssub.s32 %s16, %s23
      %p177 = scmp.eq.s32.totalorder %s176, 0
      %s179 = sadd.s32 %s178, 1
      %s180 = scalar_select %p177, %s178, %s179
      %p183 = pneg %p177
      %p184 = scmp.eq.s32.totalorder %s16, 1
      %p185 = por %p183, %p184
      %p186 = scmp.ne.s32.totalorder %s178, %s181
      %p187 = scmp.eq.s32.totalorder %s16, 0
      %p188 = por %p186, %p187
      %p189 = scmp.ne.s32.totalorder %s178, %s181
      %p190 = scmp.eq.s32.totalorder %s21, 1
      %p191 = por %p189, %p190
      %p192 = scmp.ne.s32.totalorder %s181, %s182
      %p193 = scmp.eq.s32.totalorder %s21, 0
      %p194 = por %p192, %p193
      %p195 = scmp.ne.s32.totalorder %s181, %s182
      %p196 = scmp.eq.s32.totalorder %s22, 1
      %p197 = por %p195, %p196
      %p199 = scmp.ne.s32.totalorder %s182, %s198
      %p200 = scmp.eq.s32.totalorder %s22, 0
      %p201 = por %p199, %p200
      %p202 = scmp.le.s32.totalorder 1, %s16
      %p203 = scmp.lt.s32.totalorder %s16, 3
      %p204 = pnand %p202, %p203
      %p205 = pneg %p204
      // Predicated region
      $region9: #{axial_attention_pallas.1} parent=5 // pred_check
        _
      $region10: #{axial_attention_pallas.1} parent=5 // pred_check_branch
        %207 = sbr.rel (%p204) target = $region12
      $region11: #{axial_attention_pallas.1} parent=5 // pred_region
        %s208 = ssub.s32 %s16, 1
        // Predicated region
        $region13: #{axial_attention_pallas.1} parent=11 // pred_check
          %p209 = pneg %p63
        $region14: #{axial_attention_pallas.1} parent=11 // pred_check_branch
          %211 = sbr.rel (%p209) target = $region16
        $region15: #{axial_attention_pallas.1} parent=11 // pred_region
          _
        $region16: #{axial_attention_pallas.1} parent=11 // pred_fallthru
          _
        // Predicated region
        $region17: #{axial_attention_pallas.1} parent=11 // pred_check
          %p212 = pneg %p84
        $region18: #{axial_attention_pallas.1} parent=11 // pred_check_branch
          %214 = sbr.rel (%p212) target = $region20
        $region19: #{axial_attention_pallas.1} parent=11 // pred_region
          _
        $region20: #{axial_attention_pallas.1} parent=11 // pred_fallthru
          _
        // Predicated region
        $region21: #{axial_attention_pallas.1} parent=11 // pred_check
          %p215 = pneg %p105
        $region22: #{axial_attention_pallas.1} parent=11 // pred_check_branch
          %217 = sbr.rel (%p215) target = $region24
        $region23: #{axial_attention_pallas.1} parent=11 // pred_region
          _
        $region24: #{axial_attention_pallas.1} parent=11 // pred_fallthru
          _
        // Predicated region
        $region25: #{axial_attention_pallas.1} parent=11 // pred_check
          %p218 = pneg %p126
        $region26: #{axial_attention_pallas.1} parent=11 // pred_check_branch
          %220 = sbr.rel (%p218) target = $region28
        $region27: #{axial_attention_pallas.1} parent=11 // pred_region
          _
        $region28: #{axial_attention_pallas.1} parent=11 // pred_fallthru
          _
        // Predicated region
        $region29: #{axial_attention_pallas.1} parent=11 // pred_check
          %p221 = pneg %p147
        $region30: #{axial_attention_pallas.1} parent=11 // pred_check_branch
          %223 = sbr.rel (%p221) target = $region32
        $region31: #{axial_attention_pallas.1} parent=11 // pred_region
          _
        $region32: #{axial_attention_pallas.1} parent=11 // pred_fallthru
          _
        // Predicated region
        $region33: #{axial_attention_pallas.1} parent=11 // pred_check
          %p224 = pneg %p168
        $region34: #{axial_attention_pallas.1} parent=11 // pred_check_branch
          %226 = sbr.rel (%p224) target = $region36
        $region35: #{axial_attention_pallas.1} parent=11 // pred_region
          _
        $region36: #{axial_attention_pallas.1} parent=11 // pred_fallthru
          _
      $region12: #{axial_attention_pallas.1} parent=5 // pred_fallthru
        _
      %p227 = scmp.lt.s32.totalorder %s16, 2
      // Predicated region
      $region37: #{axial_attention_pallas.1} parent=5 // pred_check
        %p228 = pneg %p227
      $region38: #{axial_attention_pallas.1} parent=5 // pred_check_branch
        %230 = sbr.rel (%p228) target = $region40
      $region39: #{axial_attention_pallas.1} parent=5 // pred_region
        // Predicated region
        $region41: #{axial_attention_pallas.1} parent=39 // pred_check
          %p231 = pneg %p36
        $region42: #{axial_attention_pallas.1} parent=39 // pred_check_branch
          %233 = sbr.rel (%p231) target = $region44
        $region43: #{axial_attention_pallas.1} parent=39 // pred_region
          %s234 = smul.u32 16, %s16
          %p235 = scmp.lt.s32.totalorder %s234, 31
          %s236 = scalar_select %p235, %s234, 31
          %s237 = smul.addr %s236, 2
          %s238 = smul.addr %s237, 8
          %s239 = scalar_lea.vmem %s0, %s238
          %s240 = smul.u32 16, %s16
        $region44: #{axial_attention_pallas.1} parent=39 // pred_fallthru
          _
      $region40: #{axial_attention_pallas.1} parent=5 // pred_fallthru
        _
      %p241 = scmp.le.s32.totalorder 1, %s16
      %p242 = scmp.lt.s32.totalorder %s16, 3
      %p243 = pnand %p241, %p242
      %p244 = pneg %p243
      // Predicated region
      $region45: #{axial_attention_pallas.1} parent=5 // pred_check
        _
      $region46: #{axial_attention_pallas.1} parent=5 // pred_check_branch
        %246 = sbr.rel (%p243) target = $region48
      $region47: #{axial_attention_pallas.1} parent=5 // pred_region
        %s247 = ssub.s32 %s16, 1
        %s248 = smul.u32 16, %s21
        %p249 = scmp.lt.s32.totalorder %s248, 31
        %s250 = scalar_select %p249, %s248, 31
        %s251 = smul.addr %s250, 2
        %s252 = smul.addr %s251, 8
        %s253 = scalar_lea.vmem %s0, %s252
        %p254 = pneg %p42
        %p255 = pneg %p39
        %p256 = pneg %p63
        %p257 = pneg %p60
        %p258 = pneg %p84
        %p259 = pneg %p81
        %p260 = pneg %p105
        %p261 = pneg %p102
        %p262 = pneg %p126
        %p263 = pneg %p123
        %p264 = pneg %p147
        %p265 = pneg %p144
        %p266 = pneg %p168
        %p267 = pneg %p165
        %p268 = pneg %p194
        %p269 = pneg %p191
        %s270 = sand.u32 %s181, 1
        %s271 = scalar_lea.sflag [#allocation3], %s270
        %s272 = sand.u32 %s181, 1
        %s273 = smul.addr %s272, 256
        %s274 = scalar_lea.vmem [#allocation2], %s273
        %s275 = smul.u32 16, %s21
        %p276 = scmp.lt.s32.totalorder %s275, 31
        %s277 = scalar_select %p276, %s275, 31
        %s278 = smul.addr %s277, 2
        %s279 = smul.addr %s278, 8
        %s280 = scalar_lea.vmem %s0, %s279
        %s281 = smul.u32 16, %s21
        %s282 = smul.u32 16, %s21
        %v284 = vld [vmem:[%s280] sm:$0xff]
        %v285 = vld [vmem:[%s280 + $0x8] sm:$0xff]
        %v286 = vld [vmem:[%s280 + $0x10] sm:$0xff]
        %v287 = vld [vmem:[%s280 + $0x18] sm:$0xff]
        %v288 = vld [vmem:[%s280 + $0x20] sm:$0xff]
        %v289 = vld [vmem:[%s280 + $0x28] sm:$0xff]
        %v290 = vld [vmem:[%s280 + $0x30] sm:$0xff]
        %v291 = vld [vmem:[%s280 + $0x38] sm:$0xff]
        %v292 = vld [vmem:[%s280 + $0x40] sm:$0xff]
        %v293 = vld [vmem:[%s280 + $0x48] sm:$0xff]
        %v294 = vld [vmem:[%s280 + $0x50] sm:$0xff]
        %v295 = vld [vmem:[%s280 + $0x58] sm:$0xff]
        %v296 = vld [vmem:[%s280 + $0x60] sm:$0xff]
        %v297 = vld [vmem:[%s280 + $0x68] sm:$0xff]
        %v298 = vld [vmem:[%s280 + $0x70] sm:$0xff]
        %v299 = vld [vmem:[%s280 + $0x78] sm:$0xff]
        %v300 = vld [vmem:[%s280 + $0x80] sm:$0xff]
        %v301 = vld [vmem:[%s280 + $0x88] sm:$0xff]
        %v302 = vld [vmem:[%s280 + $0x90] sm:$0xff]
        %v303 = vld [vmem:[%s280 + $0x98] sm:$0xff]
        %v304 = vld [vmem:[%s280 + $0xa0] sm:$0xff]
        %v305 = vld [vmem:[%s280 + $0xa8] sm:$0xff]
        %v306 = vld [vmem:[%s280 + $0xb0] sm:$0xff]
        %v307 = vld [vmem:[%s280 + $0xb8] sm:$0xff]
        %v308 = vld [vmem:[%s280 + $0xc0] sm:$0xff]
        %v309 = vld [vmem:[%s280 + $0xc8] sm:$0xff]
        %v310 = vld [vmem:[%s280 + $0xd0] sm:$0xff]
        %v311 = vld [vmem:[%s280 + $0xd8] sm:$0xff]
        %v312 = vld [vmem:[%s280 + $0xe0] sm:$0xff]
        %v313 = vld [vmem:[%s280 + $0xe8] sm:$0xff]
        %v314 = vld [vmem:[%s280 + $0xf0] sm:$0xff]
        %v315 = vld [vmem:[%s280 + $0xf8] sm:$0xff]
        %316 = vadd.xlane.f32.xlu0 %v284
        %v317 = vpop.xlane.xlu0 %316
        %318 = vadd.xlane.f32.xlu0 %v285
        %v319 = vpop.xlane.xlu0 %318
        %320 = vadd.xlane.f32.xlu0 %v286
        %v321 = vpop.xlane.xlu0 %320
        %322 = vadd.xlane.f32.xlu0 %v287
        %v323 = vpop.xlane.xlu0 %322
        %324 = vadd.xlane.f32.xlu0 %v288
        %v325 = vpop.xlane.xlu0 %324
        %326 = vadd.xlane.f32.xlu0 %v289
        %v327 = vpop.xlane.xlu0 %326
        %328 = vadd.xlane.f32.xlu0 %v290
        %v329 = vpop.xlane.xlu0 %328
        %330 = vadd.xlane.f32.xlu0 %v291
        %v331 = vpop.xlane.xlu0 %330
        %332 = vadd.xlane.f32.xlu0 %v292
        %v333 = vpop.xlane.xlu0 %332
        %334 = vadd.xlane.f32.xlu0 %v293
        %v335 = vpop.xlane.xlu0 %334
        %336 = vadd.xlane.f32.xlu0 %v294
        %v337 = vpop.xlane.xlu0 %336
        %338 = vadd.xlane.f32.xlu0 %v295
        %v339 = vpop.xlane.xlu0 %338
        %340 = vadd.xlane.f32.xlu0 %v296
        %v341 = vpop.xlane.xlu0 %340
        %342 = vadd.xlane.f32.xlu0 %v297
        %v343 = vpop.xlane.xlu0 %342
        %344 = vadd.xlane.f32.xlu0 %v298
        %v345 = vpop.xlane.xlu0 %344
        %346 = vadd.xlane.f32.xlu0 %v299
        %v347 = vpop.xlane.xlu0 %346
        %348 = vadd.xlane.f32.xlu0 %v300
        %v349 = vpop.xlane.xlu0 %348
        %350 = vadd.xlane.f32.xlu0 %v301
        %v351 = vpop.xlane.xlu0 %350
        %352 = vadd.xlane.f32.xlu0 %v302
        %v353 = vpop.xlane.xlu0 %352
        %354 = vadd.xlane.f32.xlu0 %v303
        %v355 = vpop.xlane.xlu0 %354
        %356 = vadd.xlane.f32.xlu0 %v304
        %v357 = vpop.xlane.xlu0 %356
        %358 = vadd.xlane.f32.xlu0 %v305
        %v359 = vpop.xlane.xlu0 %358
        %360 = vadd.xlane.f32.xlu0 %v306
        %v361 = vpop.xlane.xlu0 %360
        %362 = vadd.xlane.f32.xlu0 %v307
        %v363 = vpop.xlane.xlu0 %362
        %364 = vadd.xlane.f32.xlu0 %v308
        %v365 = vpop.xlane.xlu0 %364
        %366 = vadd.xlane.f32.xlu0 %v309
        %v367 = vpop.xlane.xlu0 %366
        %368 = vadd.xlane.f32.xlu0 %v310
        %v369 = vpop.xlane.xlu0 %368
        %370 = vadd.xlane.f32.xlu0 %v311
        %v371 = vpop.xlane.xlu0 %370
        %372 = vadd.xlane.f32.xlu0 %v312
        %v373 = vpop.xlane.xlu0 %372
        %374 = vadd.xlane.f32.xlu0 %v313
        %v375 = vpop.xlane.xlu0 %374
        %376 = vadd.xlane.f32.xlu0 %v314
        %v377 = vpop.xlane.xlu0 %376
        %378 = vadd.xlane.f32.xlu0 %v315
        %v379 = vpop.xlane.xlu0 %378
        %v380 = vmul.f32 %v317, 0.03125
        %v381 = vmul.f32 %v319, 0.03125
        %v382 = vmul.f32 %v321, 0.03125
        %v383 = vmul.f32 %v323, 0.03125
        %v384 = vmul.f32 %v325, 0.03125
        %v385 = vmul.f32 %v327, 0.03125
        %v386 = vmul.f32 %v329, 0.03125
        %v387 = vmul.f32 %v331, 0.03125
        %v388 = vmul.f32 %v333, 0.03125
        %v389 = vmul.f32 %v335, 0.03125
        %v390 = vmul.f32 %v337, 0.03125
        %v391 = vmul.f32 %v339, 0.03125
        %v392 = vmul.f32 %v341, 0.03125
        %v393 = vmul.f32 %v343, 0.03125
        %v394 = vmul.f32 %v345, 0.03125
        %v395 = vmul.f32 %v347, 0.03125
        %v396 = vmul.f32 %v349, 0.03125
        %v397 = vmul.f32 %v351, 0.03125
        %v398 = vmul.f32 %v353, 0.03125
        %v399 = vmul.f32 %v355, 0.03125
        %v400 = vmul.f32 %v357, 0.03125
        %v401 = vmul.f32 %v359, 0.03125
        %v402 = vmul.f32 %v361, 0.03125
        %v403 = vmul.f32 %v363, 0.03125
        %v404 = vmul.f32 %v365, 0.03125
        %v405 = vmul.f32 %v367, 0.03125
        %v406 = vmul.f32 %v369, 0.03125
        %v407 = vmul.f32 %v371, 0.03125
        %v408 = vmul.f32 %v373, 0.03125
        %v409 = vmul.f32 %v375, 0.03125
        %v410 = vmul.f32 %v377, 0.03125
        %v411 = vmul.f32 %v379, 0.03125
        %v412 = vsub.f32 %v284, %v380
        %v413 = vsub.f32 %v285, %v381
        %v414 = vsub.f32 %v286, %v382
        %v415 = vsub.f32 %v287, %v383
        %v416 = vsub.f32 %v288, %v384
        %v417 = vsub.f32 %v289, %v385
        %v418 = vsub.f32 %v290, %v386
        %v419 = vsub.f32 %v291, %v387
        %v420 = vsub.f32 %v292, %v388
        %v421 = vsub.f32 %v293, %v389
        %v422 = vsub.f32 %v294, %v390
        %v423 = vsub.f32 %v295, %v391
        %v424 = vsub.f32 %v296, %v392
        %v425 = vsub.f32 %v297, %v393
        %v426 = vsub.f32 %v298, %v394
        %v427 = vsub.f32 %v299, %v395
        %v428 = vsub.f32 %v300, %v396
        %v429 = vsub.f32 %v301, %v397
        %v430 = vsub.f32 %v302, %v398
        %v431 = vsub.f32 %v303, %v399
        %v432 = vsub.f32 %v304, %v400
        %v433 = vsub.f32 %v305, %v401
        %v434 = vsub.f32 %v306, %v402
        %v435 = vsub.f32 %v307, %v403
        %v436 = vsub.f32 %v308, %v404
        %v437 = vsub.f32 %v309, %v405
        %v438 = vsub.f32 %v310, %v406
        %v439 = vsub.f32 %v311, %v407
        %v440 = vsub.f32 %v312, %v408
        %v441 = vsub.f32 %v313, %v409
        %v442 = vsub.f32 %v314, %v410
        %v443 = vsub.f32 %v315, %v411
        %v444 = vlaneseq
        %v445 = vand.u32 %v444, 127
        %vm446 = vcmp.lt.s32.totalorder %v445, 32
        %v447 = vsel %vm446, 1, 0
        %vm448 = vcmp.eq.s32.totalorder %v447, 1
        %v449 = vsel %vm448, %v412, 0.0
        %v450 = vsel %vm448, %v413, 0.0
        %v451 = vsel %vm448, %v414, 0.0
        %v452 = vsel %vm448, %v415, 0.0
        %v453 = vsel %vm448, %v416, 0.0
        %v454 = vsel %vm448, %v417, 0.0
        %v455 = vsel %vm448, %v418, 0.0
        %v456 = vsel %vm448, %v419, 0.0
        %v457 = vsel %vm448, %v420, 0.0
        %v458 = vsel %vm448, %v421, 0.0
        %v459 = vsel %vm448, %v422, 0.0
        %v460 = vsel %vm448, %v423, 0.0
        %v461 = vsel %vm448, %v424, 0.0
        %v462 = vsel %vm448, %v425, 0.0
        %v463 = vsel %vm448, %v426, 0.0
        %v464 = vsel %vm448, %v427, 0.0
        %v465 = vsel %vm448, %v428, 0.0
        %v466 = vsel %vm448, %v429, 0.0
        %v467 = vsel %vm448, %v430, 0.0
        %v468 = vsel %vm448, %v431, 0.0
        %v469 = vsel %vm448, %v432, 0.0
        %v470 = vsel %vm448, %v433, 0.0
        %v471 = vsel %vm448, %v434, 0.0
        %v472 = vsel %vm448, %v435, 0.0
        %v473 = vsel %vm448, %v436, 0.0
        %v474 = vsel %vm448, %v437, 0.0
        %v475 = vsel %vm448, %v438, 0.0
        %v476 = vsel %vm448, %v439, 0.0
        %v477 = vsel %vm448, %v440, 0.0
        %v478 = vsel %vm448, %v441, 0.0
        %v479 = vsel %vm448, %v442, 0.0
        %v480 = vsel %vm448, %v443, 0.0
        %v481 = vmul.f32 %v449, %v449
        %v482 = vmul.f32 %v450, %v450
        %v483 = vmul.f32 %v451, %v451
        %v484 = vmul.f32 %v452, %v452
        %v485 = vmul.f32 %v453, %v453
        %v486 = vmul.f32 %v454, %v454
        %v487 = vmul.f32 %v455, %v455
        %v488 = vmul.f32 %v456, %v456
        %v489 = vmul.f32 %v457, %v457
        %v490 = vmul.f32 %v458, %v458
        %v491 = vmul.f32 %v459, %v459
        %v492 = vmul.f32 %v460, %v460
        %v493 = vmul.f32 %v461, %v461
        %v494 = vmul.f32 %v462, %v462
        %v495 = vmul.f32 %v463, %v463
        %v496 = vmul.f32 %v464, %v464
        %v497 = vmul.f32 %v465, %v465
        %v498 = vmul.f32 %v466, %v466
        %v499 = vmul.f32 %v467, %v467
        %v500 = vmul.f32 %v468, %v468
        %v501 = vmul.f32 %v469, %v469
        %v502 = vmul.f32 %v470, %v470
        %v503 = vmul.f32 %v471, %v471
        %v504 = vmul.f32 %v472, %v472
        %v505 = vmul.f32 %v473, %v473
        %v506 = vmul.f32 %v474, %v474
        %v507 = vmul.f32 %v475, %v475
        %v508 = vmul.f32 %v476, %v476
        %v509 = vmul.f32 %v477, %v477
        %v510 = vmul.f32 %v478, %v478
        %v511 = vmul.f32 %v479, %v479
        %v512 = vmul.f32 %v480, %v480
        %513 = vadd.xlane.f32.xlu0 %v481
        %v514 = vpop.xlane.xlu0 %513
        %515 = vadd.xlane.f32.xlu0 %v482
        %v516 = vpop.xlane.xlu0 %515
        %517 = vadd.xlane.f32.xlu0 %v483
        %v518 = vpop.xlane.xlu0 %517
        %519 = vadd.xlane.f32.xlu0 %v484
        %v520 = vpop.xlane.xlu0 %519
        %521 = vadd.xlane.f32.xlu0 %v485
        %v522 = vpop.xlane.xlu0 %521
        %523 = vadd.xlane.f32.xlu0 %v486
        %v524 = vpop.xlane.xlu0 %523
        %525 = vadd.xlane.f32.xlu0 %v487
        %v526 = vpop.xlane.xlu0 %525
        %527 = vadd.xlane.f32.xlu0 %v488
        %v528 = vpop.xlane.xlu0 %527
        %529 = vadd.xlane.f32.xlu0 %v489
        %v530 = vpop.xlane.xlu0 %529
        %531 = vadd.xlane.f32.xlu0 %v490
        %v532 = vpop.xlane.xlu0 %531
        %533 = vadd.xlane.f32.xlu0 %v491
        %v534 = vpop.xlane.xlu0 %533
        %535 = vadd.xlane.f32.xlu0 %v492
        %v536 = vpop.xlane.xlu0 %535
        %537 = vadd.xlane.f32.xlu0 %v493
        %v538 = vpop.xlane.xlu0 %537
        %539 = vadd.xlane.f32.xlu0 %v494
        %v540 = vpop.xlane.xlu0 %539
        %541 = vadd.xlane.f32.xlu0 %v495
        %v542 = vpop.xlane.xlu0 %541
        %543 = vadd.xlane.f32.xlu0 %v496
        %v544 = vpop.xlane.xlu0 %543
        %545 = vadd.xlane.f32.xlu0 %v497
        %v546 = vpop.xlane.xlu0 %545
        %547 = vadd.xlane.f32.xlu0 %v498
        %v548 = vpop.xlane.xlu0 %547
        %549 = vadd.xlane.f32.xlu0 %v499
        %v550 = vpop.xlane.xlu0 %549
        %551 = vadd.xlane.f32.xlu0 %v500
        %v552 = vpop.xlane.xlu0 %551
        %553 = vadd.xlane.f32.xlu0 %v501
        %v554 = vpop.xlane.xlu0 %553
        %555 = vadd.xlane.f32.xlu0 %v502
        %v556 = vpop.xlane.xlu0 %555
        %557 = vadd.xlane.f32.xlu0 %v503
        %v558 = vpop.xlane.xlu0 %557
        %559 = vadd.xlane.f32.xlu0 %v504
        %v560 = vpop.xlane.xlu0 %559
        %561 = vadd.xlane.f32.xlu0 %v505
        %v562 = vpop.xlane.xlu0 %561
        %563 = vadd.xlane.f32.xlu0 %v506
        %v564 = vpop.xlane.xlu0 %563
        %565 = vadd.xlane.f32.xlu0 %v507
        %v566 = vpop.xlane.xlu0 %565
        %567 = vadd.xlane.f32.xlu0 %v508
        %v568 = vpop.xlane.xlu0 %567
        %569 = vadd.xlane.f32.xlu0 %v509
        %v570 = vpop.xlane.xlu0 %569
        %571 = vadd.xlane.f32.xlu0 %v510
        %v572 = vpop.xlane.xlu0 %571
        %573 = vadd.xlane.f32.xlu0 %v511
        %v574 = vpop.xlane.xlu0 %573
        %575 = vadd.xlane.f32.xlu0 %v512
        %v576 = vpop.xlane.xlu0 %575
        %v577 = vmul.f32 %v514, 0.03125
        %v578 = vmul.f32 %v516, 0.03125
        %v579 = vmul.f32 %v518, 0.03125
        %v580 = vmul.f32 %v520, 0.03125
        %v581 = vmul.f32 %v522, 0.03125
        %v582 = vmul.f32 %v524, 0.03125
        %v583 = vmul.f32 %v526, 0.03125
        %v584 = vmul.f32 %v528, 0.03125
        %v585 = vmul.f32 %v530, 0.03125
        %v586 = vmul.f32 %v532, 0.03125
        %v587 = vmul.f32 %v534, 0.03125
        %v588 = vmul.f32 %v536, 0.03125
        %v589 = vmul.f32 %v538, 0.03125
        %v590 = vmul.f32 %v540, 0.03125
        %v591 = vmul.f32 %v542, 0.03125
        %v592 = vmul.f32 %v544, 0.03125
        %v593 = vmul.f32 %v546, 0.03125
        %v594 = vmul.f32 %v548, 0.03125
        %v595 = vmul.f32 %v550, 0.03125
        %v596 = vmul.f32 %v552, 0.03125
        %v597 = vmul.f32 %v554, 0.03125
        %v598 = vmul.f32 %v556, 0.03125
        %v599 = vmul.f32 %v558, 0.03125
        %v600 = vmul.f32 %v560, 0.03125
        %v601 = vmul.f32 %v562, 0.03125
        %v602 = vmul.f32 %v564, 0.03125
        %v603 = vmul.f32 %v566, 0.03125
        %v604 = vmul.f32 %v568, 0.03125
        %v605 = vmul.f32 %v570, 0.03125
        %v606 = vmul.f32 %v572, 0.03125
        %v607 = vmul.f32 %v574, 0.03125
        %v608 = vmul.f32 %v576, 0.03125
        %v609 = vadd.f32 %v577, 1e-05
        %v610 = vadd.f32 %v578, 1e-05
        %v611 = vadd.f32 %v579, 1e-05
        %v612 = vadd.f32 %v580, 1e-05
        %v613 = vadd.f32 %v581, 1e-05
        %v614 = vadd.f32 %v582, 1e-05
        %v615 = vadd.f32 %v583, 1e-05
        %v616 = vadd.f32 %v584, 1e-05
        %v617 = vadd.f32 %v585, 1e-05
        %v618 = vadd.f32 %v586, 1e-05
        %v619 = vadd.f32 %v587, 1e-05
        %v620 = vadd.f32 %v588, 1e-05
        %v621 = vadd.f32 %v589, 1e-05
        %v622 = vadd.f32 %v590, 1e-05
        %v623 = vadd.f32 %v591, 1e-05
        %v624 = vadd.f32 %v592, 1e-05
        %v625 = vadd.f32 %v593, 1e-05
        %v626 = vadd.f32 %v594, 1e-05
        %v627 = vadd.f32 %v595, 1e-05
        %v628 = vadd.f32 %v596, 1e-05
        %v629 = vadd.f32 %v597, 1e-05
        %v630 = vadd.f32 %v598, 1e-05
        %v631 = vadd.f32 %v599, 1e-05
        %v632 = vadd.f32 %v600, 1e-05
        %v633 = vadd.f32 %v601, 1e-05
        %v634 = vadd.f32 %v602, 1e-05
        %v635 = vadd.f32 %v603, 1e-05
        %v636 = vadd.f32 %v604, 1e-05
        %v637 = vadd.f32 %v605, 1e-05
        %v638 = vadd.f32 %v606, 1e-05
        %v639 = vadd.f32 %v607, 1e-05
        %v640 = vadd.f32 %v608, 1e-05
        %v641 = vrsqrt.pop %v609
        %v642 = vrsqrt.pop %v610
        %v643 = vrsqrt.pop %v611
        %v644 = vrsqrt.pop %v612
        %v645 = vrsqrt.pop %v613
        %v646 = vrsqrt.pop %v614
        %v647 = vrsqrt.pop %v615
        %v648 = vrsqrt.pop %v616
        %v649 = vrsqrt.pop %v617
        %v650 = vrsqrt.pop %v618
        %v651 = vrsqrt.pop %v619
        %v652 = vrsqrt.pop %v620
        %v653 = vrsqrt.pop %v621
        %v654 = vrsqrt.pop %v622
        %v655 = vrsqrt.pop %v623
        %v656 = vrsqrt.pop %v624
        %v657 = vrsqrt.pop %v625
        %v658 = vrsqrt.pop %v626
        %v659 = vrsqrt.pop %v627
        %v660 = vrsqrt.pop %v628
        %v661 = vrsqrt.pop %v629
        %v662 = vrsqrt.pop %v630
        %v663 = vrsqrt.pop %v631
        %v664 = vrsqrt.pop %v632
        %v665 = vrsqrt.pop %v633
        %v666 = vrsqrt.pop %v634
        %v667 = vrsqrt.pop %v635
        %v668 = vrsqrt.pop %v636
        %v669 = vrsqrt.pop %v637
        %v670 = vrsqrt.pop %v638
        %v671 = vrsqrt.pop %v639
        %v672 = vrsqrt.pop %v640
        %v673 = vmul.f32 %v449, %v641
        %v674 = vmul.f32 %v450, %v642
        %v675 = vmul.f32 %v451, %v643
        %v676 = vmul.f32 %v452, %v644
        %v677 = vmul.f32 %v453, %v645
        %v678 = vmul.f32 %v454, %v646
        %v679 = vmul.f32 %v455, %v647
        %v680 = vmul.f32 %v456, %v648
        %v681 = vmul.f32 %v457, %v649
        %v682 = vmul.f32 %v458, %v650
        %v683 = vmul.f32 %v459, %v651
        %v684 = vmul.f32 %v460, %v652
        %v685 = vmul.f32 %v461, %v653
        %v686 = vmul.f32 %v462, %v654
        %v687 = vmul.f32 %v463, %v655
        %v688 = vmul.f32 %v464, %v656
        %v689 = vmul.f32 %v465, %v657
        %v690 = vmul.f32 %v466, %v658
        %v691 = vmul.f32 %v467, %v659
        %v692 = vmul.f32 %v468, %v660
        %v693 = vmul.f32 %v469, %v661
        %v694 = vmul.f32 %v470, %v662
        %v695 = vmul.f32 %v471, %v663
        %v696 = vmul.f32 %v472, %v664
        %v697 = vmul.f32 %v473, %v665
        %v698 = vmul.f32 %v474, %v666
        %v699 = vmul.f32 %v475, %v667
        %v700 = vmul.f32 %v476, %v668
        %v701 = vmul.f32 %v477, %v669
        %v702 = vmul.f32 %v478, %v670
        %v703 = vmul.f32 %v479, %v671
        %v704 = vmul.f32 %v480, %v672
        %v705 = vld [vmem:[%s1] sm:$0x1]
        %v707 = vlaneseq
        %v708 = vshrl.u32 %v707, 7
        %v709 = vsub.s32 0, %v708
        %v710 = vrot.slane %v705, %v709
        %v712 = vmul.f32 %v673, %v710
        %v713 = vmul.f32 %v674, %v710
        %v714 = vmul.f32 %v675, %v710
        %v715 = vmul.f32 %v676, %v710
        %v716 = vmul.f32 %v677, %v710
        %v717 = vmul.f32 %v678, %v710
        %v718 = vmul.f32 %v679, %v710
        %v719 = vmul.f32 %v680, %v710
        %v720 = vmul.f32 %v681, %v710
        %v721 = vmul.f32 %v682, %v710
        %v722 = vmul.f32 %v683, %v710
        %v723 = vmul.f32 %v684, %v710
        %v724 = vmul.f32 %v685, %v710
        %v725 = vmul.f32 %v686, %v710
        %v726 = vmul.f32 %v687, %v710
        %v727 = vmul.f32 %v688, %v710
        %v728 = vmul.f32 %v689, %v710
        %v729 = vmul.f32 %v690, %v710
        %v730 = vmul.f32 %v691, %v710
        %v731 = vmul.f32 %v692, %v710
        %v732 = vmul.f32 %v693, %v710
        %v733 = vmul.f32 %v694, %v710
        %v734 = vmul.f32 %v695, %v710
        %v735 = vmul.f32 %v696, %v710
        %v736 = vmul.f32 %v697, %v710
        %v737 = vmul.f32 %v698, %v710
        %v738 = vmul.f32 %v699, %v710
        %v739 = vmul.f32 %v700, %v710
        %v740 = vmul.f32 %v701, %v710
        %v741 = vmul.f32 %v702, %v710
        %v742 = vmul.f32 %v703, %v710
        %v743 = vmul.f32 %v704, %v710
        %v744 = vld [vmem:[%s2] sm:$0x1]
        %v746 = vlaneseq
        %v747 = vshrl.u32 %v746, 7
        %v748 = vsub.s32 0, %v747
        %v749 = vrot.slane %v744, %v748
        %v751 = vadd.f32 %v712, %v749
        %v752 = vadd.f32 %v713, %v749
        %v753 = vadd.f32 %v714, %v749
        %v754 = vadd.f32 %v715, %v749
        %v755 = vadd.f32 %v716, %v749
        %v756 = vadd.f32 %v717, %v749
        %v757 = vadd.f32 %v718, %v749
        %v758 = vadd.f32 %v719, %v749
        %v759 = vadd.f32 %v720, %v749
        %v760 = vadd.f32 %v721, %v749
        %v761 = vadd.f32 %v722, %v749
        %v762 = vadd.f32 %v723, %v749
        %v763 = vadd.f32 %v724, %v749
        %v764 = vadd.f32 %v725, %v749
        %v765 = vadd.f32 %v726, %v749
        %v766 = vadd.f32 %v727, %v749
        %v767 = vadd.f32 %v728, %v749
        %v768 = vadd.f32 %v729, %v749
        %v769 = vadd.f32 %v730, %v749
        %v770 = vadd.f32 %v731, %v749
        %v771 = vadd.f32 %v732, %v749
        %v772 = vadd.f32 %v733, %v749
        %v773 = vadd.f32 %v734, %v749
        %v774 = vadd.f32 %v735, %v749
        %v775 = vadd.f32 %v736, %v749
        %v776 = vadd.f32 %v737, %v749
        %v777 = vadd.f32 %v738, %v749
        %v778 = vadd.f32 %v739, %v749
        %v779 = vadd.f32 %v740, %v749
        %v780 = vadd.f32 %v741, %v749
        %v781 = vadd.f32 %v742, %v749
        %v782 = vadd.f32 %v743, %v749
        %v783 = vpack.c.bf16 %v752, %v751
        %v784 = vpack.c.bf16 %v754, %v753
        %v785 = vpack.c.bf16 %v756, %v755
        %v786 = vpack.c.bf16 %v758, %v757
        %v787 = vpack.c.bf16 %v760, %v759
        %v788 = vpack.c.bf16 %v762, %v761
        %v789 = vpack.c.bf16 %v764, %v763
        %v790 = vpack.c.bf16 %v766, %v765
        %v791 = vpack.c.bf16 %v768, %v767
        %v792 = vpack.c.bf16 %v770, %v769
        %v793 = vpack.c.bf16 %v772, %v771
        %v794 = vpack.c.bf16 %v774, %v773
        %v795 = vpack.c.bf16 %v776, %v775
        %v796 = vpack.c.bf16 %v778, %v777
        %v797 = vpack.c.bf16 %v780, %v779
        %v798 = vpack.c.bf16 %v782, %v781
        %v799 = vld [vmem:[%s3] sm:$0xf]
        %v800 = vld [vmem:[%s3 + $0x4] sm:$0xf]
        %v801 = vld [vmem:[%s3 + $0x8] sm:$0xf]
        %v802 = vld [vmem:[%s3 + $0xc] sm:$0xf]
        %v803 = vld [vmem:[%s3 + $0x10] sm:$0xf]
        %v804 = vld [vmem:[%s3 + $0x14] sm:$0xf]
        %v805 = vld [vmem:[%s3 + $0x18] sm:$0xf]
        %v806 = vld [vmem:[%s3 + $0x1c] sm:$0xf]
        %v807 = vld [vmem:[%s3 + $0x20] sm:$0xf]
        %v808 = vld [vmem:[%s3 + $0x24] sm:$0xf]
        %v809 = vld [vmem:[%s3 + $0x28] sm:$0xf]
        %v810 = vld [vmem:[%s3 + $0x2c] sm:$0xf]
        %v811 = vld [vmem:[%s3 + $0x30] sm:$0xf]
        %v812 = vld [vmem:[%s3 + $0x34] sm:$0xf]
        %v813 = vld [vmem:[%s3 + $0x38] sm:$0xf]
        %v814 = vld [vmem:[%s3 + $0x3c] sm:$0xf]
        %v831 = vunpack.c.l.b16 %v799
        %v832 = vunpack.c.l.b16 %v800
        %v833 = vunpack.c.l.b16 %v801
        %v834 = vunpack.c.l.b16 %v802
        %v835 = vunpack.c.l.b16 %v803
        %v836 = vunpack.c.l.b16 %v804
        %v837 = vunpack.c.l.b16 %v805
        %v838 = vunpack.c.l.b16 %v806
        %v839 = vunpack.c.l.b16 %v807
        %v840 = vunpack.c.l.b16 %v808
        %v841 = vunpack.c.l.b16 %v809
        %v842 = vunpack.c.l.b16 %v810
        %v843 = vunpack.c.l.b16 %v811
        %v844 = vunpack.c.l.b16 %v812
        %v845 = vunpack.c.l.b16 %v813
        %v846 = vunpack.c.l.b16 %v814
        %v847 = vpack.c.b16 %v832, %v831
        %v848 = vpack.c.b16 %v834, %v833
        %v849 = vpack.c.b16 %v836, %v835
        %v850 = vpack.c.b16 %v838, %v837
        %v851 = vpack.c.b16 %v840, %v839
        %v852 = vpack.c.b16 %v842, %v841
        %v853 = vpack.c.b16 %v844, %v843
        %v854 = vpack.c.b16 %v846, %v845
        %863 = vmatprep.subr.bf16.mxu0 0
        %864 = vmatpush1.bf16.msra.mxu0 %v847
        %865 = vmatprep.subr.bf16.mxu0 0
        %866 = vmatpush1.bf16.msra.mxu0 %v848
        %867 = vmatprep.subr.bf16.mxu0 0
        %868 = vmatpush1.bf16.msra.mxu0 %v849
        %869 = vmatprep.subr.bf16.mxu0 0
        %870 = vmatpush1.bf16.msra.mxu0 %v850
        %871 = vmatprep.subr.bf16.mxu0 0
        %872 = vmatpush1.bf16.msra.mxu0 %v851
        %873 = vmatprep.subr.bf16.mxu0 0
        %874 = vmatpush1.bf16.msra.mxu0 %v852
        %875 = vmatprep.subr.bf16.mxu0 0
        %876 = vmatpush1.bf16.msra.mxu0 %v853
        %877 = vmatprep.subr.bf16.mxu0 0
        %878 = vmatpush1.bf16.msra.mxu0 %v854
        %879 = vmatprep.subr.bf16.mxu0 0
        %880 = vmatpush1.bf16.msra.mxu0 0
        %881 = vmatprep.subr.bf16.mxu0 0
        %882 = vmatpush1.bf16.msra.mxu0 0
        %883 = vmatprep.subr.bf16.mxu0 0
        %884 = vmatpush1.bf16.msra.mxu0 0
        %885 = vmatprep.subr.bf16.mxu0 0
        %886 = vmatpush1.bf16.msra.mxu0 0
        %887 = vmatprep.subr.bf16.mxu0 0
        %888 = vmatpush1.bf16.msra.mxu0 0
        %889 = vmatprep.subr.bf16.mxu0 0
        %890 = vmatpush1.bf16.msra.mxu0 0
        %891 = vmatprep.subr.bf16.mxu0 0
        %892 = vmatpush1.bf16.msra.mxu0 0
        %893 = vmatprep.subr.bf16.mxu0 0
        %894 = vmatpush1.bf16.msra.mxu0 0
        %895 = vmatprep.mubr.bf16.mxu0 0
        %896 = vmatmul.mubr.bf16.gmra.mrb[0].mxu0 %v783
        %v897 = vpop.f32.mrb[0].mxu0
        %v898 = vadd.f32 0.0, %v897
        %v899 = vpop.f32.mrb[0].mxu0
        %v900 = vpop.f32.mrb[0].mxu0
        %v901 = vadd.f32 0.0, %v900
        %v902 = vpop.f32.mrb[0].mxu0
        %903 = vmatprep.mubr.bf16.mxu0 0
        %904 = vmatmul.mubr.bf16.gmra.mrb[0].mxu0 %v784
        %v905 = vpop.f32.mrb[0].mxu0
        %v906 = vadd.f32 0.0, %v905
        %v907 = vpop.f32.mrb[0].mxu0
        %v908 = vpop.f32.mrb[0].mxu0
        %v909 = vadd.f32 0.0, %v908
        %v910 = vpop.f32.mrb[0].mxu0
        %911 = vmatprep.mubr.bf16.mxu0 0
        %912 = vmatmul.mubr.bf16.gmra.mrb[0].mxu0 %v785
        %v913 = vpop.f32.mrb[0].mxu0
        %v914 = vadd.f32 0.0, %v913
        %v915 = vpop.f32.mrb[0].mxu0
        %v916 = vpop.f32.mrb[0].mxu0
        %v917 = vadd.f32 0.0, %v916
        %v918 = vpop.f32.mrb[0].mxu0
        %919 = vmatprep.mubr.bf16.mxu0 0
        %920 = vmatmul.mubr.bf16.gmra.mrb[0].mxu0 %v786
        %v921 = vpop.f32.mrb[0].mxu0
        %v922 = vadd.f32 0.0, %v921
        %v923 = vpop.f32.mrb[0].mxu0
        %v924 = vpop.f32.mrb[0].mxu0
        %v925 = vadd.f32 0.0, %v924
        %v926 = vpop.f32.mrb[0].mxu0
        %927 = vmatprep.mubr.bf16.mxu0 0
        %928 = vmatmul.mubr.bf16.gmra.mrb[0].mxu0 %v787
        %v929 = vpop.f32.mrb[0].mxu0
        %v930 = vadd.f32 0.0, %v929
        %v931 = vpop.f32.mrb[0].mxu0
        %v932 = vpop.f32.mrb[0].mxu0
        %v933 = vadd.f32 0.0, %v932
        %v934 = vpop.f32.mrb[0].mxu0
        %935 = vmatprep.mubr.bf16.mxu0 0
        %936 = vmatmul.mubr.bf16.gmra.mrb[0].mxu0 %v788
        %v937 = vpop.f32.mrb[0].mxu0
        %v938 = vadd.f32 0.0, %v937
        %v939 = vpop.f32.mrb[0].mxu0
        %v940 = vpop.f32.mrb[0].mxu0
        %v941 = vadd.f32 0.0, %v940
        %v942 = vpop.f32.mrb[0].mxu0
        %943 = vmatprep.mubr.bf16.mxu0 0
        %944 = vmatmul.mubr.bf16.gmra.mrb[0].mxu0 %v789
        %v945 = vpop.f32.mrb[0].mxu0
        %v946 = vadd.f32 0.0, %v945
        %v947 = vpop.f32.mrb[0].mxu0
        %v948 = vpop.f32.mrb[0].mxu0
        %v949 = vadd.f32 0.0, %v948
        %v950 = vpop.f32.mrb[0].mxu0
        %951 = vmatprep.mubr.bf16.mxu0 0
        %952 = vmatmul.mubr.bf16.gmra.mrb[0].mxu0 %v790
        %v953 = vpop.f32.mrb[0].mxu0
        %v954 = vadd.f32 0.0, %v953
        %v955 = vpop.f32.mrb[0].mxu0
        %v956 = vpop.f32.mrb[0].mxu0
        %v957 = vadd.f32 0.0, %v956
        %v958 = vpop.f32.mrb[0].mxu0
        %959 = vmatprep.mubr.bf16.mxu0 0
        %960 = vmatmul.mubr.bf16.gmra.mrb[0].mxu0 %v791
        %v961 = vpop.f32.mrb[0].mxu0
        %v962 = vadd.f32 0.0, %v961
        %v963 = vpop.f32.mrb[0].mxu0
        %v964 = vpop.f32.mrb[0].mxu0
        %v965 = vadd.f32 0.0, %v964
        %v966 = vpop.f32.mrb[0].mxu0
        %967 = vmatprep.mubr.bf16.mxu0 0
        %968 = vmatmul.mubr.bf16.gmra.mrb[0].mxu0 %v792
        %v969 = vpop.f32.mrb[0].mxu0
        %v970 = vadd.f32 0.0, %v969
        %v971 = vpop.f32.mrb[0].mxu0
        %v972 = vpop.f32.mrb[0].mxu0
        %v973 = vadd.f32 0.0, %v972
        %v974 = vpop.f32.mrb[0].mxu0
        %975 = vmatprep.mubr.bf16.mxu0 0
        %976 = vmatmul.mubr.bf16.gmra.mrb[0].mxu0 %v793
        %v977 = vpop.f32.mrb[0].mxu0
        %v978 = vadd.f32 0.0, %v977
        %v979 = vpop.f32.mrb[0].mxu0
        %v980 = vpop.f32.mrb[0].mxu0
        %v981 = vadd.f32 0.0, %v980
        %v982 = vpop.f32.mrb[0].mxu0
        %983 = vmatprep.mubr.bf16.mxu0 0
        %984 = vmatmul.mubr.bf16.gmra.mrb[0].mxu0 %v794
        %v985 = vpop.f32.mrb[0].mxu0
        %v986 = vadd.f32 0.0, %v985
        %v987 = vpop.f32.mrb[0].mxu0
        %v988 = vpop.f32.mrb[0].mxu0
        %v989 = vadd.f32 0.0, %v988
        %v990 = vpop.f32.mrb[0].mxu0
        %991 = vmatprep.mubr.bf16.mxu0 0
        %992 = vmatmul.mubr.bf16.gmra.mrb[0].mxu0 %v795
        %v993 = vpop.f32.mrb[0].mxu0
        %v994 = vadd.f32 0.0, %v993
        %v995 = vpop.f32.mrb[0].mxu0
        %v996 = vpop.f32.mrb[0].mxu0
        %v997 = vadd.f32 0.0, %v996
        %v998 = vpop.f32.mrb[0].mxu0
        %999 = vmatprep.mubr.bf16.mxu0 0
        %1000 = vmatmul.mubr.bf16.gmra.mrb[0].mxu0 %v796
        %v1001 = vpop.f32.mrb[0].mxu0
        %v1002 = vadd.f32 0.0, %v1001
        %v1003 = vpop.f32.mrb[0].mxu0
        %v1004 = vpop.f32.mrb[0].mxu0
        %v1005 = vadd.f32 0.0, %v1004
        %v1006 = vpop.f32.mrb[0].mxu0
        %1007 = vmatprep.mubr.bf16.mxu0 0
        %1008 = vmatmul.mubr.bf16.gmra.mrb[0].mxu0 %v797
        %v1009 = vpop.f32.mrb[0].mxu0
        %v1010 = vadd.f32 0.0, %v1009
        %v1011 = vpop.f32.mrb[0].mxu0
        %v1012 = vpop.f32.mrb[0].mxu0
        %v1013 = vadd.f32 0.0, %v1012
        %v1014 = vpop.f32.mrb[0].mxu0
        %1015 = vmatprep.mubr.bf16.mxu0 0
        %1016 = vmatmul.mubr.bf16.gmra.mrb[0].mxu0 %v798
        %v1017 = vpop.f32.mrb[0].mxu0
        %v1018 = vadd.f32 0.0, %v1017
        %v1019 = vpop.f32.mrb[0].mxu0
        %v1020 = vpop.f32.mrb[0].mxu0
        %v1021 = vadd.f32 0.0, %v1020
        %v1022 = vpop.f32.mrb[0].mxu0
        %1023 = vdwg.mxu0
        %v1024 = vld [vmem:[%s4] sm:$0x1]
        %v1026 = vlaneseq
        %v1027 = vshrl.u32 %v1026, 7
        %v1028 = vsub.s32 0, %v1027
        %v1029 = vrot.slane %v1024, %v1028
        %1030 = vrot.lane.b32.xlu0 %v1029, 96
        %v1031 = vpop.permute.xlu0 %1030
        %v1033 = vadd.f32 %v898, %v1031
        %v1034 = vadd.f32 %v901, %v1031
        %v1035 = vadd.f32 %v906, %v1031
        %v1036 = vadd.f32 %v909, %v1031
        %v1037 = vadd.f32 %v914, %v1031
        %v1038 = vadd.f32 %v917, %v1031
        %v1039 = vadd.f32 %v922, %v1031
        %v1040 = vadd.f32 %v925, %v1031
        %v1041 = vadd.f32 %v930, %v1031
        %v1042 = vadd.f32 %v933, %v1031
        %v1043 = vadd.f32 %v938, %v1031
        %v1044 = vadd.f32 %v941, %v1031
        %v1045 = vadd.f32 %v946, %v1031
        %v1046 = vadd.f32 %v949, %v1031
        %v1047 = vadd.f32 %v954, %v1031
        %v1048 = vadd.f32 %v957, %v1031
        %v1049 = vadd.f32 %v962, %v1031
        %v1050 = vadd.f32 %v965, %v1031
        %v1051 = vadd.f32 %v970, %v1031
        %v1052 = vadd.f32 %v973, %v1031
        %v1053 = vadd.f32 %v978, %v1031
        %v1054 = vadd.f32 %v981, %v1031
        %v1055 = vadd.f32 %v986, %v1031
        %v1056 = vadd.f32 %v989, %v1031
        %v1057 = vadd.f32 %v994, %v1031
        %v1058 = vadd.f32 %v997, %v1031
        %v1059 = vadd.f32 %v1002, %v1031
        %v1060 = vadd.f32 %v1005, %v1031
        %v1061 = vadd.f32 %v1010, %v1031
        %v1062 = vadd.f32 %v1013, %v1031
        %v1063 = vadd.f32 %v1018, %v1031
        %v1064 = vadd.f32 %v1021, %v1031
        %v1065 = vxor.u32 %v1033, 2147483648
        %v1066 = vxor.u32 %v1034, 2147483648
        %v1067 = vxor.u32 %v1035, 2147483648
        %v1068 = vxor.u32 %v1036, 2147483648
        %v1069 = vxor.u32 %v1037, 2147483648
        %v1070 = vxor.u32 %v1038, 2147483648
        %v1071 = vxor.u32 %v1039, 2147483648
        %v1072 = vxor.u32 %v1040, 2147483648
        %v1073 = vxor.u32 %v1041, 2147483648
        %v1074 = vxor.u32 %v1042, 2147483648
        %v1075 = vxor.u32 %v1043, 2147483648
        %v1076 = vxor.u32 %v1044, 2147483648
        %v1077 = vxor.u32 %v1045, 2147483648
        %v1078 = vxor.u32 %v1046, 2147483648
        %v1079 = vxor.u32 %v1047, 2147483648
        %v1080 = vxor.u32 %v1048, 2147483648
        %v1081 = vxor.u32 %v1049, 2147483648
        %v1082 = vxor.u32 %v1050, 2147483648
        %v1083 = vxor.u32 %v1051, 2147483648
        %v1084 = vxor.u32 %v1052, 2147483648
        %v1085 = vxor.u32 %v1053, 2147483648
        %v1086 = vxor.u32 %v1054, 2147483648
        %v1087 = vxor.u32 %v1055, 2147483648
        %v1088 = vxor.u32 %v1056, 2147483648
        %v1089 = vxor.u32 %v1057, 2147483648
        %v1090 = vxor.u32 %v1058, 2147483648
        %v1091 = vxor.u32 %v1059, 2147483648
        %v1092 = vxor.u32 %v1060, 2147483648
        %v1093 = vxor.u32 %v1061, 2147483648
        %v1094 = vxor.u32 %v1062, 2147483648
        %v1095 = vxor.u32 %v1063, 2147483648
        %v1096 = vxor.u32 %v1064, 2147483648
        %v1097 = vmul.f32 %v1065, 1.442695
        %v1098 = vpow.pop %v1097
        %v1099 = vmul.f32 %v1066, 1.442695
        %v1100 = vpow.pop %v1099
        %v1101 = vmul.f32 %v1067, 1.442695
        %v1102 = vpow.pop %v1101
        %v1103 = vmul.f32 %v1068, 1.442695
        %v1104 = vpow.pop %v1103
        %v1105 = vmul.f32 %v1069, 1.442695
        %v1106 = vpow.pop %v1105
        %v1107 = vmul.f32 %v1070, 1.442695
        %v1108 = vpow.pop %v1107
        %v1109 = vmul.f32 %v1071, 1.442695
        %v1110 = vpow.pop %v1109
        %v1111 = vmul.f32 %v1072, 1.442695
        %v1112 = vpow.pop %v1111
        %v1113 = vmul.f32 %v1073, 1.442695
        %v1114 = vpow.pop %v1113
        %v1115 = vmul.f32 %v1074, 1.442695
        %v1116 = vpow.pop %v1115
        %v1117 = vmul.f32 %v1075, 1.442695
        %v1118 = vpow.pop %v1117
        %v1119 = vmul.f32 %v1076, 1.442695
        %v1120 = vpow.pop %v1119
        %v1121 = vmul.f32 %v1077, 1.442695
        %v1122 = vpow.pop %v1121
        %v1123 = vmul.f32 %v1078, 1.442695
        %v1124 = vpow.pop %v1123
        %v1125 = vmul.f32 %v1079, 1.442695
        %v1126 = vpow.pop %v1125
        %v1127 = vmul.f32 %v1080, 1.442695
        %v1128 = vpow.pop %v1127
        %v1129 = vmul.f32 %v1081, 1.442695
        %v1130 = vpow.pop %v1129
        %v1131 = vmul.f32 %v1082, 1.442695
        %v1132 = vpow.pop %v1131
        %v1133 = vmul.f32 %v1083, 1.442695
        %v1134 = vpow.pop %v1133
        %v1135 = vmul.f32 %v1084, 1.442695
        %v1136 = vpow.pop %v1135
        %v1137 = vmul.f32 %v1085, 1.442695
        %v1138 = vpow.pop %v1137
        %v1139 = vmul.f32 %v1086, 1.442695
        %v1140 = vpow.pop %v1139
        %v1141 = vmul.f32 %v1087, 1.442695
        %v1142 = vpow.pop %v1141
        %v1143 = vmul.f32 %v1088, 1.442695
        %v1144 = vpow.pop %v1143
        %v1145 = vmul.f32 %v1089, 1.442695
        %v1146 = vpow.pop %v1145
        %v1147 = vmul.f32 %v1090, 1.442695
        %v1148 = vpow.pop %v1147
        %v1149 = vmul.f32 %v1091, 1.442695
        %v1150 = vpow.pop %v1149
        %v1151 = vmul.f32 %v1092, 1.442695
        %v1152 = vpow.pop %v1151
        %v1153 = vmul.f32 %v1093, 1.442695
        %v1154 = vpow.pop %v1153
        %v1155 = vmul.f32 %v1094, 1.442695
        %v1156 = vpow.pop %v1155
        %v1157 = vmul.f32 %v1095, 1.442695
        %v1158 = vpow.pop %v1157
        %v1159 = vmul.f32 %v1096, 1.442695
        %v1160 = vpow.pop %v1159
        %v1161 = vadd.f32 %v1098, 1.0
        %v1162 = vadd.f32 %v1100, 1.0
        %v1163 = vadd.f32 %v1102, 1.0
        %v1164 = vadd.f32 %v1104, 1.0
        %v1165 = vadd.f32 %v1106, 1.0
        %v1166 = vadd.f32 %v1108, 1.0
        %v1167 = vadd.f32 %v1110, 1.0
        %v1168 = vadd.f32 %v1112, 1.0
        %v1169 = vadd.f32 %v1114, 1.0
        %v1170 = vadd.f32 %v1116, 1.0
        %v1171 = vadd.f32 %v1118, 1.0
        %v1172 = vadd.f32 %v1120, 1.0
        %v1173 = vadd.f32 %v1122, 1.0
        %v1174 = vadd.f32 %v1124, 1.0
        %v1175 = vadd.f32 %v1126, 1.0
        %v1176 = vadd.f32 %v1128, 1.0
        %v1177 = vadd.f32 %v1130, 1.0
        %v1178 = vadd.f32 %v1132, 1.0
        %v1179 = vadd.f32 %v1134, 1.0
        %v1180 = vadd.f32 %v1136, 1.0
        %v1181 = vadd.f32 %v1138, 1.0
        %v1182 = vadd.f32 %v1140, 1.0
        %v1183 = vadd.f32 %v1142, 1.0
        %v1184 = vadd.f32 %v1144, 1.0
        %v1185 = vadd.f32 %v1146, 1.0
        %v1186 = vadd.f32 %v1148, 1.0
        %v1187 = vadd.f32 %v1150, 1.0
        %v1188 = vadd.f32 %v1152, 1.0
        %v1189 = vadd.f32 %v1154, 1.0
        %v1190 = vadd.f32 %v1156, 1.0
        %v1191 = vadd.f32 %v1158, 1.0
        %v1192 = vadd.f32 %v1160, 1.0
        %v1193 = vrcp.pop %v1161
        %v1194 = vmul.f32 1.0, %v1193
        %v1195 = vrcp.pop %v1162
        %v1196 = vmul.f32 1.0, %v1195
        %v1197 = vrcp.pop %v1163
        %v1198 = vmul.f32 1.0, %v1197
        %v1199 = vrcp.pop %v1164
        %v1200 = vmul.f32 1.0, %v1199
        %v1201 = vrcp.pop %v1165
        %v1202 = vmul.f32 1.0, %v1201
        %v1203 = vrcp.pop %v1166
        %v1204 = vmul.f32 1.0, %v1203
        %v1205 = vrcp.pop %v1167
        %v1206 = vmul.f32 1.0, %v1205
        %v1207 = vrcp.pop %v1168
        %v1208 = vmul.f32 1.0, %v1207
        %v1209 = vrcp.pop %v1169
        %v1210 = vmul.f32 1.0, %v1209
        %v1211 = vrcp.pop %v1170
        %v1212 = vmul.f32 1.0, %v1211
        %v1213 = vrcp.pop %v1171
        %v1214 = vmul.f32 1.0, %v1213
        %v1215 = vrcp.pop %v1172
        %v1216 = vmul.f32 1.0, %v1215
        %v1217 = vrcp.pop %v1173
        %v1218 = vmul.f32 1.0, %v1217
        %v1219 = vrcp.pop %v1174
        %v1220 = vmul.f32 1.0, %v1219
        %v1221 = vrcp.pop %v1175
        %v1222 = vmul.f32 1.0, %v1221
        %v1223 = vrcp.pop %v1176
        %v1224 = vmul.f32 1.0, %v1223
        %v1225 = vrcp.pop %v1177
        %v1226 = vmul.f32 1.0, %v1225
        %v1227 = vrcp.pop %v1178
        %v1228 = vmul.f32 1.0, %v1227
        %v1229 = vrcp.pop %v1179
        %v1230 = vmul.f32 1.0, %v1229
        %v1231 = vrcp.pop %v1180
        %v1232 = vmul.f32 1.0, %v1231
        %v1233 = vrcp.pop %v1181
        %v1234 = vmul.f32 1.0, %v1233
        %v1235 = vrcp.pop %v1182
        %v1236 = vmul.f32 1.0, %v1235
        %v1237 = vrcp.pop %v1183
        %v1238 = vmul.f32 1.0, %v1237
        %v1239 = vrcp.pop %v1184
        %v1240 = vmul.f32 1.0, %v1239
        %v1241 = vrcp.pop %v1185
        %v1242 = vmul.f32 1.0, %v1241
        %v1243 = vrcp.pop %v1186
        %v1244 = vmul.f32 1.0, %v1243
        %v1245 = vrcp.pop %v1187
        %v1246 = vmul.f32 1.0, %v1245
        %v1247 = vrcp.pop %v1188
        %v1248 = vmul.f32 1.0, %v1247
        %v1249 = vrcp.pop %v1189
        %v1250 = vmul.f32 1.0, %v1249
        %v1251 = vrcp.pop %v1190
        %v1252 = vmul.f32 1.0, %v1251
        %v1253 = vrcp.pop %v1191
        %v1254 = vmul.f32 1.0, %v1253
        %v1255 = vrcp.pop %v1192
        %v1256 = vmul.f32 1.0, %v1255
        %v1257 = vpack.c.bf16 %v901, %v898
        %v1258 = vpack.c.bf16 %v909, %v906
        %v1259 = vpack.c.bf16 %v917, %v914
        %v1260 = vpack.c.bf16 %v925, %v922
        %v1261 = vpack.c.bf16 %v933, %v930
        %v1262 = vpack.c.bf16 %v941, %v938
        %v1263 = vpack.c.bf16 %v949, %v946
        %v1264 = vpack.c.bf16 %v957, %v954
        %v1265 = vpack.c.bf16 %v965, %v962
        %v1266 = vpack.c.bf16 %v973, %v970
        %v1267 = vpack.c.bf16 %v981, %v978
        %v1268 = vpack.c.bf16 %v989, %v986
        %v1269 = vpack.c.bf16 %v997, %v994
        %v1270 = vpack.c.bf16 %v1005, %v1002
        %v1271 = vpack.c.bf16 %v1013, %v1010
        %v1272 = vpack.c.bf16 %v1021, %v1018
        %1274 = vrot.lane.b32.xlu0 %v1257, 96
        %v1275 = vpop.permute.xlu0 %1274
        %vm1276 = vcmask 64512
        %v1278 = vsel %vm1276, %v1257, 0
        %v1281 = vsel %vm1276, %v1275, 0
        %1283 = vmatprep.subr.bf16.mxu0 0
        %1284 = vmatpush1.bf16.xpose.msra.mxu0 %v1281
        %1285 = vmatprep.subr.bf16.mxu0 0
        %1286 = vmatpush1.bf16.xpose.msra.mxu0 0
        %1287 = vmatprep.subr.bf16.mxu0 0
        %1288 = vmatpush1.bf16.xpose.msra.mxu0 0
        %1289 = vmatprep.subr.bf16.mxu0 0
        %1290 = vmatpush1.bf16.xpose.msra.mxu0 0
        %1291 = vmatprep.subr.bf16.mxu0 0
        %1292 = vmatpush1.bf16.xpose.msra.mxu0 0
        %1293 = vmatprep.subr.bf16.mxu0 0
        %1294 = vmatpush1.bf16.xpose.msra.mxu0 0
        %1295 = vmatprep.subr.bf16.mxu0 0
        %1296 = vmatpush1.bf16.xpose.msra.mxu0 0
        %1297 = vmatprep.subr.bf16.mxu0 0
        %1298 = vmatpush1.bf16.xpose.msra.mxu0 0
        %1299 = vmatprep.subr.bf16.mxu0 0
        %1300 = vmatpush1.bf16.xpose.msra.mxu0 0
        %1301 = vmatprep.subr.bf16.mxu0 0
        %1302 = vmatpush1.bf16.xpose.msra.mxu0 0
        %1303 = vmatprep.subr.bf16.mxu0 0
        %1304 = vmatpush1.bf16.xpose.msra.mxu0 0
        %1305 = vmatprep.subr.bf16.mxu0 0
        %1306 = vmatpush1.bf16.xpose.msra.mxu0 0
        %1307 = vmatprep.subr.bf16.mxu0 0
        %1308 = vmatpush1.bf16.xpose.msra.mxu0 0
        %1309 = vmatprep.subr.bf16.mxu0 0
        %1310 = vmatpush1.bf16.xpose.msra.mxu0 0
        %1311 = vmatprep.subr.bf16.mxu0 0
        %1312 = vmatpush1.bf16.xpose.msra.mxu0 0
        %1313 = vmatprep.subr.bf16.mxu0 0
        %1314 = vmatpush1.bf16.xpose.msra.mxu0 0
        %1315 = vmatprep.mubr.bf16.mxu0 0
        %1316 = vmatmul.mubr.bf16.gmra.mrb[0].mxu0 %v1278
        %v1317 = vpop.f32.mrb[0].mxu0
        %v1318 = vadd.f32 0.0, %v1317
        %v1319 = vpop.f32.mrb[0].mxu0
        %v1320 = vpop.f32.mrb[0].mxu0
        %v1321 = vadd.f32 0.0, %v1320
        %v1322 = vpop.f32.mrb[0].mxu0
        %1323 = vdwg.mxu0
        %1325 = vrot.lane.b32.xlu0 %v1258, 96
        %v1326 = vpop.permute.xlu0 %1325
        %v1328 = vsel %vm1276, %v1258, 0
        %v1331 = vsel %vm1276, %v1326, 0
        %1333 = vmatprep.subr.bf16.mxu0 0
        %1334 = vmatpush1.bf16.xpose.msra.mxu0 %v1331
        %1335 = vmatprep.subr.bf16.mxu0 0
        %1336 = vmatpush1.bf16.xpose.msra.mxu0 0
        %1337 = vmatprep.subr.bf16.mxu0 0
        %1338 = vmatpush1.bf16.xpose.msra.mxu0 0
        %1339 = vmatprep.subr.bf16.mxu0 0
        %1340 = vmatpush1.bf16.xpose.msra.mxu0 0
        %1341 = vmatprep.subr.bf16.mxu0 0
        %1342 = vmatpush1.bf16.xpose.msra.mxu0 0
        %1343 = vmatprep.subr.bf16.mxu0 0
        %1344 = vmatpush1.bf16.xpose.msra.mxu0 0
        %1345 = vmatprep.subr.bf16.mxu0 0
        %1346 = vmatpush1.bf16.xpose.msra.mxu0 0
        %1347 = vmatprep.subr.bf16.mxu0 0
        %1348 = vmatpush1.bf16.xpose.msra.mxu0 0
        %1349 = vmatprep.subr.bf16.mxu0 0
        %1350 = vmatpush1.bf16.xpose.msra.mxu0 0
        %1351 = vmatprep.subr.bf16.mxu0 0
        %1352 = vmatpush1.bf16.xpose.msra.mxu0 0
        %1353 = vmatprep.subr.bf16.mxu0 0
        %1354 = vmatpush1.bf16.xpose.msra.mxu0 0
        %1355 = vmatprep.subr.bf16.mxu0 0
        %1356 = vmatpush1.bf16.xpose.msra.mxu0 0
        %1357 = vmatprep.subr.bf16.mxu0 0
        %1358 = vmatpush1.bf16.xpose.msra.mxu0 0
        %1359 = vmatprep.subr.bf16.mxu0 0
        %1360 = vmatpush1.bf16.xpose.msra.mxu0 0
        %1361 = vmatprep.subr.bf16.mxu0 0
        %1362 = vmatpush1.bf16.xpose.msra.mxu0 0
        %1363 = vmatprep.subr.bf16.mxu0 0
        %1364 = vmatpush1.bf16.xpose.msra.mxu0 0
        %1365 = vmatprep.mubr.bf16.mxu0 0
        %1366 = vmatmul.mubr.bf16.gmra.mrb[0].mxu0 %v1328
        %v1367 = vpop.f32.mrb[0].mxu0
        %v1368 = vadd.f32 0.0, %v1367
        %v1369 = vpop.f32.mrb[0].mxu0
        %v1370 = vpop.f32.mrb[0].mxu0
        %v1371 = vadd.f32 0.0, %v1370
        %v1372 = vpop.f32.mrb[0].mxu0
        %1373 = vdwg.mxu0
        %1375 = vrot.lane.b32.xlu0 %v1259, 96
        %v1376 = vpop.permute.xlu0 %1375
        %v1378 = vsel %vm1276, %v1259, 0
        %v1381 = vsel %vm1276, %v1376, 0
        %1383 = vmatprep.subr.bf16.mxu0 0
        %1384 = vmatpush1.bf16.xpose.msra.mxu0 %v1381
        %1385 = vmatprep.subr.bf16.mxu0 0
        %1386 = vmatpush1.bf16.xpose.msra.mxu0 0
        %1387 = vmatprep.subr.bf16.mxu0 0
        %1388 = vmatpush1.bf16.xpose.msra.mxu0 0
        %1389 = vmatprep.subr.bf16.mxu0 0
        %1390 = vmatpush1.bf16.xpose.msra.mxu0 0
        %1391 = vmatprep.subr.bf16.mxu0 0
        %1392 = vmatpush1.bf16.xpose.msra.mxu0 0
        %1393 = vmatprep.subr.bf16.mxu0 0
        %1394 = vmatpush1.bf16.xpose.msra.mxu0 0
        %1395 = vmatprep.subr.bf16.mxu0 0
        %1396 = vmatpush1.bf16.xpose.msra.mxu0 0
        %1397 = vmatprep.subr.bf16.mxu0 0
        %1398 = vmatpush1.bf16.xpose.msra.mxu0 0
        %1399 = vmatprep.subr.bf16.mxu0 0
        %1400 = vmatpush1.bf16.xpose.msra.mxu0 0
        %1401 = vmatprep.subr.bf16.mxu0 0
        %1402 = vmatpush1.bf16.xpose.msra.mxu0 0
        %1403 = vmatprep.subr.bf16.mxu0 0
        %1404 = vmatpush1.bf16.xpose.msra.mxu0 0
        %1405 = vmatprep.subr.bf16.mxu0 0
        %1406 = vmatpush1.bf16.xpose.msra.mxu0 0
        %1407 = vmatprep.subr.bf16.mxu0 0
        %1408 = vmatpush1.bf16.xpose.msra.mxu0 0
        %1409 = vmatprep.subr.bf16.mxu0 0
        %1410 = vmatpush1.bf16.xpose.msra.mxu0 0
        %1411 = vmatprep.subr.bf16.mxu0 0
        %1412 = vmatpush1.bf16.xpose.msra.mxu0 0
        %1413 = vmatprep.subr.bf16.mxu0 0
        %1414 = vmatpush1.bf16.xpose.msra.mxu0 0
        %1415 = vmatprep.mubr.bf16.mxu0 0
        %1416 = vmatmul.mubr.bf16.gmra.mrb[0].mxu0 %v1378
        %v1417 = vpop.f32.mrb[0].mxu0
        %v1418 = vadd.f32 0.0, %v1417
        %v1419 = vpop.f32.mrb[0].mxu0
        %v1420 = vpop.f32.mrb[0].mxu0
        %v1421 = vadd.f32 0.0, %v1420
        %v1422 = vpop.f32.mrb[0].mxu0
        %1423 = vdwg.mxu0
        %1425 = vrot.lane.b32.xlu0 %v1260, 96
        %v1426 = vpop.permute.xlu0 %1425
        %v1428 = vsel %vm1276, %v1260, 0
        %v1431 = vsel %vm1276, %v1426, 0
        %1433 = vmatprep.subr.bf16.mxu0 0
        %1434 = vmatpush1.bf16.xpose.msra.mxu0 %v1431
        %1435 = vmatprep.subr.bf16.mxu0 0
        %1436 = vmatpush1.bf16.xpose.msra.mxu0 0
        %1437 = vmatprep.subr.bf16.mxu0 0
        %1438 = vmatpush1.bf16.xpose.msra.mxu0 0
        %1439 = vmatprep.subr.bf16.mxu0 0
        %1440 = vmatpush1.bf16.xpose.msra.mxu0 0
        %1441 = vmatprep.subr.bf16.mxu0 0
        %1442 = vmatpush1.bf16.xpose.msra.mxu0 0
        %1443 = vmatprep.subr.bf16.mxu0 0
        %1444 = vmatpush1.bf16.xpose.msra.mxu0 0
        %1445 = vmatprep.subr.bf16.mxu0 0
        %1446 = vmatpush1.bf16.xpose.msra.mxu0 0
        %1447 = vmatprep.subr.bf16.mxu0 0
        %1448 = vmatpush1.bf16.xpose.msra.mxu0 0
        %1449 = vmatprep.subr.bf16.mxu0 0
        %1450 = vmatpush1.bf16.xpose.msra.mxu0 0
        %1451 = vmatprep.subr.bf16.mxu0 0
        %1452 = vmatpush1.bf16.xpose.msra.mxu0 0
        %1453 = vmatprep.subr.bf16.mxu0 0
        %1454 = vmatpush1.bf16.xpose.msra.mxu0 0
        %1455 = vmatprep.subr.bf16.mxu0 0
        %1456 = vmatpush1.bf16.xpose.msra.mxu0 0
        %1457 = vmatprep.subr.bf16.mxu0 0
        %1458 = vmatpush1.bf16.xpose.msra.mxu0 0
        %1459 = vmatprep.subr.bf16.mxu0 0
        %1460 = vmatpush1.bf16.xpose.msra.mxu0 0
        %1461 = vmatprep.subr.bf16.mxu0 0
        %1462 = vmatpush1.bf16.xpose.msra.mxu0 0
        %1463 = vmatprep.subr.bf16.mxu0 0
        %1464 = vmatpush1.bf16.xpose.msra.mxu0 0
        %1465 = vmatprep.mubr.bf16.mxu0 0
        %1466 = vmatmul.mubr.bf16.gmra.mrb[0].mxu0 %v1428
        %v1467 = vpop.f32.mrb[0].mxu0
        %v1468 = vadd.f32 0.0, %v1467
        %v1469 = vpop.f32.mrb[0].mxu0
        %v1470 = vpop.f32.mrb[0].mxu0
        %v1471 = vadd.f32 0.0, %v1470
        %v1472 = vpop.f32.mrb[0].mxu0
        %1473 = vdwg.mxu0
        %1475 = vrot.lane.b32.xlu0 %v1261, 96
        %v1476 = vpop.permute.xlu0 %1475
        %v1478 = vsel %vm1276, %v1261, 0
        %v1481 = vsel %vm1276, %v1476, 0
        %1483 = vmatprep.subr.bf16.mxu0 0
        %1484 = vmatpush1.bf16.xpose.msra.mxu0 %v1481
        %1485 = vmatprep.subr.bf16.mxu0 0
        %1486 = vmatpush1.bf16.xpose.msra.mxu0 0
        %1487 = vmatprep.subr.bf16.mxu0 0
        %1488 = vmatpush1.bf16.xpose.msra.mxu0 0
        %1489 = vmatprep.subr.bf16.mxu0 0
        %1490 = vmatpush1.bf16.xpose.msra.mxu0 0
        %1491 = vmatprep.subr.bf16.mxu0 0
        %1492 = vmatpush1.bf16.xpose.msra.mxu0 0
        %1493 = vmatprep.subr.bf16.mxu0 0
        %1494 = vmatpush1.bf16.xpose.msra.mxu0 0
        %1495 = vmatprep.subr.bf16.mxu0 0
        %1496 = vmatpush1.bf16.xpose.msra.mxu0 0
        %1497 = vmatprep.subr.bf16.mxu0 0
        %1498 = vmatpush1.bf16.xpose.msra.mxu0 0
        %1499 = vmatprep.subr.bf16.mxu0 0
        %1500 = vmatpush1.bf16.xpose.msra.mxu0 0
        %1501 = vmatprep.subr.bf16.mxu0 0
        %1502 = vmatpush1.bf16.xpose.msra.mxu0 0
        %1503 = vmatprep.subr.bf16.mxu0 0
        %1504 = vmatpush1.bf16.xpose.msra.mxu0 0
        %1505 = vmatprep.subr.bf16.mxu0 0
        %1506 = vmatpush1.bf16.xpose.msra.mxu0 0
        %1507 = vmatprep.subr.bf16.mxu0 0
        %1508 = vmatpush1.bf16.xpose.msra.mxu0 0
        %1509 = vmatprep.subr.bf16.mxu0 0
        %1510 = vmatpush1.bf16.xpose.msra.mxu0 0
        %1511 = vmatprep.subr.bf16.mxu0 0
        %1512 = vmatpush1.bf16.xpose.msra.mxu0 0
        %1513 = vmatprep.subr.bf16.mxu0 0
        %1514 = vmatpush1.bf16.xpose.msra.mxu0 0
        %1515 = vmatprep.mubr.bf16.mxu0 0
        %1516 = vmatmul.mubr.bf16.gmra.mrb[0].mxu0 %v1478
        %v1517 = vpop.f32.mrb[0].mxu0
        %v1518 = vadd.f32 0.0, %v1517
        %v1519 = vpop.f32.mrb[0].mxu0
        %v1520 = vpop.f32.mrb[0].mxu0
        %v1521 = vadd.f32 0.0, %v1520
        %v1522 = vpop.f32.mrb[0].mxu0
        %1523 = vdwg.mxu0
        %1525 = vrot.lane.b32.xlu0 %v1262, 96
        %v1526 = vpop.permute.xlu0 %1525
        %v1528 = vsel %vm1276, %v1262, 0
        %v1531 = vsel %vm1276, %v1526, 0
        %1533 = vmatprep.subr.bf16.mxu0 0
        %1534 = vmatpush1.bf16.xpose.msra.mxu0 %v1531
        %1535 = vmatprep.subr.bf16.mxu0 0
        %1536 = vmatpush1.bf16.xpose.msra.mxu0 0
        %1537 = vmatprep.subr.bf16.mxu0 0
        %1538 = vmatpush1.bf16.xpose.msra.mxu0 0
        %1539 = vmatprep.subr.bf16.mxu0 0
        %1540 = vmatpush1.bf16.xpose.msra.mxu0 0
        %1541 = vmatprep.subr.bf16.mxu0 0
        %1542 = vmatpush1.bf16.xpose.msra.mxu0 0
        %1543 = vmatprep.subr.bf16.mxu0 0
        %1544 = vmatpush1.bf16.xpose.msra.mxu0 0
        %1545 = vmatprep.subr.bf16.mxu0 0
        %1546 = vmatpush1.bf16.xpose.msra.mxu0 0
        %1547 = vmatprep.subr.bf16.mxu0 0
        %1548 = vmatpush1.bf16.xpose.msra.mxu0 0
        %1549 = vmatprep.subr.bf16.mxu0 0
        %1550 = vmatpush1.bf16.xpose.msra.mxu0 0
        %1551 = vmatprep.subr.bf16.mxu0 0
        %1552 = vmatpush1.bf16.xpose.msra.mxu0 0
        %1553 = vmatprep.subr.bf16.mxu0 0
        %1554 = vmatpush1.bf16.xpose.msra.mxu0 0
        %1555 = vmatprep.subr.bf16.mxu0 0
        %1556 = vmatpush1.bf16.xpose.msra.mxu0 0
        %1557 = vmatprep.subr.bf16.mxu0 0
        %1558 = vmatpush1.bf16.xpose.msra.mxu0 0
        %1559 = vmatprep.subr.bf16.mxu0 0
        %1560 = vmatpush1.bf16.xpose.msra.mxu0 0
        %1561 = vmatprep.subr.bf16.mxu0 0
        %1562 = vmatpush1.bf16.xpose.msra.mxu0 0
        %1563 = vmatprep.subr.bf16.mxu0 0
        %1564 = vmatpush1.bf16.xpose.msra.mxu0 0
        %1565 = vmatprep.mubr.bf16.mxu0 0
        %1566 = vmatmul.mubr.bf16.gmra.mrb[0].mxu0 %v1528
        %v1567 = vpop.f32.mrb[0].mxu0
        %v1568 = vadd.f32 0.0, %v1567
        %v1569 = vpop.f32.mrb[0].mxu0
        %v1570 = vpop.f32.mrb[0].mxu0
        %v1571 = vadd.f32 0.0, %v1570
        %v1572 = vpop.f32.mrb[0].mxu0
        %1573 = vdwg.mxu0
        %1575 = vrot.lane.b32.xlu0 %v1263, 96
        %v1576 = vpop.permute.xlu0 %1575
        %v1578 = vsel %vm1276, %v1263, 0
        %v1581 = vsel %vm1276, %v1576, 0
        %1583 = vmatprep.subr.bf16.mxu0 0
        %1584 = vmatpush1.bf16.xpose.msra.mxu0 %v1581
        %1585 = vmatprep.subr.bf16.mxu0 0
        %1586 = vmatpush1.bf16.xpose.msra.mxu0 0
        %1587 = vmatprep.subr.bf16.mxu0 0
        %1588 = vmatpush1.bf16.xpose.msra.mxu0 0
        %1589 = vmatprep.subr.bf16.mxu0 0
        %1590 = vmatpush1.bf16.xpose.msra.mxu0 0
        %1591 = vmatprep.subr.bf16.mxu0 0
        %1592 = vmatpush1.bf16.xpose.msra.mxu0 0
        %1593 = vmatprep.subr.bf16.mxu0 0
        %1594 = vmatpush1.bf16.xpose.msra.mxu0 0
        %1595 = vmatprep.subr.bf16.mxu0 0
        %1596 = vmatpush1.bf16.xpose.msra.mxu0 0
        %1597 = vmatprep.subr.bf16.mxu0 0
        %1598 = vmatpush1.bf16.xpose.msra.mxu0 0
        %1599 = vmatprep.subr.bf16.mxu0 0
        %1600 = vmatpush1.bf16.xpose.msra.mxu0 0
        %1601 = vmatprep.subr.bf16.mxu0 0
        %1602 = vmatpush1.bf16.xpose.msra.mxu0 0
        %1603 = vmatprep.subr.bf16.mxu0 0
        %1604 = vmatpush1.bf16.xpose.msra.mxu0 0
        %1605 = vmatprep.subr.bf16.mxu0 0
        %1606 = vmatpush1.bf16.xpose.msra.mxu0 0
        %1607 = vmatprep.subr.bf16.mxu0 0
        %1608 = vmatpush1.bf16.xpose.msra.mxu0 0
        %1609 = vmatprep.subr.bf16.mxu0 0
        %1610 = vmatpush1.bf16.xpose.msra.mxu0 0
        %1611 = vmatprep.subr.bf16.mxu0 0
        %1612 = vmatpush1.bf16.xpose.msra.mxu0 0
        %1613 = vmatprep.subr.bf16.mxu0 0
        %1614 = vmatpush1.bf16.xpose.msra.mxu0 0
        %1615 = vmatprep.mubr.bf16.mxu0 0
        %1616 = vmatmul.mubr.bf16.gmra.mrb[0].mxu0 %v1578
        %v1617 = vpop.f32.mrb[0].mxu0
        %v1618 = vadd.f32 0.0, %v1617
        %v1619 = vpop.f32.mrb[0].mxu0
        %v1620 = vpop.f32.mrb[0].mxu0
        %v1621 = vadd.f32 0.0, %v1620
        %v1622 = vpop.f32.mrb[0].mxu0
        %1623 = vdwg.mxu0
        %1625 = vrot.lane.b32.xlu0 %v1264, 96
        %v1626 = vpop.permute.xlu0 %1625
        %v1628 = vsel %vm1276, %v1264, 0
        %v1631 = vsel %vm1276, %v1626, 0
        %1633 = vmatprep.subr.bf16.mxu0 0
        %1634 = vmatpush1.bf16.xpose.msra.mxu0 %v1631
        %1635 = vmatprep.subr.bf16.mxu0 0
        %1636 = vmatpush1.bf16.xpose.msra.mxu0 0
        %1637 = vmatprep.subr.bf16.mxu0 0
        %1638 = vmatpush1.bf16.xpose.msra.mxu0 0
        %1639 = vmatprep.subr.bf16.mxu0 0
        %1640 = vmatpush1.bf16.xpose.msra.mxu0 0
        %1641 = vmatprep.subr.bf16.mxu0 0
        %1642 = vmatpush1.bf16.xpose.msra.mxu0 0
        %1643 = vmatprep.subr.bf16.mxu0 0
        %1644 = vmatpush1.bf16.xpose.msra.mxu0 0
        %1645 = vmatprep.subr.bf16.mxu0 0
        %1646 = vmatpush1.bf16.xpose.msra.mxu0 0
        %1647 = vmatprep.subr.bf16.mxu0 0
        %1648 = vmatpush1.bf16.xpose.msra.mxu0 0
        %1649 = vmatprep.subr.bf16.mxu0 0
        %1650 = vmatpush1.bf16.xpose.msra.mxu0 0
        %1651 = vmatprep.subr.bf16.mxu0 0
        %1652 = vmatpush1.bf16.xpose.msra.mxu0 0
        %1653 = vmatprep.subr.bf16.mxu0 0
        %1654 = vmatpush1.bf16.xpose.msra.mxu0 0
        %1655 = vmatprep.subr.bf16.mxu0 0
        %1656 = vmatpush1.bf16.xpose.msra.mxu0 0
        %1657 = vmatprep.subr.bf16.mxu0 0
        %1658 = vmatpush1.bf16.xpose.msra.mxu0 0
        %1659 = vmatprep.subr.bf16.mxu0 0
        %1660 = vmatpush1.bf16.xpose.msra.mxu0 0
        %1661 = vmatprep.subr.bf16.mxu0 0
        %1662 = vmatpush1.bf16.xpose.msra.mxu0 0
        %1663 = vmatprep.subr.bf16.mxu0 0
        %1664 = vmatpush1.bf16.xpose.msra.mxu0 0
        %1665 = vmatprep.mubr.bf16.mxu0 0
        %1666 = vmatmul.mubr.bf16.gmra.mrb[0].mxu0 %v1628
        %v1667 = vpop.f32.mrb[0].mxu0
        %v1668 = vadd.f32 0.0, %v1667
        %v1669 = vpop.f32.mrb[0].mxu0
        %v1670 = vpop.f32.mrb[0].mxu0
        %v1671 = vadd.f32 0.0, %v1670
        %v1672 = vpop.f32.mrb[0].mxu0
        %1673 = vdwg.mxu0
        %1675 = vrot.lane.b32.xlu0 %v1265, 96
        %v1676 = vpop.permute.xlu0 %1675
        %v1678 = vsel %vm1276, %v1265, 0
        %v1681 = vsel %vm1276, %v1676, 0
        %1683 = vmatprep.subr.bf16.mxu0 0
        %1684 = vmatpush1.bf16.xpose.msra.mxu0 %v1681
        %1685 = vmatprep.subr.bf16.mxu0 0
        %1686 = vmatpush1.bf16.xpose.msra.mxu0 0
        %1687 = vmatprep.subr.bf16.mxu0 0
        %1688 = vmatpush1.bf16.xpose.msra.mxu0 0
        %1689 = vmatprep.subr.bf16.mxu0 0
        %1690 = vmatpush1.bf16.xpose.msra.mxu0 0
        %1691 = vmatprep.subr.bf16.mxu0 0
        %1692 = vmatpush1.bf16.xpose.msra.mxu0 0
        %1693 = vmatprep.subr.bf16.mxu0 0
        %1694 = vmatpush1.bf16.xpose.msra.mxu0 0
        %1695 = vmatprep.subr.bf16.mxu0 0
        %1696 = vmatpush1.bf16.xpose.msra.mxu0 0
        %1697 = vmatprep.subr.bf16.mxu0 0
        %1698 = vmatpush1.bf16.xpose.msra.mxu0 0
        %1699 = vmatprep.subr.bf16.mxu0 0
        %1700 = vmatpush1.bf16.xpose.msra.mxu0 0
        %1701 = vmatprep.subr.bf16.mxu0 0
        %1702 = vmatpush1.bf16.xpose.msra.mxu0 0
        %1703 = vmatprep.subr.bf16.mxu0 0
        %1704 = vmatpush1.bf16.xpose.msra.mxu0 0
        %1705 = vmatprep.subr.bf16.mxu0 0
        %1706 = vmatpush1.bf16.xpose.msra.mxu0 0
        %1707 = vmatprep.subr.bf16.mxu0 0
        %1708 = vmatpush1.bf16.xpose.msra.mxu0 0
        %1709 = vmatprep.subr.bf16.mxu0 0
        %1710 = vmatpush1.bf16.xpose.msra.mxu0 0
        %1711 = vmatprep.subr.bf16.mxu0 0
        %1712 = vmatpush1.bf16.xpose.msra.mxu0 0
        %1713 = vmatprep.subr.bf16.mxu0 0
        %1714 = vmatpush1.bf16.xpose.msra.mxu0 0
        %1715 = vmatprep.mubr.bf16.mxu0 0
        %1716 = vmatmul.mubr.bf16.gmra.mrb[0].mxu0 %v1678
        %v1717 = vpop.f32.mrb[0].mxu0
        %v1718 = vadd.f32 0.0, %v1717
        %v1719 = vpop.f32.mrb[0].mxu0
        %v1720 = vpop.f32.mrb[0].mxu0
        %v1721 = vadd.f32 0.0, %v1720
        %v1722 = vpop.f32.mrb[0].mxu0
        %1723 = vdwg.mxu0
        %1725 = vrot.lane.b32.xlu0 %v1266, 96
        %v1726 = vpop.permute.xlu0 %1725
        %v1728 = vsel %vm1276, %v1266, 0
        %v1731 = vsel %vm1276, %v1726, 0
        %1733 = vmatprep.subr.bf16.mxu0 0
        %1734 = vmatpush1.bf16.xpose.msra.mxu0 %v1731
        %1735 = vmatprep.subr.bf16.mxu0 0
        %1736 = vmatpush1.bf16.xpose.msra.mxu0 0
        %1737 = vmatprep.subr.bf16.mxu0 0
        %1738 = vmatpush1.bf16.xpose.msra.mxu0 0
        %1739 = vmatprep.subr.bf16.mxu0 0
        %1740 = vmatpush1.bf16.xpose.msra.mxu0 0
        %1741 = vmatprep.subr.bf16.mxu0 0
        %1742 = vmatpush1.bf16.xpose.msra.mxu0 0
        %1743 = vmatprep.subr.bf16.mxu0 0
        %1744 = vmatpush1.bf16.xpose.msra.mxu0 0
        %1745 = vmatprep.subr.bf16.mxu0 0
        %1746 = vmatpush1.bf16.xpose.msra.mxu0 0
        %1747 = vmatprep.subr.bf16.mxu0 0
        %1748 = vmatpush1.bf16.xpose.msra.mxu0 0
        %1749 = vmatprep.subr.bf16.mxu0 0
        %1750 = vmatpush1.bf16.xpose.msra.mxu0 0
        %1751 = vmatprep.subr.bf16.mxu0 0
        %1752 = vmatpush1.bf16.xpose.msra.mxu0 0
        %1753 = vmatprep.subr.bf16.mxu0 0
        %1754 = vmatpush1.bf16.xpose.msra.mxu0 0
        %1755 = vmatprep.subr.bf16.mxu0 0
        %1756 = vmatpush1.bf16.xpose.msra.mxu0 0
        %1757 = vmatprep.subr.bf16.mxu0 0
        %1758 = vmatpush1.bf16.xpose.msra.mxu0 0
        %1759 = vmatprep.subr.bf16.mxu0 0
        %1760 = vmatpush1.bf16.xpose.msra.mxu0 0
        %1761 = vmatprep.subr.bf16.mxu0 0
        %1762 = vmatpush1.bf16.xpose.msra.mxu0 0
        %1763 = vmatprep.subr.bf16.mxu0 0
        %1764 = vmatpush1.bf16.xpose.msra.mxu0 0
        %1765 = vmatprep.mubr.bf16.mxu0 0
        %1766 = vmatmul.mubr.bf16.gmra.mrb[0].mxu0 %v1728
        %v1767 = vpop.f32.mrb[0].mxu0
        %v1768 = vadd.f32 0.0, %v1767
        %v1769 = vpop.f32.mrb[0].mxu0
        %v1770 = vpop.f32.mrb[0].mxu0
        %v1771 = vadd.f32 0.0, %v1770
        %v1772 = vpop.f32.mrb[0].mxu0
        %1773 = vdwg.mxu0
        %1775 = vrot.lane.b32.xlu0 %v1267, 96
        %v1776 = vpop.permute.xlu0 %1775
        %v1778 = vsel %vm1276, %v1267, 0
        %v1781 = vsel %vm1276, %v1776, 0
        %1783 = vmatprep.subr.bf16.mxu0 0
        %1784 = vmatpush1.bf16.xpose.msra.mxu0 %v1781
        %1785 = vmatprep.subr.bf16.mxu0 0
        %1786 = vmatpush1.bf16.xpose.msra.mxu0 0
        %1787 = vmatprep.subr.bf16.mxu0 0
        %1788 = vmatpush1.bf16.xpose.msra.mxu0 0
        %1789 = vmatprep.subr.bf16.mxu0 0
        %1790 = vmatpush1.bf16.xpose.msra.mxu0 0
        %1791 = vmatprep.subr.bf16.mxu0 0
        %1792 = vmatpush1.bf16.xpose.msra.mxu0 0
        %1793 = vmatprep.subr.bf16.mxu0 0
        %1794 = vmatpush1.bf16.xpose.msra.mxu0 0
        %1795 = vmatprep.subr.bf16.mxu0 0
        %1796 = vmatpush1.bf16.xpose.msra.mxu0 0
        %1797 = vmatprep.subr.bf16.mxu0 0
        %1798 = vmatpush1.bf16.xpose.msra.mxu0 0
        %1799 = vmatprep.subr.bf16.mxu0 0
        %1800 = vmatpush1.bf16.xpose.msra.mxu0 0
        %1801 = vmatprep.subr.bf16.mxu0 0
        %1802 = vmatpush1.bf16.xpose.msra.mxu0 0
        %1803 = vmatprep.subr.bf16.mxu0 0
        %1804 = vmatpush1.bf16.xpose.msra.mxu0 0
        %1805 = vmatprep.subr.bf16.mxu0 0
        %1806 = vmatpush1.bf16.xpose.msra.mxu0 0
        %1807 = vmatprep.subr.bf16.mxu0 0
        %1808 = vmatpush1.bf16.xpose.msra.mxu0 0
        %1809 = vmatprep.subr.bf16.mxu0 0
        %1810 = vmatpush1.bf16.xpose.msra.mxu0 0
        %1811 = vmatprep.subr.bf16.mxu0 0
        %1812 = vmatpush1.bf16.xpose.msra.mxu0 0
        %1813 = vmatprep.subr.bf16.mxu0 0
        %1814 = vmatpush1.bf16.xpose.msra.mxu0 0
        %1815 = vmatprep.mubr.bf16.mxu0 0
        %1816 = vmatmul.mubr.bf16.gmra.mrb[0].mxu0 %v1778
        %v1817 = vpop.f32.mrb[0].mxu0
        %v1818 = vadd.f32 0.0, %v1817
        %v1819 = vpop.f32.mrb[0].mxu0
        %v1820 = vpop.f32.mrb[0].mxu0
        %v1821 = vadd.f32 0.0, %v1820
        %v1822 = vpop.f32.mrb[0].mxu0
        %1823 = vdwg.mxu0
        %1825 = vrot.lane.b32.xlu0 %v1268, 96
        %v1826 = vpop.permute.xlu0 %1825
        %v1828 = vsel %vm1276, %v1268, 0
        %v1831 = vsel %vm1276, %v1826, 0
        %1833 = vmatprep.subr.bf16.mxu0 0
        %1834 = vmatpush1.bf16.xpose.msra.mxu0 %v1831
        %1835 = vmatprep.subr.bf16.mxu0 0
        %1836 = vmatpush1.bf16.xpose.msra.mxu0 0
        %1837 = vmatprep.subr.bf16.mxu0 0
        %1838 = vmatpush1.bf16.xpose.msra.mxu0 0
        %1839 = vmatprep.subr.bf16.mxu0 0
        %1840 = vmatpush1.bf16.xpose.msra.mxu0 0
        %1841 = vmatprep.subr.bf16.mxu0 0
        %1842 = vmatpush1.bf16.xpose.msra.mxu0 0
        %1843 = vmatprep.subr.bf16.mxu0 0
        %1844 = vmatpush1.bf16.xpose.msra.mxu0 0
        %1845 = vmatprep.subr.bf16.mxu0 0
        %1846 = vmatpush1.bf16.xpose.msra.mxu0 0
        %1847 = vmatprep.subr.bf16.mxu0 0
        %1848 = vmatpush1.bf16.xpose.msra.mxu0 0
        %1849 = vmatprep.subr.bf16.mxu0 0
        %1850 = vmatpush1.bf16.xpose.msra.mxu0 0
        %1851 = vmatprep.subr.bf16.mxu0 0
        %1852 = vmatpush1.bf16.xpose.msra.mxu0 0
        %1853 = vmatprep.subr.bf16.mxu0 0
        %1854 = vmatpush1.bf16.xpose.msra.mxu0 0
        %1855 = vmatprep.subr.bf16.mxu0 0
        %1856 = vmatpush1.bf16.xpose.msra.mxu0 0
        %1857 = vmatprep.subr.bf16.mxu0 0
        %1858 = vmatpush1.bf16.xpose.msra.mxu0 0
        %1859 = vmatprep.subr.bf16.mxu0 0
        %1860 = vmatpush1.bf16.xpose.msra.mxu0 0
        %1861 = vmatprep.subr.bf16.mxu0 0
        %1862 = vmatpush1.bf16.xpose.msra.mxu0 0
        %1863 = vmatprep.subr.bf16.mxu0 0
        %1864 = vmatpush1.bf16.xpose.msra.mxu0 0
        %1865 = vmatprep.mubr.bf16.mxu0 0
        %1866 = vmatmul.mubr.bf16.gmra.mrb[0].mxu0 %v1828
        %v1867 = vpop.f32.mrb[0].mxu0
        %v1868 = vadd.f32 0.0, %v1867
        %v1869 = vpop.f32.mrb[0].mxu0
        %v1870 = vpop.f32.mrb[0].mxu0
        %v1871 = vadd.f32 0.0, %v1870
        %v1872 = vpop.f32.mrb[0].mxu0
        %1873 = vdwg.mxu0
        %1875 = vrot.lane.b32.xlu0 %v1269, 96
        %v1876 = vpop.permute.xlu0 %1875
        %v1878 = vsel %vm1276, %v1269, 0
        %v1881 = vsel %vm1276, %v1876, 0
        %1883 = vmatprep.subr.bf16.mxu0 0
        %1884 = vmatpush1.bf16.xpose.msra.mxu0 %v1881
        %1885 = vmatprep.subr.bf16.mxu0 0
        %1886 = vmatpush1.bf16.xpose.msra.mxu0 0
        %1887 = vmatprep.subr.bf16.mxu0 0
        %1888 = vmatpush1.bf16.xpose.msra.mxu0 0
        %1889 = vmatprep.subr.bf16.mxu0 0
        %1890 = vmatpush1.bf16.xpose.msra.mxu0 0
        %1891 = vmatprep.subr.bf16.mxu0 0
        %1892 = vmatpush1.bf16.xpose.msra.mxu0 0
        %1893 = vmatprep.subr.bf16.mxu0 0
        %1894 = vmatpush1.bf16.xpose.msra.mxu0 0
        %1895 = vmatprep.subr.bf16.mxu0 0
        %1896 = vmatpush1.bf16.xpose.msra.mxu0 0
        %1897 = vmatprep.subr.bf16.mxu0 0
        %1898 = vmatpush1.bf16.xpose.msra.mxu0 0
        %1899 = vmatprep.subr.bf16.mxu0 0
        %1900 = vmatpush1.bf16.xpose.msra.mxu0 0
        %1901 = vmatprep.subr.bf16.mxu0 0
        %1902 = vmatpush1.bf16.xpose.msra.mxu0 0
        %1903 = vmatprep.subr.bf16.mxu0 0
        %1904 = vmatpush1.bf16.xpose.msra.mxu0 0
        %1905 = vmatprep.subr.bf16.mxu0 0
        %1906 = vmatpush1.bf16.xpose.msra.mxu0 0
        %1907 = vmatprep.subr.bf16.mxu0 0
        %1908 = vmatpush1.bf16.xpose.msra.mxu0 0
        %1909 = vmatprep.subr.bf16.mxu0 0
        %1910 = vmatpush1.bf16.xpose.msra.mxu0 0
        %1911 = vmatprep.subr.bf16.mxu0 0
        %1912 = vmatpush1.bf16.xpose.msra.mxu0 0
        %1913 = vmatprep.subr.bf16.mxu0 0
        %1914 = vmatpush1.bf16.xpose.msra.mxu0 0
        %1915 = vmatprep.mubr.bf16.mxu0 0
        %1916 = vmatmul.mubr.bf16.gmra.mrb[0].mxu0 %v1878
        %v1917 = vpop.f32.mrb[0].mxu0
        %v1918 = vadd.f32 0.0, %v1917
        %v1919 = vpop.f32.mrb[0].mxu0
        %v1920 = vpop.f32.mrb[0].mxu0
        %v1921 = vadd.f32 0.0, %v1920
        %v1922 = vpop.f32.mrb[0].mxu0
        %1923 = vdwg.mxu0
        %1925 = vrot.lane.b32.xlu0 %v1270, 96
        %v1926 = vpop.permute.xlu0 %1925
        %v1928 = vsel %vm1276, %v1270, 0
        %v1931 = vsel %vm1276, %v1926, 0
        %1933 = vmatprep.subr.bf16.mxu0 0
        %1934 = vmatpush1.bf16.xpose.msra.mxu0 %v1931
        %1935 = vmatprep.subr.bf16.mxu0 0
        %1936 = vmatpush1.bf16.xpose.msra.mxu0 0
        %1937 = vmatprep.subr.bf16.mxu0 0
        %1938 = vmatpush1.bf16.xpose.msra.mxu0 0
        %1939 = vmatprep.subr.bf16.mxu0 0
        %1940 = vmatpush1.bf16.xpose.msra.mxu0 0
        %1941 = vmatprep.subr.bf16.mxu0 0
        %1942 = vmatpush1.bf16.xpose.msra.mxu0 0
        %1943 = vmatprep.subr.bf16.mxu0 0
        %1944 = vmatpush1.bf16.xpose.msra.mxu0 0
        %1945 = vmatprep.subr.bf16.mxu0 0
        %1946 = vmatpush1.bf16.xpose.msra.mxu0 0
        %1947 = vmatprep.subr.bf16.mxu0 0
        %1948 = vmatpush1.bf16.xpose.msra.mxu0 0
        %1949 = vmatprep.subr.bf16.mxu0 0
        %1950 = vmatpush1.bf16.xpose.msra.mxu0 0
        %1951 = vmatprep.subr.bf16.mxu0 0
        %1952 = vmatpush1.bf16.xpose.msra.mxu0 0
        %1953 = vmatprep.subr.bf16.mxu0 0
        %1954 = vmatpush1.bf16.xpose.msra.mxu0 0
        %1955 = vmatprep.subr.bf16.mxu0 0
        %1956 = vmatpush1.bf16.xpose.msra.mxu0 0
        %1957 = vmatprep.subr.bf16.mxu0 0
        %1958 = vmatpush1.bf16.xpose.msra.mxu0 0
        %1959 = vmatprep.subr.bf16.mxu0 0
        %1960 = vmatpush1.bf16.xpose.msra.mxu0 0
        %1961 = vmatprep.subr.bf16.mxu0 0
        %1962 = vmatpush1.bf16.xpose.msra.mxu0 0
        %1963 = vmatprep.subr.bf16.mxu0 0
        %1964 = vmatpush1.bf16.xpose.msra.mxu0 0
        %1965 = vmatprep.mubr.bf16.mxu0 0
        %1966 = vmatmul.mubr.bf16.gmra.mrb[0].mxu0 %v1928
        %v1967 = vpop.f32.mrb[0].mxu0
        %v1968 = vadd.f32 0.0, %v1967
        %v1969 = vpop.f32.mrb[0].mxu0
        %v1970 = vpop.f32.mrb[0].mxu0
        %v1971 = vadd.f32 0.0, %v1970
        %v1972 = vpop.f32.mrb[0].mxu0
        %1973 = vdwg.mxu0
        %1975 = vrot.lane.b32.xlu0 %v1271, 96
        %v1976 = vpop.permute.xlu0 %1975
        %v1978 = vsel %vm1276, %v1271, 0
        %v1981 = vsel %vm1276, %v1976, 0
        %1983 = vmatprep.subr.bf16.mxu0 0
        %1984 = vmatpush1.bf16.xpose.msra.mxu0 %v1981
        %1985 = vmatprep.subr.bf16.mxu0 0
        %1986 = vmatpush1.bf16.xpose.msra.mxu0 0
        %1987 = vmatprep.subr.bf16.mxu0 0
        %1988 = vmatpush1.bf16.xpose.msra.mxu0 0
        %1989 = vmatprep.subr.bf16.mxu0 0
        %1990 = vmatpush1.bf16.xpose.msra.mxu0 0
        %1991 = vmatprep.subr.bf16.mxu0 0
        %1992 = vmatpush1.bf16.xpose.msra.mxu0 0
        %1993 = vmatprep.subr.bf16.mxu0 0
        %1994 = vmatpush1.bf16.xpose.msra.mxu0 0
        %1995 = vmatprep.subr.bf16.mxu0 0
        %1996 = vmatpush1.bf16.xpose.msra.mxu0 0
        %1997 = vmatprep.subr.bf16.mxu0 0
        %1998 = vmatpush1.bf16.xpose.msra.mxu0 0
        %1999 = vmatprep.subr.bf16.mxu0 0
        %2000 = vmatpush1.bf16.xpose.msra.mxu0 0
        %2001 = vmatprep.subr.bf16.mxu0 0
        %2002 = vmatpush1.bf16.xpose.msra.mxu0 0
        %2003 = vmatprep.subr.bf16.mxu0 0
        %2004 = vmatpush1.bf16.xpose.msra.mxu0 0
        %2005 = vmatprep.subr.bf16.mxu0 0
        %2006 = vmatpush1.bf16.xpose.msra.mxu0 0
        %2007 = vmatprep.subr.bf16.mxu0 0
        %2008 = vmatpush1.bf16.xpose.msra.mxu0 0
        %2009 = vmatprep.subr.bf16.mxu0 0
        %2010 = vmatpush1.bf16.xpose.msra.mxu0 0
        %2011 = vmatprep.subr.bf16.mxu0 0
        %2012 = vmatpush1.bf16.xpose.msra.mxu0 0
        %2013 = vmatprep.subr.bf16.mxu0 0
        %2014 = vmatpush1.bf16.xpose.msra.mxu0 0
        %2015 = vmatprep.mubr.bf16.mxu0 0
        %2016 = vmatmul.mubr.bf16.gmra.mrb[0].mxu0 %v1978
        %v2017 = vpop.f32.mrb[0].mxu0
        %v2018 = vadd.f32 0.0, %v2017
        %v2019 = vpop.f32.mrb[0].mxu0
        %v2020 = vpop.f32.mrb[0].mxu0
        %v2021 = vadd.f32 0.0, %v2020
        %v2022 = vpop.f32.mrb[0].mxu0
        %2023 = vdwg.mxu0
        %2025 = vrot.lane.b32.xlu0 %v1272, 96
        %v2026 = vpop.permute.xlu0 %2025
        %v2028 = vsel %vm1276, %v1272, 0
        %v2031 = vsel %vm1276, %v2026, 0
        %2033 = vmatprep.subr.bf16.mxu0 0
        %2034 = vmatpush1.bf16.xpose.msra.mxu0 %v2031
        %2035 = vmatprep.subr.bf16.mxu0 0
        %2036 = vmatpush1.bf16.xpose.msra.mxu0 0
        %2037 = vmatprep.subr.bf16.mxu0 0
        %2038 = vmatpush1.bf16.xpose.msra.mxu0 0
        %2039 = vmatprep.subr.bf16.mxu0 0
        %2040 = vmatpush1.bf16.xpose.msra.mxu0 0
        %2041 = vmatprep.subr.bf16.mxu0 0
        %2042 = vmatpush1.bf16.xpose.msra.mxu0 0
        %2043 = vmatprep.subr.bf16.mxu0 0
        %2044 = vmatpush1.bf16.xpose.msra.mxu0 0
        %2045 = vmatprep.subr.bf16.mxu0 0
        %2046 = vmatpush1.bf16.xpose.msra.mxu0 0
        %2047 = vmatprep.subr.bf16.mxu0 0
        %2048 = vmatpush1.bf16.xpose.msra.mxu0 0
        %2049 = vmatprep.subr.bf16.mxu0 0
        %2050 = vmatpush1.bf16.xpose.msra.mxu0 0
        %2051 = vmatprep.subr.bf16.mxu0 0
        %2052 = vmatpush1.bf16.xpose.msra.mxu0 0
        %2053 = vmatprep.subr.bf16.mxu0 0
        %2054 = vmatpush1.bf16.xpose.msra.mxu0 0
        %2055 = vmatprep.subr.bf16.mxu0 0
        %2056 = vmatpush1.bf16.xpose.msra.mxu0 0
        %2057 = vmatprep.subr.bf16.mxu0 0
        %2058 = vmatpush1.bf16.xpose.msra.mxu0 0
        %2059 = vmatprep.subr.bf16.mxu0 0
        %2060 = vmatpush1.bf16.xpose.msra.mxu0 0
        %2061 = vmatprep.subr.bf16.mxu0 0
        %2062 = vmatpush1.bf16.xpose.msra.mxu0 0
        %2063 = vmatprep.subr.bf16.mxu0 0
        %2064 = vmatpush1.bf16.xpose.msra.mxu0 0
        %2065 = vmatprep.mubr.bf16.mxu0 0
        %2066 = vmatmul.mubr.bf16.gmra.mrb[0].mxu0 %v2028
        %v2067 = vpop.f32.mrb[0].mxu0
        %v2068 = vadd.f32 0.0, %v2067
        %v2069 = vpop.f32.mrb[0].mxu0
        %v2070 = vpop.f32.mrb[0].mxu0
        %v2071 = vadd.f32 0.0, %v2070
        %v2072 = vpop.f32.mrb[0].mxu0
        %2073 = vdwg.mxu0
        %vm2074 = vcmask 130048
        %v2075 = vsel %vm2074, %v1318, -inf
        %2076 = vmax.xlane.f32.xlu0 %v2075
        %v2077 = vpop.xlane.xlu0 %2076
        %v2078 = vsel %vm2074, %v1321, -inf
        %2079 = vmax.xlane.f32.xlu0 %v2078
        %v2080 = vpop.xlane.xlu0 %2079
        %v2081 = vsel %vm2074, %v1368, -inf
        %2082 = vmax.xlane.f32.xlu0 %v2081
        %v2083 = vpop.xlane.xlu0 %2082
        %v2084 = vsel %vm2074, %v1371, -inf
        %2085 = vmax.xlane.f32.xlu0 %v2084
        %v2086 = vpop.xlane.xlu0 %2085
        %v2087 = vsel %vm2074, %v1418, -inf
        %2088 = vmax.xlane.f32.xlu0 %v2087
        %v2089 = vpop.xlane.xlu0 %2088
        %v2090 = vsel %vm2074, %v1421, -inf
        %2091 = vmax.xlane.f32.xlu0 %v2090
        %v2092 = vpop.xlane.xlu0 %2091
        %v2093 = vsel %vm2074, %v1468, -inf
        %2094 = vmax.xlane.f32.xlu0 %v2093
        %v2095 = vpop.xlane.xlu0 %2094
        %v2096 = vsel %vm2074, %v1471, -inf
        %2097 = vmax.xlane.f32.xlu0 %v2096
        %v2098 = vpop.xlane.xlu0 %2097
        %v2099 = vsel %vm2074, %v1518, -inf
        %2100 = vmax.xlane.f32.xlu0 %v2099
        %v2101 = vpop.xlane.xlu0 %2100
        %v2102 = vsel %vm2074, %v1521, -inf
        %2103 = vmax.xlane.f32.xlu0 %v2102
        %v2104 = vpop.xlane.xlu0 %2103
        %v2105 = vsel %vm2074, %v1568, -inf
        %2106 = vmax.xlane.f32.xlu0 %v2105
        %v2107 = vpop.xlane.xlu0 %2106
        %v2108 = vsel %vm2074, %v1571, -inf
        %2109 = vmax.xlane.f32.xlu0 %v2108
        %v2110 = vpop.xlane.xlu0 %2109
        %v2111 = vsel %vm2074, %v1618, -inf
        %2112 = vmax.xlane.f32.xlu0 %v2111
        %v2113 = vpop.xlane.xlu0 %2112
        %v2114 = vsel %vm2074, %v1621, -inf
        %2115 = vmax.xlane.f32.xlu0 %v2114
        %v2116 = vpop.xlane.xlu0 %2115
        %v2117 = vsel %vm2074, %v1668, -inf
        %2118 = vmax.xlane.f32.xlu0 %v2117
        %v2119 = vpop.xlane.xlu0 %2118
        %v2120 = vsel %vm2074, %v1671, -inf
        %2121 = vmax.xlane.f32.xlu0 %v2120
        %v2122 = vpop.xlane.xlu0 %2121
        %v2123 = vsel %vm2074, %v1718, -inf
        %2124 = vmax.xlane.f32.xlu0 %v2123
        %v2125 = vpop.xlane.xlu0 %2124
        %v2126 = vsel %vm2074, %v1721, -inf
        %2127 = vmax.xlane.f32.xlu0 %v2126
        %v2128 = vpop.xlane.xlu0 %2127
        %v2129 = vsel %vm2074, %v1768, -inf
        %2130 = vmax.xlane.f32.xlu0 %v2129
        %v2131 = vpop.xlane.xlu0 %2130
        %v2132 = vsel %vm2074, %v1771, -inf
        %2133 = vmax.xlane.f32.xlu0 %v2132
        %v2134 = vpop.xlane.xlu0 %2133
        %v2135 = vsel %vm2074, %v1818, -inf
        %2136 = vmax.xlane.f32.xlu0 %v2135
        %v2137 = vpop.xlane.xlu0 %2136
        %v2138 = vsel %vm2074, %v1821, -inf
        %2139 = vmax.xlane.f32.xlu0 %v2138
        %v2140 = vpop.xlane.xlu0 %2139
        %v2141 = vsel %vm2074, %v1868, -inf
        %2142 = vmax.xlane.f32.xlu0 %v2141
        %v2143 = vpop.xlane.xlu0 %2142
        %v2144 = vsel %vm2074, %v1871, -inf
        %2145 = vmax.xlane.f32.xlu0 %v2144
        %v2146 = vpop.xlane.xlu0 %2145
        %v2147 = vsel %vm2074, %v1918, -inf
        %2148 = vmax.xlane.f32.xlu0 %v2147
        %v2149 = vpop.xlane.xlu0 %2148
        %v2150 = vsel %vm2074, %v1921, -inf
        %2151 = vmax.xlane.f32.xlu0 %v2150
        %v2152 = vpop.xlane.xlu0 %2151
        %v2153 = vsel %vm2074, %v1968, -inf
        %2154 = vmax.xlane.f32.xlu0 %v2153
        %v2155 = vpop.xlane.xlu0 %2154
        %v2156 = vsel %vm2074, %v1971, -inf
        %2157 = vmax.xlane.f32.xlu0 %v2156
        %v2158 = vpop.xlane.xlu0 %2157
        %v2159 = vsel %vm2074, %v2018, -inf
        %2160 = vmax.xlane.f32.xlu0 %v2159
        %v2161 = vpop.xlane.xlu0 %2160
        %v2162 = vsel %vm2074, %v2021, -inf
        %2163 = vmax.xlane.f32.xlu0 %v2162
        %v2164 = vpop.xlane.xlu0 %2163
        %v2165 = vsel %vm2074, %v2068, -inf
        %2166 = vmax.xlane.f32.xlu0 %v2165
        %v2167 = vpop.xlane.xlu0 %2166
        %v2168 = vsel %vm2074, %v2071, -inf
        %2169 = vmax.xlane.f32.xlu0 %v2168
        %v2170 = vpop.xlane.xlu0 %2169
        %v2171 = vsub.f32 %v1318, %v2077
        %v2172 = vsub.f32 %v1321, %v2080
        %v2173 = vsub.f32 %v1368, %v2083
        %v2174 = vsub.f32 %v1371, %v2086
        %v2175 = vsub.f32 %v1418, %v2089
        %v2176 = vsub.f32 %v1421, %v2092
        %v2177 = vsub.f32 %v1468, %v2095
        %v2178 = vsub.f32 %v1471, %v2098
        %v2179 = vsub.f32 %v1518, %v2101
        %v2180 = vsub.f32 %v1521, %v2104
        %v2181 = vsub.f32 %v1568, %v2107
        %v2182 = vsub.f32 %v1571, %v2110
        %v2183 = vsub.f32 %v1618, %v2113
        %v2184 = vsub.f32 %v1621, %v2116
        %v2185 = vsub.f32 %v1668, %v2119
        %v2186 = vsub.f32 %v1671, %v2122
        %v2187 = vsub.f32 %v1718, %v2125
        %v2188 = vsub.f32 %v1721, %v2128
        %v2189 = vsub.f32 %v1768, %v2131
        %v2190 = vsub.f32 %v1771, %v2134
        %v2191 = vsub.f32 %v1818, %v2137
        %v2192 = vsub.f32 %v1821, %v2140
        %v2193 = vsub.f32 %v1868, %v2143
        %v2194 = vsub.f32 %v1871, %v2146
        %v2195 = vsub.f32 %v1918, %v2149
        %v2196 = vsub.f32 %v1921, %v2152
        %v2197 = vsub.f32 %v1968, %v2155
        %v2198 = vsub.f32 %v1971, %v2158
        %v2199 = vsub.f32 %v2018, %v2161
        %v2200 = vsub.f32 %v2021, %v2164
        %v2201 = vsub.f32 %v2068, %v2167
        %v2202 = vsub.f32 %v2071, %v2170
        %v2203 = vmul.f32 %v2171, 1.442695
        %v2204 = vpow.pop %v2203
        %v2205 = vmul.f32 %v2172, 1.442695
        %v2206 = vpow.pop %v2205
        %v2207 = vmul.f32 %v2173, 1.442695
        %v2208 = vpow.pop %v2207
        %v2209 = vmul.f32 %v2174, 1.442695
        %v2210 = vpow.pop %v2209
        %v2211 = vmul.f32 %v2175, 1.442695
        %v2212 = vpow.pop %v2211
        %v2213 = vmul.f32 %v2176, 1.442695
        %v2214 = vpow.pop %v2213
        %v2215 = vmul.f32 %v2177, 1.442695
        %v2216 = vpow.pop %v2215
        %v2217 = vmul.f32 %v2178, 1.442695
        %v2218 = vpow.pop %v2217
        %v2219 = vmul.f32 %v2179, 1.442695
        %v2220 = vpow.pop %v2219
        %v2221 = vmul.f32 %v2180, 1.442695
        %v2222 = vpow.pop %v2221
        %v2223 = vmul.f32 %v2181, 1.442695
        %v2224 = vpow.pop %v2223
        %v2225 = vmul.f32 %v2182, 1.442695
        %v2226 = vpow.pop %v2225
        %v2227 = vmul.f32 %v2183, 1.442695
        %v2228 = vpow.pop %v2227
        %v2229 = vmul.f32 %v2184, 1.442695
        %v2230 = vpow.pop %v2229
        %v2231 = vmul.f32 %v2185, 1.442695
        %v2232 = vpow.pop %v2231
        %v2233 = vmul.f32 %v2186, 1.442695
        %v2234 = vpow.pop %v2233
        %v2235 = vmul.f32 %v2187, 1.442695
        %v2236 = vpow.pop %v2235
        %v2237 = vmul.f32 %v2188, 1.442695
        %v2238 = vpow.pop %v2237
        %v2239 = vmul.f32 %v2189, 1.442695
        %v2240 = vpow.pop %v2239
        %v2241 = vmul.f32 %v2190, 1.442695
        %v2242 = vpow.pop %v2241
        %v2243 = vmul.f32 %v2191, 1.442695
        %v2244 = vpow.pop %v2243
        %v2245 = vmul.f32 %v2192, 1.442695
        %v2246 = vpow.pop %v2245
        %v2247 = vmul.f32 %v2193, 1.442695
        %v2248 = vpow.pop %v2247
        %v2249 = vmul.f32 %v2194, 1.442695
        %v2250 = vpow.pop %v2249
        %v2251 = vmul.f32 %v2195, 1.442695
        %v2252 = vpow.pop %v2251
        %v2253 = vmul.f32 %v2196, 1.442695
        %v2254 = vpow.pop %v2253
        %v2255 = vmul.f32 %v2197, 1.442695
        %v2256 = vpow.pop %v2255
        %v2257 = vmul.f32 %v2198, 1.442695
        %v2258 = vpow.pop %v2257
        %v2259 = vmul.f32 %v2199, 1.442695
        %v2260 = vpow.pop %v2259
        %v2261 = vmul.f32 %v2200, 1.442695
        %v2262 = vpow.pop %v2261
        %v2263 = vmul.f32 %v2201, 1.442695
        %v2264 = vpow.pop %v2263
        %v2265 = vmul.f32 %v2202, 1.442695
        %v2266 = vpow.pop %v2265
        %v2267 = vsel %vm2074, %v2204, 0.0
        %2268 = vadd.xlane.f32.xlu0 %v2267
        %v2269 = vpop.xlane.xlu0 %2268
        %v2270 = vsel %vm2074, %v2206, 0.0
        %2271 = vadd.xlane.f32.xlu0 %v2270
        %v2272 = vpop.xlane.xlu0 %2271
        %v2273 = vsel %vm2074, %v2208, 0.0
        %2274 = vadd.xlane.f32.xlu0 %v2273
        %v2275 = vpop.xlane.xlu0 %2274
        %v2276 = vsel %vm2074, %v2210, 0.0
        %2277 = vadd.xlane.f32.xlu0 %v2276
        %v2278 = vpop.xlane.xlu0 %2277
        %v2279 = vsel %vm2074, %v2212, 0.0
        %2280 = vadd.xlane.f32.xlu0 %v2279
        %v2281 = vpop.xlane.xlu0 %2280
        %v2282 = vsel %vm2074, %v2214, 0.0
        %2283 = vadd.xlane.f32.xlu0 %v2282
        %v2284 = vpop.xlane.xlu0 %2283
        %v2285 = vsel %vm2074, %v2216, 0.0
        %2286 = vadd.xlane.f32.xlu0 %v2285
        %v2287 = vpop.xlane.xlu0 %2286
        %v2288 = vsel %vm2074, %v2218, 0.0
        %2289 = vadd.xlane.f32.xlu0 %v2288
        %v2290 = vpop.xlane.xlu0 %2289
        %v2291 = vsel %vm2074, %v2220, 0.0
        %2292 = vadd.xlane.f32.xlu0 %v2291
        %v2293 = vpop.xlane.xlu0 %2292
        %v2294 = vsel %vm2074, %v2222, 0.0
        %2295 = vadd.xlane.f32.xlu0 %v2294
        %v2296 = vpop.xlane.xlu0 %2295
        %v2297 = vsel %vm2074, %v2224, 0.0
        %2298 = vadd.xlane.f32.xlu0 %v2297
        %v2299 = vpop.xlane.xlu0 %2298
        %v2300 = vsel %vm2074, %v2226, 0.0
        %2301 = vadd.xlane.f32.xlu0 %v2300
        %v2302 = vpop.xlane.xlu0 %2301
        %v2303 = vsel %vm2074, %v2228, 0.0
        %2304 = vadd.xlane.f32.xlu0 %v2303
        %v2305 = vpop.xlane.xlu0 %2304
        %v2306 = vsel %vm2074, %v2230, 0.0
        %2307 = vadd.xlane.f32.xlu0 %v2306
        %v2308 = vpop.xlane.xlu0 %2307
        %v2309 = vsel %vm2074, %v2232, 0.0
        %2310 = vadd.xlane.f32.xlu0 %v2309
        %v2311 = vpop.xlane.xlu0 %2310
        %v2312 = vsel %vm2074, %v2234, 0.0
        %2313 = vadd.xlane.f32.xlu0 %v2312
        %v2314 = vpop.xlane.xlu0 %2313
        %v2315 = vsel %vm2074, %v2236, 0.0
        %2316 = vadd.xlane.f32.xlu0 %v2315
        %v2317 = vpop.xlane.xlu0 %2316
        %v2318 = vsel %vm2074, %v2238, 0.0
        %2319 = vadd.xlane.f32.xlu0 %v2318
        %v2320 = vpop.xlane.xlu0 %2319
        %v2321 = vsel %vm2074, %v2240, 0.0
        %2322 = vadd.xlane.f32.xlu0 %v2321
        %v2323 = vpop.xlane.xlu0 %2322
        %v2324 = vsel %vm2074, %v2242, 0.0
        %2325 = vadd.xlane.f32.xlu0 %v2324
        %v2326 = vpop.xlane.xlu0 %2325
        %v2327 = vsel %vm2074, %v2244, 0.0
        %2328 = vadd.xlane.f32.xlu0 %v2327
        %v2329 = vpop.xlane.xlu0 %2328
        %v2330 = vsel %vm2074, %v2246, 0.0
        %2331 = vadd.xlane.f32.xlu0 %v2330
        %v2332 = vpop.xlane.xlu0 %2331
        %v2333 = vsel %vm2074, %v2248, 0.0
        %2334 = vadd.xlane.f32.xlu0 %v2333
        %v2335 = vpop.xlane.xlu0 %2334
        %v2336 = vsel %vm2074, %v2250, 0.0
        %2337 = vadd.xlane.f32.xlu0 %v2336
        %v2338 = vpop.xlane.xlu0 %2337
        %v2339 = vsel %vm2074, %v2252, 0.0
        %2340 = vadd.xlane.f32.xlu0 %v2339
        %v2341 = vpop.xlane.xlu0 %2340
        %v2342 = vsel %vm2074, %v2254, 0.0
        %2343 = vadd.xlane.f32.xlu0 %v2342
        %v2344 = vpop.xlane.xlu0 %2343
        %v2345 = vsel %vm2074, %v2256, 0.0
        %2346 = vadd.xlane.f32.xlu0 %v2345
        %v2347 = vpop.xlane.xlu0 %2346
        %v2348 = vsel %vm2074, %v2258, 0.0
        %2349 = vadd.xlane.f32.xlu0 %v2348
        %v2350 = vpop.xlane.xlu0 %2349
        %v2351 = vsel %vm2074, %v2260, 0.0
        %2352 = vadd.xlane.f32.xlu0 %v2351
        %v2353 = vpop.xlane.xlu0 %2352
        %v2354 = vsel %vm2074, %v2262, 0.0
        %2355 = vadd.xlane.f32.xlu0 %v2354
        %v2356 = vpop.xlane.xlu0 %2355
        %v2357 = vsel %vm2074, %v2264, 0.0
        %2358 = vadd.xlane.f32.xlu0 %v2357
        %v2359 = vpop.xlane.xlu0 %2358
        %v2360 = vsel %vm2074, %v2266, 0.0
        %2361 = vadd.xlane.f32.xlu0 %v2360
        %v2362 = vpop.xlane.xlu0 %2361
        %v2363 = vrcp.pop %v2269
        %v2364 = vrcp.pop %v2272
        %v2365 = vrcp.pop %v2275
        %v2366 = vrcp.pop %v2278
        %v2367 = vrcp.pop %v2281
        %v2368 = vrcp.pop %v2284
        %v2369 = vrcp.pop %v2287
        %v2370 = vrcp.pop %v2290
        %v2371 = vrcp.pop %v2293
        %v2372 = vrcp.pop %v2296
        %v2373 = vrcp.pop %v2299
        %v2374 = vrcp.pop %v2302
        %v2375 = vrcp.pop %v2305
        %v2376 = vrcp.pop %v2308
        %v2377 = vrcp.pop %v2311
        %v2378 = vrcp.pop %v2314
        %v2379 = vrcp.pop %v2317
        %v2380 = vrcp.pop %v2320
        %v2381 = vrcp.pop %v2323
        %v2382 = vrcp.pop %v2326
        %v2383 = vrcp.pop %v2329
        %v2384 = vrcp.pop %v2332
        %v2385 = vrcp.pop %v2335
        %v2386 = vrcp.pop %v2338
        %v2387 = vrcp.pop %v2341
        %v2388 = vrcp.pop %v2344
        %v2389 = vrcp.pop %v2347
        %v2390 = vrcp.pop %v2350
        %v2391 = vrcp.pop %v2353
        %v2392 = vrcp.pop %v2356
        %v2393 = vrcp.pop %v2359
        %v2394 = vrcp.pop %v2362
        %v2395 = vmul.f32 %v2204, %v2363
        %v2396 = vmul.f32 %v2206, %v2364
        %v2397 = vmul.f32 %v2208, %v2365
        %v2398 = vmul.f32 %v2210, %v2366
        %v2399 = vmul.f32 %v2212, %v2367
        %v2400 = vmul.f32 %v2214, %v2368
        %v2401 = vmul.f32 %v2216, %v2369
        %v2402 = vmul.f32 %v2218, %v2370
        %v2403 = vmul.f32 %v2220, %v2371
        %v2404 = vmul.f32 %v2222, %v2372
        %v2405 = vmul.f32 %v2224, %v2373
        %v2406 = vmul.f32 %v2226, %v2374
        %v2407 = vmul.f32 %v2228, %v2375
        %v2408 = vmul.f32 %v2230, %v2376
        %v2409 = vmul.f32 %v2232, %v2377
        %v2410 = vmul.f32 %v2234, %v2378
        %v2411 = vmul.f32 %v2236, %v2379
        %v2412 = vmul.f32 %v2238, %v2380
        %v2413 = vmul.f32 %v2240, %v2381
        %v2414 = vmul.f32 %v2242, %v2382
        %v2415 = vmul.f32 %v2244, %v2383
        %v2416 = vmul.f32 %v2246, %v2384
        %v2417 = vmul.f32 %v2248, %v2385
        %v2418 = vmul.f32 %v2250, %v2386
        %v2419 = vmul.f32 %v2252, %v2387
        %v2420 = vmul.f32 %v2254, %v2388
        %v2421 = vmul.f32 %v2256, %v2389
        %v2422 = vmul.f32 %v2258, %v2390
        %v2423 = vmul.f32 %v2260, %v2391
        %v2424 = vmul.f32 %v2262, %v2392
        %v2425 = vmul.f32 %v2264, %v2393
        %v2426 = vmul.f32 %v2266, %v2394
        %v2427 = vpack.c.bf16 %v2396, %v2395
        %v2428 = vpack.c.bf16 %v2398, %v2397
        %v2429 = vpack.c.bf16 %v2400, %v2399
        %v2430 = vpack.c.bf16 %v2402, %v2401
        %v2431 = vpack.c.bf16 %v2404, %v2403
        %v2432 = vpack.c.bf16 %v2406, %v2405
        %v2433 = vpack.c.bf16 %v2408, %v2407
        %v2434 = vpack.c.bf16 %v2410, %v2409
        %v2435 = vpack.c.bf16 %v2412, %v2411
        %v2436 = vpack.c.bf16 %v2414, %v2413
        %v2437 = vpack.c.bf16 %v2416, %v2415
        %v2438 = vpack.c.bf16 %v2418, %v2417
        %v2439 = vpack.c.bf16 %v2420, %v2419
        %v2440 = vpack.c.bf16 %v2422, %v2421
        %v2441 = vpack.c.bf16 %v2424, %v2423
        %v2442 = vpack.c.bf16 %v2426, %v2425
        %2443 = vrot.lane.b32.xlu0 %v1257, 64
        %v2444 = vpop.permute.xlu0 %2443
        %v2447 = vsel %vm2074, %v2427, 0
        %2449 = vmatprep.subr.bf16.mxu0 0
        %2450 = vmatpush1.bf16.msra.mxu0 %v2444
        %2451 = vmatprep.subr.bf16.mxu0 0
        %2452 = vmatpush1.bf16.msra.mxu0 0
        %2453 = vmatprep.subr.bf16.mxu0 0
        %2454 = vmatpush1.bf16.msra.mxu0 0
        %2455 = vmatprep.subr.bf16.mxu0 0
        %2456 = vmatpush1.bf16.msra.mxu0 0
        %2457 = vmatprep.subr.bf16.mxu0 0
        %2458 = vmatpush1.bf16.msra.mxu0 0
        %2459 = vmatprep.subr.bf16.mxu0 0
        %2460 = vmatpush1.bf16.msra.mxu0 0
        %2461 = vmatprep.subr.bf16.mxu0 0
        %2462 = vmatpush1.bf16.msra.mxu0 0
        %2463 = vmatprep.subr.bf16.mxu0 0
        %2464 = vmatpush1.bf16.msra.mxu0 0
        %2465 = vmatprep.subr.bf16.mxu0 0
        %2466 = vmatpush1.bf16.msra.mxu0 0
        %2467 = vmatprep.subr.bf16.mxu0 0
        %2468 = vmatpush1.bf16.msra.mxu0 0
        %2469 = vmatprep.subr.bf16.mxu0 0
        %2470 = vmatpush1.bf16.msra.mxu0 0
        %2471 = vmatprep.subr.bf16.mxu0 0
        %2472 = vmatpush1.bf16.msra.mxu0 0
        %2473 = vmatprep.subr.bf16.mxu0 0
        %2474 = vmatpush1.bf16.msra.mxu0 0
        %2475 = vmatprep.subr.bf16.mxu0 0
        %2476 = vmatpush1.bf16.msra.mxu0 0
        %2477 = vmatprep.subr.bf16.mxu0 0
        %2478 = vmatpush1.bf16.msra.mxu0 0
        %2479 = vmatprep.subr.bf16.mxu0 0
        %2480 = vmatpush1.bf16.msra.mxu0 0
        %2481 = vmatprep.mubr.bf16.mxu0 0
        %2482 = vmatmul.mubr.bf16.gmra.mrb[0].mxu0 %v2447
        %v2483 = vpop.f32.mrb[0].mxu0
        %v2484 = vadd.f32 0.0, %v2483
        %v2485 = vpop.f32.mrb[0].mxu0
        %v2486 = vpop.f32.mrb[0].mxu0
        %v2487 = vadd.f32 0.0, %v2486
        %v2488 = vpop.f32.mrb[0].mxu0
        %2489 = vdwg.mxu0
        %2490 = vrot.lane.b32.xlu0 %v1258, 64
        %v2491 = vpop.permute.xlu0 %2490
        %v2494 = vsel %vm2074, %v2428, 0
        %2496 = vmatprep.subr.bf16.mxu0 0
        %2497 = vmatpush1.bf16.msra.mxu0 %v2491
        %2498 = vmatprep.subr.bf16.mxu0 0
        %2499 = vmatpush1.bf16.msra.mxu0 0
        %2500 = vmatprep.subr.bf16.mxu0 0
        %2501 = vmatpush1.bf16.msra.mxu0 0
        %2502 = vmatprep.subr.bf16.mxu0 0
        %2503 = vmatpush1.bf16.msra.mxu0 0
        %2504 = vmatprep.subr.bf16.mxu0 0
        %2505 = vmatpush1.bf16.msra.mxu0 0
        %2506 = vmatprep.subr.bf16.mxu0 0
        %2507 = vmatpush1.bf16.msra.mxu0 0
        %2508 = vmatprep.subr.bf16.mxu0 0
        %2509 = vmatpush1.bf16.msra.mxu0 0
        %2510 = vmatprep.subr.bf16.mxu0 0
        %2511 = vmatpush1.bf16.msra.mxu0 0
        %2512 = vmatprep.subr.bf16.mxu0 0
        %2513 = vmatpush1.bf16.msra.mxu0 0
        %2514 = vmatprep.subr.bf16.mxu0 0
        %2515 = vmatpush1.bf16.msra.mxu0 0
        %2516 = vmatprep.subr.bf16.mxu0 0
        %2517 = vmatpush1.bf16.msra.mxu0 0
        %2518 = vmatprep.subr.bf16.mxu0 0
        %2519 = vmatpush1.bf16.msra.mxu0 0
        %2520 = vmatprep.subr.bf16.mxu0 0
        %2521 = vmatpush1.bf16.msra.mxu0 0
        %2522 = vmatprep.subr.bf16.mxu0 0
        %2523 = vmatpush1.bf16.msra.mxu0 0
        %2524 = vmatprep.subr.bf16.mxu0 0
        %2525 = vmatpush1.bf16.msra.mxu0 0
        %2526 = vmatprep.subr.bf16.mxu0 0
        %2527 = vmatpush1.bf16.msra.mxu0 0
        %2528 = vmatprep.mubr.bf16.mxu0 0
        %2529 = vmatmul.mubr.bf16.gmra.mrb[0].mxu0 %v2494
        %v2530 = vpop.f32.mrb[0].mxu0
        %v2531 = vadd.f32 0.0, %v2530
        %v2532 = vpop.f32.mrb[0].mxu0
        %v2533 = vpop.f32.mrb[0].mxu0
        %v2534 = vadd.f32 0.0, %v2533
        %v2535 = vpop.f32.mrb[0].mxu0
        %2536 = vdwg.mxu0
        %2537 = vrot.lane.b32.xlu0 %v1259, 64
        %v2538 = vpop.permute.xlu0 %2537
        %v2541 = vsel %vm2074, %v2429, 0
        %2543 = vmatprep.subr.bf16.mxu0 0
        %2544 = vmatpush1.bf16.msra.mxu0 %v2538
        %2545 = vmatprep.subr.bf16.mxu0 0
        %2546 = vmatpush1.bf16.msra.mxu0 0
        %2547 = vmatprep.subr.bf16.mxu0 0
        %2548 = vmatpush1.bf16.msra.mxu0 0
        %2549 = vmatprep.subr.bf16.mxu0 0
        %2550 = vmatpush1.bf16.msra.mxu0 0
        %2551 = vmatprep.subr.bf16.mxu0 0
        %2552 = vmatpush1.bf16.msra.mxu0 0
        %2553 = vmatprep.subr.bf16.mxu0 0
        %2554 = vmatpush1.bf16.msra.mxu0 0
        %2555 = vmatprep.subr.bf16.mxu0 0
        %2556 = vmatpush1.bf16.msra.mxu0 0
        %2557 = vmatprep.subr.bf16.mxu0 0
        %2558 = vmatpush1.bf16.msra.mxu0 0
        %2559 = vmatprep.subr.bf16.mxu0 0
        %2560 = vmatpush1.bf16.msra.mxu0 0
        %2561 = vmatprep.subr.bf16.mxu0 0
        %2562 = vmatpush1.bf16.msra.mxu0 0
        %2563 = vmatprep.subr.bf16.mxu0 0
        %2564 = vmatpush1.bf16.msra.mxu0 0
        %2565 = vmatprep.subr.bf16.mxu0 0
        %2566 = vmatpush1.bf16.msra.mxu0 0
        %2567 = vmatprep.subr.bf16.mxu0 0
        %2568 = vmatpush1.bf16.msra.mxu0 0
        %2569 = vmatprep.subr.bf16.mxu0 0
        %2570 = vmatpush1.bf16.msra.mxu0 0
        %2571 = vmatprep.subr.bf16.mxu0 0
        %2572 = vmatpush1.bf16.msra.mxu0 0
        %2573 = vmatprep.subr.bf16.mxu0 0
        %2574 = vmatpush1.bf16.msra.mxu0 0
        %2575 = vmatprep.mubr.bf16.mxu0 0
        %2576 = vmatmul.mubr.bf16.gmra.mrb[0].mxu0 %v2541
        %v2577 = vpop.f32.mrb[0].mxu0
        %v2578 = vadd.f32 0.0, %v2577
        %v2579 = vpop.f32.mrb[0].mxu0
        %v2580 = vpop.f32.mrb[0].mxu0
        %v2581 = vadd.f32 0.0, %v2580
        %v2582 = vpop.f32.mrb[0].mxu0
        %2583 = vdwg.mxu0
        %2584 = vrot.lane.b32.xlu0 %v1260, 64
        %v2585 = vpop.permute.xlu0 %2584
        %v2588 = vsel %vm2074, %v2430, 0
        %2590 = vmatprep.subr.bf16.mxu0 0
        %2591 = vmatpush1.bf16.msra.mxu0 %v2585
        %2592 = vmatprep.subr.bf16.mxu0 0
        %2593 = vmatpush1.bf16.msra.mxu0 0
        %2594 = vmatprep.subr.bf16.mxu0 0
        %2595 = vmatpush1.bf16.msra.mxu0 0
        %2596 = vmatprep.subr.bf16.mxu0 0
        %2597 = vmatpush1.bf16.msra.mxu0 0
        %2598 = vmatprep.subr.bf16.mxu0 0
        %2599 = vmatpush1.bf16.msra.mxu0 0
        %2600 = vmatprep.subr.bf16.mxu0 0
        %2601 = vmatpush1.bf16.msra.mxu0 0
        %2602 = vmatprep.subr.bf16.mxu0 0
        %2603 = vmatpush1.bf16.msra.mxu0 0
        %2604 = vmatprep.subr.bf16.mxu0 0
        %2605 = vmatpush1.bf16.msra.mxu0 0
        %2606 = vmatprep.subr.bf16.mxu0 0
        %2607 = vmatpush1.bf16.msra.mxu0 0
        %2608 = vmatprep.subr.bf16.mxu0 0
        %2609 = vmatpush1.bf16.msra.mxu0 0
        %2610 = vmatprep.subr.bf16.mxu0 0
        %2611 = vmatpush1.bf16.msra.mxu0 0
        %2612 = vmatprep.subr.bf16.mxu0 0
        %2613 = vmatpush1.bf16.msra.mxu0 0
        %2614 = vmatprep.subr.bf16.mxu0 0
        %2615 = vmatpush1.bf16.msra.mxu0 0
        %2616 = vmatprep.subr.bf16.mxu0 0
        %2617 = vmatpush1.bf16.msra.mxu0 0
        %2618 = vmatprep.subr.bf16.mxu0 0
        %2619 = vmatpush1.bf16.msra.mxu0 0
        %2620 = vmatprep.subr.bf16.mxu0 0
        %2621 = vmatpush1.bf16.msra.mxu0 0
        %2622 = vmatprep.mubr.bf16.mxu0 0
        %2623 = vmatmul.mubr.bf16.gmra.mrb[0].mxu0 %v2588
        %v2624 = vpop.f32.mrb[0].mxu0
        %v2625 = vadd.f32 0.0, %v2624
        %v2626 = vpop.f32.mrb[0].mxu0
        %v2627 = vpop.f32.mrb[0].mxu0
        %v2628 = vadd.f32 0.0, %v2627
        %v2629 = vpop.f32.mrb[0].mxu0
        %2630 = vdwg.mxu0
        %2631 = vrot.lane.b32.xlu0 %v1261, 64
        %v2632 = vpop.permute.xlu0 %2631
        %v2635 = vsel %vm2074, %v2431, 0
        %2637 = vmatprep.subr.bf16.mxu0 0
        %2638 = vmatpush1.bf16.msra.mxu0 %v2632
        %2639 = vmatprep.subr.bf16.mxu0 0
        %2640 = vmatpush1.bf16.msra.mxu0 0
        %2641 = vmatprep.subr.bf16.mxu0 0
        %2642 = vmatpush1.bf16.msra.mxu0 0
        %2643 = vmatprep.subr.bf16.mxu0 0
        %2644 = vmatpush1.bf16.msra.mxu0 0
        %2645 = vmatprep.subr.bf16.mxu0 0
        %2646 = vmatpush1.bf16.msra.mxu0 0
        %2647 = vmatprep.subr.bf16.mxu0 0
        %2648 = vmatpush1.bf16.msra.mxu0 0
        %2649 = vmatprep.subr.bf16.mxu0 0
        %2650 = vmatpush1.bf16.msra.mxu0 0
        %2651 = vmatprep.subr.bf16.mxu0 0
        %2652 = vmatpush1.bf16.msra.mxu0 0
        %2653 = vmatprep.subr.bf16.mxu0 0
        %2654 = vmatpush1.bf16.msra.mxu0 0
        %2655 = vmatprep.subr.bf16.mxu0 0
        %2656 = vmatpush1.bf16.msra.mxu0 0
        %2657 = vmatprep.subr.bf16.mxu0 0
        %2658 = vmatpush1.bf16.msra.mxu0 0
        %2659 = vmatprep.subr.bf16.mxu0 0
        %2660 = vmatpush1.bf16.msra.mxu0 0
        %2661 = vmatprep.subr.bf16.mxu0 0
        %2662 = vmatpush1.bf16.msra.mxu0 0
        %2663 = vmatprep.subr.bf16.mxu0 0
        %2664 = vmatpush1.bf16.msra.mxu0 0
        %2665 = vmatprep.subr.bf16.mxu0 0
        %2666 = vmatpush1.bf16.msra.mxu0 0
        %2667 = vmatprep.subr.bf16.mxu0 0
        %2668 = vmatpush1.bf16.msra.mxu0 0
        %2669 = vmatprep.mubr.bf16.mxu0 0
        %2670 = vmatmul.mubr.bf16.gmra.mrb[0].mxu0 %v2635
        %v2671 = vpop.f32.mrb[0].mxu0
        %v2672 = vadd.f32 0.0, %v2671
        %v2673 = vpop.f32.mrb[0].mxu0
        %v2674 = vpop.f32.mrb[0].mxu0
        %v2675 = vadd.f32 0.0, %v2674
        %v2676 = vpop.f32.mrb[0].mxu0
        %2677 = vdwg.mxu0
        %2678 = vrot.lane.b32.xlu0 %v1262, 64
        %v2679 = vpop.permute.xlu0 %2678
        %v2682 = vsel %vm2074, %v2432, 0
        %2684 = vmatprep.subr.bf16.mxu0 0
        %2685 = vmatpush1.bf16.msra.mxu0 %v2679
        %2686 = vmatprep.subr.bf16.mxu0 0
        %2687 = vmatpush1.bf16.msra.mxu0 0
        %2688 = vmatprep.subr.bf16.mxu0 0
        %2689 = vmatpush1.bf16.msra.mxu0 0
        %2690 = vmatprep.subr.bf16.mxu0 0
        %2691 = vmatpush1.bf16.msra.mxu0 0
        %2692 = vmatprep.subr.bf16.mxu0 0
        %2693 = vmatpush1.bf16.msra.mxu0 0
        %2694 = vmatprep.subr.bf16.mxu0 0
        %2695 = vmatpush1.bf16.msra.mxu0 0
        %2696 = vmatprep.subr.bf16.mxu0 0
        %2697 = vmatpush1.bf16.msra.mxu0 0
        %2698 = vmatprep.subr.bf16.mxu0 0
        %2699 = vmatpush1.bf16.msra.mxu0 0
        %2700 = vmatprep.subr.bf16.mxu0 0
        %2701 = vmatpush1.bf16.msra.mxu0 0
        %2702 = vmatprep.subr.bf16.mxu0 0
        %2703 = vmatpush1.bf16.msra.mxu0 0
        %2704 = vmatprep.subr.bf16.mxu0 0
        %2705 = vmatpush1.bf16.msra.mxu0 0
        %2706 = vmatprep.subr.bf16.mxu0 0
        %2707 = vmatpush1.bf16.msra.mxu0 0
        %2708 = vmatprep.subr.bf16.mxu0 0
        %2709 = vmatpush1.bf16.msra.mxu0 0
        %2710 = vmatprep.subr.bf16.mxu0 0
        %2711 = vmatpush1.bf16.msra.mxu0 0
        %2712 = vmatprep.subr.bf16.mxu0 0
        %2713 = vmatpush1.bf16.msra.mxu0 0
        %2714 = vmatprep.subr.bf16.mxu0 0
        %2715 = vmatpush1.bf16.msra.mxu0 0
        %2716 = vmatprep.mubr.bf16.mxu0 0
        %2717 = vmatmul.mubr.bf16.gmra.mrb[0].mxu0 %v2682
        %v2718 = vpop.f32.mrb[0].mxu0
        %v2719 = vadd.f32 0.0, %v2718
        %v2720 = vpop.f32.mrb[0].mxu0
        %v2721 = vpop.f32.mrb[0].mxu0
        %v2722 = vadd.f32 0.0, %v2721
        %v2723 = vpop.f32.mrb[0].mxu0
        %2724 = vdwg.mxu0
        %2725 = vrot.lane.b32.xlu0 %v1263, 64
        %v2726 = vpop.permute.xlu0 %2725
        %v2729 = vsel %vm2074, %v2433, 0
        %2731 = vmatprep.subr.bf16.mxu0 0
        %2732 = vmatpush1.bf16.msra.mxu0 %v2726
        %2733 = vmatprep.subr.bf16.mxu0 0
        %2734 = vmatpush1.bf16.msra.mxu0 0
        %2735 = vmatprep.subr.bf16.mxu0 0
        %2736 = vmatpush1.bf16.msra.mxu0 0
        %2737 = vmatprep.subr.bf16.mxu0 0
        %2738 = vmatpush1.bf16.msra.mxu0 0
        %2739 = vmatprep.subr.bf16.mxu0 0
        %2740 = vmatpush1.bf16.msra.mxu0 0
        %2741 = vmatprep.subr.bf16.mxu0 0
        %2742 = vmatpush1.bf16.msra.mxu0 0
        %2743 = vmatprep.subr.bf16.mxu0 0
        %2744 = vmatpush1.bf16.msra.mxu0 0
        %2745 = vmatprep.subr.bf16.mxu0 0
        %2746 = vmatpush1.bf16.msra.mxu0 0
        %2747 = vmatprep.subr.bf16.mxu0 0
        %2748 = vmatpush1.bf16.msra.mxu0 0
        %2749 = vmatprep.subr.bf16.mxu0 0
        %2750 = vmatpush1.bf16.msra.mxu0 0
        %2751 = vmatprep.subr.bf16.mxu0 0
        %2752 = vmatpush1.bf16.msra.mxu0 0
        %2753 = vmatprep.subr.bf16.mxu0 0
        %2754 = vmatpush1.bf16.msra.mxu0 0
        %2755 = vmatprep.subr.bf16.mxu0 0
        %2756 = vmatpush1.bf16.msra.mxu0 0
        %2757 = vmatprep.subr.bf16.mxu0 0
        %2758 = vmatpush1.bf16.msra.mxu0 0
        %2759 = vmatprep.subr.bf16.mxu0 0
        %2760 = vmatpush1.bf16.msra.mxu0 0
        %2761 = vmatprep.subr.bf16.mxu0 0
        %2762 = vmatpush1.bf16.msra.mxu0 0
        %2763 = vmatprep.mubr.bf16.mxu0 0
        %2764 = vmatmul.mubr.bf16.gmra.mrb[0].mxu0 %v2729
        %v2765 = vpop.f32.mrb[0].mxu0
        %v2766 = vadd.f32 0.0, %v2765
        %v2767 = vpop.f32.mrb[0].mxu0
        %v2768 = vpop.f32.mrb[0].mxu0
        %v2769 = vadd.f32 0.0, %v2768
        %v2770 = vpop.f32.mrb[0].mxu0
        %2771 = vdwg.mxu0
        %2772 = vrot.lane.b32.xlu0 %v1264, 64
        %v2773 = vpop.permute.xlu0 %2772
        %v2776 = vsel %vm2074, %v2434, 0
        %2778 = vmatprep.subr.bf16.mxu0 0
        %2779 = vmatpush1.bf16.msra.mxu0 %v2773
        %2780 = vmatprep.subr.bf16.mxu0 0
        %2781 = vmatpush1.bf16.msra.mxu0 0
        %2782 = vmatprep.subr.bf16.mxu0 0
        %2783 = vmatpush1.bf16.msra.mxu0 0
        %2784 = vmatprep.subr.bf16.mxu0 0
        %2785 = vmatpush1.bf16.msra.mxu0 0
        %2786 = vmatprep.subr.bf16.mxu0 0
        %2787 = vmatpush1.bf16.msra.mxu0 0
        %2788 = vmatprep.subr.bf16.mxu0 0
        %2789 = vmatpush1.bf16.msra.mxu0 0
        %2790 = vmatprep.subr.bf16.mxu0 0
        %2791 = vmatpush1.bf16.msra.mxu0 0
        %2792 = vmatprep.subr.bf16.mxu0 0
        %2793 = vmatpush1.bf16.msra.mxu0 0
        %2794 = vmatprep.subr.bf16.mxu0 0
        %2795 = vmatpush1.bf16.msra.mxu0 0
        %2796 = vmatprep.subr.bf16.mxu0 0
        %2797 = vmatpush1.bf16.msra.mxu0 0
        %2798 = vmatprep.subr.bf16.mxu0 0
        %2799 = vmatpush1.bf16.msra.mxu0 0
        %2800 = vmatprep.subr.bf16.mxu0 0
        %2801 = vmatpush1.bf16.msra.mxu0 0
        %2802 = vmatprep.subr.bf16.mxu0 0
        %2803 = vmatpush1.bf16.msra.mxu0 0
        %2804 = vmatprep.subr.bf16.mxu0 0
        %2805 = vmatpush1.bf16.msra.mxu0 0
        %2806 = vmatprep.subr.bf16.mxu0 0
        %2807 = vmatpush1.bf16.msra.mxu0 0
        %2808 = vmatprep.subr.bf16.mxu0 0
        %2809 = vmatpush1.bf16.msra.mxu0 0
        %2810 = vmatprep.mubr.bf16.mxu0 0
        %2811 = vmatmul.mubr.bf16.gmra.mrb[0].mxu0 %v2776
        %v2812 = vpop.f32.mrb[0].mxu0
        %v2813 = vadd.f32 0.0, %v2812
        %v2814 = vpop.f32.mrb[0].mxu0
        %v2815 = vpop.f32.mrb[0].mxu0
        %v2816 = vadd.f32 0.0, %v2815
        %v2817 = vpop.f32.mrb[0].mxu0
        %2818 = vdwg.mxu0
        %2819 = vrot.lane.b32.xlu0 %v1265, 64
        %v2820 = vpop.permute.xlu0 %2819
        %v2823 = vsel %vm2074, %v2435, 0
        %2825 = vmatprep.subr.bf16.mxu0 0
        %2826 = vmatpush1.bf16.msra.mxu0 %v2820
        %2827 = vmatprep.subr.bf16.mxu0 0
        %2828 = vmatpush1.bf16.msra.mxu0 0
        %2829 = vmatprep.subr.bf16.mxu0 0
        %2830 = vmatpush1.bf16.msra.mxu0 0
        %2831 = vmatprep.subr.bf16.mxu0 0
        %2832 = vmatpush1.bf16.msra.mxu0 0
        %2833 = vmatprep.subr.bf16.mxu0 0
        %2834 = vmatpush1.bf16.msra.mxu0 0
        %2835 = vmatprep.subr.bf16.mxu0 0
        %2836 = vmatpush1.bf16.msra.mxu0 0
        %2837 = vmatprep.subr.bf16.mxu0 0
        %2838 = vmatpush1.bf16.msra.mxu0 0
        %2839 = vmatprep.subr.bf16.mxu0 0
        %2840 = vmatpush1.bf16.msra.mxu0 0
        %2841 = vmatprep.subr.bf16.mxu0 0
        %2842 = vmatpush1.bf16.msra.mxu0 0
        %2843 = vmatprep.subr.bf16.mxu0 0
        %2844 = vmatpush1.bf16.msra.mxu0 0
        %2845 = vmatprep.subr.bf16.mxu0 0
        %2846 = vmatpush1.bf16.msra.mxu0 0
        %2847 = vmatprep.subr.bf16.mxu0 0
        %2848 = vmatpush1.bf16.msra.mxu0 0
        %2849 = vmatprep.subr.bf16.mxu0 0
        %2850 = vmatpush1.bf16.msra.mxu0 0
        %2851 = vmatprep.subr.bf16.mxu0 0
        %2852 = vmatpush1.bf16.msra.mxu0 0
        %2853 = vmatprep.subr.bf16.mxu0 0
        %2854 = vmatpush1.bf16.msra.mxu0 0
        %2855 = vmatprep.subr.bf16.mxu0 0
        %2856 = vmatpush1.bf16.msra.mxu0 0
        %2857 = vmatprep.mubr.bf16.mxu0 0
        %2858 = vmatmul.mubr.bf16.gmra.mrb[0].mxu0 %v2823
        %v2859 = vpop.f32.mrb[0].mxu0
        %v2860 = vadd.f32 0.0, %v2859
        %v2861 = vpop.f32.mrb[0].mxu0
        %v2862 = vpop.f32.mrb[0].mxu0
        %v2863 = vadd.f32 0.0, %v2862
        %v2864 = vpop.f32.mrb[0].mxu0
        %2865 = vdwg.mxu0
        %2866 = vrot.lane.b32.xlu0 %v1266, 64
        %v2867 = vpop.permute.xlu0 %2866
        %v2870 = vsel %vm2074, %v2436, 0
        %2872 = vmatprep.subr.bf16.mxu0 0
        %2873 = vmatpush1.bf16.msra.mxu0 %v2867
        %2874 = vmatprep.subr.bf16.mxu0 0
        %2875 = vmatpush1.bf16.msra.mxu0 0
        %2876 = vmatprep.subr.bf16.mxu0 0
        %2877 = vmatpush1.bf16.msra.mxu0 0
        %2878 = vmatprep.subr.bf16.mxu0 0
        %2879 = vmatpush1.bf16.msra.mxu0 0
        %2880 = vmatprep.subr.bf16.mxu0 0
        %2881 = vmatpush1.bf16.msra.mxu0 0
        %2882 = vmatprep.subr.bf16.mxu0 0
        %2883 = vmatpush1.bf16.msra.mxu0 0
        %2884 = vmatprep.subr.bf16.mxu0 0
        %2885 = vmatpush1.bf16.msra.mxu0 0
        %2886 = vmatprep.subr.bf16.mxu0 0
        %2887 = vmatpush1.bf16.msra.mxu0 0
        %2888 = vmatprep.subr.bf16.mxu0 0
        %2889 = vmatpush1.bf16.msra.mxu0 0
        %2890 = vmatprep.subr.bf16.mxu0 0
        %2891 = vmatpush1.bf16.msra.mxu0 0
        %2892 = vmatprep.subr.bf16.mxu0 0
        %2893 = vmatpush1.bf16.msra.mxu0 0
        %2894 = vmatprep.subr.bf16.mxu0 0
        %2895 = vmatpush1.bf16.msra.mxu0 0
        %2896 = vmatprep.subr.bf16.mxu0 0
        %2897 = vmatpush1.bf16.msra.mxu0 0
        %2898 = vmatprep.subr.bf16.mxu0 0
        %2899 = vmatpush1.bf16.msra.mxu0 0
        %2900 = vmatprep.subr.bf16.mxu0 0
        %2901 = vmatpush1.bf16.msra.mxu0 0
        %2902 = vmatprep.subr.bf16.mxu0 0
        %2903 = vmatpush1.bf16.msra.mxu0 0
        %2904 = vmatprep.mubr.bf16.mxu0 0
        %2905 = vmatmul.mubr.bf16.gmra.mrb[0].mxu0 %v2870
        %v2906 = vpop.f32.mrb[0].mxu0
        %v2907 = vadd.f32 0.0, %v2906
        %v2908 = vpop.f32.mrb[0].mxu0
        %v2909 = vpop.f32.mrb[0].mxu0
        %v2910 = vadd.f32 0.0, %v2909
        %v2911 = vpop.f32.mrb[0].mxu0
        %2912 = vdwg.mxu0
        %2913 = vrot.lane.b32.xlu0 %v1267, 64
        %v2914 = vpop.permute.xlu0 %2913
        %v2917 = vsel %vm2074, %v2437, 0
        %2919 = vmatprep.subr.bf16.mxu0 0
        %2920 = vmatpush1.bf16.msra.mxu0 %v2914
        %2921 = vmatprep.subr.bf16.mxu0 0
        %2922 = vmatpush1.bf16.msra.mxu0 0
        %2923 = vmatprep.subr.bf16.mxu0 0
        %2924 = vmatpush1.bf16.msra.mxu0 0
        %2925 = vmatprep.subr.bf16.mxu0 0
        %2926 = vmatpush1.bf16.msra.mxu0 0
        %2927 = vmatprep.subr.bf16.mxu0 0
        %2928 = vmatpush1.bf16.msra.mxu0 0
        %2929 = vmatprep.subr.bf16.mxu0 0
        %2930 = vmatpush1.bf16.msra.mxu0 0
        %2931 = vmatprep.subr.bf16.mxu0 0
        %2932 = vmatpush1.bf16.msra.mxu0 0
        %2933 = vmatprep.subr.bf16.mxu0 0
        %2934 = vmatpush1.bf16.msra.mxu0 0
        %2935 = vmatprep.subr.bf16.mxu0 0
        %2936 = vmatpush1.bf16.msra.mxu0 0
        %2937 = vmatprep.subr.bf16.mxu0 0
        %2938 = vmatpush1.bf16.msra.mxu0 0
        %2939 = vmatprep.subr.bf16.mxu0 0
        %2940 = vmatpush1.bf16.msra.mxu0 0
        %2941 = vmatprep.subr.bf16.mxu0 0
        %2942 = vmatpush1.bf16.msra.mxu0 0
        %2943 = vmatprep.subr.bf16.mxu0 0
        %2944 = vmatpush1.bf16.msra.mxu0 0
        %2945 = vmatprep.subr.bf16.mxu0 0
        %2946 = vmatpush1.bf16.msra.mxu0 0
        %2947 = vmatprep.subr.bf16.mxu0 0
        %2948 = vmatpush1.bf16.msra.mxu0 0
        %2949 = vmatprep.subr.bf16.mxu0 0
        %2950 = vmatpush1.bf16.msra.mxu0 0
        %2951 = vmatprep.mubr.bf16.mxu0 0
        %2952 = vmatmul.mubr.bf16.gmra.mrb[0].mxu0 %v2917
        %v2953 = vpop.f32.mrb[0].mxu0
        %v2954 = vadd.f32 0.0, %v2953
        %v2955 = vpop.f32.mrb[0].mxu0
        %v2956 = vpop.f32.mrb[0].mxu0
        %v2957 = vadd.f32 0.0, %v2956
        %v2958 = vpop.f32.mrb[0].mxu0
        %2959 = vdwg.mxu0
        %2960 = vrot.lane.b32.xlu0 %v1268, 64
        %v2961 = vpop.permute.xlu0 %2960
        %v2964 = vsel %vm2074, %v2438, 0
        %2966 = vmatprep.subr.bf16.mxu0 0
        %2967 = vmatpush1.bf16.msra.mxu0 %v2961
        %2968 = vmatprep.subr.bf16.mxu0 0
        %2969 = vmatpush1.bf16.msra.mxu0 0
        %2970 = vmatprep.subr.bf16.mxu0 0
        %2971 = vmatpush1.bf16.msra.mxu0 0
        %2972 = vmatprep.subr.bf16.mxu0 0
        %2973 = vmatpush1.bf16.msra.mxu0 0
        %2974 = vmatprep.subr.bf16.mxu0 0
        %2975 = vmatpush1.bf16.msra.mxu0 0
        %2976 = vmatprep.subr.bf16.mxu0 0
        %2977 = vmatpush1.bf16.msra.mxu0 0
        %2978 = vmatprep.subr.bf16.mxu0 0
        %2979 = vmatpush1.bf16.msra.mxu0 0
        %2980 = vmatprep.subr.bf16.mxu0 0
        %2981 = vmatpush1.bf16.msra.mxu0 0
        %2982 = vmatprep.subr.bf16.mxu0 0
        %2983 = vmatpush1.bf16.msra.mxu0 0
        %2984 = vmatprep.subr.bf16.mxu0 0
        %2985 = vmatpush1.bf16.msra.mxu0 0
        %2986 = vmatprep.subr.bf16.mxu0 0
        %2987 = vmatpush1.bf16.msra.mxu0 0
        %2988 = vmatprep.subr.bf16.mxu0 0
        %2989 = vmatpush1.bf16.msra.mxu0 0
        %2990 = vmatprep.subr.bf16.mxu0 0
        %2991 = vmatpush1.bf16.msra.mxu0 0
        %2992 = vmatprep.subr.bf16.mxu0 0
        %2993 = vmatpush1.bf16.msra.mxu0 0
        %2994 = vmatprep.subr.bf16.mxu0 0
        %2995 = vmatpush1.bf16.msra.mxu0 0
        %2996 = vmatprep.subr.bf16.mxu0 0
        %2997 = vmatpush1.bf16.msra.mxu0 0
        %2998 = vmatprep.mubr.bf16.mxu0 0
        %2999 = vmatmul.mubr.bf16.gmra.mrb[0].mxu0 %v2964
        %v3000 = vpop.f32.mrb[0].mxu0
        %v3001 = vadd.f32 0.0, %v3000
        %v3002 = vpop.f32.mrb[0].mxu0
        %v3003 = vpop.f32.mrb[0].mxu0
        %v3004 = vadd.f32 0.0, %v3003
        %v3005 = vpop.f32.mrb[0].mxu0
        %3006 = vdwg.mxu0
        %3007 = vrot.lane.b32.xlu0 %v1269, 64
        %v3008 = vpop.permute.xlu0 %3007
        %v3011 = vsel %vm2074, %v2439, 0
        %3013 = vmatprep.subr.bf16.mxu0 0
        %3014 = vmatpush1.bf16.msra.mxu0 %v3008
        %3015 = vmatprep.subr.bf16.mxu0 0
        %3016 = vmatpush1.bf16.msra.mxu0 0
        %3017 = vmatprep.subr.bf16.mxu0 0
        %3018 = vmatpush1.bf16.msra.mxu0 0
        %3019 = vmatprep.subr.bf16.mxu0 0
        %3020 = vmatpush1.bf16.msra.mxu0 0
        %3021 = vmatprep.subr.bf16.mxu0 0
        %3022 = vmatpush1.bf16.msra.mxu0 0
        %3023 = vmatprep.subr.bf16.mxu0 0
        %3024 = vmatpush1.bf16.msra.mxu0 0
        %3025 = vmatprep.subr.bf16.mxu0 0
        %3026 = vmatpush1.bf16.msra.mxu0 0
        %3027 = vmatprep.subr.bf16.mxu0 0
        %3028 = vmatpush1.bf16.msra.mxu0 0
        %3029 = vmatprep.subr.bf16.mxu0 0
        %3030 = vmatpush1.bf16.msra.mxu0 0
        %3031 = vmatprep.subr.bf16.mxu0 0
        %3032 = vmatpush1.bf16.msra.mxu0 0
        %3033 = vmatprep.subr.bf16.mxu0 0
        %3034 = vmatpush1.bf16.msra.mxu0 0
        %3035 = vmatprep.subr.bf16.mxu0 0
        %3036 = vmatpush1.bf16.msra.mxu0 0
        %3037 = vmatprep.subr.bf16.mxu0 0
        %3038 = vmatpush1.bf16.msra.mxu0 0
        %3039 = vmatprep.subr.bf16.mxu0 0
        %3040 = vmatpush1.bf16.msra.mxu0 0
        %3041 = vmatprep.subr.bf16.mxu0 0
        %3042 = vmatpush1.bf16.msra.mxu0 0
        %3043 = vmatprep.subr.bf16.mxu0 0
        %3044 = vmatpush1.bf16.msra.mxu0 0
        %3045 = vmatprep.mubr.bf16.mxu0 0
        %3046 = vmatmul.mubr.bf16.gmra.mrb[0].mxu0 %v3011
        %v3047 = vpop.f32.mrb[0].mxu0
        %v3048 = vadd.f32 0.0, %v3047
        %v3049 = vpop.f32.mrb[0].mxu0
        %v3050 = vpop.f32.mrb[0].mxu0
        %v3051 = vadd.f32 0.0, %v3050
        %v3052 = vpop.f32.mrb[0].mxu0
        %3053 = vdwg.mxu0
        %3054 = vrot.lane.b32.xlu0 %v1270, 64
        %v3055 = vpop.permute.xlu0 %3054
        %v3058 = vsel %vm2074, %v2440, 0
        %3060 = vmatprep.subr.bf16.mxu0 0
        %3061 = vmatpush1.bf16.msra.mxu0 %v3055
        %3062 = vmatprep.subr.bf16.mxu0 0
        %3063 = vmatpush1.bf16.msra.mxu0 0
        %3064 = vmatprep.subr.bf16.mxu0 0
        %3065 = vmatpush1.bf16.msra.mxu0 0
        %3066 = vmatprep.subr.bf16.mxu0 0
        %3067 = vmatpush1.bf16.msra.mxu0 0
        %3068 = vmatprep.subr.bf16.mxu0 0
        %3069 = vmatpush1.bf16.msra.mxu0 0
        %3070 = vmatprep.subr.bf16.mxu0 0
        %3071 = vmatpush1.bf16.msra.mxu0 0
        %3072 = vmatprep.subr.bf16.mxu0 0
        %3073 = vmatpush1.bf16.msra.mxu0 0
        %3074 = vmatprep.subr.bf16.mxu0 0
        %3075 = vmatpush1.bf16.msra.mxu0 0
        %3076 = vmatprep.subr.bf16.mxu0 0
        %3077 = vmatpush1.bf16.msra.mxu0 0
        %3078 = vmatprep.subr.bf16.mxu0 0
        %3079 = vmatpush1.bf16.msra.mxu0 0
        %3080 = vmatprep.subr.bf16.mxu0 0
        %3081 = vmatpush1.bf16.msra.mxu0 0
        %3082 = vmatprep.subr.bf16.mxu0 0
        %3083 = vmatpush1.bf16.msra.mxu0 0
        %3084 = vmatprep.subr.bf16.mxu0 0
        %3085 = vmatpush1.bf16.msra.mxu0 0
        %3086 = vmatprep.subr.bf16.mxu0 0
        %3087 = vmatpush1.bf16.msra.mxu0 0
        %3088 = vmatprep.subr.bf16.mxu0 0
        %3089 = vmatpush1.bf16.msra.mxu0 0
        %3090 = vmatprep.subr.bf16.mxu0 0
        %3091 = vmatpush1.bf16.msra.mxu0 0
        %3092 = vmatprep.mubr.bf16.mxu0 0
        %3093 = vmatmul.mubr.bf16.gmra.mrb[0].mxu0 %v3058
        %v3094 = vpop.f32.mrb[0].mxu0
        %v3095 = vadd.f32 0.0, %v3094
        %v3096 = vpop.f32.mrb[0].mxu0
        %v3097 = vpop.f32.mrb[0].mxu0
        %v3098 = vadd.f32 0.0, %v3097
        %v3099 = vpop.f32.mrb[0].mxu0
        %3100 = vdwg.mxu0
        %3101 = vrot.lane.b32.xlu0 %v1271, 64
        %v3102 = vpop.permute.xlu0 %3101
        %v3105 = vsel %vm2074, %v2441, 0
        %3107 = vmatprep.subr.bf16.mxu0 0
        %3108 = vmatpush1.bf16.msra.mxu0 %v3102
        %3109 = vmatprep.subr.bf16.mxu0 0
        %3110 = vmatpush1.bf16.msra.mxu0 0
        %3111 = vmatprep.subr.bf16.mxu0 0
        %3112 = vmatpush1.bf16.msra.mxu0 0
        %3113 = vmatprep.subr.bf16.mxu0 0
        %3114 = vmatpush1.bf16.msra.mxu0 0
        %3115 = vmatprep.subr.bf16.mxu0 0
        %3116 = vmatpush1.bf16.msra.mxu0 0
        %3117 = vmatprep.subr.bf16.mxu0 0
        %3118 = vmatpush1.bf16.msra.mxu0 0
        %3119 = vmatprep.subr.bf16.mxu0 0
        %3120 = vmatpush1.bf16.msra.mxu0 0
        %3121 = vmatprep.subr.bf16.mxu0 0
        %3122 = vmatpush1.bf16.msra.mxu0 0
        %3123 = vmatprep.subr.bf16.mxu0 0
        %3124 = vmatpush1.bf16.msra.mxu0 0
        %3125 = vmatprep.subr.bf16.mxu0 0
        %3126 = vmatpush1.bf16.msra.mxu0 0
        %3127 = vmatprep.subr.bf16.mxu0 0
        %3128 = vmatpush1.bf16.msra.mxu0 0
        %3129 = vmatprep.subr.bf16.mxu0 0
        %3130 = vmatpush1.bf16.msra.mxu0 0
        %3131 = vmatprep.subr.bf16.mxu0 0
        %3132 = vmatpush1.bf16.msra.mxu0 0
        %3133 = vmatprep.subr.bf16.mxu0 0
        %3134 = vmatpush1.bf16.msra.mxu0 0
        %3135 = vmatprep.subr.bf16.mxu0 0
        %3136 = vmatpush1.bf16.msra.mxu0 0
        %3137 = vmatprep.subr.bf16.mxu0 0
        %3138 = vmatpush1.bf16.msra.mxu0 0
        %3139 = vmatprep.mubr.bf16.mxu0 0
        %3140 = vmatmul.mubr.bf16.gmra.mrb[0].mxu0 %v3105
        %v3141 = vpop.f32.mrb[0].mxu0
        %v3142 = vadd.f32 0.0, %v3141
        %v3143 = vpop.f32.mrb[0].mxu0
        %v3144 = vpop.f32.mrb[0].mxu0
        %v3145 = vadd.f32 0.0, %v3144
        %v3146 = vpop.f32.mrb[0].mxu0
        %3147 = vdwg.mxu0
        %3148 = vrot.lane.b32.xlu0 %v1272, 64
        %v3149 = vpop.permute.xlu0 %3148
        %v3152 = vsel %vm2074, %v2442, 0
        %3154 = vmatprep.subr.bf16.mxu0 0
        %3155 = vmatpush1.bf16.msra.mxu0 %v3149
        %3156 = vmatprep.subr.bf16.mxu0 0
        %3157 = vmatpush1.bf16.msra.mxu0 0
        %3158 = vmatprep.subr.bf16.mxu0 0
        %3159 = vmatpush1.bf16.msra.mxu0 0
        %3160 = vmatprep.subr.bf16.mxu0 0
        %3161 = vmatpush1.bf16.msra.mxu0 0
        %3162 = vmatprep.subr.bf16.mxu0 0
        %3163 = vmatpush1.bf16.msra.mxu0 0
        %3164 = vmatprep.subr.bf16.mxu0 0
        %3165 = vmatpush1.bf16.msra.mxu0 0
        %3166 = vmatprep.subr.bf16.mxu0 0
        %3167 = vmatpush1.bf16.msra.mxu0 0
        %3168 = vmatprep.subr.bf16.mxu0 0
        %3169 = vmatpush1.bf16.msra.mxu0 0
        %3170 = vmatprep.subr.bf16.mxu0 0
        %3171 = vmatpush1.bf16.msra.mxu0 0
        %3172 = vmatprep.subr.bf16.mxu0 0
        %3173 = vmatpush1.bf16.msra.mxu0 0
        %3174 = vmatprep.subr.bf16.mxu0 0
        %3175 = vmatpush1.bf16.msra.mxu0 0
        %3176 = vmatprep.subr.bf16.mxu0 0
        %3177 = vmatpush1.bf16.msra.mxu0 0
        %3178 = vmatprep.subr.bf16.mxu0 0
        %3179 = vmatpush1.bf16.msra.mxu0 0
        %3180 = vmatprep.subr.bf16.mxu0 0
        %3181 = vmatpush1.bf16.msra.mxu0 0
        %3182 = vmatprep.subr.bf16.mxu0 0
        %3183 = vmatpush1.bf16.msra.mxu0 0
        %3184 = vmatprep.subr.bf16.mxu0 0
        %3185 = vmatpush1.bf16.msra.mxu0 0
        %3186 = vmatprep.mubr.bf16.mxu0 0
        %3187 = vmatmul.mubr.bf16.gmra.mrb[0].mxu0 %v3152
        %v3188 = vpop.f32.mrb[0].mxu0
        %v3189 = vadd.f32 0.0, %v3188
        %v3190 = vpop.f32.mrb[0].mxu0
        %v3191 = vpop.f32.mrb[0].mxu0
        %v3192 = vadd.f32 0.0, %v3191
        %v3193 = vpop.f32.mrb[0].mxu0
        %3194 = vdwg.mxu0
        %3195 = vrot.lane.b32.xlu0 %v1257, 120
        %v3196 = vpop.permute.xlu0 %3195
        %3197 = vrot.lane.b32.xlu0 %v1257, 88
        %v3198 = vpop.permute.xlu0 %3197
        %v3200 = vsel %vm1276, %v3196, 0
        %v3203 = vsel %vm1276, %v3198, 0
        %3205 = vmatprep.subr.bf16.mxu0 0
        %3206 = vmatpush1.bf16.xpose.msra.mxu0 %v3203
        %3207 = vmatprep.subr.bf16.mxu0 0
        %3208 = vmatpush1.bf16.xpose.msra.mxu0 0
        %3209 = vmatprep.subr.bf16.mxu0 0
        %3210 = vmatpush1.bf16.xpose.msra.mxu0 0
        %3211 = vmatprep.subr.bf16.mxu0 0
        %3212 = vmatpush1.bf16.xpose.msra.mxu0 0
        %3213 = vmatprep.subr.bf16.mxu0 0
        %3214 = vmatpush1.bf16.xpose.msra.mxu0 0
        %3215 = vmatprep.subr.bf16.mxu0 0
        %3216 = vmatpush1.bf16.xpose.msra.mxu0 0
        %3217 = vmatprep.subr.bf16.mxu0 0
        %3218 = vmatpush1.bf16.xpose.msra.mxu0 0
        %3219 = vmatprep.subr.bf16.mxu0 0
        %3220 = vmatpush1.bf16.xpose.msra.mxu0 0
        %3221 = vmatprep.subr.bf16.mxu0 0
        %3222 = vmatpush1.bf16.xpose.msra.mxu0 0
        %3223 = vmatprep.subr.bf16.mxu0 0
        %3224 = vmatpush1.bf16.xpose.msra.mxu0 0
        %3225 = vmatprep.subr.bf16.mxu0 0
        %3226 = vmatpush1.bf16.xpose.msra.mxu0 0
        %3227 = vmatprep.subr.bf16.mxu0 0
        %3228 = vmatpush1.bf16.xpose.msra.mxu0 0
        %3229 = vmatprep.subr.bf16.mxu0 0
        %3230 = vmatpush1.bf16.xpose.msra.mxu0 0
        %3231 = vmatprep.subr.bf16.mxu0 0
        %3232 = vmatpush1.bf16.xpose.msra.mxu0 0
        %3233 = vmatprep.subr.bf16.mxu0 0
        %3234 = vmatpush1.bf16.xpose.msra.mxu0 0
        %3235 = vmatprep.subr.bf16.mxu0 0
        %3236 = vmatpush1.bf16.xpose.msra.mxu0 0
        %3237 = vmatprep.mubr.bf16.mxu0 0
        %3238 = vmatmul.mubr.bf16.gmra.mrb[0].mxu0 %v3200
        %v3239 = vpop.f32.mrb[0].mxu0
        %v3240 = vadd.f32 0.0, %v3239
        %v3241 = vpop.f32.mrb[0].mxu0
        %v3242 = vpop.f32.mrb[0].mxu0
        %v3243 = vadd.f32 0.0, %v3242
        %v3244 = vpop.f32.mrb[0].mxu0
        %3245 = vdwg.mxu0
        %3246 = vrot.lane.b32.xlu0 %v1258, 120
        %v3247 = vpop.permute.xlu0 %3246
        %3248 = vrot.lane.b32.xlu0 %v1258, 88
        %v3249 = vpop.permute.xlu0 %3248
        %v3251 = vsel %vm1276, %v3247, 0
        %v3254 = vsel %vm1276, %v3249, 0
        %3256 = vmatprep.subr.bf16.mxu0 0
        %3257 = vmatpush1.bf16.xpose.msra.mxu0 %v3254
        %3258 = vmatprep.subr.bf16.mxu0 0
        %3259 = vmatpush1.bf16.xpose.msra.mxu0 0
        %3260 = vmatprep.subr.bf16.mxu0 0
        %3261 = vmatpush1.bf16.xpose.msra.mxu0 0
        %3262 = vmatprep.subr.bf16.mxu0 0
        %3263 = vmatpush1.bf16.xpose.msra.mxu0 0
        %3264 = vmatprep.subr.bf16.mxu0 0
        %3265 = vmatpush1.bf16.xpose.msra.mxu0 0
        %3266 = vmatprep.subr.bf16.mxu0 0
        %3267 = vmatpush1.bf16.xpose.msra.mxu0 0
        %3268 = vmatprep.subr.bf16.mxu0 0
        %3269 = vmatpush1.bf16.xpose.msra.mxu0 0
        %3270 = vmatprep.subr.bf16.mxu0 0
        %3271 = vmatpush1.bf16.xpose.msra.mxu0 0
        %3272 = vmatprep.subr.bf16.mxu0 0
        %3273 = vmatpush1.bf16.xpose.msra.mxu0 0
        %3274 = vmatprep.subr.bf16.mxu0 0
        %3275 = vmatpush1.bf16.xpose.msra.mxu0 0
        %3276 = vmatprep.subr.bf16.mxu0 0
        %3277 = vmatpush1.bf16.xpose.msra.mxu0 0
        %3278 = vmatprep.subr.bf16.mxu0 0
        %3279 = vmatpush1.bf16.xpose.msra.mxu0 0
        %3280 = vmatprep.subr.bf16.mxu0 0
        %3281 = vmatpush1.bf16.xpose.msra.mxu0 0
        %3282 = vmatprep.subr.bf16.mxu0 0
        %3283 = vmatpush1.bf16.xpose.msra.mxu0 0
        %3284 = vmatprep.subr.bf16.mxu0 0
        %3285 = vmatpush1.bf16.xpose.msra.mxu0 0
        %3286 = vmatprep.subr.bf16.mxu0 0
        %3287 = vmatpush1.bf16.xpose.msra.mxu0 0
        %3288 = vmatprep.mubr.bf16.mxu0 0
        %3289 = vmatmul.mubr.bf16.gmra.mrb[0].mxu0 %v3251
        %v3290 = vpop.f32.mrb[0].mxu0
        %v3291 = vadd.f32 0.0, %v3290
        %v3292 = vpop.f32.mrb[0].mxu0
        %v3293 = vpop.f32.mrb[0].mxu0
        %v3294 = vadd.f32 0.0, %v3293
        %v3295 = vpop.f32.mrb[0].mxu0
        %3296 = vdwg.mxu0
        %3297 = vrot.lane.b32.xlu0 %v1259, 120
        %v3298 = vpop.permute.xlu0 %3297
        %3299 = vrot.lane.b32.xlu0 %v1259, 88
        %v3300 = vpop.permute.xlu0 %3299
        %v3302 = vsel %vm1276, %v3298, 0
        %v3305 = vsel %vm1276, %v3300, 0
        %3307 = vmatprep.subr.bf16.mxu0 0
        %3308 = vmatpush1.bf16.xpose.msra.mxu0 %v3305
        %3309 = vmatprep.subr.bf16.mxu0 0
        %3310 = vmatpush1.bf16.xpose.msra.mxu0 0
        %3311 = vmatprep.subr.bf16.mxu0 0
        %3312 = vmatpush1.bf16.xpose.msra.mxu0 0
        %3313 = vmatprep.subr.bf16.mxu0 0
        %3314 = vmatpush1.bf16.xpose.msra.mxu0 0
        %3315 = vmatprep.subr.bf16.mxu0 0
        %3316 = vmatpush1.bf16.xpose.msra.mxu0 0
        %3317 = vmatprep.subr.bf16.mxu0 0
        %3318 = vmatpush1.bf16.xpose.msra.mxu0 0
        %3319 = vmatprep.subr.bf16.mxu0 0
        %3320 = vmatpush1.bf16.xpose.msra.mxu0 0
        %3321 = vmatprep.subr.bf16.mxu0 0
        %3322 = vmatpush1.bf16.xpose.msra.mxu0 0
        %3323 = vmatprep.subr.bf16.mxu0 0
        %3324 = vmatpush1.bf16.xpose.msra.mxu0 0
        %3325 = vmatprep.subr.bf16.mxu0 0
        %3326 = vmatpush1.bf16.xpose.msra.mxu0 0
        %3327 = vmatprep.subr.bf16.mxu0 0
        %3328 = vmatpush1.bf16.xpose.msra.mxu0 0
        %3329 = vmatprep.subr.bf16.mxu0 0
        %3330 = vmatpush1.bf16.xpose.msra.mxu0 0
        %3331 = vmatprep.subr.bf16.mxu0 0
        %3332 = vmatpush1.bf16.xpose.msra.mxu0 0
        %3333 = vmatprep.subr.bf16.mxu0 0
        %3334 = vmatpush1.bf16.xpose.msra.mxu0 0
        %3335 = vmatprep.subr.bf16.mxu0 0
        %3336 = vmatpush1.bf16.xpose.msra.mxu0 0
        %3337 = vmatprep.subr.bf16.mxu0 0
        %3338 = vmatpush1.bf16.xpose.msra.mxu0 0
        %3339 = vmatprep.mubr.bf16.mxu0 0
        %3340 = vmatmul.mubr.bf16.gmra.mrb[0].mxu0 %v3302
        %v3341 = vpop.f32.mrb[0].mxu0
        %v3342 = vadd.f32 0.0, %v3341
        %v3343 = vpop.f32.mrb[0].mxu0
        %v3344 = vpop.f32.mrb[0].mxu0
        %v3345 = vadd.f32 0.0, %v3344
        %v3346 = vpop.f32.mrb[0].mxu0
        %3347 = vdwg.mxu0
        %3348 = vrot.lane.b32.xlu0 %v1260, 120
        %v3349 = vpop.permute.xlu0 %3348
        %3350 = vrot.lane.b32.xlu0 %v1260, 88
        %v3351 = vpop.permute.xlu0 %3350
        %v3353 = vsel %vm1276, %v3349, 0
        %v3356 = vsel %vm1276, %v3351, 0
        %3358 = vmatprep.subr.bf16.mxu0 0
        %3359 = vmatpush1.bf16.xpose.msra.mxu0 %v3356
        %3360 = vmatprep.subr.bf16.mxu0 0
        %3361 = vmatpush1.bf16.xpose.msra.mxu0 0
        %3362 = vmatprep.subr.bf16.mxu0 0
        %3363 = vmatpush1.bf16.xpose.msra.mxu0 0
        %3364 = vmatprep.subr.bf16.mxu0 0
        %3365 = vmatpush1.bf16.xpose.msra.mxu0 0
        %3366 = vmatprep.subr.bf16.mxu0 0
        %3367 = vmatpush1.bf16.xpose.msra.mxu0 0
        %3368 = vmatprep.subr.bf16.mxu0 0
        %3369 = vmatpush1.bf16.xpose.msra.mxu0 0
        %3370 = vmatprep.subr.bf16.mxu0 0
        %3371 = vmatpush1.bf16.xpose.msra.mxu0 0
        %3372 = vmatprep.subr.bf16.mxu0 0
        %3373 = vmatpush1.bf16.xpose.msra.mxu0 0
        %3374 = vmatprep.subr.bf16.mxu0 0
        %3375 = vmatpush1.bf16.xpose.msra.mxu0 0
        %3376 = vmatprep.subr.bf16.mxu0 0
        %3377 = vmatpush1.bf16.xpose.msra.mxu0 0
        %3378 = vmatprep.subr.bf16.mxu0 0
        %3379 = vmatpush1.bf16.xpose.msra.mxu0 0
        %3380 = vmatprep.subr.bf16.mxu0 0
        %3381 = vmatpush1.bf16.xpose.msra.mxu0 0
        %3382 = vmatprep.subr.bf16.mxu0 0
        %3383 = vmatpush1.bf16.xpose.msra.mxu0 0
        %3384 = vmatprep.subr.bf16.mxu0 0
        %3385 = vmatpush1.bf16.xpose.msra.mxu0 0
        %3386 = vmatprep.subr.bf16.mxu0 0
        %3387 = vmatpush1.bf16.xpose.msra.mxu0 0
        %3388 = vmatprep.subr.bf16.mxu0 0
        %3389 = vmatpush1.bf16.xpose.msra.mxu0 0
        %3390 = vmatprep.mubr.bf16.mxu0 0
        %3391 = vmatmul.mubr.bf16.gmra.mrb[0].mxu0 %v3353
        %v3392 = vpop.f32.mrb[0].mxu0
        %v3393 = vadd.f32 0.0, %v3392
        %v3394 = vpop.f32.mrb[0].mxu0
        %v3395 = vpop.f32.mrb[0].mxu0
        %v3396 = vadd.f32 0.0, %v3395
        %v3397 = vpop.f32.mrb[0].mxu0
        %3398 = vdwg.mxu0
        %3399 = vrot.lane.b32.xlu0 %v1261, 120
        %v3400 = vpop.permute.xlu0 %3399
        %3401 = vrot.lane.b32.xlu0 %v1261, 88
        %v3402 = vpop.permute.xlu0 %3401
        %v3404 = vsel %vm1276, %v3400, 0
        %v3407 = vsel %vm1276, %v3402, 0
        %3409 = vmatprep.subr.bf16.mxu0 0
        %3410 = vmatpush1.bf16.xpose.msra.mxu0 %v3407
        %3411 = vmatprep.subr.bf16.mxu0 0
        %3412 = vmatpush1.bf16.xpose.msra.mxu0 0
        %3413 = vmatprep.subr.bf16.mxu0 0
        %3414 = vmatpush1.bf16.xpose.msra.mxu0 0
        %3415 = vmatprep.subr.bf16.mxu0 0
        %3416 = vmatpush1.bf16.xpose.msra.mxu0 0
        %3417 = vmatprep.subr.bf16.mxu0 0
        %3418 = vmatpush1.bf16.xpose.msra.mxu0 0
        %3419 = vmatprep.subr.bf16.mxu0 0
        %3420 = vmatpush1.bf16.xpose.msra.mxu0 0
        %3421 = vmatprep.subr.bf16.mxu0 0
        %3422 = vmatpush1.bf16.xpose.msra.mxu0 0
        %3423 = vmatprep.subr.bf16.mxu0 0
        %3424 = vmatpush1.bf16.xpose.msra.mxu0 0
        %3425 = vmatprep.subr.bf16.mxu0 0
        %3426 = vmatpush1.bf16.xpose.msra.mxu0 0
        %3427 = vmatprep.subr.bf16.mxu0 0
        %3428 = vmatpush1.bf16.xpose.msra.mxu0 0
        %3429 = vmatprep.subr.bf16.mxu0 0
        %3430 = vmatpush1.bf16.xpose.msra.mxu0 0
        %3431 = vmatprep.subr.bf16.mxu0 0
        %3432 = vmatpush1.bf16.xpose.msra.mxu0 0
        %3433 = vmatprep.subr.bf16.mxu0 0
        %3434 = vmatpush1.bf16.xpose.msra.mxu0 0
        %3435 = vmatprep.subr.bf16.mxu0 0
        %3436 = vmatpush1.bf16.xpose.msra.mxu0 0
        %3437 = vmatprep.subr.bf16.mxu0 0
        %3438 = vmatpush1.bf16.xpose.msra.mxu0 0
        %3439 = vmatprep.subr.bf16.mxu0 0
        %3440 = vmatpush1.bf16.xpose.msra.mxu0 0
        %3441 = vmatprep.mubr.bf16.mxu0 0
        %3442 = vmatmul.mubr.bf16.gmra.mrb[0].mxu0 %v3404
        %v3443 = vpop.f32.mrb[0].mxu0
        %v3444 = vadd.f32 0.0, %v3443
        %v3445 = vpop.f32.mrb[0].mxu0
        %v3446 = vpop.f32.mrb[0].mxu0
        %v3447 = vadd.f32 0.0, %v3446
        %v3448 = vpop.f32.mrb[0].mxu0
        %3449 = vdwg.mxu0
        %3450 = vrot.lane.b32.xlu0 %v1262, 120
        %v3451 = vpop.permute.xlu0 %3450
        %3452 = vrot.lane.b32.xlu0 %v1262, 88
        %v3453 = vpop.permute.xlu0 %3452
        %v3455 = vsel %vm1276, %v3451, 0
        %v3458 = vsel %vm1276, %v3453, 0
        %3460 = vmatprep.subr.bf16.mxu0 0
        %3461 = vmatpush1.bf16.xpose.msra.mxu0 %v3458
        %3462 = vmatprep.subr.bf16.mxu0 0
        %3463 = vmatpush1.bf16.xpose.msra.mxu0 0
        %3464 = vmatprep.subr.bf16.mxu0 0
        %3465 = vmatpush1.bf16.xpose.msra.mxu0 0
        %3466 = vmatprep.subr.bf16.mxu0 0
        %3467 = vmatpush1.bf16.xpose.msra.mxu0 0
        %3468 = vmatprep.subr.bf16.mxu0 0
        %3469 = vmatpush1.bf16.xpose.msra.mxu0 0
        %3470 = vmatprep.subr.bf16.mxu0 0
        %3471 = vmatpush1.bf16.xpose.msra.mxu0 0
        %3472 = vmatprep.subr.bf16.mxu0 0
        %3473 = vmatpush1.bf16.xpose.msra.mxu0 0
        %3474 = vmatprep.subr.bf16.mxu0 0
        %3475 = vmatpush1.bf16.xpose.msra.mxu0 0
        %3476 = vmatprep.subr.bf16.mxu0 0
        %3477 = vmatpush1.bf16.xpose.msra.mxu0 0
        %3478 = vmatprep.subr.bf16.mxu0 0
        %3479 = vmatpush1.bf16.xpose.msra.mxu0 0
        %3480 = vmatprep.subr.bf16.mxu0 0
        %3481 = vmatpush1.bf16.xpose.msra.mxu0 0
        %3482 = vmatprep.subr.bf16.mxu0 0
        %3483 = vmatpush1.bf16.xpose.msra.mxu0 0
        %3484 = vmatprep.subr.bf16.mxu0 0
        %3485 = vmatpush1.bf16.xpose.msra.mxu0 0
        %3486 = vmatprep.subr.bf16.mxu0 0
        %3487 = vmatpush1.bf16.xpose.msra.mxu0 0
        %3488 = vmatprep.subr.bf16.mxu0 0
        %3489 = vmatpush1.bf16.xpose.msra.mxu0 0
        %3490 = vmatprep.subr.bf16.mxu0 0
        %3491 = vmatpush1.bf16.xpose.msra.mxu0 0
        %3492 = vmatprep.mubr.bf16.mxu0 0
        %3493 = vmatmul.mubr.bf16.gmra.mrb[0].mxu0 %v3455
        %v3494 = vpop.f32.mrb[0].mxu0
        %v3495 = vadd.f32 0.0, %v3494
        %v3496 = vpop.f32.mrb[0].mxu0
        %v3497 = vpop.f32.mrb[0].mxu0
        %v3498 = vadd.f32 0.0, %v3497
        %v3499 = vpop.f32.mrb[0].mxu0
        %3500 = vdwg.mxu0
        %3501 = vrot.lane.b32.xlu0 %v1263, 120
        %v3502 = vpop.permute.xlu0 %3501
        %3503 = vrot.lane.b32.xlu0 %v1263, 88
        %v3504 = vpop.permute.xlu0 %3503
        %v3506 = vsel %vm1276, %v3502, 0
        %v3509 = vsel %vm1276, %v3504, 0
        %3511 = vmatprep.subr.bf16.mxu0 0
        %3512 = vmatpush1.bf16.xpose.msra.mxu0 %v3509
        %3513 = vmatprep.subr.bf16.mxu0 0
        %3514 = vmatpush1.bf16.xpose.msra.mxu0 0
        %3515 = vmatprep.subr.bf16.mxu0 0
        %3516 = vmatpush1.bf16.xpose.msra.mxu0 0
        %3517 = vmatprep.subr.bf16.mxu0 0
        %3518 = vmatpush1.bf16.xpose.msra.mxu0 0
        %3519 = vmatprep.subr.bf16.mxu0 0
        %3520 = vmatpush1.bf16.xpose.msra.mxu0 0
        %3521 = vmatprep.subr.bf16.mxu0 0
        %3522 = vmatpush1.bf16.xpose.msra.mxu0 0
        %3523 = vmatprep.subr.bf16.mxu0 0
        %3524 = vmatpush1.bf16.xpose.msra.mxu0 0
        %3525 = vmatprep.subr.bf16.mxu0 0
        %3526 = vmatpush1.bf16.xpose.msra.mxu0 0
        %3527 = vmatprep.subr.bf16.mxu0 0
        %3528 = vmatpush1.bf16.xpose.msra.mxu0 0
        %3529 = vmatprep.subr.bf16.mxu0 0
        %3530 = vmatpush1.bf16.xpose.msra.mxu0 0
        %3531 = vmatprep.subr.bf16.mxu0 0
        %3532 = vmatpush1.bf16.xpose.msra.mxu0 0
        %3533 = vmatprep.subr.bf16.mxu0 0
        %3534 = vmatpush1.bf16.xpose.msra.mxu0 0
        %3535 = vmatprep.subr.bf16.mxu0 0
        %3536 = vmatpush1.bf16.xpose.msra.mxu0 0
        %3537 = vmatprep.subr.bf16.mxu0 0
        %3538 = vmatpush1.bf16.xpose.msra.mxu0 0
        %3539 = vmatprep.subr.bf16.mxu0 0
        %3540 = vmatpush1.bf16.xpose.msra.mxu0 0
        %3541 = vmatprep.subr.bf16.mxu0 0
        %3542 = vmatpush1.bf16.xpose.msra.mxu0 0
        %3543 = vmatprep.mubr.bf16.mxu0 0
        %3544 = vmatmul.mubr.bf16.gmra.mrb[0].mxu0 %v3506
        %v3545 = vpop.f32.mrb[0].mxu0
        %v3546 = vadd.f32 0.0, %v3545
        %v3547 = vpop.f32.mrb[0].mxu0
        %v3548 = vpop.f32.mrb[0].mxu0
        %v3549 = vadd.f32 0.0, %v3548
        %v3550 = vpop.f32.mrb[0].mxu0
        %3551 = vdwg.mxu0
        %3552 = vrot.lane.b32.xlu0 %v1264, 120
        %v3553 = vpop.permute.xlu0 %3552
        %3554 = vrot.lane.b32.xlu0 %v1264, 88
        %v3555 = vpop.permute.xlu0 %3554
        %v3557 = vsel %vm1276, %v3553, 0
        %v3560 = vsel %vm1276, %v3555, 0
        %3562 = vmatprep.subr.bf16.mxu0 0
        %3563 = vmatpush1.bf16.xpose.msra.mxu0 %v3560
        %3564 = vmatprep.subr.bf16.mxu0 0
        %3565 = vmatpush1.bf16.xpose.msra.mxu0 0
        %3566 = vmatprep.subr.bf16.mxu0 0
        %3567 = vmatpush1.bf16.xpose.msra.mxu0 0
        %3568 = vmatprep.subr.bf16.mxu0 0
        %3569 = vmatpush1.bf16.xpose.msra.mxu0 0
        %3570 = vmatprep.subr.bf16.mxu0 0
        %3571 = vmatpush1.bf16.xpose.msra.mxu0 0
        %3572 = vmatprep.subr.bf16.mxu0 0
        %3573 = vmatpush1.bf16.xpose.msra.mxu0 0
        %3574 = vmatprep.subr.bf16.mxu0 0
        %3575 = vmatpush1.bf16.xpose.msra.mxu0 0
        %3576 = vmatprep.subr.bf16.mxu0 0
        %3577 = vmatpush1.bf16.xpose.msra.mxu0 0
        %3578 = vmatprep.subr.bf16.mxu0 0
        %3579 = vmatpush1.bf16.xpose.msra.mxu0 0
        %3580 = vmatprep.subr.bf16.mxu0 0
        %3581 = vmatpush1.bf16.xpose.msra.mxu0 0
        %3582 = vmatprep.subr.bf16.mxu0 0
        %3583 = vmatpush1.bf16.xpose.msra.mxu0 0
        %3584 = vmatprep.subr.bf16.mxu0 0
        %3585 = vmatpush1.bf16.xpose.msra.mxu0 0
        %3586 = vmatprep.subr.bf16.mxu0 0
        %3587 = vmatpush1.bf16.xpose.msra.mxu0 0
        %3588 = vmatprep.subr.bf16.mxu0 0
        %3589 = vmatpush1.bf16.xpose.msra.mxu0 0
        %3590 = vmatprep.subr.bf16.mxu0 0
        %3591 = vmatpush1.bf16.xpose.msra.mxu0 0
        %3592 = vmatprep.subr.bf16.mxu0 0
        %3593 = vmatpush1.bf16.xpose.msra.mxu0 0
        %3594 = vmatprep.mubr.bf16.mxu0 0
        %3595 = vmatmul.mubr.bf16.gmra.mrb[0].mxu0 %v3557
        %v3596 = vpop.f32.mrb[0].mxu0
        %v3597 = vadd.f32 0.0, %v3596
        %v3598 = vpop.f32.mrb[0].mxu0
        %v3599 = vpop.f32.mrb[0].mxu0
        %v3600 = vadd.f32 0.0, %v3599
        %v3601 = vpop.f32.mrb[0].mxu0
        %3602 = vdwg.mxu0
        %3603 = vrot.lane.b32.xlu0 %v1265, 120
        %v3604 = vpop.permute.xlu0 %3603
        %3605 = vrot.lane.b32.xlu0 %v1265, 88
        %v3606 = vpop.permute.xlu0 %3605
        %v3608 = vsel %vm1276, %v3604, 0
        %v3611 = vsel %vm1276, %v3606, 0
        %3613 = vmatprep.subr.bf16.mxu0 0
        %3614 = vmatpush1.bf16.xpose.msra.mxu0 %v3611
        %3615 = vmatprep.subr.bf16.mxu0 0
        %3616 = vmatpush1.bf16.xpose.msra.mxu0 0
        %3617 = vmatprep.subr.bf16.mxu0 0
        %3618 = vmatpush1.bf16.xpose.msra.mxu0 0
        %3619 = vmatprep.subr.bf16.mxu0 0
        %3620 = vmatpush1.bf16.xpose.msra.mxu0 0
        %3621 = vmatprep.subr.bf16.mxu0 0
        %3622 = vmatpush1.bf16.xpose.msra.mxu0 0
        %3623 = vmatprep.subr.bf16.mxu0 0
        %3624 = vmatpush1.bf16.xpose.msra.mxu0 0
        %3625 = vmatprep.subr.bf16.mxu0 0
        %3626 = vmatpush1.bf16.xpose.msra.mxu0 0
        %3627 = vmatprep.subr.bf16.mxu0 0
        %3628 = vmatpush1.bf16.xpose.msra.mxu0 0
        %3629 = vmatprep.subr.bf16.mxu0 0
        %3630 = vmatpush1.bf16.xpose.msra.mxu0 0
        %3631 = vmatprep.subr.bf16.mxu0 0
        %3632 = vmatpush1.bf16.xpose.msra.mxu0 0
        %3633 = vmatprep.subr.bf16.mxu0 0
        %3634 = vmatpush1.bf16.xpose.msra.mxu0 0
        %3635 = vmatprep.subr.bf16.mxu0 0
        %3636 = vmatpush1.bf16.xpose.msra.mxu0 0
        %3637 = vmatprep.subr.bf16.mxu0 0
        %3638 = vmatpush1.bf16.xpose.msra.mxu0 0
        %3639 = vmatprep.subr.bf16.mxu0 0
        %3640 = vmatpush1.bf16.xpose.msra.mxu0 0
        %3641 = vmatprep.subr.bf16.mxu0 0
        %3642 = vmatpush1.bf16.xpose.msra.mxu0 0
        %3643 = vmatprep.subr.bf16.mxu0 0
        %3644 = vmatpush1.bf16.xpose.msra.mxu0 0
        %3645 = vmatprep.mubr.bf16.mxu0 0
        %3646 = vmatmul.mubr.bf16.gmra.mrb[0].mxu0 %v3608
        %v3647 = vpop.f32.mrb[0].mxu0
        %v3648 = vadd.f32 0.0, %v3647
        %v3649 = vpop.f32.mrb[0].mxu0
        %v3650 = vpop.f32.mrb[0].mxu0
        %v3651 = vadd.f32 0.0, %v3650
        %v3652 = vpop.f32.mrb[0].mxu0
        %3653 = vdwg.mxu0
        %3654 = vrot.lane.b32.xlu0 %v1266, 120
        %v3655 = vpop.permute.xlu0 %3654
        %3656 = vrot.lane.b32.xlu0 %v1266, 88
        %v3657 = vpop.permute.xlu0 %3656
        %v3659 = vsel %vm1276, %v3655, 0
        %v3662 = vsel %vm1276, %v3657, 0
        %3664 = vmatprep.subr.bf16.mxu0 0
        %3665 = vmatpush1.bf16.xpose.msra.mxu0 %v3662
        %3666 = vmatprep.subr.bf16.mxu0 0
        %3667 = vmatpush1.bf16.xpose.msra.mxu0 0
        %3668 = vmatprep.subr.bf16.mxu0 0
        %3669 = vmatpush1.bf16.xpose.msra.mxu0 0
        %3670 = vmatprep.subr.bf16.mxu0 0
        %3671 = vmatpush1.bf16.xpose.msra.mxu0 0
        %3672 = vmatprep.subr.bf16.mxu0 0
        %3673 = vmatpush1.bf16.xpose.msra.mxu0 0
        %3674 = vmatprep.subr.bf16.mxu0 0
        %3675 = vmatpush1.bf16.xpose.msra.mxu0 0
        %3676 = vmatprep.subr.bf16.mxu0 0
        %3677 = vmatpush1.bf16.xpose.msra.mxu0 0
        %3678 = vmatprep.subr.bf16.mxu0 0
        %3679 = vmatpush1.bf16.xpose.msra.mxu0 0
        %3680 = vmatprep.subr.bf16.mxu0 0
        %3681 = vmatpush1.bf16.xpose.msra.mxu0 0
        %3682 = vmatprep.subr.bf16.mxu0 0
        %3683 = vmatpush1.bf16.xpose.msra.mxu0 0
        %3684 = vmatprep.subr.bf16.mxu0 0
        %3685 = vmatpush1.bf16.xpose.msra.mxu0 0
        %3686 = vmatprep.subr.bf16.mxu0 0
        %3687 = vmatpush1.bf16.xpose.msra.mxu0 0
        %3688 = vmatprep.subr.bf16.mxu0 0
        %3689 = vmatpush1.bf16.xpose.msra.mxu0 0
        %3690 = vmatprep.subr.bf16.mxu0 0
        %3691 = vmatpush1.bf16.xpose.msra.mxu0 0
        %3692 = vmatprep.subr.bf16.mxu0 0
        %3693 = vmatpush1.bf16.xpose.msra.mxu0 0
        %3694 = vmatprep.subr.bf16.mxu0 0
        %3695 = vmatpush1.bf16.xpose.msra.mxu0 0
        %3696 = vmatprep.mubr.bf16.mxu0 0
        %3697 = vmatmul.mubr.bf16.gmra.mrb[0].mxu0 %v3659
        %v3698 = vpop.f32.mrb[0].mxu0
        %v3699 = vadd.f32 0.0, %v3698
        %v3700 = vpop.f32.mrb[0].mxu0
        %v3701 = vpop.f32.mrb[0].mxu0
        %v3702 = vadd.f32 0.0, %v3701
        %v3703 = vpop.f32.mrb[0].mxu0
        %3704 = vdwg.mxu0
        %3705 = vrot.lane.b32.xlu0 %v1267, 120
        %v3706 = vpop.permute.xlu0 %3705
        %3707 = vrot.lane.b32.xlu0 %v1267, 88
        %v3708 = vpop.permute.xlu0 %3707
        %v3710 = vsel %vm1276, %v3706, 0
        %v3713 = vsel %vm1276, %v3708, 0
        %3715 = vmatprep.subr.bf16.mxu0 0
        %3716 = vmatpush1.bf16.xpose.msra.mxu0 %v3713
        %3717 = vmatprep.subr.bf16.mxu0 0
        %3718 = vmatpush1.bf16.xpose.msra.mxu0 0
        %3719 = vmatprep.subr.bf16.mxu0 0
        %3720 = vmatpush1.bf16.xpose.msra.mxu0 0
        %3721 = vmatprep.subr.bf16.mxu0 0
        %3722 = vmatpush1.bf16.xpose.msra.mxu0 0
        %3723 = vmatprep.subr.bf16.mxu0 0
        %3724 = vmatpush1.bf16.xpose.msra.mxu0 0
        %3725 = vmatprep.subr.bf16.mxu0 0
        %3726 = vmatpush1.bf16.xpose.msra.mxu0 0
        %3727 = vmatprep.subr.bf16.mxu0 0
        %3728 = vmatpush1.bf16.xpose.msra.mxu0 0
        %3729 = vmatprep.subr.bf16.mxu0 0
        %3730 = vmatpush1.bf16.xpose.msra.mxu0 0
        %3731 = vmatprep.subr.bf16.mxu0 0
        %3732 = vmatpush1.bf16.xpose.msra.mxu0 0
        %3733 = vmatprep.subr.bf16.mxu0 0
        %3734 = vmatpush1.bf16.xpose.msra.mxu0 0
        %3735 = vmatprep.subr.bf16.mxu0 0
        %3736 = vmatpush1.bf16.xpose.msra.mxu0 0
        %3737 = vmatprep.subr.bf16.mxu0 0
        %3738 = vmatpush1.bf16.xpose.msra.mxu0 0
        %3739 = vmatprep.subr.bf16.mxu0 0
        %3740 = vmatpush1.bf16.xpose.msra.mxu0 0
        %3741 = vmatprep.subr.bf16.mxu0 0
        %3742 = vmatpush1.bf16.xpose.msra.mxu0 0
        %3743 = vmatprep.subr.bf16.mxu0 0
        %3744 = vmatpush1.bf16.xpose.msra.mxu0 0
        %3745 = vmatprep.subr.bf16.mxu0 0
        %3746 = vmatpush1.bf16.xpose.msra.mxu0 0
        %3747 = vmatprep.mubr.bf16.mxu0 0
        %3748 = vmatmul.mubr.bf16.gmra.mrb[0].mxu0 %v3710
        %v3749 = vpop.f32.mrb[0].mxu0
        %v3750 = vadd.f32 0.0, %v3749
        %v3751 = vpop.f32.mrb[0].mxu0
        %v3752 = vpop.f32.mrb[0].mxu0
        %v3753 = vadd.f32 0.0, %v3752
        %v3754 = vpop.f32.mrb[0].mxu0
        %3755 = vdwg.mxu0
        %3756 = vrot.lane.b32.xlu0 %v1268, 120
        %v3757 = vpop.permute.xlu0 %3756
        %3758 = vrot.lane.b32.xlu0 %v1268, 88
        %v3759 = vpop.permute.xlu0 %3758
        %v3761 = vsel %vm1276, %v3757, 0
        %v3764 = vsel %vm1276, %v3759, 0
        %3766 = vmatprep.subr.bf16.mxu0 0
        %3767 = vmatpush1.bf16.xpose.msra.mxu0 %v3764
        %3768 = vmatprep.subr.bf16.mxu0 0
        %3769 = vmatpush1.bf16.xpose.msra.mxu0 0
        %3770 = vmatprep.subr.bf16.mxu0 0
        %3771 = vmatpush1.bf16.xpose.msra.mxu0 0
        %3772 = vmatprep.subr.bf16.mxu0 0
        %3773 = vmatpush1.bf16.xpose.msra.mxu0 0
        %3774 = vmatprep.subr.bf16.mxu0 0
        %3775 = vmatpush1.bf16.xpose.msra.mxu0 0
        %3776 = vmatprep.subr.bf16.mxu0 0
        %3777 = vmatpush1.bf16.xpose.msra.mxu0 0
        %3778 = vmatprep.subr.bf16.mxu0 0
        %3779 = vmatpush1.bf16.xpose.msra.mxu0 0
        %3780 = vmatprep.subr.bf16.mxu0 0
        %3781 = vmatpush1.bf16.xpose.msra.mxu0 0
        %3782 = vmatprep.subr.bf16.mxu0 0
        %3783 = vmatpush1.bf16.xpose.msra.mxu0 0
        %3784 = vmatprep.subr.bf16.mxu0 0
        %3785 = vmatpush1.bf16.xpose.msra.mxu0 0
        %3786 = vmatprep.subr.bf16.mxu0 0
        %3787 = vmatpush1.bf16.xpose.msra.mxu0 0
        %3788 = vmatprep.subr.bf16.mxu0 0
        %3789 = vmatpush1.bf16.xpose.msra.mxu0 0
        %3790 = vmatprep.subr.bf16.mxu0 0
        %3791 = vmatpush1.bf16.xpose.msra.mxu0 0
        %3792 = vmatprep.subr.bf16.mxu0 0
        %3793 = vmatpush1.bf16.xpose.msra.mxu0 0
        %3794 = vmatprep.subr.bf16.mxu0 0
        %3795 = vmatpush1.bf16.xpose.msra.mxu0 0
        %3796 = vmatprep.subr.bf16.mxu0 0
        %3797 = vmatpush1.bf16.xpose.msra.mxu0 0
        %3798 = vmatprep.mubr.bf16.mxu0 0
        %3799 = vmatmul.mubr.bf16.gmra.mrb[0].mxu0 %v3761
        %v3800 = vpop.f32.mrb[0].mxu0
        %v3801 = vadd.f32 0.0, %v3800
        %v3802 = vpop.f32.mrb[0].mxu0
        %v3803 = vpop.f32.mrb[0].mxu0
        %v3804 = vadd.f32 0.0, %v3803
        %v3805 = vpop.f32.mrb[0].mxu0
        %3806 = vdwg.mxu0
        %3807 = vrot.lane.b32.xlu0 %v1269, 120
        %v3808 = vpop.permute.xlu0 %3807
        %3809 = vrot.lane.b32.xlu0 %v1269, 88
        %v3810 = vpop.permute.xlu0 %3809
        %v3812 = vsel %vm1276, %v3808, 0
        %v3815 = vsel %vm1276, %v3810, 0
        %3817 = vmatprep.subr.bf16.mxu0 0
        %3818 = vmatpush1.bf16.xpose.msra.mxu0 %v3815
        %3819 = vmatprep.subr.bf16.mxu0 0
        %3820 = vmatpush1.bf16.xpose.msra.mxu0 0
        %3821 = vmatprep.subr.bf16.mxu0 0
        %3822 = vmatpush1.bf16.xpose.msra.mxu0 0
        %3823 = vmatprep.subr.bf16.mxu0 0
        %3824 = vmatpush1.bf16.xpose.msra.mxu0 0
        %3825 = vmatprep.subr.bf16.mxu0 0
        %3826 = vmatpush1.bf16.xpose.msra.mxu0 0
        %3827 = vmatprep.subr.bf16.mxu0 0
        %3828 = vmatpush1.bf16.xpose.msra.mxu0 0
        %3829 = vmatprep.subr.bf16.mxu0 0
        %3830 = vmatpush1.bf16.xpose.msra.mxu0 0
        %3831 = vmatprep.subr.bf16.mxu0 0
        %3832 = vmatpush1.bf16.xpose.msra.mxu0 0
        %3833 = vmatprep.subr.bf16.mxu0 0
        %3834 = vmatpush1.bf16.xpose.msra.mxu0 0
        %3835 = vmatprep.subr.bf16.mxu0 0
        %3836 = vmatpush1.bf16.xpose.msra.mxu0 0
        %3837 = vmatprep.subr.bf16.mxu0 0
        %3838 = vmatpush1.bf16.xpose.msra.mxu0 0
        %3839 = vmatprep.subr.bf16.mxu0 0
        %3840 = vmatpush1.bf16.xpose.msra.mxu0 0
        %3841 = vmatprep.subr.bf16.mxu0 0
        %3842 = vmatpush1.bf16.xpose.msra.mxu0 0
        %3843 = vmatprep.subr.bf16.mxu0 0
        %3844 = vmatpush1.bf16.xpose.msra.mxu0 0
        %3845 = vmatprep.subr.bf16.mxu0 0
        %3846 = vmatpush1.bf16.xpose.msra.mxu0 0
        %3847 = vmatprep.subr.bf16.mxu0 0
        %3848 = vmatpush1.bf16.xpose.msra.mxu0 0
        %3849 = vmatprep.mubr.bf16.mxu0 0
        %3850 = vmatmul.mubr.bf16.gmra.mrb[0].mxu0 %v3812
        %v3851 = vpop.f32.mrb[0].mxu0
        %v3852 = vadd.f32 0.0, %v3851
        %v3853 = vpop.f32.mrb[0].mxu0
        %v3854 = vpop.f32.mrb[0].mxu0
        %v3855 = vadd.f32 0.0, %v3854
        %v3856 = vpop.f32.mrb[0].mxu0
        %3857 = vdwg.mxu0
        %3858 = vrot.lane.b32.xlu0 %v1270, 120
        %v3859 = vpop.permute.xlu0 %3858
        %3860 = vrot.lane.b32.xlu0 %v1270, 88
        %v3861 = vpop.permute.xlu0 %3860
        %v3863 = vsel %vm1276, %v3859, 0
        %v3866 = vsel %vm1276, %v3861, 0
        %3868 = vmatprep.subr.bf16.mxu0 0
        %3869 = vmatpush1.bf16.xpose.msra.mxu0 %v3866
        %3870 = vmatprep.subr.bf16.mxu0 0
        %3871 = vmatpush1.bf16.xpose.msra.mxu0 0
        %3872 = vmatprep.subr.bf16.mxu0 0
        %3873 = vmatpush1.bf16.xpose.msra.mxu0 0
        %3874 = vmatprep.subr.bf16.mxu0 0
        %3875 = vmatpush1.bf16.xpose.msra.mxu0 0
        %3876 = vmatprep.subr.bf16.mxu0 0
        %3877 = vmatpush1.bf16.xpose.msra.mxu0 0
        %3878 = vmatprep.subr.bf16.mxu0 0
        %3879 = vmatpush1.bf16.xpose.msra.mxu0 0
        %3880 = vmatprep.subr.bf16.mxu0 0
        %3881 = vmatpush1.bf16.xpose.msra.mxu0 0
        %3882 = vmatprep.subr.bf16.mxu0 0
        %3883 = vmatpush1.bf16.xpose.msra.mxu0 0
        %3884 = vmatprep.subr.bf16.mxu0 0
        %3885 = vmatpush1.bf16.xpose.msra.mxu0 0
        %3886 = vmatprep.subr.bf16.mxu0 0
        %3887 = vmatpush1.bf16.xpose.msra.mxu0 0
        %3888 = vmatprep.subr.bf16.mxu0 0
        %3889 = vmatpush1.bf16.xpose.msra.mxu0 0
        %3890 = vmatprep.subr.bf16.mxu0 0
        %3891 = vmatpush1.bf16.xpose.msra.mxu0 0
        %3892 = vmatprep.subr.bf16.mxu0 0
        %3893 = vmatpush1.bf16.xpose.msra.mxu0 0
        %3894 = vmatprep.subr.bf16.mxu0 0
        %3895 = vmatpush1.bf16.xpose.msra.mxu0 0
        %3896 = vmatprep.subr.bf16.mxu0 0
        %3897 = vmatpush1.bf16.xpose.msra.mxu0 0
        %3898 = vmatprep.subr.bf16.mxu0 0
        %3899 = vmatpush1.bf16.xpose.msra.mxu0 0
        %3900 = vmatprep.mubr.bf16.mxu0 0
        %3901 = vmatmul.mubr.bf16.gmra.mrb[0].mxu0 %v3863
        %v3902 = vpop.f32.mrb[0].mxu0
        %v3903 = vadd.f32 0.0, %v3902
        %v3904 = vpop.f32.mrb[0].mxu0
        %v3905 = vpop.f32.mrb[0].mxu0
        %v3906 = vadd.f32 0.0, %v3905
        %v3907 = vpop.f32.mrb[0].mxu0
        %3908 = vdwg.mxu0
        %3909 = vrot.lane.b32.xlu0 %v1271, 120
        %v3910 = vpop.permute.xlu0 %3909
        %3911 = vrot.lane.b32.xlu0 %v1271, 88
        %v3912 = vpop.permute.xlu0 %3911
        %v3914 = vsel %vm1276, %v3910, 0
        %v3917 = vsel %vm1276, %v3912, 0
        %3919 = vmatprep.subr.bf16.mxu0 0
        %3920 = vmatpush1.bf16.xpose.msra.mxu0 %v3917
        %3921 = vmatprep.subr.bf16.mxu0 0
        %3922 = vmatpush1.bf16.xpose.msra.mxu0 0
        %3923 = vmatprep.subr.bf16.mxu0 0
        %3924 = vmatpush1.bf16.xpose.msra.mxu0 0
        %3925 = vmatprep.subr.bf16.mxu0 0
        %3926 = vmatpush1.bf16.xpose.msra.mxu0 0
        %3927 = vmatprep.subr.bf16.mxu0 0
        %3928 = vmatpush1.bf16.xpose.msra.mxu0 0
        %3929 = vmatprep.subr.bf16.mxu0 0
        %3930 = vmatpush1.bf16.xpose.msra.mxu0 0
        %3931 = vmatprep.subr.bf16.mxu0 0
        %3932 = vmatpush1.bf16.xpose.msra.mxu0 0
        %3933 = vmatprep.subr.bf16.mxu0 0
        %3934 = vmatpush1.bf16.xpose.msra.mxu0 0
        %3935 = vmatprep.subr.bf16.mxu0 0
        %3936 = vmatpush1.bf16.xpose.msra.mxu0 0
        %3937 = vmatprep.subr.bf16.mxu0 0
        %3938 = vmatpush1.bf16.xpose.msra.mxu0 0
        %3939 = vmatprep.subr.bf16.mxu0 0
        %3940 = vmatpush1.bf16.xpose.msra.mxu0 0
        %3941 = vmatprep.subr.bf16.mxu0 0
        %3942 = vmatpush1.bf16.xpose.msra.mxu0 0
        %3943 = vmatprep.subr.bf16.mxu0 0
        %3944 = vmatpush1.bf16.xpose.msra.mxu0 0
        %3945 = vmatprep.subr.bf16.mxu0 0
        %3946 = vmatpush1.bf16.xpose.msra.mxu0 0
        %3947 = vmatprep.subr.bf16.mxu0 0
        %3948 = vmatpush1.bf16.xpose.msra.mxu0 0
        %3949 = vmatprep.subr.bf16.mxu0 0
        %3950 = vmatpush1.bf16.xpose.msra.mxu0 0
        %3951 = vmatprep.mubr.bf16.mxu0 0
        %3952 = vmatmul.mubr.bf16.gmra.mrb[0].mxu0 %v3914
        %v3953 = vpop.f32.mrb[0].mxu0
        %v3954 = vadd.f32 0.0, %v3953
        %v3955 = vpop.f32.mrb[0].mxu0
        %v3956 = vpop.f32.mrb[0].mxu0
        %v3957 = vadd.f32 0.0, %v3956
        %v3958 = vpop.f32.mrb[0].mxu0
        %3959 = vdwg.mxu0
        %3960 = vrot.lane.b32.xlu0 %v1272, 120
        %v3961 = vpop.permute.xlu0 %3960
        %3962 = vrot.lane.b32.xlu0 %v1272, 88
        %v3963 = vpop.permute.xlu0 %3962
        %v3965 = vsel %vm1276, %v3961, 0
        %v3968 = vsel %vm1276, %v3963, 0
        %3970 = vmatprep.subr.bf16.mxu0 0
        %3971 = vmatpush1.bf16.xpose.msra.mxu0 %v3968
        %3972 = vmatprep.subr.bf16.mxu0 0
        %3973 = vmatpush1.bf16.xpose.msra.mxu0 0
        %3974 = vmatprep.subr.bf16.mxu0 0
        %3975 = vmatpush1.bf16.xpose.msra.mxu0 0
        %3976 = vmatprep.subr.bf16.mxu0 0
        %3977 = vmatpush1.bf16.xpose.msra.mxu0 0
        %3978 = vmatprep.subr.bf16.mxu0 0
        %3979 = vmatpush1.bf16.xpose.msra.mxu0 0
        %3980 = vmatprep.subr.bf16.mxu0 0
        %3981 = vmatpush1.bf16.xpose.msra.mxu0 0
        %3982 = vmatprep.subr.bf16.mxu0 0
        %3983 = vmatpush1.bf16.xpose.msra.mxu0 0
        %3984 = vmatprep.subr.bf16.mxu0 0
        %3985 = vmatpush1.bf16.xpose.msra.mxu0 0
        %3986 = vmatprep.subr.bf16.mxu0 0
        %3987 = vmatpush1.bf16.xpose.msra.mxu0 0
        %3988 = vmatprep.subr.bf16.mxu0 0
        %3989 = vmatpush1.bf16.xpose.msra.mxu0 0
        %3990 = vmatprep.subr.bf16.mxu0 0
        %3991 = vmatpush1.bf16.xpose.msra.mxu0 0
        %3992 = vmatprep.subr.bf16.mxu0 0
        %3993 = vmatpush1.bf16.xpose.msra.mxu0 0
        %3994 = vmatprep.subr.bf16.mxu0 0
        %3995 = vmatpush1.bf16.xpose.msra.mxu0 0
        %3996 = vmatprep.subr.bf16.mxu0 0
        %3997 = vmatpush1.bf16.xpose.msra.mxu0 0
        %3998 = vmatprep.subr.bf16.mxu0 0
        %3999 = vmatpush1.bf16.xpose.msra.mxu0 0
        %4000 = vmatprep.subr.bf16.mxu0 0
        %4001 = vmatpush1.bf16.xpose.msra.mxu0 0
        %4002 = vmatprep.mubr.bf16.mxu0 0
        %4003 = vmatmul.mubr.bf16.gmra.mrb[0].mxu0 %v3965
        %v4004 = vpop.f32.mrb[0].mxu0
        %v4005 = vadd.f32 0.0, %v4004
        %v4006 = vpop.f32.mrb[0].mxu0
        %v4007 = vpop.f32.mrb[0].mxu0
        %v4008 = vadd.f32 0.0, %v4007
        %v4009 = vpop.f32.mrb[0].mxu0
        %4010 = vdwg.mxu0
        %v4011 = vsel %vm2074, %v3240, -inf
        %4012 = vmax.xlane.f32.xlu0 %v4011
        %v4013 = vpop.xlane.xlu0 %4012
        %v4014 = vsel %vm2074, %v3243, -inf
        %4015 = vmax.xlane.f32.xlu0 %v4014
        %v4016 = vpop.xlane.xlu0 %4015
        %v4017 = vsel %vm2074, %v3291, -inf
        %4018 = vmax.xlane.f32.xlu0 %v4017
        %v4019 = vpop.xlane.xlu0 %4018
        %v4020 = vsel %vm2074, %v3294, -inf
        %4021 = vmax.xlane.f32.xlu0 %v4020
        %v4022 = vpop.xlane.xlu0 %4021
        %v4023 = vsel %vm2074, %v3342, -inf
        %4024 = vmax.xlane.f32.xlu0 %v4023
        %v4025 = vpop.xlane.xlu0 %4024
        %v4026 = vsel %vm2074, %v3345, -inf
        %4027 = vmax.xlane.f32.xlu0 %v4026
        %v4028 = vpop.xlane.xlu0 %4027
        %v4029 = vsel %vm2074, %v3393, -inf
        %4030 = vmax.xlane.f32.xlu0 %v4029
        %v4031 = vpop.xlane.xlu0 %4030
        %v4032 = vsel %vm2074, %v3396, -inf
        %4033 = vmax.xlane.f32.xlu0 %v4032
        %v4034 = vpop.xlane.xlu0 %4033
        %v4035 = vsel %vm2074, %v3444, -inf
        %4036 = vmax.xlane.f32.xlu0 %v4035
        %v4037 = vpop.xlane.xlu0 %4036
        %v4038 = vsel %vm2074, %v3447, -inf
        %4039 = vmax.xlane.f32.xlu0 %v4038
        %v4040 = vpop.xlane.xlu0 %4039
        %v4041 = vsel %vm2074, %v3495, -inf
        %4042 = vmax.xlane.f32.xlu0 %v4041
        %v4043 = vpop.xlane.xlu0 %4042
        %v4044 = vsel %vm2074, %v3498, -inf
        %4045 = vmax.xlane.f32.xlu0 %v4044
        %v4046 = vpop.xlane.xlu0 %4045
        %v4047 = vsel %vm2074, %v3546, -inf
        %4048 = vmax.xlane.f32.xlu0 %v4047
        %v4049 = vpop.xlane.xlu0 %4048
        %v4050 = vsel %vm2074, %v3549, -inf
        %4051 = vmax.xlane.f32.xlu0 %v4050
        %v4052 = vpop.xlane.xlu0 %4051
        %v4053 = vsel %vm2074, %v3597, -inf
        %4054 = vmax.xlane.f32.xlu0 %v4053
        %v4055 = vpop.xlane.xlu0 %4054
        %v4056 = vsel %vm2074, %v3600, -inf
        %4057 = vmax.xlane.f32.xlu0 %v4056
        %v4058 = vpop.xlane.xlu0 %4057
        %v4059 = vsel %vm2074, %v3648, -inf
        %4060 = vmax.xlane.f32.xlu0 %v4059
        %v4061 = vpop.xlane.xlu0 %4060
        %v4062 = vsel %vm2074, %v3651, -inf
        %4063 = vmax.xlane.f32.xlu0 %v4062
        %v4064 = vpop.xlane.xlu0 %4063
        %v4065 = vsel %vm2074, %v3699, -inf
        %4066 = vmax.xlane.f32.xlu0 %v4065
        %v4067 = vpop.xlane.xlu0 %4066
        %v4068 = vsel %vm2074, %v3702, -inf
        %4069 = vmax.xlane.f32.xlu0 %v4068
        %v4070 = vpop.xlane.xlu0 %4069
        %v4071 = vsel %vm2074, %v3750, -inf
        %4072 = vmax.xlane.f32.xlu0 %v4071
        %v4073 = vpop.xlane.xlu0 %4072
        %v4074 = vsel %vm2074, %v3753, -inf
        %4075 = vmax.xlane.f32.xlu0 %v4074
        %v4076 = vpop.xlane.xlu0 %4075
        %v4077 = vsel %vm2074, %v3801, -inf
        %4078 = vmax.xlane.f32.xlu0 %v4077
        %v4079 = vpop.xlane.xlu0 %4078
        %v4080 = vsel %vm2074, %v3804, -inf
        %4081 = vmax.xlane.f32.xlu0 %v4080
        %v4082 = vpop.xlane.xlu0 %4081
        %v4083 = vsel %vm2074, %v3852, -inf
        %4084 = vmax.xlane.f32.xlu0 %v4083
        %v4085 = vpop.xlane.xlu0 %4084
        %v4086 = vsel %vm2074, %v3855, -inf
        %4087 = vmax.xlane.f32.xlu0 %v4086
        %v4088 = vpop.xlane.xlu0 %4087
        %v4089 = vsel %vm2074, %v3903, -inf
        %4090 = vmax.xlane.f32.xlu0 %v4089
        %v4091 = vpop.xlane.xlu0 %4090
        %v4092 = vsel %vm2074, %v3906, -inf
        %4093 = vmax.xlane.f32.xlu0 %v4092
        %v4094 = vpop.xlane.xlu0 %4093
        %v4095 = vsel %vm2074, %v3954, -inf
        %4096 = vmax.xlane.f32.xlu0 %v4095
        %v4097 = vpop.xlane.xlu0 %4096
        %v4098 = vsel %vm2074, %v3957, -inf
        %4099 = vmax.xlane.f32.xlu0 %v4098
        %v4100 = vpop.xlane.xlu0 %4099
        %v4101 = vsel %vm2074, %v4005, -inf
        %4102 = vmax.xlane.f32.xlu0 %v4101
        %v4103 = vpop.xlane.xlu0 %4102
        %v4104 = vsel %vm2074, %v4008, -inf
        %4105 = vmax.xlane.f32.xlu0 %v4104
        %v4106 = vpop.xlane.xlu0 %4105
        %v4107 = vsub.f32 %v3240, %v4013
        %v4108 = vsub.f32 %v3243, %v4016
        %v4109 = vsub.f32 %v3291, %v4019
        %v4110 = vsub.f32 %v3294, %v4022
        %v4111 = vsub.f32 %v3342, %v4025
        %v4112 = vsub.f32 %v3345, %v4028
        %v4113 = vsub.f32 %v3393, %v4031
        %v4114 = vsub.f32 %v3396, %v4034
        %v4115 = vsub.f32 %v3444, %v4037
        %v4116 = vsub.f32 %v3447, %v4040
        %v4117 = vsub.f32 %v3495, %v4043
        %v4118 = vsub.f32 %v3498, %v4046
        %v4119 = vsub.f32 %v3546, %v4049
        %v4120 = vsub.f32 %v3549, %v4052
        %v4121 = vsub.f32 %v3597, %v4055
        %v4122 = vsub.f32 %v3600, %v4058
        %v4123 = vsub.f32 %v3648, %v4061
        %v4124 = vsub.f32 %v3651, %v4064
        %v4125 = vsub.f32 %v3699, %v4067
        %v4126 = vsub.f32 %v3702, %v4070
        %v4127 = vsub.f32 %v3750, %v4073
        %v4128 = vsub.f32 %v3753, %v4076
        %v4129 = vsub.f32 %v3801, %v4079
        %v4130 = vsub.f32 %v3804, %v4082
        %v4131 = vsub.f32 %v3852, %v4085
        %v4132 = vsub.f32 %v3855, %v4088
        %v4133 = vsub.f32 %v3903, %v4091
        %v4134 = vsub.f32 %v3906, %v4094
        %v4135 = vsub.f32 %v3954, %v4097
        %v4136 = vsub.f32 %v3957, %v4100
        %v4137 = vsub.f32 %v4005, %v4103
        %v4138 = vsub.f32 %v4008, %v4106
        %v4139 = vmul.f32 %v4107, 1.442695
        %v4140 = vpow.pop %v4139
        %v4141 = vmul.f32 %v4108, 1.442695
        %v4142 = vpow.pop %v4141
        %v4143 = vmul.f32 %v4109, 1.442695
        %v4144 = vpow.pop %v4143
        %v4145 = vmul.f32 %v4110, 1.442695
        %v4146 = vpow.pop %v4145
        %v4147 = vmul.f32 %v4111, 1.442695
        %v4148 = vpow.pop %v4147
        %v4149 = vmul.f32 %v4112, 1.442695
        %v4150 = vpow.pop %v4149
        %v4151 = vmul.f32 %v4113, 1.442695
        %v4152 = vpow.pop %v4151
        %v4153 = vmul.f32 %v4114, 1.442695
        %v4154 = vpow.pop %v4153
        %v4155 = vmul.f32 %v4115, 1.442695
        %v4156 = vpow.pop %v4155
        %v4157 = vmul.f32 %v4116, 1.442695
        %v4158 = vpow.pop %v4157
        %v4159 = vmul.f32 %v4117, 1.442695
        %v4160 = vpow.pop %v4159
        %v4161 = vmul.f32 %v4118, 1.442695
        %v4162 = vpow.pop %v4161
        %v4163 = vmul.f32 %v4119, 1.442695
        %v4164 = vpow.pop %v4163
        %v4165 = vmul.f32 %v4120, 1.442695
        %v4166 = vpow.pop %v4165
        %v4167 = vmul.f32 %v4121, 1.442695
        %v4168 = vpow.pop %v4167
        %v4169 = vmul.f32 %v4122, 1.442695
        %v4170 = vpow.pop %v4169
        %v4171 = vmul.f32 %v4123, 1.442695
        %v4172 = vpow.pop %v4171
        %v4173 = vmul.f32 %v4124, 1.442695
        %v4174 = vpow.pop %v4173
        %v4175 = vmul.f32 %v4125, 1.442695
        %v4176 = vpow.pop %v4175
        %v4177 = vmul.f32 %v4126, 1.442695
        %v4178 = vpow.pop %v4177
        %v4179 = vmul.f32 %v4127, 1.442695
        %v4180 = vpow.pop %v4179
        %v4181 = vmul.f32 %v4128, 1.442695
        %v4182 = vpow.pop %v4181
        %v4183 = vmul.f32 %v4129, 1.442695
        %v4184 = vpow.pop %v4183
        %v4185 = vmul.f32 %v4130, 1.442695
        %v4186 = vpow.pop %v4185
        %v4187 = vmul.f32 %v4131, 1.442695
        %v4188 = vpow.pop %v4187
        %v4189 = vmul.f32 %v4132, 1.442695
        %v4190 = vpow.pop %v4189
        %v4191 = vmul.f32 %v4133, 1.442695
        %v4192 = vpow.pop %v4191
        %v4193 = vmul.f32 %v4134, 1.442695
        %v4194 = vpow.pop %v4193
        %v4195 = vmul.f32 %v4135, 1.442695
        %v4196 = vpow.pop %v4195
        %v4197 = vmul.f32 %v4136, 1.442695
        %v4198 = vpow.pop %v4197
        %v4199 = vmul.f32 %v4137, 1.442695
        %v4200 = vpow.pop %v4199
        %v4201 = vmul.f32 %v4138, 1.442695
        %v4202 = vpow.pop %v4201
        %v4203 = vsel %vm2074, %v4140, 0.0
        %4204 = vadd.xlane.f32.xlu0 %v4203
        %v4205 = vpop.xlane.xlu0 %4204
        %v4206 = vsel %vm2074, %v4142, 0.0
        %4207 = vadd.xlane.f32.xlu0 %v4206
        %v4208 = vpop.xlane.xlu0 %4207
        %v4209 = vsel %vm2074, %v4144, 0.0
        %4210 = vadd.xlane.f32.xlu0 %v4209
        %v4211 = vpop.xlane.xlu0 %4210
        %v4212 = vsel %vm2074, %v4146, 0.0
        %4213 = vadd.xlane.f32.xlu0 %v4212
        %v4214 = vpop.xlane.xlu0 %4213
        %v4215 = vsel %vm2074, %v4148, 0.0
        %4216 = vadd.xlane.f32.xlu0 %v4215
        %v4217 = vpop.xlane.xlu0 %4216
        %v4218 = vsel %vm2074, %v4150, 0.0
        %4219 = vadd.xlane.f32.xlu0 %v4218
        %v4220 = vpop.xlane.xlu0 %4219
        %v4221 = vsel %vm2074, %v4152, 0.0
        %4222 = vadd.xlane.f32.xlu0 %v4221
        %v4223 = vpop.xlane.xlu0 %4222
        %v4224 = vsel %vm2074, %v4154, 0.0
        %4225 = vadd.xlane.f32.xlu0 %v4224
        %v4226 = vpop.xlane.xlu0 %4225
        %v4227 = vsel %vm2074, %v4156, 0.0
        %4228 = vadd.xlane.f32.xlu0 %v4227
        %v4229 = vpop.xlane.xlu0 %4228
        %v4230 = vsel %vm2074, %v4158, 0.0
        %4231 = vadd.xlane.f32.xlu0 %v4230
        %v4232 = vpop.xlane.xlu0 %4231
        %v4233 = vsel %vm2074, %v4160, 0.0
        %4234 = vadd.xlane.f32.xlu0 %v4233
        %v4235 = vpop.xlane.xlu0 %4234
        %v4236 = vsel %vm2074, %v4162, 0.0
        %4237 = vadd.xlane.f32.xlu0 %v4236
        %v4238 = vpop.xlane.xlu0 %4237
        %v4239 = vsel %vm2074, %v4164, 0.0
        %4240 = vadd.xlane.f32.xlu0 %v4239
        %v4241 = vpop.xlane.xlu0 %4240
        %v4242 = vsel %vm2074, %v4166, 0.0
        %4243 = vadd.xlane.f32.xlu0 %v4242
        %v4244 = vpop.xlane.xlu0 %4243
        %v4245 = vsel %vm2074, %v4168, 0.0
        %4246 = vadd.xlane.f32.xlu0 %v4245
        %v4247 = vpop.xlane.xlu0 %4246
        %v4248 = vsel %vm2074, %v4170, 0.0
        %4249 = vadd.xlane.f32.xlu0 %v4248
        %v4250 = vpop.xlane.xlu0 %4249
        %v4251 = vsel %vm2074, %v4172, 0.0
        %4252 = vadd.xlane.f32.xlu0 %v4251
        %v4253 = vpop.xlane.xlu0 %4252
        %v4254 = vsel %vm2074, %v4174, 0.0
        %4255 = vadd.xlane.f32.xlu0 %v4254
        %v4256 = vpop.xlane.xlu0 %4255
        %v4257 = vsel %vm2074, %v4176, 0.0
        %4258 = vadd.xlane.f32.xlu0 %v4257
        %v4259 = vpop.xlane.xlu0 %4258
        %v4260 = vsel %vm2074, %v4178, 0.0
        %4261 = vadd.xlane.f32.xlu0 %v4260
        %v4262 = vpop.xlane.xlu0 %4261
        %v4263 = vsel %vm2074, %v4180, 0.0
        %4264 = vadd.xlane.f32.xlu0 %v4263
        %v4265 = vpop.xlane.xlu0 %4264
        %v4266 = vsel %vm2074, %v4182, 0.0
        %4267 = vadd.xlane.f32.xlu0 %v4266
        %v4268 = vpop.xlane.xlu0 %4267
        %v4269 = vsel %vm2074, %v4184, 0.0
        %4270 = vadd.xlane.f32.xlu0 %v4269
        %v4271 = vpop.xlane.xlu0 %4270
        %v4272 = vsel %vm2074, %v4186, 0.0
        %4273 = vadd.xlane.f32.xlu0 %v4272
        %v4274 = vpop.xlane.xlu0 %4273
        %v4275 = vsel %vm2074, %v4188, 0.0
        %4276 = vadd.xlane.f32.xlu0 %v4275
        %v4277 = vpop.xlane.xlu0 %4276
        %v4278 = vsel %vm2074, %v4190, 0.0
        %4279 = vadd.xlane.f32.xlu0 %v4278
        %v4280 = vpop.xlane.xlu0 %4279
        %v4281 = vsel %vm2074, %v4192, 0.0
        %4282 = vadd.xlane.f32.xlu0 %v4281
        %v4283 = vpop.xlane.xlu0 %4282
        %v4284 = vsel %vm2074, %v4194, 0.0
        %4285 = vadd.xlane.f32.xlu0 %v4284
        %v4286 = vpop.xlane.xlu0 %4285
        %v4287 = vsel %vm2074, %v4196, 0.0
        %4288 = vadd.xlane.f32.xlu0 %v4287
        %v4289 = vpop.xlane.xlu0 %4288
        %v4290 = vsel %vm2074, %v4198, 0.0
        %4291 = vadd.xlane.f32.xlu0 %v4290
        %v4292 = vpop.xlane.xlu0 %4291
        %v4293 = vsel %vm2074, %v4200, 0.0
        %4294 = vadd.xlane.f32.xlu0 %v4293
        %v4295 = vpop.xlane.xlu0 %4294
        %v4296 = vsel %vm2074, %v4202, 0.0
        %4297 = vadd.xlane.f32.xlu0 %v4296
        %v4298 = vpop.xlane.xlu0 %4297
        %v4299 = vrcp.pop %v4205
        %v4300 = vrcp.pop %v4208
        %v4301 = vrcp.pop %v4211
        %v4302 = vrcp.pop %v4214
        %v4303 = vrcp.pop %v4217
        %v4304 = vrcp.pop %v4220
        %v4305 = vrcp.pop %v4223
        %v4306 = vrcp.pop %v4226
        %v4307 = vrcp.pop %v4229
        %v4308 = vrcp.pop %v4232
        %v4309 = vrcp.pop %v4235
        %v4310 = vrcp.pop %v4238
        %v4311 = vrcp.pop %v4241
        %v4312 = vrcp.pop %v4244
        %v4313 = vrcp.pop %v4247
        %v4314 = vrcp.pop %v4250
        %v4315 = vrcp.pop %v4253
        %v4316 = vrcp.pop %v4256
        %v4317 = vrcp.pop %v4259
        %v4318 = vrcp.pop %v4262
        %v4319 = vrcp.pop %v4265
        %v4320 = vrcp.pop %v4268
        %v4321 = vrcp.pop %v4271
        %v4322 = vrcp.pop %v4274
        %v4323 = vrcp.pop %v4277
        %v4324 = vrcp.pop %v4280
        %v4325 = vrcp.pop %v4283
        %v4326 = vrcp.pop %v4286
        %v4327 = vrcp.pop %v4289
        %v4328 = vrcp.pop %v4292
        %v4329 = vrcp.pop %v4295
        %v4330 = vrcp.pop %v4298
        %v4331 = vmul.f32 %v4140, %v4299
        %v4332 = vmul.f32 %v4142, %v4300
        %v4333 = vmul.f32 %v4144, %v4301
        %v4334 = vmul.f32 %v4146, %v4302
        %v4335 = vmul.f32 %v4148, %v4303
        %v4336 = vmul.f32 %v4150, %v4304
        %v4337 = vmul.f32 %v4152, %v4305
        %v4338 = vmul.f32 %v4154, %v4306
        %v4339 = vmul.f32 %v4156, %v4307
        %v4340 = vmul.f32 %v4158, %v4308
        %v4341 = vmul.f32 %v4160, %v4309
        %v4342 = vmul.f32 %v4162, %v4310
        %v4343 = vmul.f32 %v4164, %v4311
        %v4344 = vmul.f32 %v4166, %v4312
        %v4345 = vmul.f32 %v4168, %v4313
        %v4346 = vmul.f32 %v4170, %v4314
        %v4347 = vmul.f32 %v4172, %v4315
        %v4348 = vmul.f32 %v4174, %v4316
        %v4349 = vmul.f32 %v4176, %v4317
        %v4350 = vmul.f32 %v4178, %v4318
        %v4351 = vmul.f32 %v4180, %v4319
        %v4352 = vmul.f32 %v4182, %v4320
        %v4353 = vmul.f32 %v4184, %v4321
        %v4354 = vmul.f32 %v4186, %v4322
        %v4355 = vmul.f32 %v4188, %v4323
        %v4356 = vmul.f32 %v4190, %v4324
        %v4357 = vmul.f32 %v4192, %v4325
        %v4358 = vmul.f32 %v4194, %v4326
        %v4359 = vmul.f32 %v4196, %v4327
        %v4360 = vmul.f32 %v4198, %v4328
        %v4361 = vmul.f32 %v4200, %v4329
        %v4362 = vmul.f32 %v4202, %v4330
        %v4363 = vpack.c.bf16 %v4332, %v4331
        %v4364 = vpack.c.bf16 %v4334, %v4333
        %v4365 = vpack.c.bf16 %v4336, %v4335
        %v4366 = vpack.c.bf16 %v4338, %v4337
        %v4367 = vpack.c.bf16 %v4340, %v4339
        %v4368 = vpack.c.bf16 %v4342, %v4341
        %v4369 = vpack.c.bf16 %v4344, %v4343
        %v4370 = vpack.c.bf16 %v4346, %v4345
        %v4371 = vpack.c.bf16 %v4348, %v4347
        %v4372 = vpack.c.bf16 %v4350, %v4349
        %v4373 = vpack.c.bf16 %v4352, %v4351
        %v4374 = vpack.c.bf16 %v4354, %v4353
        %v4375 = vpack.c.bf16 %v4356, %v4355
        %v4376 = vpack.c.bf16 %v4358, %v4357
        %v4377 = vpack.c.bf16 %v4360, %v4359
        %v4378 = vpack.c.bf16 %v4362, %v4361
        %4379 = vrot.lane.b32.xlu0 %v1257, 56
        %v4380 = vpop.permute.xlu0 %4379
        %v4383 = vsel %vm2074, %v4363, 0
        %4385 = vmatprep.subr.bf16.mxu0 0
        %4386 = vmatpush1.bf16.msra.mxu0 %v4380
        %4387 = vmatprep.subr.bf16.mxu0 0
        %4388 = vmatpush1.bf16.msra.mxu0 0
        %4389 = vmatprep.subr.bf16.mxu0 0
        %4390 = vmatpush1.bf16.msra.mxu0 0
        %4391 = vmatprep.subr.bf16.mxu0 0
        %4392 = vmatpush1.bf16.msra.mxu0 0
        %4393 = vmatprep.subr.bf16.mxu0 0
        %4394 = vmatpush1.bf16.msra.mxu0 0
        %4395 = vmatprep.subr.bf16.mxu0 0
        %4396 = vmatpush1.bf16.msra.mxu0 0
        %4397 = vmatprep.subr.bf16.mxu0 0
        %4398 = vmatpush1.bf16.msra.mxu0 0
        %4399 = vmatprep.subr.bf16.mxu0 0
        %4400 = vmatpush1.bf16.msra.mxu0 0
        %4401 = vmatprep.subr.bf16.mxu0 0
        %4402 = vmatpush1.bf16.msra.mxu0 0
        %4403 = vmatprep.subr.bf16.mxu0 0
        %4404 = vmatpush1.bf16.msra.mxu0 0
        %4405 = vmatprep.subr.bf16.mxu0 0
        %4406 = vmatpush1.bf16.msra.mxu0 0
        %4407 = vmatprep.subr.bf16.mxu0 0
        %4408 = vmatpush1.bf16.msra.mxu0 0
        %4409 = vmatprep.subr.bf16.mxu0 0
        %4410 = vmatpush1.bf16.msra.mxu0 0
        %4411 = vmatprep.subr.bf16.mxu0 0
        %4412 = vmatpush1.bf16.msra.mxu0 0
        %4413 = vmatprep.subr.bf16.mxu0 0
        %4414 = vmatpush1.bf16.msra.mxu0 0
        %4415 = vmatprep.subr.bf16.mxu0 0
        %4416 = vmatpush1.bf16.msra.mxu0 0
        %4417 = vmatprep.mubr.bf16.mxu0 0
        %4418 = vmatmul.mubr.bf16.gmra.mrb[0].mxu0 %v4383
        %v4419 = vpop.f32.mrb[0].mxu0
        %v4420 = vadd.f32 0.0, %v4419
        %v4421 = vpop.f32.mrb[0].mxu0
        %v4422 = vpop.f32.mrb[0].mxu0
        %v4423 = vadd.f32 0.0, %v4422
        %v4424 = vpop.f32.mrb[0].mxu0
        %4425 = vdwg.mxu0
        %4426 = vrot.lane.b32.xlu0 %v1258, 56
        %v4427 = vpop.permute.xlu0 %4426
        %v4430 = vsel %vm2074, %v4364, 0
        %4432 = vmatprep.subr.bf16.mxu0 0
        %4433 = vmatpush1.bf16.msra.mxu0 %v4427
        %4434 = vmatprep.subr.bf16.mxu0 0
        %4435 = vmatpush1.bf16.msra.mxu0 0
        %4436 = vmatprep.subr.bf16.mxu0 0
        %4437 = vmatpush1.bf16.msra.mxu0 0
        %4438 = vmatprep.subr.bf16.mxu0 0
        %4439 = vmatpush1.bf16.msra.mxu0 0
        %4440 = vmatprep.subr.bf16.mxu0 0
        %4441 = vmatpush1.bf16.msra.mxu0 0
        %4442 = vmatprep.subr.bf16.mxu0 0
        %4443 = vmatpush1.bf16.msra.mxu0 0
        %4444 = vmatprep.subr.bf16.mxu0 0
        %4445 = vmatpush1.bf16.msra.mxu0 0
        %4446 = vmatprep.subr.bf16.mxu0 0
        %4447 = vmatpush1.bf16.msra.mxu0 0
        %4448 = vmatprep.subr.bf16.mxu0 0
        %4449 = vmatpush1.bf16.msra.mxu0 0
        %4450 = vmatprep.subr.bf16.mxu0 0
        %4451 = vmatpush1.bf16.msra.mxu0 0
        %4452 = vmatprep.subr.bf16.mxu0 0
        %4453 = vmatpush1.bf16.msra.mxu0 0
        %4454 = vmatprep.subr.bf16.mxu0 0
        %4455 = vmatpush1.bf16.msra.mxu0 0
        %4456 = vmatprep.subr.bf16.mxu0 0
        %4457 = vmatpush1.bf16.msra.mxu0 0
        %4458 = vmatprep.subr.bf16.mxu0 0
        %4459 = vmatpush1.bf16.msra.mxu0 0
        %4460 = vmatprep.subr.bf16.mxu0 0
        %4461 = vmatpush1.bf16.msra.mxu0 0
        %4462 = vmatprep.subr.bf16.mxu0 0
        %4463 = vmatpush1.bf16.msra.mxu0 0
        %4464 = vmatprep.mubr.bf16.mxu0 0
        %4465 = vmatmul.mubr.bf16.gmra.mrb[0].mxu0 %v4430
        %v4466 = vpop.f32.mrb[0].mxu0
        %v4467 = vadd.f32 0.0, %v4466
        %v4468 = vpop.f32.mrb[0].mxu0
        %v4469 = vpop.f32.mrb[0].mxu0
        %v4470 = vadd.f32 0.0, %v4469
        %v4471 = vpop.f32.mrb[0].mxu0
        %4472 = vdwg.mxu0
        %4473 = vrot.lane.b32.xlu0 %v1259, 56
        %v4474 = vpop.permute.xlu0 %4473
        %v4477 = vsel %vm2074, %v4365, 0
        %4479 = vmatprep.subr.bf16.mxu0 0
        %4480 = vmatpush1.bf16.msra.mxu0 %v4474
        %4481 = vmatprep.subr.bf16.mxu0 0
        %4482 = vmatpush1.bf16.msra.mxu0 0
        %4483 = vmatprep.subr.bf16.mxu0 0
        %4484 = vmatpush1.bf16.msra.mxu0 0
        %4485 = vmatprep.subr.bf16.mxu0 0
        %4486 = vmatpush1.bf16.msra.mxu0 0
        %4487 = vmatprep.subr.bf16.mxu0 0
        %4488 = vmatpush1.bf16.msra.mxu0 0
        %4489 = vmatprep.subr.bf16.mxu0 0
        %4490 = vmatpush1.bf16.msra.mxu0 0
        %4491 = vmatprep.subr.bf16.mxu0 0
        %4492 = vmatpush1.bf16.msra.mxu0 0
        %4493 = vmatprep.subr.bf16.mxu0 0
        %4494 = vmatpush1.bf16.msra.mxu0 0
        %4495 = vmatprep.subr.bf16.mxu0 0
        %4496 = vmatpush1.bf16.msra.mxu0 0
        %4497 = vmatprep.subr.bf16.mxu0 0
        %4498 = vmatpush1.bf16.msra.mxu0 0
        %4499 = vmatprep.subr.bf16.mxu0 0
        %4500 = vmatpush1.bf16.msra.mxu0 0
        %4501 = vmatprep.subr.bf16.mxu0 0
        %4502 = vmatpush1.bf16.msra.mxu0 0
        %4503 = vmatprep.subr.bf16.mxu0 0
        %4504 = vmatpush1.bf16.msra.mxu0 0
        %4505 = vmatprep.subr.bf16.mxu0 0
        %4506 = vmatpush1.bf16.msra.mxu0 0
        %4507 = vmatprep.subr.bf16.mxu0 0
        %4508 = vmatpush1.bf16.msra.mxu0 0
        %4509 = vmatprep.subr.bf16.mxu0 0
        %4510 = vmatpush1.bf16.msra.mxu0 0
        %4511 = vmatprep.mubr.bf16.mxu0 0
        %4512 = vmatmul.mubr.bf16.gmra.mrb[0].mxu0 %v4477
        %v4513 = vpop.f32.mrb[0].mxu0
        %v4514 = vadd.f32 0.0, %v4513
        %v4515 = vpop.f32.mrb[0].mxu0
        %v4516 = vpop.f32.mrb[0].mxu0
        %v4517 = vadd.f32 0.0, %v4516
        %v4518 = vpop.f32.mrb[0].mxu0
        %4519 = vdwg.mxu0
        %4520 = vrot.lane.b32.xlu0 %v1260, 56
        %v4521 = vpop.permute.xlu0 %4520
        %v4524 = vsel %vm2074, %v4366, 0
        %4526 = vmatprep.subr.bf16.mxu0 0
        %4527 = vmatpush1.bf16.msra.mxu0 %v4521
        %4528 = vmatprep.subr.bf16.mxu0 0
        %4529 = vmatpush1.bf16.msra.mxu0 0
        %4530 = vmatprep.subr.bf16.mxu0 0
        %4531 = vmatpush1.bf16.msra.mxu0 0
        %4532 = vmatprep.subr.bf16.mxu0 0
        %4533 = vmatpush1.bf16.msra.mxu0 0
        %4534 = vmatprep.subr.bf16.mxu0 0
        %4535 = vmatpush1.bf16.msra.mxu0 0
        %4536 = vmatprep.subr.bf16.mxu0 0
        %4537 = vmatpush1.bf16.msra.mxu0 0
        %4538 = vmatprep.subr.bf16.mxu0 0
        %4539 = vmatpush1.bf16.msra.mxu0 0
        %4540 = vmatprep.subr.bf16.mxu0 0
        %4541 = vmatpush1.bf16.msra.mxu0 0
        %4542 = vmatprep.subr.bf16.mxu0 0
        %4543 = vmatpush1.bf16.msra.mxu0 0
        %4544 = vmatprep.subr.bf16.mxu0 0
        %4545 = vmatpush1.bf16.msra.mxu0 0
        %4546 = vmatprep.subr.bf16.mxu0 0
        %4547 = vmatpush1.bf16.msra.mxu0 0
        %4548 = vmatprep.subr.bf16.mxu0 0
        %4549 = vmatpush1.bf16.msra.mxu0 0
        %4550 = vmatprep.subr.bf16.mxu0 0
        %4551 = vmatpush1.bf16.msra.mxu0 0
        %4552 = vmatprep.subr.bf16.mxu0 0
        %4553 = vmatpush1.bf16.msra.mxu0 0
        %4554 = vmatprep.subr.bf16.mxu0 0
        %4555 = vmatpush1.bf16.msra.mxu0 0
        %4556 = vmatprep.subr.bf16.mxu0 0
        %4557 = vmatpush1.bf16.msra.mxu0 0
        %4558 = vmatprep.mubr.bf16.mxu0 0
        %4559 = vmatmul.mubr.bf16.gmra.mrb[0].mxu0 %v4524
        %v4560 = vpop.f32.mrb[0].mxu0
        %v4561 = vadd.f32 0.0, %v4560
        %v4562 = vpop.f32.mrb[0].mxu0
        %v4563 = vpop.f32.mrb[0].mxu0
        %v4564 = vadd.f32 0.0, %v4563
        %v4565 = vpop.f32.mrb[0].mxu0
        %4566 = vdwg.mxu0
        %4567 = vrot.lane.b32.xlu0 %v1261, 56
        %v4568 = vpop.permute.xlu0 %4567
        %v4571 = vsel %vm2074, %v4367, 0
        %4573 = vmatprep.subr.bf16.mxu0 0
        %4574 = vmatpush1.bf16.msra.mxu0 %v4568
        %4575 = vmatprep.subr.bf16.mxu0 0
        %4576 = vmatpush1.bf16.msra.mxu0 0
        %4577 = vmatprep.subr.bf16.mxu0 0
        %4578 = vmatpush1.bf16.msra.mxu0 0
        %4579 = vmatprep.subr.bf16.mxu0 0
        %4580 = vmatpush1.bf16.msra.mxu0 0
        %4581 = vmatprep.subr.bf16.mxu0 0
        %4582 = vmatpush1.bf16.msra.mxu0 0
        %4583 = vmatprep.subr.bf16.mxu0 0
        %4584 = vmatpush1.bf16.msra.mxu0 0
        %4585 = vmatprep.subr.bf16.mxu0 0
        %4586 = vmatpush1.bf16.msra.mxu0 0
        %4587 = vmatprep.subr.bf16.mxu0 0
        %4588 = vmatpush1.bf16.msra.mxu0 0
        %4589 = vmatprep.subr.bf16.mxu0 0
        %4590 = vmatpush1.bf16.msra.mxu0 0
        %4591 = vmatprep.subr.bf16.mxu0 0
        %4592 = vmatpush1.bf16.msra.mxu0 0
        %4593 = vmatprep.subr.bf16.mxu0 0
        %4594 = vmatpush1.bf16.msra.mxu0 0
        %4595 = vmatprep.subr.bf16.mxu0 0
        %4596 = vmatpush1.bf16.msra.mxu0 0
        %4597 = vmatprep.subr.bf16.mxu0 0
        %4598 = vmatpush1.bf16.msra.mxu0 0
        %4599 = vmatprep.subr.bf16.mxu0 0
        %4600 = vmatpush1.bf16.msra.mxu0 0
        %4601 = vmatprep.subr.bf16.mxu0 0
        %4602 = vmatpush1.bf16.msra.mxu0 0
        %4603 = vmatprep.subr.bf16.mxu0 0
        %4604 = vmatpush1.bf16.msra.mxu0 0
        %4605 = vmatprep.mubr.bf16.mxu0 0
        %4606 = vmatmul.mubr.bf16.gmra.mrb[0].mxu0 %v4571
        %v4607 = vpop.f32.mrb[0].mxu0
        %v4608 = vadd.f32 0.0, %v4607
        %v4609 = vpop.f32.mrb[0].mxu0
        %v4610 = vpop.f32.mrb[0].mxu0
        %v4611 = vadd.f32 0.0, %v4610
        %v4612 = vpop.f32.mrb[0].mxu0
        %4613 = vdwg.mxu0
        %4614 = vrot.lane.b32.xlu0 %v1262, 56
        %v4615 = vpop.permute.xlu0 %4614
        %v4618 = vsel %vm2074, %v4368, 0
        %4620 = vmatprep.subr.bf16.mxu0 0
        %4621 = vmatpush1.bf16.msra.mxu0 %v4615
        %4622 = vmatprep.subr.bf16.mxu0 0
        %4623 = vmatpush1.bf16.msra.mxu0 0
        %4624 = vmatprep.subr.bf16.mxu0 0
        %4625 = vmatpush1.bf16.msra.mxu0 0
        %4626 = vmatprep.subr.bf16.mxu0 0
        %4627 = vmatpush1.bf16.msra.mxu0 0
        %4628 = vmatprep.subr.bf16.mxu0 0
        %4629 = vmatpush1.bf16.msra.mxu0 0
        %4630 = vmatprep.subr.bf16.mxu0 0
        %4631 = vmatpush1.bf16.msra.mxu0 0
        %4632 = vmatprep.subr.bf16.mxu0 0
        %4633 = vmatpush1.bf16.msra.mxu0 0
        %4634 = vmatprep.subr.bf16.mxu0 0
        %4635 = vmatpush1.bf16.msra.mxu0 0
        %4636 = vmatprep.subr.bf16.mxu0 0
        %4637 = vmatpush1.bf16.msra.mxu0 0
        %4638 = vmatprep.subr.bf16.mxu0 0
        %4639 = vmatpush1.bf16.msra.mxu0 0
        %4640 = vmatprep.subr.bf16.mxu0 0
        %4641 = vmatpush1.bf16.msra.mxu0 0
        %4642 = vmatprep.subr.bf16.mxu0 0
        %4643 = vmatpush1.bf16.msra.mxu0 0
        %4644 = vmatprep.subr.bf16.mxu0 0
        %4645 = vmatpush1.bf16.msra.mxu0 0
        %4646 = vmatprep.subr.bf16.mxu0 0
        %4647 = vmatpush1.bf16.msra.mxu0 0
        %4648 = vmatprep.subr.bf16.mxu0 0
        %4649 = vmatpush1.bf16.msra.mxu0 0
        %4650 = vmatprep.subr.bf16.mxu0 0
        %4651 = vmatpush1.bf16.msra.mxu0 0
        %4652 = vmatprep.mubr.bf16.mxu0 0
        %4653 = vmatmul.mubr.bf16.gmra.mrb[0].mxu0 %v4618
        %v4654 = vpop.f32.mrb[0].mxu0
        %v4655 = vadd.f32 0.0, %v4654
        %v4656 = vpop.f32.mrb[0].mxu0
        %v4657 = vpop.f32.mrb[0].mxu0
        %v4658 = vadd.f32 0.0, %v4657
        %v4659 = vpop.f32.mrb[0].mxu0
        %4660 = vdwg.mxu0
        %4661 = vrot.lane.b32.xlu0 %v1263, 56
        %v4662 = vpop.permute.xlu0 %4661
        %v4665 = vsel %vm2074, %v4369, 0
        %4667 = vmatprep.subr.bf16.mxu0 0
        %4668 = vmatpush1.bf16.msra.mxu0 %v4662
        %4669 = vmatprep.subr.bf16.mxu0 0
        %4670 = vmatpush1.bf16.msra.mxu0 0
        %4671 = vmatprep.subr.bf16.mxu0 0
        %4672 = vmatpush1.bf16.msra.mxu0 0
        %4673 = vmatprep.subr.bf16.mxu0 0
        %4674 = vmatpush1.bf16.msra.mxu0 0
        %4675 = vmatprep.subr.bf16.mxu0 0
        %4676 = vmatpush1.bf16.msra.mxu0 0
        %4677 = vmatprep.subr.bf16.mxu0 0
        %4678 = vmatpush1.bf16.msra.mxu0 0
        %4679 = vmatprep.subr.bf16.mxu0 0
        %4680 = vmatpush1.bf16.msra.mxu0 0
        %4681 = vmatprep.subr.bf16.mxu0 0
        %4682 = vmatpush1.bf16.msra.mxu0 0
        %4683 = vmatprep.subr.bf16.mxu0 0
        %4684 = vmatpush1.bf16.msra.mxu0 0
        %4685 = vmatprep.subr.bf16.mxu0 0
        %4686 = vmatpush1.bf16.msra.mxu0 0
        %4687 = vmatprep.subr.bf16.mxu0 0
        %4688 = vmatpush1.bf16.msra.mxu0 0
        %4689 = vmatprep.subr.bf16.mxu0 0
        %4690 = vmatpush1.bf16.msra.mxu0 0
        %4691 = vmatprep.subr.bf16.mxu0 0
        %4692 = vmatpush1.bf16.msra.mxu0 0
        %4693 = vmatprep.subr.bf16.mxu0 0
        %4694 = vmatpush1.bf16.msra.mxu0 0
        %4695 = vmatprep.subr.bf16.mxu0 0
        %4696 = vmatpush1.bf16.msra.mxu0 0
        %4697 = vmatprep.subr.bf16.mxu0 0
        %4698 = vmatpush1.bf16.msra.mxu0 0
        %4699 = vmatprep.mubr.bf16.mxu0 0
        %4700 = vmatmul.mubr.bf16.gmra.mrb[0].mxu0 %v4665
        %v4701 = vpop.f32.mrb[0].mxu0
        %v4702 = vadd.f32 0.0, %v4701
        %v4703 = vpop.f32.mrb[0].mxu0
        %v4704 = vpop.f32.mrb[0].mxu0
        %v4705 = vadd.f32 0.0, %v4704
        %v4706 = vpop.f32.mrb[0].mxu0
        %4707 = vdwg.mxu0
        %4708 = vrot.lane.b32.xlu0 %v1264, 56
        %v4709 = vpop.permute.xlu0 %4708
        %v4712 = vsel %vm2074, %v4370, 0
        %4714 = vmatprep.subr.bf16.mxu0 0
        %4715 = vmatpush1.bf16.msra.mxu0 %v4709
        %4716 = vmatprep.subr.bf16.mxu0 0
        %4717 = vmatpush1.bf16.msra.mxu0 0
        %4718 = vmatprep.subr.bf16.mxu0 0
        %4719 = vmatpush1.bf16.msra.mxu0 0
        %4720 = vmatprep.subr.bf16.mxu0 0
        %4721 = vmatpush1.bf16.msra.mxu0 0
        %4722 = vmatprep.subr.bf16.mxu0 0
        %4723 = vmatpush1.bf16.msra.mxu0 0
        %4724 = vmatprep.subr.bf16.mxu0 0
        %4725 = vmatpush1.bf16.msra.mxu0 0
        %4726 = vmatprep.subr.bf16.mxu0 0
        %4727 = vmatpush1.bf16.msra.mxu0 0
        %4728 = vmatprep.subr.bf16.mxu0 0
        %4729 = vmatpush1.bf16.msra.mxu0 0
        %4730 = vmatprep.subr.bf16.mxu0 0
        %4731 = vmatpush1.bf16.msra.mxu0 0
        %4732 = vmatprep.subr.bf16.mxu0 0
        %4733 = vmatpush1.bf16.msra.mxu0 0
        %4734 = vmatprep.subr.bf16.mxu0 0
        %4735 = vmatpush1.bf16.msra.mxu0 0
        %4736 = vmatprep.subr.bf16.mxu0 0
        %4737 = vmatpush1.bf16.msra.mxu0 0
        %4738 = vmatprep.subr.bf16.mxu0 0
        %4739 = vmatpush1.bf16.msra.mxu0 0
        %4740 = vmatprep.subr.bf16.mxu0 0
        %4741 = vmatpush1.bf16.msra.mxu0 0
        %4742 = vmatprep.subr.bf16.mxu0 0
        %4743 = vmatpush1.bf16.msra.mxu0 0
        %4744 = vmatprep.subr.bf16.mxu0 0
        %4745 = vmatpush1.bf16.msra.mxu0 0
        %4746 = vmatprep.mubr.bf16.mxu0 0
        %4747 = vmatmul.mubr.bf16.gmra.mrb[0].mxu0 %v4712
        %v4748 = vpop.f32.mrb[0].mxu0
        %v4749 = vadd.f32 0.0, %v4748
        %v4750 = vpop.f32.mrb[0].mxu0
        %v4751 = vpop.f32.mrb[0].mxu0
        %v4752 = vadd.f32 0.0, %v4751
        %v4753 = vpop.f32.mrb[0].mxu0
        %4754 = vdwg.mxu0
        %4755 = vrot.lane.b32.xlu0 %v1265, 56
        %v4756 = vpop.permute.xlu0 %4755
        %v4759 = vsel %vm2074, %v4371, 0
        %4761 = vmatprep.subr.bf16.mxu0 0
        %4762 = vmatpush1.bf16.msra.mxu0 %v4756
        %4763 = vmatprep.subr.bf16.mxu0 0
        %4764 = vmatpush1.bf16.msra.mxu0 0
        %4765 = vmatprep.subr.bf16.mxu0 0
        %4766 = vmatpush1.bf16.msra.mxu0 0
        %4767 = vmatprep.subr.bf16.mxu0 0
        %4768 = vmatpush1.bf16.msra.mxu0 0
        %4769 = vmatprep.subr.bf16.mxu0 0
        %4770 = vmatpush1.bf16.msra.mxu0 0
        %4771 = vmatprep.subr.bf16.mxu0 0
        %4772 = vmatpush1.bf16.msra.mxu0 0
        %4773 = vmatprep.subr.bf16.mxu0 0
        %4774 = vmatpush1.bf16.msra.mxu0 0
        %4775 = vmatprep.subr.bf16.mxu0 0
        %4776 = vmatpush1.bf16.msra.mxu0 0
        %4777 = vmatprep.subr.bf16.mxu0 0
        %4778 = vmatpush1.bf16.msra.mxu0 0
        %4779 = vmatprep.subr.bf16.mxu0 0
        %4780 = vmatpush1.bf16.msra.mxu0 0
        %4781 = vmatprep.subr.bf16.mxu0 0
        %4782 = vmatpush1.bf16.msra.mxu0 0
        %4783 = vmatprep.subr.bf16.mxu0 0
        %4784 = vmatpush1.bf16.msra.mxu0 0
        %4785 = vmatprep.subr.bf16.mxu0 0
        %4786 = vmatpush1.bf16.msra.mxu0 0
        %4787 = vmatprep.subr.bf16.mxu0 0
        %4788 = vmatpush1.bf16.msra.mxu0 0
        %4789 = vmatprep.subr.bf16.mxu0 0
        %4790 = vmatpush1.bf16.msra.mxu0 0
        %4791 = vmatprep.subr.bf16.mxu0 0
        %4792 = vmatpush1.bf16.msra.mxu0 0
        %4793 = vmatprep.mubr.bf16.mxu0 0
        %4794 = vmatmul.mubr.bf16.gmra.mrb[0].mxu0 %v4759
        %v4795 = vpop.f32.mrb[0].mxu0
        %v4796 = vadd.f32 0.0, %v4795
        %v4797 = vpop.f32.mrb[0].mxu0
        %v4798 = vpop.f32.mrb[0].mxu0
        %v4799 = vadd.f32 0.0, %v4798
        %v4800 = vpop.f32.mrb[0].mxu0
        %4801 = vdwg.mxu0
        %4802 = vrot.lane.b32.xlu0 %v1266, 56
        %v4803 = vpop.permute.xlu0 %4802
        %v4806 = vsel %vm2074, %v4372, 0
        %4808 = vmatprep.subr.bf16.mxu0 0
        %4809 = vmatpush1.bf16.msra.mxu0 %v4803
        %4810 = vmatprep.subr.bf16.mxu0 0
        %4811 = vmatpush1.bf16.msra.mxu0 0
        %4812 = vmatprep.subr.bf16.mxu0 0
        %4813 = vmatpush1.bf16.msra.mxu0 0
        %4814 = vmatprep.subr.bf16.mxu0 0
        %4815 = vmatpush1.bf16.msra.mxu0 0
        %4816 = vmatprep.subr.bf16.mxu0 0
        %4817 = vmatpush1.bf16.msra.mxu0 0
        %4818 = vmatprep.subr.bf16.mxu0 0
        %4819 = vmatpush1.bf16.msra.mxu0 0
        %4820 = vmatprep.subr.bf16.mxu0 0
        %4821 = vmatpush1.bf16.msra.mxu0 0
        %4822 = vmatprep.subr.bf16.mxu0 0
        %4823 = vmatpush1.bf16.msra.mxu0 0
        %4824 = vmatprep.subr.bf16.mxu0 0
        %4825 = vmatpush1.bf16.msra.mxu0 0
        %4826 = vmatprep.subr.bf16.mxu0 0
        %4827 = vmatpush1.bf16.msra.mxu0 0
        %4828 = vmatprep.subr.bf16.mxu0 0
        %4829 = vmatpush1.bf16.msra.mxu0 0
        %4830 = vmatprep.subr.bf16.mxu0 0
        %4831 = vmatpush1.bf16.msra.mxu0 0
        %4832 = vmatprep.subr.bf16.mxu0 0
        %4833 = vmatpush1.bf16.msra.mxu0 0
        %4834 = vmatprep.subr.bf16.mxu0 0
        %4835 = vmatpush1.bf16.msra.mxu0 0
        %4836 = vmatprep.subr.bf16.mxu0 0
        %4837 = vmatpush1.bf16.msra.mxu0 0
        %4838 = vmatprep.subr.bf16.mxu0 0
        %4839 = vmatpush1.bf16.msra.mxu0 0
        %4840 = vmatprep.mubr.bf16.mxu0 0
        %4841 = vmatmul.mubr.bf16.gmra.mrb[0].mxu0 %v4806
        %v4842 = vpop.f32.mrb[0].mxu0
        %v4843 = vadd.f32 0.0, %v4842
        %v4844 = vpop.f32.mrb[0].mxu0
        %v4845 = vpop.f32.mrb[0].mxu0
        %v4846 = vadd.f32 0.0, %v4845
        %v4847 = vpop.f32.mrb[0].mxu0
        %4848 = vdwg.mxu0
        %4849 = vrot.lane.b32.xlu0 %v1267, 56
        %v4850 = vpop.permute.xlu0 %4849
        %v4853 = vsel %vm2074, %v4373, 0
        %4855 = vmatprep.subr.bf16.mxu0 0
        %4856 = vmatpush1.bf16.msra.mxu0 %v4850
        %4857 = vmatprep.subr.bf16.mxu0 0
        %4858 = vmatpush1.bf16.msra.mxu0 0
        %4859 = vmatprep.subr.bf16.mxu0 0
        %4860 = vmatpush1.bf16.msra.mxu0 0
        %4861 = vmatprep.subr.bf16.mxu0 0
        %4862 = vmatpush1.bf16.msra.mxu0 0
        %4863 = vmatprep.subr.bf16.mxu0 0
        %4864 = vmatpush1.bf16.msra.mxu0 0
        %4865 = vmatprep.subr.bf16.mxu0 0
        %4866 = vmatpush1.bf16.msra.mxu0 0
        %4867 = vmatprep.subr.bf16.mxu0 0
        %4868 = vmatpush1.bf16.msra.mxu0 0
        %4869 = vmatprep.subr.bf16.mxu0 0
        %4870 = vmatpush1.bf16.msra.mxu0 0
        %4871 = vmatprep.subr.bf16.mxu0 0
        %4872 = vmatpush1.bf16.msra.mxu0 0
        %4873 = vmatprep.subr.bf16.mxu0 0
        %4874 = vmatpush1.bf16.msra.mxu0 0
        %4875 = vmatprep.subr.bf16.mxu0 0
        %4876 = vmatpush1.bf16.msra.mxu0 0
        %4877 = vmatprep.subr.bf16.mxu0 0
        %4878 = vmatpush1.bf16.msra.mxu0 0
        %4879 = vmatprep.subr.bf16.mxu0 0
        %4880 = vmatpush1.bf16.msra.mxu0 0
        %4881 = vmatprep.subr.bf16.mxu0 0
        %4882 = vmatpush1.bf16.msra.mxu0 0
        %4883 = vmatprep.subr.bf16.mxu0 0
        %4884 = vmatpush1.bf16.msra.mxu0 0
        %4885 = vmatprep.subr.bf16.mxu0 0
        %4886 = vmatpush1.bf16.msra.mxu0 0
        %4887 = vmatprep.mubr.bf16.mxu0 0
        %4888 = vmatmul.mubr.bf16.gmra.mrb[0].mxu0 %v4853
        %v4889 = vpop.f32.mrb[0].mxu0
        %v4890 = vadd.f32 0.0, %v4889
        %v4891 = vpop.f32.mrb[0].mxu0
        %v4892 = vpop.f32.mrb[0].mxu0
        %v4893 = vadd.f32 0.0, %v4892
        %v4894 = vpop.f32.mrb[0].mxu0
        %4895 = vdwg.mxu0
        %4896 = vrot.lane.b32.xlu0 %v1268, 56
        %v4897 = vpop.permute.xlu0 %4896
        %v4900 = vsel %vm2074, %v4374, 0
        %4902 = vmatprep.subr.bf16.mxu0 0
        %4903 = vmatpush1.bf16.msra.mxu0 %v4897
        %4904 = vmatprep.subr.bf16.mxu0 0
        %4905 = vmatpush1.bf16.msra.mxu0 0
        %4906 = vmatprep.subr.bf16.mxu0 0
        %4907 = vmatpush1.bf16.msra.mxu0 0
        %4908 = vmatprep.subr.bf16.mxu0 0
        %4909 = vmatpush1.bf16.msra.mxu0 0
        %4910 = vmatprep.subr.bf16.mxu0 0
        %4911 = vmatpush1.bf16.msra.mxu0 0
        %4912 = vmatprep.subr.bf16.mxu0 0
        %4913 = vmatpush1.bf16.msra.mxu0 0
        %4914 = vmatprep.subr.bf16.mxu0 0
        %4915 = vmatpush1.bf16.msra.mxu0 0
        %4916 = vmatprep.subr.bf16.mxu0 0
        %4917 = vmatpush1.bf16.msra.mxu0 0
        %4918 = vmatprep.subr.bf16.mxu0 0
        %4919 = vmatpush1.bf16.msra.mxu0 0
        %4920 = vmatprep.subr.bf16.mxu0 0
        %4921 = vmatpush1.bf16.msra.mxu0 0
        %4922 = vmatprep.subr.bf16.mxu0 0
        %4923 = vmatpush1.bf16.msra.mxu0 0
        %4924 = vmatprep.subr.bf16.mxu0 0
        %4925 = vmatpush1.bf16.msra.mxu0 0
        %4926 = vmatprep.subr.bf16.mxu0 0
        %4927 = vmatpush1.bf16.msra.mxu0 0
        %4928 = vmatprep.subr.bf16.mxu0 0
        %4929 = vmatpush1.bf16.msra.mxu0 0
        %4930 = vmatprep.subr.bf16.mxu0 0
        %4931 = vmatpush1.bf16.msra.mxu0 0
        %4932 = vmatprep.subr.bf16.mxu0 0
        %4933 = vmatpush1.bf16.msra.mxu0 0
        %4934 = vmatprep.mubr.bf16.mxu0 0
        %4935 = vmatmul.mubr.bf16.gmra.mrb[0].mxu0 %v4900
        %v4936 = vpop.f32.mrb[0].mxu0
        %v4937 = vadd.f32 0.0, %v4936
        %v4938 = vpop.f32.mrb[0].mxu0
        %v4939 = vpop.f32.mrb[0].mxu0
        %v4940 = vadd.f32 0.0, %v4939
        %v4941 = vpop.f32.mrb[0].mxu0
        %4942 = vdwg.mxu0
        %4943 = vrot.lane.b32.xlu0 %v1269, 56
        %v4944 = vpop.permute.xlu0 %4943
        %v4947 = vsel %vm2074, %v4375, 0
        %4949 = vmatprep.subr.bf16.mxu0 0
        %4950 = vmatpush1.bf16.msra.mxu0 %v4944
        %4951 = vmatprep.subr.bf16.mxu0 0
        %4952 = vmatpush1.bf16.msra.mxu0 0
        %4953 = vmatprep.subr.bf16.mxu0 0
        %4954 = vmatpush1.bf16.msra.mxu0 0
        %4955 = vmatprep.subr.bf16.mxu0 0
        %4956 = vmatpush1.bf16.msra.mxu0 0
        %4957 = vmatprep.subr.bf16.mxu0 0
        %4958 = vmatpush1.bf16.msra.mxu0 0
        %4959 = vmatprep.subr.bf16.mxu0 0
        %4960 = vmatpush1.bf16.msra.mxu0 0
        %4961 = vmatprep.subr.bf16.mxu0 0
        %4962 = vmatpush1.bf16.msra.mxu0 0
        %4963 = vmatprep.subr.bf16.mxu0 0
        %4964 = vmatpush1.bf16.msra.mxu0 0
        %4965 = vmatprep.subr.bf16.mxu0 0
        %4966 = vmatpush1.bf16.msra.mxu0 0
        %4967 = vmatprep.subr.bf16.mxu0 0
        %4968 = vmatpush1.bf16.msra.mxu0 0
        %4969 = vmatprep.subr.bf16.mxu0 0
        %4970 = vmatpush1.bf16.msra.mxu0 0
        %4971 = vmatprep.subr.bf16.mxu0 0
        %4972 = vmatpush1.bf16.msra.mxu0 0
        %4973 = vmatprep.subr.bf16.mxu0 0
        %4974 = vmatpush1.bf16.msra.mxu0 0
        %4975 = vmatprep.subr.bf16.mxu0 0
        %4976 = vmatpush1.bf16.msra.mxu0 0
        %4977 = vmatprep.subr.bf16.mxu0 0
        %4978 = vmatpush1.bf16.msra.mxu0 0
        %4979 = vmatprep.subr.bf16.mxu0 0
        %4980 = vmatpush1.bf16.msra.mxu0 0
        %4981 = vmatprep.mubr.bf16.mxu0 0
        %4982 = vmatmul.mubr.bf16.gmra.mrb[0].mxu0 %v4947
        %v4983 = vpop.f32.mrb[0].mxu0
        %v4984 = vadd.f32 0.0, %v4983
        %v4985 = vpop.f32.mrb[0].mxu0
        %v4986 = vpop.f32.mrb[0].mxu0
        %v4987 = vadd.f32 0.0, %v4986
        %v4988 = vpop.f32.mrb[0].mxu0
        %4989 = vdwg.mxu0
        %4990 = vrot.lane.b32.xlu0 %v1270, 56
        %v4991 = vpop.permute.xlu0 %4990
        %v4994 = vsel %vm2074, %v4376, 0
        %4996 = vmatprep.subr.bf16.mxu0 0
        %4997 = vmatpush1.bf16.msra.mxu0 %v4991
        %4998 = vmatprep.subr.bf16.mxu0 0
        %4999 = vmatpush1.bf16.msra.mxu0 0
        %5000 = vmatprep.subr.bf16.mxu0 0
        %5001 = vmatpush1.bf16.msra.mxu0 0
        %5002 = vmatprep.subr.bf16.mxu0 0
        %5003 = vmatpush1.bf16.msra.mxu0 0
        %5004 = vmatprep.subr.bf16.mxu0 0
        %5005 = vmatpush1.bf16.msra.mxu0 0
        %5006 = vmatprep.subr.bf16.mxu0 0
        %5007 = vmatpush1.bf16.msra.mxu0 0
        %5008 = vmatprep.subr.bf16.mxu0 0
        %5009 = vmatpush1.bf16.msra.mxu0 0
        %5010 = vmatprep.subr.bf16.mxu0 0
        %5011 = vmatpush1.bf16.msra.mxu0 0
        %5012 = vmatprep.subr.bf16.mxu0 0
        %5013 = vmatpush1.bf16.msra.mxu0 0
        %5014 = vmatprep.subr.bf16.mxu0 0
        %5015 = vmatpush1.bf16.msra.mxu0 0
        %5016 = vmatprep.subr.bf16.mxu0 0
        %5017 = vmatpush1.bf16.msra.mxu0 0
        %5018 = vmatprep.subr.bf16.mxu0 0
        %5019 = vmatpush1.bf16.msra.mxu0 0
        %5020 = vmatprep.subr.bf16.mxu0 0
        %5021 = vmatpush1.bf16.msra.mxu0 0
        %5022 = vmatprep.subr.bf16.mxu0 0
        %5023 = vmatpush1.bf16.msra.mxu0 0
        %5024 = vmatprep.subr.bf16.mxu0 0
        %5025 = vmatpush1.bf16.msra.mxu0 0
        %5026 = vmatprep.subr.bf16.mxu0 0
        %5027 = vmatpush1.bf16.msra.mxu0 0
        %5028 = vmatprep.mubr.bf16.mxu0 0
        %5029 = vmatmul.mubr.bf16.gmra.mrb[0].mxu0 %v4994
        %v5030 = vpop.f32.mrb[0].mxu0
        %v5031 = vadd.f32 0.0, %v5030
        %v5032 = vpop.f32.mrb[0].mxu0
        %v5033 = vpop.f32.mrb[0].mxu0
        %v5034 = vadd.f32 0.0, %v5033
        %v5035 = vpop.f32.mrb[0].mxu0
        %5036 = vdwg.mxu0
        %5037 = vrot.lane.b32.xlu0 %v1271, 56
        %v5038 = vpop.permute.xlu0 %5037
        %v5041 = vsel %vm2074, %v4377, 0
        %5043 = vmatprep.subr.bf16.mxu0 0
        %5044 = vmatpush1.bf16.msra.mxu0 %v5038
        %5045 = vmatprep.subr.bf16.mxu0 0
        %5046 = vmatpush1.bf16.msra.mxu0 0
        %5047 = vmatprep.subr.bf16.mxu0 0
        %5048 = vmatpush1.bf16.msra.mxu0 0
        %5049 = vmatprep.subr.bf16.mxu0 0
        %5050 = vmatpush1.bf16.msra.mxu0 0
        %5051 = vmatprep.subr.bf16.mxu0 0
        %5052 = vmatpush1.bf16.msra.mxu0 0
        %5053 = vmatprep.subr.bf16.mxu0 0
        %5054 = vmatpush1.bf16.msra.mxu0 0
        %5055 = vmatprep.subr.bf16.mxu0 0
        %5056 = vmatpush1.bf16.msra.mxu0 0
        %5057 = vmatprep.subr.bf16.mxu0 0
        %5058 = vmatpush1.bf16.msra.mxu0 0
        %5059 = vmatprep.subr.bf16.mxu0 0
        %5060 = vmatpush1.bf16.msra.mxu0 0
        %5061 = vmatprep.subr.bf16.mxu0 0
        %5062 = vmatpush1.bf16.msra.mxu0 0
        %5063 = vmatprep.subr.bf16.mxu0 0
        %5064 = vmatpush1.bf16.msra.mxu0 0
        %5065 = vmatprep.subr.bf16.mxu0 0
        %5066 = vmatpush1.bf16.msra.mxu0 0
        %5067 = vmatprep.subr.bf16.mxu0 0
        %5068 = vmatpush1.bf16.msra.mxu0 0
        %5069 = vmatprep.subr.bf16.mxu0 0
        %5070 = vmatpush1.bf16.msra.mxu0 0
        %5071 = vmatprep.subr.bf16.mxu0 0
        %5072 = vmatpush1.bf16.msra.mxu0 0
        %5073 = vmatprep.subr.bf16.mxu0 0
        %5074 = vmatpush1.bf16.msra.mxu0 0
        %5075 = vmatprep.mubr.bf16.mxu0 0
        %5076 = vmatmul.mubr.bf16.gmra.mrb[0].mxu0 %v5041
        %v5077 = vpop.f32.mrb[0].mxu0
        %v5078 = vadd.f32 0.0, %v5077
        %v5079 = vpop.f32.mrb[0].mxu0
        %v5080 = vpop.f32.mrb[0].mxu0
        %v5081 = vadd.f32 0.0, %v5080
        %v5082 = vpop.f32.mrb[0].mxu0
        %5083 = vdwg.mxu0
        %5084 = vrot.lane.b32.xlu0 %v1272, 56
        %v5085 = vpop.permute.xlu0 %5084
        %v5088 = vsel %vm2074, %v4378, 0
        %5090 = vmatprep.subr.bf16.mxu0 0
        %5091 = vmatpush1.bf16.msra.mxu0 %v5085
        %5092 = vmatprep.subr.bf16.mxu0 0
        %5093 = vmatpush1.bf16.msra.mxu0 0
        %5094 = vmatprep.subr.bf16.mxu0 0
        %5095 = vmatpush1.bf16.msra.mxu0 0
        %5096 = vmatprep.subr.bf16.mxu0 0
        %5097 = vmatpush1.bf16.msra.mxu0 0
        %5098 = vmatprep.subr.bf16.mxu0 0
        %5099 = vmatpush1.bf16.msra.mxu0 0
        %5100 = vmatprep.subr.bf16.mxu0 0
        %5101 = vmatpush1.bf16.msra.mxu0 0
        %5102 = vmatprep.subr.bf16.mxu0 0
        %5103 = vmatpush1.bf16.msra.mxu0 0
        %5104 = vmatprep.subr.bf16.mxu0 0
        %5105 = vmatpush1.bf16.msra.mxu0 0
        %5106 = vmatprep.subr.bf16.mxu0 0
        %5107 = vmatpush1.bf16.msra.mxu0 0
        %5108 = vmatprep.subr.bf16.mxu0 0
        %5109 = vmatpush1.bf16.msra.mxu0 0
        %5110 = vmatprep.subr.bf16.mxu0 0
        %5111 = vmatpush1.bf16.msra.mxu0 0
        %5112 = vmatprep.subr.bf16.mxu0 0
        %5113 = vmatpush1.bf16.msra.mxu0 0
        %5114 = vmatprep.subr.bf16.mxu0 0
        %5115 = vmatpush1.bf16.msra.mxu0 0
        %5116 = vmatprep.subr.bf16.mxu0 0
        %5117 = vmatpush1.bf16.msra.mxu0 0
        %5118 = vmatprep.subr.bf16.mxu0 0
        %5119 = vmatpush1.bf16.msra.mxu0 0
        %5120 = vmatprep.subr.bf16.mxu0 0
        %5121 = vmatpush1.bf16.msra.mxu0 0
        %5122 = vmatprep.mubr.bf16.mxu0 0
        %5123 = vmatmul.mubr.bf16.gmra.mrb[0].mxu0 %v5088
        %v5124 = vpop.f32.mrb[0].mxu0
        %v5125 = vadd.f32 0.0, %v5124
        %v5126 = vpop.f32.mrb[0].mxu0
        %v5127 = vpop.f32.mrb[0].mxu0
        %v5128 = vadd.f32 0.0, %v5127
        %v5129 = vpop.f32.mrb[0].mxu0
        %5130 = vdwg.mxu0
        %5131 = vrot.lane.b32.xlu0 %v1257, 112
        %v5132 = vpop.permute.xlu0 %5131
        %5133 = vrot.lane.b32.xlu0 %v1257, 80
        %v5134 = vpop.permute.xlu0 %5133
        %v5136 = vsel %vm1276, %v5132, 0
        %v5139 = vsel %vm1276, %v5134, 0
        %5141 = vmatprep.subr.bf16.mxu0 0
        %5142 = vmatpush1.bf16.xpose.msra.mxu0 %v5139
        %5143 = vmatprep.subr.bf16.mxu0 0
        %5144 = vmatpush1.bf16.xpose.msra.mxu0 0
        %5145 = vmatprep.subr.bf16.mxu0 0
        %5146 = vmatpush1.bf16.xpose.msra.mxu0 0
        %5147 = vmatprep.subr.bf16.mxu0 0
        %5148 = vmatpush1.bf16.xpose.msra.mxu0 0
        %5149 = vmatprep.subr.bf16.mxu0 0
        %5150 = vmatpush1.bf16.xpose.msra.mxu0 0
        %5151 = vmatprep.subr.bf16.mxu0 0
        %5152 = vmatpush1.bf16.xpose.msra.mxu0 0
        %5153 = vmatprep.subr.bf16.mxu0 0
        %5154 = vmatpush1.bf16.xpose.msra.mxu0 0
        %5155 = vmatprep.subr.bf16.mxu0 0
        %5156 = vmatpush1.bf16.xpose.msra.mxu0 0
        %5157 = vmatprep.subr.bf16.mxu0 0
        %5158 = vmatpush1.bf16.xpose.msra.mxu0 0
        %5159 = vmatprep.subr.bf16.mxu0 0
        %5160 = vmatpush1.bf16.xpose.msra.mxu0 0
        %5161 = vmatprep.subr.bf16.mxu0 0
        %5162 = vmatpush1.bf16.xpose.msra.mxu0 0
        %5163 = vmatprep.subr.bf16.mxu0 0
        %5164 = vmatpush1.bf16.xpose.msra.mxu0 0
        %5165 = vmatprep.subr.bf16.mxu0 0
        %5166 = vmatpush1.bf16.xpose.msra.mxu0 0
        %5167 = vmatprep.subr.bf16.mxu0 0
        %5168 = vmatpush1.bf16.xpose.msra.mxu0 0
        %5169 = vmatprep.subr.bf16.mxu0 0
        %5170 = vmatpush1.bf16.xpose.msra.mxu0 0
        %5171 = vmatprep.subr.bf16.mxu0 0
        %5172 = vmatpush1.bf16.xpose.msra.mxu0 0
        %5173 = vmatprep.mubr.bf16.mxu0 0
        %5174 = vmatmul.mubr.bf16.gmra.mrb[0].mxu0 %v5136
        %v5175 = vpop.f32.mrb[0].mxu0
        %v5176 = vadd.f32 0.0, %v5175
        %v5177 = vpop.f32.mrb[0].mxu0
        %v5178 = vpop.f32.mrb[0].mxu0
        %v5179 = vadd.f32 0.0, %v5178
        %v5180 = vpop.f32.mrb[0].mxu0
        %5181 = vdwg.mxu0
        %5182 = vrot.lane.b32.xlu0 %v1258, 112
        %v5183 = vpop.permute.xlu0 %5182
        %5184 = vrot.lane.b32.xlu0 %v1258, 80
        %v5185 = vpop.permute.xlu0 %5184
        %v5187 = vsel %vm1276, %v5183, 0
        %v5190 = vsel %vm1276, %v5185, 0
        %5192 = vmatprep.subr.bf16.mxu0 0
        %5193 = vmatpush1.bf16.xpose.msra.mxu0 %v5190
        %5194 = vmatprep.subr.bf16.mxu0 0
        %5195 = vmatpush1.bf16.xpose.msra.mxu0 0
        %5196 = vmatprep.subr.bf16.mxu0 0
        %5197 = vmatpush1.bf16.xpose.msra.mxu0 0
        %5198 = vmatprep.subr.bf16.mxu0 0
        %5199 = vmatpush1.bf16.xpose.msra.mxu0 0
        %5200 = vmatprep.subr.bf16.mxu0 0
        %5201 = vmatpush1.bf16.xpose.msra.mxu0 0
        %5202 = vmatprep.subr.bf16.mxu0 0
        %5203 = vmatpush1.bf16.xpose.msra.mxu0 0
        %5204 = vmatprep.subr.bf16.mxu0 0
        %5205 = vmatpush1.bf16.xpose.msra.mxu0 0
        %5206 = vmatprep.subr.bf16.mxu0 0
        %5207 = vmatpush1.bf16.xpose.msra.mxu0 0
        %5208 = vmatprep.subr.bf16.mxu0 0
        %5209 = vmatpush1.bf16.xpose.msra.mxu0 0
        %5210 = vmatprep.subr.bf16.mxu0 0
        %5211 = vmatpush1.bf16.xpose.msra.mxu0 0
        %5212 = vmatprep.subr.bf16.mxu0 0
        %5213 = vmatpush1.bf16.xpose.msra.mxu0 0
        %5214 = vmatprep.subr.bf16.mxu0 0
        %5215 = vmatpush1.bf16.xpose.msra.mxu0 0
        %5216 = vmatprep.subr.bf16.mxu0 0
        %5217 = vmatpush1.bf16.xpose.msra.mxu0 0
        %5218 = vmatprep.subr.bf16.mxu0 0
        %5219 = vmatpush1.bf16.xpose.msra.mxu0 0
        %5220 = vmatprep.subr.bf16.mxu0 0
        %5221 = vmatpush1.bf16.xpose.msra.mxu0 0
        %5222 = vmatprep.subr.bf16.mxu0 0
        %5223 = vmatpush1.bf16.xpose.msra.mxu0 0
        %5224 = vmatprep.mubr.bf16.mxu0 0
        %5225 = vmatmul.mubr.bf16.gmra.mrb[0].mxu0 %v5187
        %v5226 = vpop.f32.mrb[0].mxu0
        %v5227 = vadd.f32 0.0, %v5226
        %v5228 = vpop.f32.mrb[0].mxu0
        %v5229 = vpop.f32.mrb[0].mxu0
        %v5230 = vadd.f32 0.0, %v5229
        %v5231 = vpop.f32.mrb[0].mxu0
        %5232 = vdwg.mxu0
        %5233 = vrot.lane.b32.xlu0 %v1259, 112
        %v5234 = vpop.permute.xlu0 %5233
        %5235 = vrot.lane.b32.xlu0 %v1259, 80
        %v5236 = vpop.permute.xlu0 %5235
        %v5238 = vsel %vm1276, %v5234, 0
        %v5241 = vsel %vm1276, %v5236, 0
        %5243 = vmatprep.subr.bf16.mxu0 0
        %5244 = vmatpush1.bf16.xpose.msra.mxu0 %v5241
        %5245 = vmatprep.subr.bf16.mxu0 0
        %5246 = vmatpush1.bf16.xpose.msra.mxu0 0
        %5247 = vmatprep.subr.bf16.mxu0 0
        %5248 = vmatpush1.bf16.xpose.msra.mxu0 0
        %5249 = vmatprep.subr.bf16.mxu0 0
        %5250 = vmatpush1.bf16.xpose.msra.mxu0 0
        %5251 = vmatprep.subr.bf16.mxu0 0
        %5252 = vmatpush1.bf16.xpose.msra.mxu0 0
        %5253 = vmatprep.subr.bf16.mxu0 0
        %5254 = vmatpush1.bf16.xpose.msra.mxu0 0
        %5255 = vmatprep.subr.bf16.mxu0 0
        %5256 = vmatpush1.bf16.xpose.msra.mxu0 0
        %5257 = vmatprep.subr.bf16.mxu0 0
        %5258 = vmatpush1.bf16.xpose.msra.mxu0 0
        %5259 = vmatprep.subr.bf16.mxu0 0
        %5260 = vmatpush1.bf16.xpose.msra.mxu0 0
        %5261 = vmatprep.subr.bf16.mxu0 0
        %5262 = vmatpush1.bf16.xpose.msra.mxu0 0
        %5263 = vmatprep.subr.bf16.mxu0 0
        %5264 = vmatpush1.bf16.xpose.msra.mxu0 0
        %5265 = vmatprep.subr.bf16.mxu0 0
        %5266 = vmatpush1.bf16.xpose.msra.mxu0 0
        %5267 = vmatprep.subr.bf16.mxu0 0
        %5268 = vmatpush1.bf16.xpose.msra.mxu0 0
        %5269 = vmatprep.subr.bf16.mxu0 0
        %5270 = vmatpush1.bf16.xpose.msra.mxu0 0
        %5271 = vmatprep.subr.bf16.mxu0 0
        %5272 = vmatpush1.bf16.xpose.msra.mxu0 0
        %5273 = vmatprep.subr.bf16.mxu0 0
        %5274 = vmatpush1.bf16.xpose.msra.mxu0 0
        %5275 = vmatprep.mubr.bf16.mxu0 0
        %5276 = vmatmul.mubr.bf16.gmra.mrb[0].mxu0 %v5238
        %v5277 = vpop.f32.mrb[0].mxu0
        %v5278 = vadd.f32 0.0, %v5277
        %v5279 = vpop.f32.mrb[0].mxu0
        %v5280 = vpop.f32.mrb[0].mxu0
        %v5281 = vadd.f32 0.0, %v5280
        %v5282 = vpop.f32.mrb[0].mxu0
        %5283 = vdwg.mxu0
        %5284 = vrot.lane.b32.xlu0 %v1260, 112
        %v5285 = vpop.permute.xlu0 %5284
        %5286 = vrot.lane.b32.xlu0 %v1260, 80
        %v5287 = vpop.permute.xlu0 %5286
        %v5289 = vsel %vm1276, %v5285, 0
        %v5292 = vsel %vm1276, %v5287, 0
        %5294 = vmatprep.subr.bf16.mxu0 0
        %5295 = vmatpush1.bf16.xpose.msra.mxu0 %v5292
        %5296 = vmatprep.subr.bf16.mxu0 0
        %5297 = vmatpush1.bf16.xpose.msra.mxu0 0
        %5298 = vmatprep.subr.bf16.mxu0 0
        %5299 = vmatpush1.bf16.xpose.msra.mxu0 0
        %5300 = vmatprep.subr.bf16.mxu0 0
        %5301 = vmatpush1.bf16.xpose.msra.mxu0 0
        %5302 = vmatprep.subr.bf16.mxu0 0
        %5303 = vmatpush1.bf16.xpose.msra.mxu0 0
        %5304 = vmatprep.subr.bf16.mxu0 0
        %5305 = vmatpush1.bf16.xpose.msra.mxu0 0
        %5306 = vmatprep.subr.bf16.mxu0 0
        %5307 = vmatpush1.bf16.xpose.msra.mxu0 0
        %5308 = vmatprep.subr.bf16.mxu0 0
        %5309 = vmatpush1.bf16.xpose.msra.mxu0 0
        %5310 = vmatprep.subr.bf16.mxu0 0
        %5311 = vmatpush1.bf16.xpose.msra.mxu0 0
        %5312 = vmatprep.subr.bf16.mxu0 0
        %5313 = vmatpush1.bf16.xpose.msra.mxu0 0
        %5314 = vmatprep.subr.bf16.mxu0 0
        %5315 = vmatpush1.bf16.xpose.msra.mxu0 0
        %5316 = vmatprep.subr.bf16.mxu0 0
        %5317 = vmatpush1.bf16.xpose.msra.mxu0 0
        %5318 = vmatprep.subr.bf16.mxu0 0
        %5319 = vmatpush1.bf16.xpose.msra.mxu0 0
        %5320 = vmatprep.subr.bf16.mxu0 0
        %5321 = vmatpush1.bf16.xpose.msra.mxu0 0
        %5322 = vmatprep.subr.bf16.mxu0 0
        %5323 = vmatpush1.bf16.xpose.msra.mxu0 0
        %5324 = vmatprep.subr.bf16.mxu0 0
        %5325 = vmatpush1.bf16.xpose.msra.mxu0 0
        %5326 = vmatprep.mubr.bf16.mxu0 0
        %5327 = vmatmul.mubr.bf16.gmra.mrb[0].mxu0 %v5289
        %v5328 = vpop.f32.mrb[0].mxu0
        %v5329 = vadd.f32 0.0, %v5328
        %v5330 = vpop.f32.mrb[0].mxu0
        %v5331 = vpop.f32.mrb[0].mxu0
        %v5332 = vadd.f32 0.0, %v5331
        %v5333 = vpop.f32.mrb[0].mxu0
        %5334 = vdwg.mxu0
        %5335 = vrot.lane.b32.xlu0 %v1261, 112
        %v5336 = vpop.permute.xlu0 %5335
        %5337 = vrot.lane.b32.xlu0 %v1261, 80
        %v5338 = vpop.permute.xlu0 %5337
        %v5340 = vsel %vm1276, %v5336, 0
        %v5343 = vsel %vm1276, %v5338, 0
        %5345 = vmatprep.subr.bf16.mxu0 0
        %5346 = vmatpush1.bf16.xpose.msra.mxu0 %v5343
        %5347 = vmatprep.subr.bf16.mxu0 0
        %5348 = vmatpush1.bf16.xpose.msra.mxu0 0
        %5349 = vmatprep.subr.bf16.mxu0 0
        %5350 = vmatpush1.bf16.xpose.msra.mxu0 0
        %5351 = vmatprep.subr.bf16.mxu0 0
        %5352 = vmatpush1.bf16.xpose.msra.mxu0 0
        %5353 = vmatprep.subr.bf16.mxu0 0
        %5354 = vmatpush1.bf16.xpose.msra.mxu0 0
        %5355 = vmatprep.subr.bf16.mxu0 0
        %5356 = vmatpush1.bf16.xpose.msra.mxu0 0
        %5357 = vmatprep.subr.bf16.mxu0 0
        %5358 = vmatpush1.bf16.xpose.msra.mxu0 0
        %5359 = vmatprep.subr.bf16.mxu0 0
        %5360 = vmatpush1.bf16.xpose.msra.mxu0 0
        %5361 = vmatprep.subr.bf16.mxu0 0
        %5362 = vmatpush1.bf16.xpose.msra.mxu0 0
        %5363 = vmatprep.subr.bf16.mxu0 0
        %5364 = vmatpush1.bf16.xpose.msra.mxu0 0
        %5365 = vmatprep.subr.bf16.mxu0 0
        %5366 = vmatpush1.bf16.xpose.msra.mxu0 0
        %5367 = vmatprep.subr.bf16.mxu0 0
        %5368 = vmatpush1.bf16.xpose.msra.mxu0 0
        %5369 = vmatprep.subr.bf16.mxu0 0
        %5370 = vmatpush1.bf16.xpose.msra.mxu0 0
        %5371 = vmatprep.subr.bf16.mxu0 0
        %5372 = vmatpush1.bf16.xpose.msra.mxu0 0
        %5373 = vmatprep.subr.bf16.mxu0 0
        %5374 = vmatpush1.bf16.xpose.msra.mxu0 0
        %5375 = vmatprep.subr.bf16.mxu0 0
        %5376 = vmatpush1.bf16.xpose.msra.mxu0 0
        %5377 = vmatprep.mubr.bf16.mxu0 0
        %5378 = vmatmul.mubr.bf16.gmra.mrb[0].mxu0 %v5340
        %v5379 = vpop.f32.mrb[0].mxu0
        %v5380 = vadd.f32 0.0, %v5379
        %v5381 = vpop.f32.mrb[0].mxu0
        %v5382 = vpop.f32.mrb[0].mxu0
        %v5383 = vadd.f32 0.0, %v5382
        %v5384 = vpop.f32.mrb[0].mxu0
        %5385 = vdwg.mxu0
        %5386 = vrot.lane.b32.xlu0 %v1262, 112
        %v5387 = vpop.permute.xlu0 %5386
        %5388 = vrot.lane.b32.xlu0 %v1262, 80
        %v5389 = vpop.permute.xlu0 %5388
        %v5391 = vsel %vm1276, %v5387, 0
        %v5394 = vsel %vm1276, %v5389, 0
        %5396 = vmatprep.subr.bf16.mxu0 0
        %5397 = vmatpush1.bf16.xpose.msra.mxu0 %v5394
        %5398 = vmatprep.subr.bf16.mxu0 0
        %5399 = vmatpush1.bf16.xpose.msra.mxu0 0
        %5400 = vmatprep.subr.bf16.mxu0 0
        %5401 = vmatpush1.bf16.xpose.msra.mxu0 0
        %5402 = vmatprep.subr.bf16.mxu0 0
        %5403 = vmatpush1.bf16.xpose.msra.mxu0 0
        %5404 = vmatprep.subr.bf16.mxu0 0
        %5405 = vmatpush1.bf16.xpose.msra.mxu0 0
        %5406 = vmatprep.subr.bf16.mxu0 0
        %5407 = vmatpush1.bf16.xpose.msra.mxu0 0
        %5408 = vmatprep.subr.bf16.mxu0 0
        %5409 = vmatpush1.bf16.xpose.msra.mxu0 0
        %5410 = vmatprep.subr.bf16.mxu0 0
        %5411 = vmatpush1.bf16.xpose.msra.mxu0 0
        %5412 = vmatprep.subr.bf16.mxu0 0
        %5413 = vmatpush1.bf16.xpose.msra.mxu0 0
        %5414 = vmatprep.subr.bf16.mxu0 0
        %5415 = vmatpush1.bf16.xpose.msra.mxu0 0
        %5416 = vmatprep.subr.bf16.mxu0 0
        %5417 = vmatpush1.bf16.xpose.msra.mxu0 0
        %5418 = vmatprep.subr.bf16.mxu0 0
        %5419 = vmatpush1.bf16.xpose.msra.mxu0 0
        %5420 = vmatprep.subr.bf16.mxu0 0
        %5421 = vmatpush1.bf16.xpose.msra.mxu0 0
        %5422 = vmatprep.subr.bf16.mxu0 0
        %5423 = vmatpush1.bf16.xpose.msra.mxu0 0
        %5424 = vmatprep.subr.bf16.mxu0 0
        %5425 = vmatpush1.bf16.xpose.msra.mxu0 0
        %5426 = vmatprep.subr.bf16.mxu0 0
        %5427 = vmatpush1.bf16.xpose.msra.mxu0 0
        %5428 = vmatprep.mubr.bf16.mxu0 0
        %5429 = vmatmul.mubr.bf16.gmra.mrb[0].mxu0 %v5391
        %v5430 = vpop.f32.mrb[0].mxu0
        %v5431 = vadd.f32 0.0, %v5430
        %v5432 = vpop.f32.mrb[0].mxu0
        %v5433 = vpop.f32.mrb[0].mxu0
        %v5434 = vadd.f32 0.0, %v5433
        %v5435 = vpop.f32.mrb[0].mxu0
        %5436 = vdwg.mxu0
        %5437 = vrot.lane.b32.xlu0 %v1263, 112
        %v5438 = vpop.permute.xlu0 %5437
        %5439 = vrot.lane.b32.xlu0 %v1263, 80
        %v5440 = vpop.permute.xlu0 %5439
        %v5442 = vsel %vm1276, %v5438, 0
        %v5445 = vsel %vm1276, %v5440, 0
        %5447 = vmatprep.subr.bf16.mxu0 0
        %5448 = vmatpush1.bf16.xpose.msra.mxu0 %v5445
        %5449 = vmatprep.subr.bf16.mxu0 0
        %5450 = vmatpush1.bf16.xpose.msra.mxu0 0
        %5451 = vmatprep.subr.bf16.mxu0 0
        %5452 = vmatpush1.bf16.xpose.msra.mxu0 0
        %5453 = vmatprep.subr.bf16.mxu0 0
        %5454 = vmatpush1.bf16.xpose.msra.mxu0 0
        %5455 = vmatprep.subr.bf16.mxu0 0
        %5456 = vmatpush1.bf16.xpose.msra.mxu0 0
        %5457 = vmatprep.subr.bf16.mxu0 0
        %5458 = vmatpush1.bf16.xpose.msra.mxu0 0
        %5459 = vmatprep.subr.bf16.mxu0 0
        %5460 = vmatpush1.bf16.xpose.msra.mxu0 0
        %5461 = vmatprep.subr.bf16.mxu0 0
        %5462 = vmatpush1.bf16.xpose.msra.mxu0 0
        %5463 = vmatprep.subr.bf16.mxu0 0
        %5464 = vmatpush1.bf16.xpose.msra.mxu0 0
        %5465 = vmatprep.subr.bf16.mxu0 0
        %5466 = vmatpush1.bf16.xpose.msra.mxu0 0
        %5467 = vmatprep.subr.bf16.mxu0 0
        %5468 = vmatpush1.bf16.xpose.msra.mxu0 0
        %5469 = vmatprep.subr.bf16.mxu0 0
        %5470 = vmatpush1.bf16.xpose.msra.mxu0 0
        %5471 = vmatprep.subr.bf16.mxu0 0
        %5472 = vmatpush1.bf16.xpose.msra.mxu0 0
        %5473 = vmatprep.subr.bf16.mxu0 0
        %5474 = vmatpush1.bf16.xpose.msra.mxu0 0
        %5475 = vmatprep.subr.bf16.mxu0 0
        %5476 = vmatpush1.bf16.xpose.msra.mxu0 0
        %5477 = vmatprep.subr.bf16.mxu0 0
        %5478 = vmatpush1.bf16.xpose.msra.mxu0 0
        %5479 = vmatprep.mubr.bf16.mxu0 0
        %5480 = vmatmul.mubr.bf16.gmra.mrb[0].mxu0 %v5442
        %v5481 = vpop.f32.mrb[0].mxu0
        %v5482 = vadd.f32 0.0, %v5481
        %v5483 = vpop.f32.mrb[0].mxu0
        %v5484 = vpop.f32.mrb[0].mxu0
        %v5485 = vadd.f32 0.0, %v5484
        %v5486 = vpop.f32.mrb[0].mxu0
        %5487 = vdwg.mxu0
        %5488 = vrot.lane.b32.xlu0 %v1264, 112
        %v5489 = vpop.permute.xlu0 %5488
        %5490 = vrot.lane.b32.xlu0 %v1264, 80
        %v5491 = vpop.permute.xlu0 %5490
        %v5493 = vsel %vm1276, %v5489, 0
        %v5496 = vsel %vm1276, %v5491, 0
        %5498 = vmatprep.subr.bf16.mxu0 0
        %5499 = vmatpush1.bf16.xpose.msra.mxu0 %v5496
        %5500 = vmatprep.subr.bf16.mxu0 0
        %5501 = vmatpush1.bf16.xpose.msra.mxu0 0
        %5502 = vmatprep.subr.bf16.mxu0 0
        %5503 = vmatpush1.bf16.xpose.msra.mxu0 0
        %5504 = vmatprep.subr.bf16.mxu0 0
        %5505 = vmatpush1.bf16.xpose.msra.mxu0 0
        %5506 = vmatprep.subr.bf16.mxu0 0
        %5507 = vmatpush1.bf16.xpose.msra.mxu0 0
        %5508 = vmatprep.subr.bf16.mxu0 0
        %5509 = vmatpush1.bf16.xpose.msra.mxu0 0
        %5510 = vmatprep.subr.bf16.mxu0 0
        %5511 = vmatpush1.bf16.xpose.msra.mxu0 0
        %5512 = vmatprep.subr.bf16.mxu0 0
        %5513 = vmatpush1.bf16.xpose.msra.mxu0 0
        %5514 = vmatprep.subr.bf16.mxu0 0
        %5515 = vmatpush1.bf16.xpose.msra.mxu0 0
        %5516 = vmatprep.subr.bf16.mxu0 0
        %5517 = vmatpush1.bf16.xpose.msra.mxu0 0
        %5518 = vmatprep.subr.bf16.mxu0 0
        %5519 = vmatpush1.bf16.xpose.msra.mxu0 0
        %5520 = vmatprep.subr.bf16.mxu0 0
        %5521 = vmatpush1.bf16.xpose.msra.mxu0 0
        %5522 = vmatprep.subr.bf16.mxu0 0
        %5523 = vmatpush1.bf16.xpose.msra.mxu0 0
        %5524 = vmatprep.subr.bf16.mxu0 0
        %5525 = vmatpush1.bf16.xpose.msra.mxu0 0
        %5526 = vmatprep.subr.bf16.mxu0 0
        %5527 = vmatpush1.bf16.xpose.msra.mxu0 0
        %5528 = vmatprep.subr.bf16.mxu0 0
        %5529 = vmatpush1.bf16.xpose.msra.mxu0 0
        %5530 = vmatprep.mubr.bf16.mxu0 0
        %5531 = vmatmul.mubr.bf16.gmra.mrb[0].mxu0 %v5493
        %v5532 = vpop.f32.mrb[0].mxu0
        %v5533 = vadd.f32 0.0, %v5532
        %v5534 = vpop.f32.mrb[0].mxu0
        %v5535 = vpop.f32.mrb[0].mxu0
        %v5536 = vadd.f32 0.0, %v5535
        %v5537 = vpop.f32.mrb[0].mxu0
        %5538 = vdwg.mxu0
        %5539 = vrot.lane.b32.xlu0 %v1265, 112
        %v5540 = vpop.permute.xlu0 %5539
        %5541 = vrot.lane.b32.xlu0 %v1265, 80
        %v5542 = vpop.permute.xlu0 %5541
        %v5544 = vsel %vm1276, %v5540, 0
        %v5547 = vsel %vm1276, %v5542, 0
        %5549 = vmatprep.subr.bf16.mxu0 0
        %5550 = vmatpush1.bf16.xpose.msra.mxu0 %v5547
        %5551 = vmatprep.subr.bf16.mxu0 0
        %5552 = vmatpush1.bf16.xpose.msra.mxu0 0
        %5553 = vmatprep.subr.bf16.mxu0 0
        %5554 = vmatpush1.bf16.xpose.msra.mxu0 0
        %5555 = vmatprep.subr.bf16.mxu0 0
        %5556 = vmatpush1.bf16.xpose.msra.mxu0 0
        %5557 = vmatprep.subr.bf16.mxu0 0
        %5558 = vmatpush1.bf16.xpose.msra.mxu0 0
        %5559 = vmatprep.subr.bf16.mxu0 0
        %5560 = vmatpush1.bf16.xpose.msra.mxu0 0
        %5561 = vmatprep.subr.bf16.mxu0 0
        %5562 = vmatpush1.bf16.xpose.msra.mxu0 0
        %5563 = vmatprep.subr.bf16.mxu0 0
        %5564 = vmatpush1.bf16.xpose.msra.mxu0 0
        %5565 = vmatprep.subr.bf16.mxu0 0
        %5566 = vmatpush1.bf16.xpose.msra.mxu0 0
        %5567 = vmatprep.subr.bf16.mxu0 0
        %5568 = vmatpush1.bf16.xpose.msra.mxu0 0
        %5569 = vmatprep.subr.bf16.mxu0 0
        %5570 = vmatpush1.bf16.xpose.msra.mxu0 0
        %5571 = vmatprep.subr.bf16.mxu0 0
        %5572 = vmatpush1.bf16.xpose.msra.mxu0 0
        %5573 = vmatprep.subr.bf16.mxu0 0
        %5574 = vmatpush1.bf16.xpose.msra.mxu0 0
        %5575 = vmatprep.subr.bf16.mxu0 0
        %5576 = vmatpush1.bf16.xpose.msra.mxu0 0
        %5577 = vmatprep.subr.bf16.mxu0 0
        %5578 = vmatpush1.bf16.xpose.msra.mxu0 0
        %5579 = vmatprep.subr.bf16.mxu0 0
        %5580 = vmatpush1.bf16.xpose.msra.mxu0 0
        %5581 = vmatprep.mubr.bf16.mxu0 0
        %5582 = vmatmul.mubr.bf16.gmra.mrb[0].mxu0 %v5544
        %v5583 = vpop.f32.mrb[0].mxu0
        %v5584 = vadd.f32 0.0, %v5583
        %v5585 = vpop.f32.mrb[0].mxu0
        %v5586 = vpop.f32.mrb[0].mxu0
        %v5587 = vadd.f32 0.0, %v5586
        %v5588 = vpop.f32.mrb[0].mxu0
        %5589 = vdwg.mxu0
        %5590 = vrot.lane.b32.xlu0 %v1266, 112
        %v5591 = vpop.permute.xlu0 %5590
        %5592 = vrot.lane.b32.xlu0 %v1266, 80
        %v5593 = vpop.permute.xlu0 %5592
        %v5595 = vsel %vm1276, %v5591, 0
        %v5598 = vsel %vm1276, %v5593, 0
        %5600 = vmatprep.subr.bf16.mxu0 0
        %5601 = vmatpush1.bf16.xpose.msra.mxu0 %v5598
        %5602 = vmatprep.subr.bf16.mxu0 0
        %5603 = vmatpush1.bf16.xpose.msra.mxu0 0
        %5604 = vmatprep.subr.bf16.mxu0 0
        %5605 = vmatpush1.bf16.xpose.msra.mxu0 0
        %5606 = vmatprep.subr.bf16.mxu0 0
        %5607 = vmatpush1.bf16.xpose.msra.mxu0 0
        %5608 = vmatprep.subr.bf16.mxu0 0
        %5609 = vmatpush1.bf16.xpose.msra.mxu0 0
        %5610 = vmatprep.subr.bf16.mxu0 0
        %5611 = vmatpush1.bf16.xpose.msra.mxu0 0
        %5612 = vmatprep.subr.bf16.mxu0 0
        %5613 = vmatpush1.bf16.xpose.msra.mxu0 0
        %5614 = vmatprep.subr.bf16.mxu0 0
        %5615 = vmatpush1.bf16.xpose.msra.mxu0 0
        %5616 = vmatprep.subr.bf16.mxu0 0
        %5617 = vmatpush1.bf16.xpose.msra.mxu0 0
        %5618 = vmatprep.subr.bf16.mxu0 0
        %5619 = vmatpush1.bf16.xpose.msra.mxu0 0
        %5620 = vmatprep.subr.bf16.mxu0 0
        %5621 = vmatpush1.bf16.xpose.msra.mxu0 0
        %5622 = vmatprep.subr.bf16.mxu0 0
        %5623 = vmatpush1.bf16.xpose.msra.mxu0 0
        %5624 = vmatprep.subr.bf16.mxu0 0
        %5625 = vmatpush1.bf16.xpose.msra.mxu0 0
        %5626 = vmatprep.subr.bf16.mxu0 0
        %5627 = vmatpush1.bf16.xpose.msra.mxu0 0
        %5628 = vmatprep.subr.bf16.mxu0 0
        %5629 = vmatpush1.bf16.xpose.msra.mxu0 0
        %5630 = vmatprep.subr.bf16.mxu0 0
        %5631 = vmatpush1.bf16.xpose.msra.mxu0 0
        %5632 = vmatprep.mubr.bf16.mxu0 0
        %5633 = vmatmul.mubr.bf16.gmra.mrb[0].mxu0 %v5595
        %v5634 = vpop.f32.mrb[0].mxu0
        %v5635 = vadd.f32 0.0, %v5634
        %v5636 = vpop.f32.mrb[0].mxu0
        %v5637 = vpop.f32.mrb[0].mxu0
        %v5638 = vadd.f32 0.0, %v5637
        %v5639 = vpop.f32.mrb[0].mxu0
        %5640 = vdwg.mxu0
        %5641 = vrot.lane.b32.xlu0 %v1267, 112
        %v5642 = vpop.permute.xlu0 %5641
        %5643 = vrot.lane.b32.xlu0 %v1267, 80
        %v5644 = vpop.permute.xlu0 %5643
        %v5646 = vsel %vm1276, %v5642, 0
        %v5649 = vsel %vm1276, %v5644, 0
        %5651 = vmatprep.subr.bf16.mxu0 0
        %5652 = vmatpush1.bf16.xpose.msra.mxu0 %v5649
        %5653 = vmatprep.subr.bf16.mxu0 0
        %5654 = vmatpush1.bf16.xpose.msra.mxu0 0
        %5655 = vmatprep.subr.bf16.mxu0 0
        %5656 = vmatpush1.bf16.xpose.msra.mxu0 0
        %5657 = vmatprep.subr.bf16.mxu0 0
        %5658 = vmatpush1.bf16.xpose.msra.mxu0 0
        %5659 = vmatprep.subr.bf16.mxu0 0
        %5660 = vmatpush1.bf16.xpose.msra.mxu0 0
        %5661 = vmatprep.subr.bf16.mxu0 0
        %5662 = vmatpush1.bf16.xpose.msra.mxu0 0
        %5663 = vmatprep.subr.bf16.mxu0 0
        %5664 = vmatpush1.bf16.xpose.msra.mxu0 0
        %5665 = vmatprep.subr.bf16.mxu0 0
        %5666 = vmatpush1.bf16.xpose.msra.mxu0 0
        %5667 = vmatprep.subr.bf16.mxu0 0
        %5668 = vmatpush1.bf16.xpose.msra.mxu0 0
        %5669 = vmatprep.subr.bf16.mxu0 0
        %5670 = vmatpush1.bf16.xpose.msra.mxu0 0
        %5671 = vmatprep.subr.bf16.mxu0 0
        %5672 = vmatpush1.bf16.xpose.msra.mxu0 0
        %5673 = vmatprep.subr.bf16.mxu0 0
        %5674 = vmatpush1.bf16.xpose.msra.mxu0 0
        %5675 = vmatprep.subr.bf16.mxu0 0
        %5676 = vmatpush1.bf16.xpose.msra.mxu0 0
        %5677 = vmatprep.subr.bf16.mxu0 0
        %5678 = vmatpush1.bf16.xpose.msra.mxu0 0
        %5679 = vmatprep.subr.bf16.mxu0 0
        %5680 = vmatpush1.bf16.xpose.msra.mxu0 0
        %5681 = vmatprep.subr.bf16.mxu0 0
        %5682 = vmatpush1.bf16.xpose.msra.mxu0 0
        %5683 = vmatprep.mubr.bf16.mxu0 0
        %5684 = vmatmul.mubr.bf16.gmra.mrb[0].mxu0 %v5646
        %v5685 = vpop.f32.mrb[0].mxu0
        %v5686 = vadd.f32 0.0, %v5685
        %v5687 = vpop.f32.mrb[0].mxu0
        %v5688 = vpop.f32.mrb[0].mxu0
        %v5689 = vadd.f32 0.0, %v5688
        %v5690 = vpop.f32.mrb[0].mxu0
        %5691 = vdwg.mxu0
        %5692 = vrot.lane.b32.xlu0 %v1268, 112
        %v5693 = vpop.permute.xlu0 %5692
        %5694 = vrot.lane.b32.xlu0 %v1268, 80
        %v5695 = vpop.permute.xlu0 %5694
        %v5697 = vsel %vm1276, %v5693, 0
        %v5700 = vsel %vm1276, %v5695, 0
        %5702 = vmatprep.subr.bf16.mxu0 0
        %5703 = vmatpush1.bf16.xpose.msra.mxu0 %v5700
        %5704 = vmatprep.subr.bf16.mxu0 0
        %5705 = vmatpush1.bf16.xpose.msra.mxu0 0
        %5706 = vmatprep.subr.bf16.mxu0 0
        %5707 = vmatpush1.bf16.xpose.msra.mxu0 0
        %5708 = vmatprep.subr.bf16.mxu0 0
        %5709 = vmatpush1.bf16.xpose.msra.mxu0 0
        %5710 = vmatprep.subr.bf16.mxu0 0
        %5711 = vmatpush1.bf16.xpose.msra.mxu0 0
        %5712 = vmatprep.subr.bf16.mxu0 0
        %5713 = vmatpush1.bf16.xpose.msra.mxu0 0
        %5714 = vmatprep.subr.bf16.mxu0 0
        %5715 = vmatpush1.bf16.xpose.msra.mxu0 0
        %5716 = vmatprep.subr.bf16.mxu0 0
        %5717 = vmatpush1.bf16.xpose.msra.mxu0 0
        %5718 = vmatprep.subr.bf16.mxu0 0
        %5719 = vmatpush1.bf16.xpose.msra.mxu0 0
        %5720 = vmatprep.subr.bf16.mxu0 0
        %5721 = vmatpush1.bf16.xpose.msra.mxu0 0
        %5722 = vmatprep.subr.bf16.mxu0 0
        %5723 = vmatpush1.bf16.xpose.msra.mxu0 0
        %5724 = vmatprep.subr.bf16.mxu0 0
        %5725 = vmatpush1.bf16.xpose.msra.mxu0 0
        %5726 = vmatprep.subr.bf16.mxu0 0
        %5727 = vmatpush1.bf16.xpose.msra.mxu0 0
        %5728 = vmatprep.subr.bf16.mxu0 0
        %5729 = vmatpush1.bf16.xpose.msra.mxu0 0
        %5730 = vmatprep.subr.bf16.mxu0 0
        %5731 = vmatpush1.bf16.xpose.msra.mxu0 0
        %5732 = vmatprep.subr.bf16.mxu0 0
        %5733 = vmatpush1.bf16.xpose.msra.mxu0 0
        %5734 = vmatprep.mubr.bf16.mxu0 0
        %5735 = vmatmul.mubr.bf16.gmra.mrb[0].mxu0 %v5697
        %v5736 = vpop.f32.mrb[0].mxu0
        %v5737 = vadd.f32 0.0, %v5736
        %v5738 = vpop.f32.mrb[0].mxu0
        %v5739 = vpop.f32.mrb[0].mxu0
        %v5740 = vadd.f32 0.0, %v5739
        %v5741 = vpop.f32.mrb[0].mxu0
        %5742 = vdwg.mxu0
        %5743 = vrot.lane.b32.xlu0 %v1269, 112
        %v5744 = vpop.permute.xlu0 %5743
        %5745 = vrot.lane.b32.xlu0 %v1269, 80
        %v5746 = vpop.permute.xlu0 %5745
        %v5748 = vsel %vm1276, %v5744, 0
        %v5751 = vsel %vm1276, %v5746, 0
        %5753 = vmatprep.subr.bf16.mxu0 0
        %5754 = vmatpush1.bf16.xpose.msra.mxu0 %v5751
        %5755 = vmatprep.subr.bf16.mxu0 0
        %5756 = vmatpush1.bf16.xpose.msra.mxu0 0
        %5757 = vmatprep.subr.bf16.mxu0 0
        %5758 = vmatpush1.bf16.xpose.msra.mxu0 0
        %5759 = vmatprep.subr.bf16.mxu0 0
        %5760 = vmatpush1.bf16.xpose.msra.mxu0 0
        %5761 = vmatprep.subr.bf16.mxu0 0
        %5762 = vmatpush1.bf16.xpose.msra.mxu0 0
        %5763 = vmatprep.subr.bf16.mxu0 0
        %5764 = vmatpush1.bf16.xpose.msra.mxu0 0
        %5765 = vmatprep.subr.bf16.mxu0 0
        %5766 = vmatpush1.bf16.xpose.msra.mxu0 0
        %5767 = vmatprep.subr.bf16.mxu0 0
        %5768 = vmatpush1.bf16.xpose.msra.mxu0 0
        %5769 = vmatprep.subr.bf16.mxu0 0
        %5770 = vmatpush1.bf16.xpose.msra.mxu0 0
        %5771 = vmatprep.subr.bf16.mxu0 0
        %5772 = vmatpush1.bf16.xpose.msra.mxu0 0
        %5773 = vmatprep.subr.bf16.mxu0 0
        %5774 = vmatpush1.bf16.xpose.msra.mxu0 0
        %5775 = vmatprep.subr.bf16.mxu0 0
        %5776 = vmatpush1.bf16.xpose.msra.mxu0 0
        %5777 = vmatprep.subr.bf16.mxu0 0
        %5778 = vmatpush1.bf16.xpose.msra.mxu0 0
        %5779 = vmatprep.subr.bf16.mxu0 0
        %5780 = vmatpush1.bf16.xpose.msra.mxu0 0
        %5781 = vmatprep.subr.bf16.mxu0 0
        %5782 = vmatpush1.bf16.xpose.msra.mxu0 0
        %5783 = vmatprep.subr.bf16.mxu0 0
        %5784 = vmatpush1.bf16.xpose.msra.mxu0 0
        %5785 = vmatprep.mubr.bf16.mxu0 0
        %5786 = vmatmul.mubr.bf16.gmra.mrb[0].mxu0 %v5748
        %v5787 = vpop.f32.mrb[0].mxu0
        %v5788 = vadd.f32 0.0, %v5787
        %v5789 = vpop.f32.mrb[0].mxu0
        %v5790 = vpop.f32.mrb[0].mxu0
        %v5791 = vadd.f32 0.0, %v5790
        %v5792 = vpop.f32.mrb[0].mxu0
        %5793 = vdwg.mxu0
        %5794 = vrot.lane.b32.xlu0 %v1270, 112
        %v5795 = vpop.permute.xlu0 %5794
        %5796 = vrot.lane.b32.xlu0 %v1270, 80
        %v5797 = vpop.permute.xlu0 %5796
        %v5799 = vsel %vm1276, %v5795, 0
        %v5802 = vsel %vm1276, %v5797, 0
        %5804 = vmatprep.subr.bf16.mxu0 0
        %5805 = vmatpush1.bf16.xpose.msra.mxu0 %v5802
        %5806 = vmatprep.subr.bf16.mxu0 0
        %5807 = vmatpush1.bf16.xpose.msra.mxu0 0
        %5808 = vmatprep.subr.bf16.mxu0 0
        %5809 = vmatpush1.bf16.xpose.msra.mxu0 0
        %5810 = vmatprep.subr.bf16.mxu0 0
        %5811 = vmatpush1.bf16.xpose.msra.mxu0 0
        %5812 = vmatprep.subr.bf16.mxu0 0
        %5813 = vmatpush1.bf16.xpose.msra.mxu0 0
        %5814 = vmatprep.subr.bf16.mxu0 0
        %5815 = vmatpush1.bf16.xpose.msra.mxu0 0
        %5816 = vmatprep.subr.bf16.mxu0 0
        %5817 = vmatpush1.bf16.xpose.msra.mxu0 0
        %5818 = vmatprep.subr.bf16.mxu0 0
        %5819 = vmatpush1.bf16.xpose.msra.mxu0 0
        %5820 = vmatprep.subr.bf16.mxu0 0
        %5821 = vmatpush1.bf16.xpose.msra.mxu0 0
        %5822 = vmatprep.subr.bf16.mxu0 0
        %5823 = vmatpush1.bf16.xpose.msra.mxu0 0
        %5824 = vmatprep.subr.bf16.mxu0 0
        %5825 = vmatpush1.bf16.xpose.msra.mxu0 0
        %5826 = vmatprep.subr.bf16.mxu0 0
        %5827 = vmatpush1.bf16.xpose.msra.mxu0 0
        %5828 = vmatprep.subr.bf16.mxu0 0
        %5829 = vmatpush1.bf16.xpose.msra.mxu0 0
        %5830 = vmatprep.subr.bf16.mxu0 0
        %5831 = vmatpush1.bf16.xpose.msra.mxu0 0
        %5832 = vmatprep.subr.bf16.mxu0 0
        %5833 = vmatpush1.bf16.xpose.msra.mxu0 0
        %5834 = vmatprep.subr.bf16.mxu0 0
        %5835 = vmatpush1.bf16.xpose.msra.mxu0 0
        %5836 = vmatprep.mubr.bf16.mxu0 0
        %5837 = vmatmul.mubr.bf16.gmra.mrb[0].mxu0 %v5799
        %v5838 = vpop.f32.mrb[0].mxu0
        %v5839 = vadd.f32 0.0, %v5838
        %v5840 = vpop.f32.mrb[0].mxu0
        %v5841 = vpop.f32.mrb[0].mxu0
        %v5842 = vadd.f32 0.0, %v5841
        %v5843 = vpop.f32.mrb[0].mxu0
        %5844 = vdwg.mxu0
        %5845 = vrot.lane.b32.xlu0 %v1271, 112
        %v5846 = vpop.permute.xlu0 %5845
        %5847 = vrot.lane.b32.xlu0 %v1271, 80
        %v5848 = vpop.permute.xlu0 %5847
        %v5850 = vsel %vm1276, %v5846, 0
        %v5853 = vsel %vm1276, %v5848, 0
        %5855 = vmatprep.subr.bf16.mxu0 0
        %5856 = vmatpush1.bf16.xpose.msra.mxu0 %v5853
        %5857 = vmatprep.subr.bf16.mxu0 0
        %5858 = vmatpush1.bf16.xpose.msra.mxu0 0
        %5859 = vmatprep.subr.bf16.mxu0 0
        %5860 = vmatpush1.bf16.xpose.msra.mxu0 0
        %5861 = vmatprep.subr.bf16.mxu0 0
        %5862 = vmatpush1.bf16.xpose.msra.mxu0 0
        %5863 = vmatprep.subr.bf16.mxu0 0
        %5864 = vmatpush1.bf16.xpose.msra.mxu0 0
        %5865 = vmatprep.subr.bf16.mxu0 0
        %5866 = vmatpush1.bf16.xpose.msra.mxu0 0
        %5867 = vmatprep.subr.bf16.mxu0 0
        %5868 = vmatpush1.bf16.xpose.msra.mxu0 0
        %5869 = vmatprep.subr.bf16.mxu0 0
        %5870 = vmatpush1.bf16.xpose.msra.mxu0 0
        %5871 = vmatprep.subr.bf16.mxu0 0
        %5872 = vmatpush1.bf16.xpose.msra.mxu0 0
        %5873 = vmatprep.subr.bf16.mxu0 0
        %5874 = vmatpush1.bf16.xpose.msra.mxu0 0
        %5875 = vmatprep.subr.bf16.mxu0 0
        %5876 = vmatpush1.bf16.xpose.msra.mxu0 0
        %5877 = vmatprep.subr.bf16.mxu0 0
        %5878 = vmatpush1.bf16.xpose.msra.mxu0 0
        %5879 = vmatprep.subr.bf16.mxu0 0
        %5880 = vmatpush1.bf16.xpose.msra.mxu0 0
        %5881 = vmatprep.subr.bf16.mxu0 0
        %5882 = vmatpush1.bf16.xpose.msra.mxu0 0
        %5883 = vmatprep.subr.bf16.mxu0 0
        %5884 = vmatpush1.bf16.xpose.msra.mxu0 0
        %5885 = vmatprep.subr.bf16.mxu0 0
        %5886 = vmatpush1.bf16.xpose.msra.mxu0 0
        %5887 = vmatprep.mubr.bf16.mxu0 0
        %5888 = vmatmul.mubr.bf16.gmra.mrb[0].mxu0 %v5850
        %v5889 = vpop.f32.mrb[0].mxu0
        %v5890 = vadd.f32 0.0, %v5889
        %v5891 = vpop.f32.mrb[0].mxu0
        %v5892 = vpop.f32.mrb[0].mxu0
        %v5893 = vadd.f32 0.0, %v5892
        %v5894 = vpop.f32.mrb[0].mxu0
        %5895 = vdwg.mxu0
        %5896 = vrot.lane.b32.xlu0 %v1272, 112
        %v5897 = vpop.permute.xlu0 %5896
        %5898 = vrot.lane.b32.xlu0 %v1272, 80
        %v5899 = vpop.permute.xlu0 %5898
        %v5901 = vsel %vm1276, %v5897, 0
        %v5904 = vsel %vm1276, %v5899, 0
        %5906 = vmatprep.subr.bf16.mxu0 0
        %5907 = vmatpush1.bf16.xpose.msra.mxu0 %v5904
        %5908 = vmatprep.subr.bf16.mxu0 0
        %5909 = vmatpush1.bf16.xpose.msra.mxu0 0
        %5910 = vmatprep.subr.bf16.mxu0 0
        %5911 = vmatpush1.bf16.xpose.msra.mxu0 0
        %5912 = vmatprep.subr.bf16.mxu0 0
        %5913 = vmatpush1.bf16.xpose.msra.mxu0 0
        %5914 = vmatprep.subr.bf16.mxu0 0
        %5915 = vmatpush1.bf16.xpose.msra.mxu0 0
        %5916 = vmatprep.subr.bf16.mxu0 0
        %5917 = vmatpush1.bf16.xpose.msra.mxu0 0
        %5918 = vmatprep.subr.bf16.mxu0 0
        %5919 = vmatpush1.bf16.xpose.msra.mxu0 0
        %5920 = vmatprep.subr.bf16.mxu0 0
        %5921 = vmatpush1.bf16.xpose.msra.mxu0 0
        %5922 = vmatprep.subr.bf16.mxu0 0
        %5923 = vmatpush1.bf16.xpose.msra.mxu0 0
        %5924 = vmatprep.subr.bf16.mxu0 0
        %5925 = vmatpush1.bf16.xpose.msra.mxu0 0
        %5926 = vmatprep.subr.bf16.mxu0 0
        %5927 = vmatpush1.bf16.xpose.msra.mxu0 0
        %5928 = vmatprep.subr.bf16.mxu0 0
        %5929 = vmatpush1.bf16.xpose.msra.mxu0 0
        %5930 = vmatprep.subr.bf16.mxu0 0
        %5931 = vmatpush1.bf16.xpose.msra.mxu0 0
        %5932 = vmatprep.subr.bf16.mxu0 0
        %5933 = vmatpush1.bf16.xpose.msra.mxu0 0
        %5934 = vmatprep.subr.bf16.mxu0 0
        %5935 = vmatpush1.bf16.xpose.msra.mxu0 0
        %5936 = vmatprep.subr.bf16.mxu0 0
        %5937 = vmatpush1.bf16.xpose.msra.mxu0 0
        %5938 = vmatprep.mubr.bf16.mxu0 0
        %5939 = vmatmul.mubr.bf16.gmra.mrb[0].mxu0 %v5901
        %v5940 = vpop.f32.mrb[0].mxu0
        %v5941 = vadd.f32 0.0, %v5940
        %v5942 = vpop.f32.mrb[0].mxu0
        %v5943 = vpop.f32.mrb[0].mxu0
        %v5944 = vadd.f32 0.0, %v5943
        %v5945 = vpop.f32.mrb[0].mxu0
        %5946 = vdwg.mxu0
        %v5947 = vsel %vm2074, %v5176, -inf
        %5948 = vmax.xlane.f32.xlu0 %v5947
        %v5949 = vpop.xlane.xlu0 %5948
        %v5950 = vsel %vm2074, %v5179, -inf
        %5951 = vmax.xlane.f32.xlu0 %v5950
        %v5952 = vpop.xlane.xlu0 %5951
        %v5953 = vsel %vm2074, %v5227, -inf
        %5954 = vmax.xlane.f32.xlu0 %v5953
        %v5955 = vpop.xlane.xlu0 %5954
        %v5956 = vsel %vm2074, %v5230, -inf
        %5957 = vmax.xlane.f32.xlu0 %v5956
        %v5958 = vpop.xlane.xlu0 %5957
        %v5959 = vsel %vm2074, %v5278, -inf
        %5960 = vmax.xlane.f32.xlu0 %v5959
        %v5961 = vpop.xlane.xlu0 %5960
        %v5962 = vsel %vm2074, %v5281, -inf
        %5963 = vmax.xlane.f32.xlu0 %v5962
        %v5964 = vpop.xlane.xlu0 %5963
        %v5965 = vsel %vm2074, %v5329, -inf
        %5966 = vmax.xlane.f32.xlu0 %v5965
        %v5967 = vpop.xlane.xlu0 %5966
        %v5968 = vsel %vm2074, %v5332, -inf
        %5969 = vmax.xlane.f32.xlu0 %v5968
        %v5970 = vpop.xlane.xlu0 %5969
        %v5971 = vsel %vm2074, %v5380, -inf
        %5972 = vmax.xlane.f32.xlu0 %v5971
        %v5973 = vpop.xlane.xlu0 %5972
        %v5974 = vsel %vm2074, %v5383, -inf
        %5975 = vmax.xlane.f32.xlu0 %v5974
        %v5976 = vpop.xlane.xlu0 %5975
        %v5977 = vsel %vm2074, %v5431, -inf
        %5978 = vmax.xlane.f32.xlu0 %v5977
        %v5979 = vpop.xlane.xlu0 %5978
        %v5980 = vsel %vm2074, %v5434, -inf
        %5981 = vmax.xlane.f32.xlu0 %v5980
        %v5982 = vpop.xlane.xlu0 %5981
        %v5983 = vsel %vm2074, %v5482, -inf
        %5984 = vmax.xlane.f32.xlu0 %v5983
        %v5985 = vpop.xlane.xlu0 %5984
        %v5986 = vsel %vm2074, %v5485, -inf
        %5987 = vmax.xlane.f32.xlu0 %v5986
        %v5988 = vpop.xlane.xlu0 %5987
        %v5989 = vsel %vm2074, %v5533, -inf
        %5990 = vmax.xlane.f32.xlu0 %v5989
        %v5991 = vpop.xlane.xlu0 %5990
        %v5992 = vsel %vm2074, %v5536, -inf
        %5993 = vmax.xlane.f32.xlu0 %v5992
        %v5994 = vpop.xlane.xlu0 %5993
        %v5995 = vsel %vm2074, %v5584, -inf
        %5996 = vmax.xlane.f32.xlu0 %v5995
        %v5997 = vpop.xlane.xlu0 %5996
        %v5998 = vsel %vm2074, %v5587, -inf
        %5999 = vmax.xlane.f32.xlu0 %v5998
        %v6000 = vpop.xlane.xlu0 %5999
        %v6001 = vsel %vm2074, %v5635, -inf
        %6002 = vmax.xlane.f32.xlu0 %v6001
        %v6003 = vpop.xlane.xlu0 %6002
        %v6004 = vsel %vm2074, %v5638, -inf
        %6005 = vmax.xlane.f32.xlu0 %v6004
        %v6006 = vpop.xlane.xlu0 %6005
        %v6007 = vsel %vm2074, %v5686, -inf
        %6008 = vmax.xlane.f32.xlu0 %v6007
        %v6009 = vpop.xlane.xlu0 %6008
        %v6010 = vsel %vm2074, %v5689, -inf
        %6011 = vmax.xlane.f32.xlu0 %v6010
        %v6012 = vpop.xlane.xlu0 %6011
        %v6013 = vsel %vm2074, %v5737, -inf
        %6014 = vmax.xlane.f32.xlu0 %v6013
        %v6015 = vpop.xlane.xlu0 %6014
        %v6016 = vsel %vm2074, %v5740, -inf
        %6017 = vmax.xlane.f32.xlu0 %v6016
        %v6018 = vpop.xlane.xlu0 %6017
        %v6019 = vsel %vm2074, %v5788, -inf
        %6020 = vmax.xlane.f32.xlu0 %v6019
        %v6021 = vpop.xlane.xlu0 %6020
        %v6022 = vsel %vm2074, %v5791, -inf
        %6023 = vmax.xlane.f32.xlu0 %v6022
        %v6024 = vpop.xlane.xlu0 %6023
        %v6025 = vsel %vm2074, %v5839, -inf
        %6026 = vmax.xlane.f32.xlu0 %v6025
        %v6027 = vpop.xlane.xlu0 %6026
        %v6028 = vsel %vm2074, %v5842, -inf
        %6029 = vmax.xlane.f32.xlu0 %v6028
        %v6030 = vpop.xlane.xlu0 %6029
        %v6031 = vsel %vm2074, %v5890, -inf
        %6032 = vmax.xlane.f32.xlu0 %v6031
        %v6033 = vpop.xlane.xlu0 %6032
        %v6034 = vsel %vm2074, %v5893, -inf
        %6035 = vmax.xlane.f32.xlu0 %v6034
        %v6036 = vpop.xlane.xlu0 %6035
        %v6037 = vsel %vm2074, %v5941, -inf
        %6038 = vmax.xlane.f32.xlu0 %v6037
        %v6039 = vpop.xlane.xlu0 %6038
        %v6040 = vsel %vm2074, %v5944, -inf
        %6041 = vmax.xlane.f32.xlu0 %v6040
        %v6042 = vpop.xlane.xlu0 %6041
        %v6043 = vsub.f32 %v5176, %v5949
        %v6044 = vsub.f32 %v5179, %v5952
        %v6045 = vsub.f32 %v5227, %v5955
        %v6046 = vsub.f32 %v5230, %v5958
        %v6047 = vsub.f32 %v5278, %v5961
        %v6048 = vsub.f32 %v5281, %v5964
        %v6049 = vsub.f32 %v5329, %v5967
        %v6050 = vsub.f32 %v5332, %v5970
        %v6051 = vsub.f32 %v5380, %v5973
        %v6052 = vsub.f32 %v5383, %v5976
        %v6053 = vsub.f32 %v5431, %v5979
        %v6054 = vsub.f32 %v5434, %v5982
        %v6055 = vsub.f32 %v5482, %v5985
        %v6056 = vsub.f32 %v5485, %v5988
        %v6057 = vsub.f32 %v5533, %v5991
        %v6058 = vsub.f32 %v5536, %v5994
        %v6059 = vsub.f32 %v5584, %v5997
        %v6060 = vsub.f32 %v5587, %v6000
        %v6061 = vsub.f32 %v5635, %v6003
        %v6062 = vsub.f32 %v5638, %v6006
        %v6063 = vsub.f32 %v5686, %v6009
        %v6064 = vsub.f32 %v5689, %v6012
        %v6065 = vsub.f32 %v5737, %v6015
        %v6066 = vsub.f32 %v5740, %v6018
        %v6067 = vsub.f32 %v5788, %v6021
        %v6068 = vsub.f32 %v5791, %v6024
        %v6069 = vsub.f32 %v5839, %v6027
        %v6070 = vsub.f32 %v5842, %v6030
        %v6071 = vsub.f32 %v5890, %v6033
        %v6072 = vsub.f32 %v5893, %v6036
        %v6073 = vsub.f32 %v5941, %v6039
        %v6074 = vsub.f32 %v5944, %v6042
        %v6075 = vmul.f32 %v6043, 1.442695
        %v6076 = vpow.pop %v6075
        %v6077 = vmul.f32 %v6044, 1.442695
        %v6078 = vpow.pop %v6077
        %v6079 = vmul.f32 %v6045, 1.442695
        %v6080 = vpow.pop %v6079
        %v6081 = vmul.f32 %v6046, 1.442695
        %v6082 = vpow.pop %v6081
        %v6083 = vmul.f32 %v6047, 1.442695
        %v6084 = vpow.pop %v6083
        %v6085 = vmul.f32 %v6048, 1.442695
        %v6086 = vpow.pop %v6085
        %v6087 = vmul.f32 %v6049, 1.442695
        %v6088 = vpow.pop %v6087
        %v6089 = vmul.f32 %v6050, 1.442695
        %v6090 = vpow.pop %v6089
        %v6091 = vmul.f32 %v6051, 1.442695
        %v6092 = vpow.pop %v6091
        %v6093 = vmul.f32 %v6052, 1.442695
        %v6094 = vpow.pop %v6093
        %v6095 = vmul.f32 %v6053, 1.442695
        %v6096 = vpow.pop %v6095
        %v6097 = vmul.f32 %v6054, 1.442695
        %v6098 = vpow.pop %v6097
        %v6099 = vmul.f32 %v6055, 1.442695
        %v6100 = vpow.pop %v6099
        %v6101 = vmul.f32 %v6056, 1.442695
        %v6102 = vpow.pop %v6101
        %v6103 = vmul.f32 %v6057, 1.442695
        %v6104 = vpow.pop %v6103
        %v6105 = vmul.f32 %v6058, 1.442695
        %v6106 = vpow.pop %v6105
        %v6107 = vmul.f32 %v6059, 1.442695
        %v6108 = vpow.pop %v6107
        %v6109 = vmul.f32 %v6060, 1.442695
        %v6110 = vpow.pop %v6109
        %v6111 = vmul.f32 %v6061, 1.442695
        %v6112 = vpow.pop %v6111
        %v6113 = vmul.f32 %v6062, 1.442695
        %v6114 = vpow.pop %v6113
        %v6115 = vmul.f32 %v6063, 1.442695
        %v6116 = vpow.pop %v6115
        %v6117 = vmul.f32 %v6064, 1.442695
        %v6118 = vpow.pop %v6117
        %v6119 = vmul.f32 %v6065, 1.442695
        %v6120 = vpow.pop %v6119
        %v6121 = vmul.f32 %v6066, 1.442695
        %v6122 = vpow.pop %v6121
        %v6123 = vmul.f32 %v6067, 1.442695
        %v6124 = vpow.pop %v6123
        %v6125 = vmul.f32 %v6068, 1.442695
        %v6126 = vpow.pop %v6125
        %v6127 = vmul.f32 %v6069, 1.442695
        %v6128 = vpow.pop %v6127
        %v6129 = vmul.f32 %v6070, 1.442695
        %v6130 = vpow.pop %v6129
        %v6131 = vmul.f32 %v6071, 1.442695
        %v6132 = vpow.pop %v6131
        %v6133 = vmul.f32 %v6072, 1.442695
        %v6134 = vpow.pop %v6133
        %v6135 = vmul.f32 %v6073, 1.442695
        %v6136 = vpow.pop %v6135
        %v6137 = vmul.f32 %v6074, 1.442695
        %v6138 = vpow.pop %v6137
        %v6139 = vsel %vm2074, %v6076, 0.0
        %6140 = vadd.xlane.f32.xlu0 %v6139
        %v6141 = vpop.xlane.xlu0 %6140
        %v6142 = vsel %vm2074, %v6078, 0.0
        %6143 = vadd.xlane.f32.xlu0 %v6142
        %v6144 = vpop.xlane.xlu0 %6143
        %v6145 = vsel %vm2074, %v6080, 0.0
        %6146 = vadd.xlane.f32.xlu0 %v6145
        %v6147 = vpop.xlane.xlu0 %6146
        %v6148 = vsel %vm2074, %v6082, 0.0
        %6149 = vadd.xlane.f32.xlu0 %v6148
        %v6150 = vpop.xlane.xlu0 %6149
        %v6151 = vsel %vm2074, %v6084, 0.0
        %6152 = vadd.xlane.f32.xlu0 %v6151
        %v6153 = vpop.xlane.xlu0 %6152
        %v6154 = vsel %vm2074, %v6086, 0.0
        %6155 = vadd.xlane.f32.xlu0 %v6154
        %v6156 = vpop.xlane.xlu0 %6155
        %v6157 = vsel %vm2074, %v6088, 0.0
        %6158 = vadd.xlane.f32.xlu0 %v6157
        %v6159 = vpop.xlane.xlu0 %6158
        %v6160 = vsel %vm2074, %v6090, 0.0
        %6161 = vadd.xlane.f32.xlu0 %v6160
        %v6162 = vpop.xlane.xlu0 %6161
        %v6163 = vsel %vm2074, %v6092, 0.0
        %6164 = vadd.xlane.f32.xlu0 %v6163
        %v6165 = vpop.xlane.xlu0 %6164
        %v6166 = vsel %vm2074, %v6094, 0.0
        %6167 = vadd.xlane.f32.xlu0 %v6166
        %v6168 = vpop.xlane.xlu0 %6167
        %v6169 = vsel %vm2074, %v6096, 0.0
        %6170 = vadd.xlane.f32.xlu0 %v6169
        %v6171 = vpop.xlane.xlu0 %6170
        %v6172 = vsel %vm2074, %v6098, 0.0
        %6173 = vadd.xlane.f32.xlu0 %v6172
        %v6174 = vpop.xlane.xlu0 %6173
        %v6175 = vsel %vm2074, %v6100, 0.0
        %6176 = vadd.xlane.f32.xlu0 %v6175
        %v6177 = vpop.xlane.xlu0 %6176
        %v6178 = vsel %vm2074, %v6102, 0.0
        %6179 = vadd.xlane.f32.xlu0 %v6178
        %v6180 = vpop.xlane.xlu0 %6179
        %v6181 = vsel %vm2074, %v6104, 0.0
        %6182 = vadd.xlane.f32.xlu0 %v6181
        %v6183 = vpop.xlane.xlu0 %6182
        %v6184 = vsel %vm2074, %v6106, 0.0
        %6185 = vadd.xlane.f32.xlu0 %v6184
        %v6186 = vpop.xlane.xlu0 %6185
        %v6187 = vsel %vm2074, %v6108, 0.0
        %6188 = vadd.xlane.f32.xlu0 %v6187
        %v6189 = vpop.xlane.xlu0 %6188
        %v6190 = vsel %vm2074, %v6110, 0.0
        %6191 = vadd.xlane.f32.xlu0 %v6190
        %v6192 = vpop.xlane.xlu0 %6191
        %v6193 = vsel %vm2074, %v6112, 0.0
        %6194 = vadd.xlane.f32.xlu0 %v6193
        %v6195 = vpop.xlane.xlu0 %6194
        %v6196 = vsel %vm2074, %v6114, 0.0
        %6197 = vadd.xlane.f32.xlu0 %v6196
        %v6198 = vpop.xlane.xlu0 %6197
        %v6199 = vsel %vm2074, %v6116, 0.0
        %6200 = vadd.xlane.f32.xlu0 %v6199
        %v6201 = vpop.xlane.xlu0 %6200
        %v6202 = vsel %vm2074, %v6118, 0.0
        %6203 = vadd.xlane.f32.xlu0 %v6202
        %v6204 = vpop.xlane.xlu0 %6203
        %v6205 = vsel %vm2074, %v6120, 0.0
        %6206 = vadd.xlane.f32.xlu0 %v6205
        %v6207 = vpop.xlane.xlu0 %6206
        %v6208 = vsel %vm2074, %v6122, 0.0
        %6209 = vadd.xlane.f32.xlu0 %v6208
        %v6210 = vpop.xlane.xlu0 %6209
        %v6211 = vsel %vm2074, %v6124, 0.0
        %6212 = vadd.xlane.f32.xlu0 %v6211
        %v6213 = vpop.xlane.xlu0 %6212
        %v6214 = vsel %vm2074, %v6126, 0.0
        %6215 = vadd.xlane.f32.xlu0 %v6214
        %v6216 = vpop.xlane.xlu0 %6215
        %v6217 = vsel %vm2074, %v6128, 0.0
        %6218 = vadd.xlane.f32.xlu0 %v6217
        %v6219 = vpop.xlane.xlu0 %6218
        %v6220 = vsel %vm2074, %v6130, 0.0
        %6221 = vadd.xlane.f32.xlu0 %v6220
        %v6222 = vpop.xlane.xlu0 %6221
        %v6223 = vsel %vm2074, %v6132, 0.0
        %6224 = vadd.xlane.f32.xlu0 %v6223
        %v6225 = vpop.xlane.xlu0 %6224
        %v6226 = vsel %vm2074, %v6134, 0.0
        %6227 = vadd.xlane.f32.xlu0 %v6226
        %v6228 = vpop.xlane.xlu0 %6227
        %v6229 = vsel %vm2074, %v6136, 0.0
        %6230 = vadd.xlane.f32.xlu0 %v6229
        %v6231 = vpop.xlane.xlu0 %6230
        %v6232 = vsel %vm2074, %v6138, 0.0
        %6233 = vadd.xlane.f32.xlu0 %v6232
        %v6234 = vpop.xlane.xlu0 %6233
        %v6235 = vrcp.pop %v6141
        %v6236 = vrcp.pop %v6144
        %v6237 = vrcp.pop %v6147
        %v6238 = vrcp.pop %v6150
        %v6239 = vrcp.pop %v6153
        %v6240 = vrcp.pop %v6156
        %v6241 = vrcp.pop %v6159
        %v6242 = vrcp.pop %v6162
        %v6243 = vrcp.pop %v6165
        %v6244 = vrcp.pop %v6168
        %v6245 = vrcp.pop %v6171
        %v6246 = vrcp.pop %v6174
        %v6247 = vrcp.pop %v6177
        %v6248 = vrcp.pop %v6180
        %v6249 = vrcp.pop %v6183
        %v6250 = vrcp.pop %v6186
        %v6251 = vrcp.pop %v6189
        %v6252 = vrcp.pop %v6192
        %v6253 = vrcp.pop %v6195
        %v6254 = vrcp.pop %v6198
        %v6255 = vrcp.pop %v6201
        %v6256 = vrcp.pop %v6204
        %v6257 = vrcp.pop %v6207
        %v6258 = vrcp.pop %v6210
        %v6259 = vrcp.pop %v6213
        %v6260 = vrcp.pop %v6216
        %v6261 = vrcp.pop %v6219
        %v6262 = vrcp.pop %v6222
        %v6263 = vrcp.pop %v6225
        %v6264 = vrcp.pop %v6228
        %v6265 = vrcp.pop %v6231
        %v6266 = vrcp.pop %v6234
        %v6267 = vmul.f32 %v6076, %v6235
        %v6268 = vmul.f32 %v6078, %v6236
        %v6269 = vmul.f32 %v6080, %v6237
        %v6270 = vmul.f32 %v6082, %v6238
        %v6271 = vmul.f32 %v6084, %v6239
        %v6272 = vmul.f32 %v6086, %v6240
        %v6273 = vmul.f32 %v6088, %v6241
        %v6274 = vmul.f32 %v6090, %v6242
        %v6275 = vmul.f32 %v6092, %v6243
        %v6276 = vmul.f32 %v6094, %v6244
        %v6277 = vmul.f32 %v6096, %v6245
        %v6278 = vmul.f32 %v6098, %v6246
        %v6279 = vmul.f32 %v6100, %v6247
        %v6280 = vmul.f32 %v6102, %v6248
        %v6281 = vmul.f32 %v6104, %v6249
        %v6282 = vmul.f32 %v6106, %v6250
        %v6283 = vmul.f32 %v6108, %v6251
        %v6284 = vmul.f32 %v6110, %v6252
        %v6285 = vmul.f32 %v6112, %v6253
        %v6286 = vmul.f32 %v6114, %v6254
        %v6287 = vmul.f32 %v6116, %v6255
        %v6288 = vmul.f32 %v6118, %v6256
        %v6289 = vmul.f32 %v6120, %v6257
        %v6290 = vmul.f32 %v6122, %v6258
        %v6291 = vmul.f32 %v6124, %v6259
        %v6292 = vmul.f32 %v6126, %v6260
        %v6293 = vmul.f32 %v6128, %v6261
        %v6294 = vmul.f32 %v6130, %v6262
        %v6295 = vmul.f32 %v6132, %v6263
        %v6296 = vmul.f32 %v6134, %v6264
        %v6297 = vmul.f32 %v6136, %v6265
        %v6298 = vmul.f32 %v6138, %v6266
        %v6299 = vpack.c.bf16 %v6268, %v6267
        %v6300 = vpack.c.bf16 %v6270, %v6269
        %v6301 = vpack.c.bf16 %v6272, %v6271
        %v6302 = vpack.c.bf16 %v6274, %v6273
        %v6303 = vpack.c.bf16 %v6276, %v6275
        %v6304 = vpack.c.bf16 %v6278, %v6277
        %v6305 = vpack.c.bf16 %v6280, %v6279
        %v6306 = vpack.c.bf16 %v6282, %v6281
        %v6307 = vpack.c.bf16 %v6284, %v6283
        %v6308 = vpack.c.bf16 %v6286, %v6285
        %v6309 = vpack.c.bf16 %v6288, %v6287
        %v6310 = vpack.c.bf16 %v6290, %v6289
        %v6311 = vpack.c.bf16 %v6292, %v6291
        %v6312 = vpack.c.bf16 %v6294, %v6293
        %v6313 = vpack.c.bf16 %v6296, %v6295
        %v6314 = vpack.c.bf16 %v6298, %v6297
        %6315 = vrot.lane.b32.xlu0 %v1257, 48
        %v6316 = vpop.permute.xlu0 %6315
        %v6319 = vsel %vm2074, %v6299, 0
        %6321 = vmatprep.subr.bf16.mxu0 0
        %6322 = vmatpush1.bf16.msra.mxu0 %v6316
        %6323 = vmatprep.subr.bf16.mxu0 0
        %6324 = vmatpush1.bf16.msra.mxu0 0
        %6325 = vmatprep.subr.bf16.mxu0 0
        %6326 = vmatpush1.bf16.msra.mxu0 0
        %6327 = vmatprep.subr.bf16.mxu0 0
        %6328 = vmatpush1.bf16.msra.mxu0 0
        %6329 = vmatprep.subr.bf16.mxu0 0
        %6330 = vmatpush1.bf16.msra.mxu0 0
        %6331 = vmatprep.subr.bf16.mxu0 0
        %6332 = vmatpush1.bf16.msra.mxu0 0
        %6333 = vmatprep.subr.bf16.mxu0 0
        %6334 = vmatpush1.bf16.msra.mxu0 0
        %6335 = vmatprep.subr.bf16.mxu0 0
        %6336 = vmatpush1.bf16.msra.mxu0 0
        %6337 = vmatprep.subr.bf16.mxu0 0
        %6338 = vmatpush1.bf16.msra.mxu0 0
        %6339 = vmatprep.subr.bf16.mxu0 0
        %6340 = vmatpush1.bf16.msra.mxu0 0
        %6341 = vmatprep.subr.bf16.mxu0 0
        %6342 = vmatpush1.bf16.msra.mxu0 0
        %6343 = vmatprep.subr.bf16.mxu0 0
        %6344 = vmatpush1.bf16.msra.mxu0 0
        %6345 = vmatprep.subr.bf16.mxu0 0
        %6346 = vmatpush1.bf16.msra.mxu0 0
        %6347 = vmatprep.subr.bf16.mxu0 0
        %6348 = vmatpush1.bf16.msra.mxu0 0
        %6349 = vmatprep.subr.bf16.mxu0 0
        %6350 = vmatpush1.bf16.msra.mxu0 0
        %6351 = vmatprep.subr.bf16.mxu0 0
        %6352 = vmatpush1.bf16.msra.mxu0 0
        %6353 = vmatprep.mubr.bf16.mxu0 0
        %6354 = vmatmul.mubr.bf16.gmra.mrb[0].mxu0 %v6319
        %v6355 = vpop.f32.mrb[0].mxu0
        %v6356 = vadd.f32 0.0, %v6355
        %v6357 = vpop.f32.mrb[0].mxu0
        %v6358 = vpop.f32.mrb[0].mxu0
        %v6359 = vadd.f32 0.0, %v6358
        %v6360 = vpop.f32.mrb[0].mxu0
        %6361 = vdwg.mxu0
        %6362 = vrot.lane.b32.xlu0 %v1258, 48
        %v6363 = vpop.permute.xlu0 %6362
        %v6366 = vsel %vm2074, %v6300, 0
        %6368 = vmatprep.subr.bf16.mxu0 0
        %6369 = vmatpush1.bf16.msra.mxu0 %v6363
        %6370 = vmatprep.subr.bf16.mxu0 0
        %6371 = vmatpush1.bf16.msra.mxu0 0
        %6372 = vmatprep.subr.bf16.mxu0 0
        %6373 = vmatpush1.bf16.msra.mxu0 0
        %6374 = vmatprep.subr.bf16.mxu0 0
        %6375 = vmatpush1.bf16.msra.mxu0 0
        %6376 = vmatprep.subr.bf16.mxu0 0
        %6377 = vmatpush1.bf16.msra.mxu0 0
        %6378 = vmatprep.subr.bf16.mxu0 0
        %6379 = vmatpush1.bf16.msra.mxu0 0
        %6380 = vmatprep.subr.bf16.mxu0 0
        %6381 = vmatpush1.bf16.msra.mxu0 0
        %6382 = vmatprep.subr.bf16.mxu0 0
        %6383 = vmatpush1.bf16.msra.mxu0 0
        %6384 = vmatprep.subr.bf16.mxu0 0
        %6385 = vmatpush1.bf16.msra.mxu0 0
        %6386 = vmatprep.subr.bf16.mxu0 0
        %6387 = vmatpush1.bf16.msra.mxu0 0
        %6388 = vmatprep.subr.bf16.mxu0 0
        %6389 = vmatpush1.bf16.msra.mxu0 0
        %6390 = vmatprep.subr.bf16.mxu0 0
        %6391 = vmatpush1.bf16.msra.mxu0 0
        %6392 = vmatprep.subr.bf16.mxu0 0
        %6393 = vmatpush1.bf16.msra.mxu0 0
        %6394 = vmatprep.subr.bf16.mxu0 0
        %6395 = vmatpush1.bf16.msra.mxu0 0
        %6396 = vmatprep.subr.bf16.mxu0 0
        %6397 = vmatpush1.bf16.msra.mxu0 0
        %6398 = vmatprep.subr.bf16.mxu0 0
        %6399 = vmatpush1.bf16.msra.mxu0 0
        %6400 = vmatprep.mubr.bf16.mxu0 0
        %6401 = vmatmul.mubr.bf16.gmra.mrb[0].mxu0 %v6366
        %v6402 = vpop.f32.mrb[0].mxu0
        %v6403 = vadd.f32 0.0, %v6402
        %v6404 = vpop.f32.mrb[0].mxu0
        %v6405 = vpop.f32.mrb[0].mxu0
        %v6406 = vadd.f32 0.0, %v6405
        %v6407 = vpop.f32.mrb[0].mxu0
        %6408 = vdwg.mxu0
        %6409 = vrot.lane.b32.xlu0 %v1259, 48
        %v6410 = vpop.permute.xlu0 %6409
        %v6413 = vsel %vm2074, %v6301, 0
        %6415 = vmatprep.subr.bf16.mxu0 0
        %6416 = vmatpush1.bf16.msra.mxu0 %v6410
        %6417 = vmatprep.subr.bf16.mxu0 0
        %6418 = vmatpush1.bf16.msra.mxu0 0
        %6419 = vmatprep.subr.bf16.mxu0 0
        %6420 = vmatpush1.bf16.msra.mxu0 0
        %6421 = vmatprep.subr.bf16.mxu0 0
        %6422 = vmatpush1.bf16.msra.mxu0 0
        %6423 = vmatprep.subr.bf16.mxu0 0
        %6424 = vmatpush1.bf16.msra.mxu0 0
        %6425 = vmatprep.subr.bf16.mxu0 0
        %6426 = vmatpush1.bf16.msra.mxu0 0
        %6427 = vmatprep.subr.bf16.mxu0 0
        %6428 = vmatpush1.bf16.msra.mxu0 0
        %6429 = vmatprep.subr.bf16.mxu0 0
        %6430 = vmatpush1.bf16.msra.mxu0 0
        %6431 = vmatprep.subr.bf16.mxu0 0
        %6432 = vmatpush1.bf16.msra.mxu0 0
        %6433 = vmatprep.subr.bf16.mxu0 0
        %6434 = vmatpush1.bf16.msra.mxu0 0
        %6435 = vmatprep.subr.bf16.mxu0 0
        %6436 = vmatpush1.bf16.msra.mxu0 0
        %6437 = vmatprep.subr.bf16.mxu0 0
        %6438 = vmatpush1.bf16.msra.mxu0 0
        %6439 = vmatprep.subr.bf16.mxu0 0
        %6440 = vmatpush1.bf16.msra.mxu0 0
        %6441 = vmatprep.subr.bf16.mxu0 0
        %6442 = vmatpush1.bf16.msra.mxu0 0
        %6443 = vmatprep.subr.bf16.mxu0 0
        %6444 = vmatpush1.bf16.msra.mxu0 0
        %6445 = vmatprep.subr.bf16.mxu0 0
        %6446 = vmatpush1.bf16.msra.mxu0 0
        %6447 = vmatprep.mubr.bf16.mxu0 0
        %6448 = vmatmul.mubr.bf16.gmra.mrb[0].mxu0 %v6413
        %v6449 = vpop.f32.mrb[0].mxu0
        %v6450 = vadd.f32 0.0, %v6449
        %v6451 = vpop.f32.mrb[0].mxu0
        %v6452 = vpop.f32.mrb[0].mxu0
        %v6453 = vadd.f32 0.0, %v6452
        %v6454 = vpop.f32.mrb[0].mxu0
        %6455 = vdwg.mxu0
        %6456 = vrot.lane.b32.xlu0 %v1260, 48
        %v6457 = vpop.permute.xlu0 %6456
        %v6460 = vsel %vm2074, %v6302, 0
        %6462 = vmatprep.subr.bf16.mxu0 0
        %6463 = vmatpush1.bf16.msra.mxu0 %v6457
        %6464 = vmatprep.subr.bf16.mxu0 0
        %6465 = vmatpush1.bf16.msra.mxu0 0
        %6466 = vmatprep.subr.bf16.mxu0 0
        %6467 = vmatpush1.bf16.msra.mxu0 0
        %6468 = vmatprep.subr.bf16.mxu0 0
        %6469 = vmatpush1.bf16.msra.mxu0 0
        %6470 = vmatprep.subr.bf16.mxu0 0
        %6471 = vmatpush1.bf16.msra.mxu0 0
        %6472 = vmatprep.subr.bf16.mxu0 0
        %6473 = vmatpush1.bf16.msra.mxu0 0
        %6474 = vmatprep.subr.bf16.mxu0 0
        %6475 = vmatpush1.bf16.msra.mxu0 0
        %6476 = vmatprep.subr.bf16.mxu0 0
        %6477 = vmatpush1.bf16.msra.mxu0 0
        %6478 = vmatprep.subr.bf16.mxu0 0
        %6479 = vmatpush1.bf16.msra.mxu0 0
        %6480 = vmatprep.subr.bf16.mxu0 0
        %6481 = vmatpush1.bf16.msra.mxu0 0
        %6482 = vmatprep.subr.bf16.mxu0 0
        %6483 = vmatpush1.bf16.msra.mxu0 0
        %6484 = vmatprep.subr.bf16.mxu0 0
        %6485 = vmatpush1.bf16.msra.mxu0 0
        %6486 = vmatprep.subr.bf16.mxu0 0
        %6487 = vmatpush1.bf16.msra.mxu0 0
        %6488 = vmatprep.subr.bf16.mxu0 0
        %6489 = vmatpush1.bf16.msra.mxu0 0
        %6490 = vmatprep.subr.bf16.mxu0 0
        %6491 = vmatpush1.bf16.msra.mxu0 0
        %6492 = vmatprep.subr.bf16.mxu0 0
        %6493 = vmatpush1.bf16.msra.mxu0 0
        %6494 = vmatprep.mubr.bf16.mxu0 0
        %6495 = vmatmul.mubr.bf16.gmra.mrb[0].mxu0 %v6460
        %v6496 = vpop.f32.mrb[0].mxu0
        %v6497 = vadd.f32 0.0, %v6496
        %v6498 = vpop.f32.mrb[0].mxu0
        %v6499 = vpop.f32.mrb[0].mxu0
        %v6500 = vadd.f32 0.0, %v6499
        %v6501 = vpop.f32.mrb[0].mxu0
        %6502 = vdwg.mxu0
        %6503 = vrot.lane.b32.xlu0 %v1261, 48
        %v6504 = vpop.permute.xlu0 %6503
        %v6507 = vsel %vm2074, %v6303, 0
        %6509 = vmatprep.subr.bf16.mxu0 0
        %6510 = vmatpush1.bf16.msra.mxu0 %v6504
        %6511 = vmatprep.subr.bf16.mxu0 0
        %6512 = vmatpush1.bf16.msra.mxu0 0
        %6513 = vmatprep.subr.bf16.mxu0 0
        %6514 = vmatpush1.bf16.msra.mxu0 0
        %6515 = vmatprep.subr.bf16.mxu0 0
        %6516 = vmatpush1.bf16.msra.mxu0 0
        %6517 = vmatprep.subr.bf16.mxu0 0
        %6518 = vmatpush1.bf16.msra.mxu0 0
        %6519 = vmatprep.subr.bf16.mxu0 0
        %6520 = vmatpush1.bf16.msra.mxu0 0
        %6521 = vmatprep.subr.bf16.mxu0 0
        %6522 = vmatpush1.bf16.msra.mxu0 0
        %6523 = vmatprep.subr.bf16.mxu0 0
        %6524 = vmatpush1.bf16.msra.mxu0 0
        %6525 = vmatprep.subr.bf16.mxu0 0
        %6526 = vmatpush1.bf16.msra.mxu0 0
        %6527 = vmatprep.subr.bf16.mxu0 0
        %6528 = vmatpush1.bf16.msra.mxu0 0
        %6529 = vmatprep.subr.bf16.mxu0 0
        %6530 = vmatpush1.bf16.msra.mxu0 0
        %6531 = vmatprep.subr.bf16.mxu0 0
        %6532 = vmatpush1.bf16.msra.mxu0 0
        %6533 = vmatprep.subr.bf16.mxu0 0
        %6534 = vmatpush1.bf16.msra.mxu0 0
        %6535 = vmatprep.subr.bf16.mxu0 0
        %6536 = vmatpush1.bf16.msra.mxu0 0
        %6537 = vmatprep.subr.bf16.mxu0 0
        %6538 = vmatpush1.bf16.msra.mxu0 0
        %6539 = vmatprep.subr.bf16.mxu0 0
        %6540 = vmatpush1.bf16.msra.mxu0 0
        %6541 = vmatprep.mubr.bf16.mxu0 0
        %6542 = vmatmul.mubr.bf16.gmra.mrb[0].mxu0 %v6507
        %v6543 = vpop.f32.mrb[0].mxu0
        %v6544 = vadd.f32 0.0, %v6543
        %v6545 = vpop.f32.mrb[0].mxu0
        %v6546 = vpop.f32.mrb[0].mxu0
        %v6547 = vadd.f32 0.0, %v6546
        %v6548 = vpop.f32.mrb[0].mxu0
        %6549 = vdwg.mxu0
        %6550 = vrot.lane.b32.xlu0 %v1262, 48
        %v6551 = vpop.permute.xlu0 %6550
        %v6554 = vsel %vm2074, %v6304, 0
        %6556 = vmatprep.subr.bf16.mxu0 0
        %6557 = vmatpush1.bf16.msra.mxu0 %v6551
        %6558 = vmatprep.subr.bf16.mxu0 0
        %6559 = vmatpush1.bf16.msra.mxu0 0
        %6560 = vmatprep.subr.bf16.mxu0 0
        %6561 = vmatpush1.bf16.msra.mxu0 0
        %6562 = vmatprep.subr.bf16.mxu0 0
        %6563 = vmatpush1.bf16.msra.mxu0 0
        %6564 = vmatprep.subr.bf16.mxu0 0
        %6565 = vmatpush1.bf16.msra.mxu0 0
        %6566 = vmatprep.subr.bf16.mxu0 0
        %6567 = vmatpush1.bf16.msra.mxu0 0
        %6568 = vmatprep.subr.bf16.mxu0 0
        %6569 = vmatpush1.bf16.msra.mxu0 0
        %6570 = vmatprep.subr.bf16.mxu0 0
        %6571 = vmatpush1.bf16.msra.mxu0 0
        %6572 = vmatprep.subr.bf16.mxu0 0
        %6573 = vmatpush1.bf16.msra.mxu0 0
        %6574 = vmatprep.subr.bf16.mxu0 0
        %6575 = vmatpush1.bf16.msra.mxu0 0
        %6576 = vmatprep.subr.bf16.mxu0 0
        %6577 = vmatpush1.bf16.msra.mxu0 0
        %6578 = vmatprep.subr.bf16.mxu0 0
        %6579 = vmatpush1.bf16.msra.mxu0 0
        %6580 = vmatprep.subr.bf16.mxu0 0
        %6581 = vmatpush1.bf16.msra.mxu0 0
        %6582 = vmatprep.subr.bf16.mxu0 0
        %6583 = vmatpush1.bf16.msra.mxu0 0
        %6584 = vmatprep.subr.bf16.mxu0 0
        %6585 = vmatpush1.bf16.msra.mxu0 0
        %6586 = vmatprep.subr.bf16.mxu0 0
        %6587 = vmatpush1.bf16.msra.mxu0 0
        %6588 = vmatprep.mubr.bf16.mxu0 0
        %6589 = vmatmul.mubr.bf16.gmra.mrb[0].mxu0 %v6554
        %v6590 = vpop.f32.mrb[0].mxu0
        %v6591 = vadd.f32 0.0, %v6590
        %v6592 = vpop.f32.mrb[0].mxu0
        %v6593 = vpop.f32.mrb[0].mxu0
        %v6594 = vadd.f32 0.0, %v6593
        %v6595 = vpop.f32.mrb[0].mxu0
        %6596 = vdwg.mxu0
        %6597 = vrot.lane.b32.xlu0 %v1263, 48
        %v6598 = vpop.permute.xlu0 %6597
        %v6601 = vsel %vm2074, %v6305, 0
        %6603 = vmatprep.subr.bf16.mxu0 0
        %6604 = vmatpush1.bf16.msra.mxu0 %v6598
        %6605 = vmatprep.subr.bf16.mxu0 0
        %6606 = vmatpush1.bf16.msra.mxu0 0
        %6607 = vmatprep.subr.bf16.mxu0 0
        %6608 = vmatpush1.bf16.msra.mxu0 0
        %6609 = vmatprep.subr.bf16.mxu0 0
        %6610 = vmatpush1.bf16.msra.mxu0 0
        %6611 = vmatprep.subr.bf16.mxu0 0
        %6612 = vmatpush1.bf16.msra.mxu0 0
        %6613 = vmatprep.subr.bf16.mxu0 0
        %6614 = vmatpush1.bf16.msra.mxu0 0
        %6615 = vmatprep.subr.bf16.mxu0 0
        %6616 = vmatpush1.bf16.msra.mxu0 0
        %6617 = vmatprep.subr.bf16.mxu0 0
        %6618 = vmatpush1.bf16.msra.mxu0 0
        %6619 = vmatprep.subr.bf16.mxu0 0
        %6620 = vmatpush1.bf16.msra.mxu0 0
        %6621 = vmatprep.subr.bf16.mxu0 0
        %6622 = vmatpush1.bf16.msra.mxu0 0
        %6623 = vmatprep.subr.bf16.mxu0 0
        %6624 = vmatpush1.bf16.msra.mxu0 0
        %6625 = vmatprep.subr.bf16.mxu0 0
        %6626 = vmatpush1.bf16.msra.mxu0 0
        %6627 = vmatprep.subr.bf16.mxu0 0
        %6628 = vmatpush1.bf16.msra.mxu0 0
        %6629 = vmatprep.subr.bf16.mxu0 0
        %6630 = vmatpush1.bf16.msra.mxu0 0
        %6631 = vmatprep.subr.bf16.mxu0 0
        %6632 = vmatpush1.bf16.msra.mxu0 0
        %6633 = vmatprep.subr.bf16.mxu0 0
        %6634 = vmatpush1.bf16.msra.mxu0 0
        %6635 = vmatprep.mubr.bf16.mxu0 0
        %6636 = vmatmul.mubr.bf16.gmra.mrb[0].mxu0 %v6601
        %v6637 = vpop.f32.mrb[0].mxu0
        %v6638 = vadd.f32 0.0, %v6637
        %v6639 = vpop.f32.mrb[0].mxu0
        %v6640 = vpop.f32.mrb[0].mxu0
        %v6641 = vadd.f32 0.0, %v6640
        %v6642 = vpop.f32.mrb[0].mxu0
        %6643 = vdwg.mxu0
        %6644 = vrot.lane.b32.xlu0 %v1264, 48
        %v6645 = vpop.permute.xlu0 %6644
        %v6648 = vsel %vm2074, %v6306, 0
        %6650 = vmatprep.subr.bf16.mxu0 0
        %6651 = vmatpush1.bf16.msra.mxu0 %v6645
        %6652 = vmatprep.subr.bf16.mxu0 0
        %6653 = vmatpush1.bf16.msra.mxu0 0
        %6654 = vmatprep.subr.bf16.mxu0 0
        %6655 = vmatpush1.bf16.msra.mxu0 0
        %6656 = vmatprep.subr.bf16.mxu0 0
        %6657 = vmatpush1.bf16.msra.mxu0 0
        %6658 = vmatprep.subr.bf16.mxu0 0
        %6659 = vmatpush1.bf16.msra.mxu0 0
        %6660 = vmatprep.subr.bf16.mxu0 0
        %6661 = vmatpush1.bf16.msra.mxu0 0
        %6662 = vmatprep.subr.bf16.mxu0 0
        %6663 = vmatpush1.bf16.msra.mxu0 0
        %6664 = vmatprep.subr.bf16.mxu0 0
        %6665 = vmatpush1.bf16.msra.mxu0 0
        %6666 = vmatprep.subr.bf16.mxu0 0
        %6667 = vmatpush1.bf16.msra.mxu0 0
        %6668 = vmatprep.subr.bf16.mxu0 0
        %6669 = vmatpush1.bf16.msra.mxu0 0
        %6670 = vmatprep.subr.bf16.mxu0 0
        %6671 = vmatpush1.bf16.msra.mxu0 0
        %6672 = vmatprep.subr.bf16.mxu0 0
        %6673 = vmatpush1.bf16.msra.mxu0 0
        %6674 = vmatprep.subr.bf16.mxu0 0
        %6675 = vmatpush1.bf16.msra.mxu0 0
        %6676 = vmatprep.subr.bf16.mxu0 0
        %6677 = vmatpush1.bf16.msra.mxu0 0
        %6678 = vmatprep.subr.bf16.mxu0 0
        %6679 = vmatpush1.bf16.msra.mxu0 0
        %6680 = vmatprep.subr.bf16.mxu0 0
        %6681 = vmatpush1.bf16.msra.mxu0 0
        %6682 = vmatprep.mubr.bf16.mxu0 0
        %6683 = vmatmul.mubr.bf16.gmra.mrb[0].mxu0 %v6648
        %v6684 = vpop.f32.mrb[0].mxu0
        %v6685 = vadd.f32 0.0, %v6684
        %v6686 = vpop.f32.mrb[0].mxu0
        %v6687 = vpop.f32.mrb[0].mxu0
        %v6688 = vadd.f32 0.0, %v6687
        %v6689 = vpop.f32.mrb[0].mxu0
        %6690 = vdwg.mxu0
        %6691 = vrot.lane.b32.xlu0 %v1265, 48
        %v6692 = vpop.permute.xlu0 %6691
        %v6695 = vsel %vm2074, %v6307, 0
        %6697 = vmatprep.subr.bf16.mxu0 0
        %6698 = vmatpush1.bf16.msra.mxu0 %v6692
        %6699 = vmatprep.subr.bf16.mxu0 0
        %6700 = vmatpush1.bf16.msra.mxu0 0
        %6701 = vmatprep.subr.bf16.mxu0 0
        %6702 = vmatpush1.bf16.msra.mxu0 0
        %6703 = vmatprep.subr.bf16.mxu0 0
        %6704 = vmatpush1.bf16.msra.mxu0 0
        %6705 = vmatprep.subr.bf16.mxu0 0
        %6706 = vmatpush1.bf16.msra.mxu0 0
        %6707 = vmatprep.subr.bf16.mxu0 0
        %6708 = vmatpush1.bf16.msra.mxu0 0
        %6709 = vmatprep.subr.bf16.mxu0 0
        %6710 = vmatpush1.bf16.msra.mxu0 0
        %6711 = vmatprep.subr.bf16.mxu0 0
        %6712 = vmatpush1.bf16.msra.mxu0 0
        %6713 = vmatprep.subr.bf16.mxu0 0
        %6714 = vmatpush1.bf16.msra.mxu0 0
        %6715 = vmatprep.subr.bf16.mxu0 0
        %6716 = vmatpush1.bf16.msra.mxu0 0
        %6717 = vmatprep.subr.bf16.mxu0 0
        %6718 = vmatpush1.bf16.msra.mxu0 0
        %6719 = vmatprep.subr.bf16.mxu0 0
        %6720 = vmatpush1.bf16.msra.mxu0 0
        %6721 = vmatprep.subr.bf16.mxu0 0
        %6722 = vmatpush1.bf16.msra.mxu0 0
        %6723 = vmatprep.subr.bf16.mxu0 0
        %6724 = vmatpush1.bf16.msra.mxu0 0
        %6725 = vmatprep.subr.bf16.mxu0 0
        %6726 = vmatpush1.bf16.msra.mxu0 0
        %6727 = vmatprep.subr.bf16.mxu0 0
        %6728 = vmatpush1.bf16.msra.mxu0 0
        %6729 = vmatprep.mubr.bf16.mxu0 0
        %6730 = vmatmul.mubr.bf16.gmra.mrb[0].mxu0 %v6695
        %v6731 = vpop.f32.mrb[0].mxu0
        %v6732 = vadd.f32 0.0, %v6731
        %v6733 = vpop.f32.mrb[0].mxu0
        %v6734 = vpop.f32.mrb[0].mxu0
        %v6735 = vadd.f32 0.0, %v6734
        %v6736 = vpop.f32.mrb[0].mxu0
        %6737 = vdwg.mxu0
        %6738 = vrot.lane.b32.xlu0 %v1266, 48
        %v6739 = vpop.permute.xlu0 %6738
        %v6742 = vsel %vm2074, %v6308, 0
        %6744 = vmatprep.subr.bf16.mxu0 0
        %6745 = vmatpush1.bf16.msra.mxu0 %v6739
        %6746 = vmatprep.subr.bf16.mxu0 0
        %6747 = vmatpush1.bf16.msra.mxu0 0
        %6748 = vmatprep.subr.bf16.mxu0 0
        %6749 = vmatpush1.bf16.msra.mxu0 0
        %6750 = vmatprep.subr.bf16.mxu0 0
        %6751 = vmatpush1.bf16.msra.mxu0 0
        %6752 = vmatprep.subr.bf16.mxu0 0
        %6753 = vmatpush1.bf16.msra.mxu0 0
        %6754 = vmatprep.subr.bf16.mxu0 0
        %6755 = vmatpush1.bf16.msra.mxu0 0
        %6756 = vmatprep.subr.bf16.mxu0 0
        %6757 = vmatpush1.bf16.msra.mxu0 0
        %6758 = vmatprep.subr.bf16.mxu0 0
        %6759 = vmatpush1.bf16.msra.mxu0 0
        %6760 = vmatprep.subr.bf16.mxu0 0
        %6761 = vmatpush1.bf16.msra.mxu0 0
        %6762 = vmatprep.subr.bf16.mxu0 0
        %6763 = vmatpush1.bf16.msra.mxu0 0
        %6764 = vmatprep.subr.bf16.mxu0 0
        %6765 = vmatpush1.bf16.msra.mxu0 0
        %6766 = vmatprep.subr.bf16.mxu0 0
        %6767 = vmatpush1.bf16.msra.mxu0 0
        %6768 = vmatprep.subr.bf16.mxu0 0
        %6769 = vmatpush1.bf16.msra.mxu0 0
        %6770 = vmatprep.subr.bf16.mxu0 0
        %6771 = vmatpush1.bf16.msra.mxu0 0
        %6772 = vmatprep.subr.bf16.mxu0 0
        %6773 = vmatpush1.bf16.msra.mxu0 0
        %6774 = vmatprep.subr.bf16.mxu0 0
        %6775 = vmatpush1.bf16.msra.mxu0 0
        %6776 = vmatprep.mubr.bf16.mxu0 0
        %6777 = vmatmul.mubr.bf16.gmra.mrb[0].mxu0 %v6742
        %v6778 = vpop.f32.mrb[0].mxu0
        %v6779 = vadd.f32 0.0, %v6778
        %v6780 = vpop.f32.mrb[0].mxu0
        %v6781 = vpop.f32.mrb[0].mxu0
        %v6782 = vadd.f32 0.0, %v6781
        %v6783 = vpop.f32.mrb[0].mxu0
        %6784 = vdwg.mxu0
        %6785 = vrot.lane.b32.xlu0 %v1267, 48
        %v6786 = vpop.permute.xlu0 %6785
        %v6789 = vsel %vm2074, %v6309, 0
        %6791 = vmatprep.subr.bf16.mxu0 0
        %6792 = vmatpush1.bf16.msra.mxu0 %v6786
        %6793 = vmatprep.subr.bf16.mxu0 0
        %6794 = vmatpush1.bf16.msra.mxu0 0
        %6795 = vmatprep.subr.bf16.mxu0 0
        %6796 = vmatpush1.bf16.msra.mxu0 0
        %6797 = vmatprep.subr.bf16.mxu0 0
        %6798 = vmatpush1.bf16.msra.mxu0 0
        %6799 = vmatprep.subr.bf16.mxu0 0
        %6800 = vmatpush1.bf16.msra.mxu0 0
        %6801 = vmatprep.subr.bf16.mxu0 0
        %6802 = vmatpush1.bf16.msra.mxu0 0
        %6803 = vmatprep.subr.bf16.mxu0 0
        %6804 = vmatpush1.bf16.msra.mxu0 0
        %6805 = vmatprep.subr.bf16.mxu0 0
        %6806 = vmatpush1.bf16.msra.mxu0 0
        %6807 = vmatprep.subr.bf16.mxu0 0
        %6808 = vmatpush1.bf16.msra.mxu0 0
        %6809 = vmatprep.subr.bf16.mxu0 0
        %6810 = vmatpush1.bf16.msra.mxu0 0
        %6811 = vmatprep.subr.bf16.mxu0 0
        %6812 = vmatpush1.bf16.msra.mxu0 0
        %6813 = vmatprep.subr.bf16.mxu0 0
        %6814 = vmatpush1.bf16.msra.mxu0 0
        %6815 = vmatprep.subr.bf16.mxu0 0
        %6816 = vmatpush1.bf16.msra.mxu0 0
        %6817 = vmatprep.subr.bf16.mxu0 0
        %6818 = vmatpush1.bf16.msra.mxu0 0
        %6819 = vmatprep.subr.bf16.mxu0 0
        %6820 = vmatpush1.bf16.msra.mxu0 0
        %6821 = vmatprep.subr.bf16.mxu0 0
        %6822 = vmatpush1.bf16.msra.mxu0 0
        %6823 = vmatprep.mubr.bf16.mxu0 0
        %6824 = vmatmul.mubr.bf16.gmra.mrb[0].mxu0 %v6789
        %v6825 = vpop.f32.mrb[0].mxu0
        %v6826 = vadd.f32 0.0, %v6825
        %v6827 = vpop.f32.mrb[0].mxu0
        %v6828 = vpop.f32.mrb[0].mxu0
        %v6829 = vadd.f32 0.0, %v6828
        %v6830 = vpop.f32.mrb[0].mxu0
        %6831 = vdwg.mxu0
        %6832 = vrot.lane.b32.xlu0 %v1268, 48
        %v6833 = vpop.permute.xlu0 %6832
        %v6836 = vsel %vm2074, %v6310, 0
        %6838 = vmatprep.subr.bf16.mxu0 0
        %6839 = vmatpush1.bf16.msra.mxu0 %v6833
        %6840 = vmatprep.subr.bf16.mxu0 0
        %6841 = vmatpush1.bf16.msra.mxu0 0
        %6842 = vmatprep.subr.bf16.mxu0 0
        %6843 = vmatpush1.bf16.msra.mxu0 0
        %6844 = vmatprep.subr.bf16.mxu0 0
        %6845 = vmatpush1.bf16.msra.mxu0 0
        %6846 = vmatprep.subr.bf16.mxu0 0
        %6847 = vmatpush1.bf16.msra.mxu0 0
        %6848 = vmatprep.subr.bf16.mxu0 0
        %6849 = vmatpush1.bf16.msra.mxu0 0
        %6850 = vmatprep.subr.bf16.mxu0 0
        %6851 = vmatpush1.bf16.msra.mxu0 0
        %6852 = vmatprep.subr.bf16.mxu0 0
        %6853 = vmatpush1.bf16.msra.mxu0 0
        %6854 = vmatprep.subr.bf16.mxu0 0
        %6855 = vmatpush1.bf16.msra.mxu0 0
        %6856 = vmatprep.subr.bf16.mxu0 0
        %6857 = vmatpush1.bf16.msra.mxu0 0
        %6858 = vmatprep.subr.bf16.mxu0 0
        %6859 = vmatpush1.bf16.msra.mxu0 0
        %6860 = vmatprep.subr.bf16.mxu0 0
        %6861 = vmatpush1.bf16.msra.mxu0 0
        %6862 = vmatprep.subr.bf16.mxu0 0
        %6863 = vmatpush1.bf16.msra.mxu0 0
        %6864 = vmatprep.subr.bf16.mxu0 0
        %6865 = vmatpush1.bf16.msra.mxu0 0
        %6866 = vmatprep.subr.bf16.mxu0 0
        %6867 = vmatpush1.bf16.msra.mxu0 0
        %6868 = vmatprep.subr.bf16.mxu0 0
        %6869 = vmatpush1.bf16.msra.mxu0 0
        %6870 = vmatprep.mubr.bf16.mxu0 0
        %6871 = vmatmul.mubr.bf16.gmra.mrb[0].mxu0 %v6836
        %v6872 = vpop.f32.mrb[0].mxu0
        %v6873 = vadd.f32 0.0, %v6872
        %v6874 = vpop.f32.mrb[0].mxu0
        %v6875 = vpop.f32.mrb[0].mxu0
        %v6876 = vadd.f32 0.0, %v6875
        %v6877 = vpop.f32.mrb[0].mxu0
        %6878 = vdwg.mxu0
        %6879 = vrot.lane.b32.xlu0 %v1269, 48
        %v6880 = vpop.permute.xlu0 %6879
        %v6883 = vsel %vm2074, %v6311, 0
        %6885 = vmatprep.subr.bf16.mxu0 0
        %6886 = vmatpush1.bf16.msra.mxu0 %v6880
        %6887 = vmatprep.subr.bf16.mxu0 0
        %6888 = vmatpush1.bf16.msra.mxu0 0
        %6889 = vmatprep.subr.bf16.mxu0 0
        %6890 = vmatpush1.bf16.msra.mxu0 0
        %6891 = vmatprep.subr.bf16.mxu0 0
        %6892 = vmatpush1.bf16.msra.mxu0 0
        %6893 = vmatprep.subr.bf16.mxu0 0
        %6894 = vmatpush1.bf16.msra.mxu0 0
        %6895 = vmatprep.subr.bf16.mxu0 0
        %6896 = vmatpush1.bf16.msra.mxu0 0
        %6897 = vmatprep.subr.bf16.mxu0 0
        %6898 = vmatpush1.bf16.msra.mxu0 0
        %6899 = vmatprep.subr.bf16.mxu0 0
        %6900 = vmatpush1.bf16.msra.mxu0 0
        %6901 = vmatprep.subr.bf16.mxu0 0
        %6902 = vmatpush1.bf16.msra.mxu0 0
        %6903 = vmatprep.subr.bf16.mxu0 0
        %6904 = vmatpush1.bf16.msra.mxu0 0
        %6905 = vmatprep.subr.bf16.mxu0 0
        %6906 = vmatpush1.bf16.msra.mxu0 0
        %6907 = vmatprep.subr.bf16.mxu0 0
        %6908 = vmatpush1.bf16.msra.mxu0 0
        %6909 = vmatprep.subr.bf16.mxu0 0
        %6910 = vmatpush1.bf16.msra.mxu0 0
        %6911 = vmatprep.subr.bf16.mxu0 0
        %6912 = vmatpush1.bf16.msra.mxu0 0
        %6913 = vmatprep.subr.bf16.mxu0 0
        %6914 = vmatpush1.bf16.msra.mxu0 0
        %6915 = vmatprep.subr.bf16.mxu0 0
        %6916 = vmatpush1.bf16.msra.mxu0 0
        %6917 = vmatprep.mubr.bf16.mxu0 0
        %6918 = vmatmul.mubr.bf16.gmra.mrb[0].mxu0 %v6883
        %v6919 = vpop.f32.mrb[0].mxu0
        %v6920 = vadd.f32 0.0, %v6919
        %v6921 = vpop.f32.mrb[0].mxu0
        %v6922 = vpop.f32.mrb[0].mxu0
        %v6923 = vadd.f32 0.0, %v6922
        %v6924 = vpop.f32.mrb[0].mxu0
        %6925 = vdwg.mxu0
        %6926 = vrot.lane.b32.xlu0 %v1270, 48
        %v6927 = vpop.permute.xlu0 %6926
        %v6930 = vsel %vm2074, %v6312, 0
        %6932 = vmatprep.subr.bf16.mxu0 0
        %6933 = vmatpush1.bf16.msra.mxu0 %v6927
        %6934 = vmatprep.subr.bf16.mxu0 0
        %6935 = vmatpush1.bf16.msra.mxu0 0
        %6936 = vmatprep.subr.bf16.mxu0 0
        %6937 = vmatpush1.bf16.msra.mxu0 0
        %6938 = vmatprep.subr.bf16.mxu0 0
        %6939 = vmatpush1.bf16.msra.mxu0 0
        %6940 = vmatprep.subr.bf16.mxu0 0
        %6941 = vmatpush1.bf16.msra.mxu0 0
        %6942 = vmatprep.subr.bf16.mxu0 0
        %6943 = vmatpush1.bf16.msra.mxu0 0
        %6944 = vmatprep.subr.bf16.mxu0 0
        %6945 = vmatpush1.bf16.msra.mxu0 0
        %6946 = vmatprep.subr.bf16.mxu0 0
        %6947 = vmatpush1.bf16.msra.mxu0 0
        %6948 = vmatprep.subr.bf16.mxu0 0
        %6949 = vmatpush1.bf16.msra.mxu0 0
        %6950 = vmatprep.subr.bf16.mxu0 0
        %6951 = vmatpush1.bf16.msra.mxu0 0
        %6952 = vmatprep.subr.bf16.mxu0 0
        %6953 = vmatpush1.bf16.msra.mxu0 0
        %6954 = vmatprep.subr.bf16.mxu0 0
        %6955 = vmatpush1.bf16.msra.mxu0 0
        %6956 = vmatprep.subr.bf16.mxu0 0
        %6957 = vmatpush1.bf16.msra.mxu0 0
        %6958 = vmatprep.subr.bf16.mxu0 0
        %6959 = vmatpush1.bf16.msra.mxu0 0
        %6960 = vmatprep.subr.bf16.mxu0 0
        %6961 = vmatpush1.bf16.msra.mxu0 0
        %6962 = vmatprep.subr.bf16.mxu0 0
        %6963 = vmatpush1.bf16.msra.mxu0 0
        %6964 = vmatprep.mubr.bf16.mxu0 0
        %6965 = vmatmul.mubr.bf16.gmra.mrb[0].mxu0 %v6930
        %v6966 = vpop.f32.mrb[0].mxu0
        %v6967 = vadd.f32 0.0, %v6966
        %v6968 = vpop.f32.mrb[0].mxu0
        %v6969 = vpop.f32.mrb[0].mxu0
        %v6970 = vadd.f32 0.0, %v6969
        %v6971 = vpop.f32.mrb[0].mxu0
        %6972 = vdwg.mxu0
        %6973 = vrot.lane.b32.xlu0 %v1271, 48
        %v6974 = vpop.permute.xlu0 %6973
        %v6977 = vsel %vm2074, %v6313, 0
        %6979 = vmatprep.subr.bf16.mxu0 0
        %6980 = vmatpush1.bf16.msra.mxu0 %v6974
        %6981 = vmatprep.subr.bf16.mxu0 0
        %6982 = vmatpush1.bf16.msra.mxu0 0
        %6983 = vmatprep.subr.bf16.mxu0 0
        %6984 = vmatpush1.bf16.msra.mxu0 0
        %6985 = vmatprep.subr.bf16.mxu0 0
        %6986 = vmatpush1.bf16.msra.mxu0 0
        %6987 = vmatprep.subr.bf16.mxu0 0
        %6988 = vmatpush1.bf16.msra.mxu0 0
        %6989 = vmatprep.subr.bf16.mxu0 0
        %6990 = vmatpush1.bf16.msra.mxu0 0
        %6991 = vmatprep.subr.bf16.mxu0 0
        %6992 = vmatpush1.bf16.msra.mxu0 0
        %6993 = vmatprep.subr.bf16.mxu0 0
        %6994 = vmatpush1.bf16.msra.mxu0 0
        %6995 = vmatprep.subr.bf16.mxu0 0
        %6996 = vmatpush1.bf16.msra.mxu0 0
        %6997 = vmatprep.subr.bf16.mxu0 0
        %6998 = vmatpush1.bf16.msra.mxu0 0
        %6999 = vmatprep.subr.bf16.mxu0 0
        %7000 = vmatpush1.bf16.msra.mxu0 0
        %7001 = vmatprep.subr.bf16.mxu0 0
        %7002 = vmatpush1.bf16.msra.mxu0 0
        %7003 = vmatprep.subr.bf16.mxu0 0
        %7004 = vmatpush1.bf16.msra.mxu0 0
        %7005 = vmatprep.subr.bf16.mxu0 0
        %7006 = vmatpush1.bf16.msra.mxu0 0
        %7007 = vmatprep.subr.bf16.mxu0 0
        %7008 = vmatpush1.bf16.msra.mxu0 0
        %7009 = vmatprep.subr.bf16.mxu0 0
        %7010 = vmatpush1.bf16.msra.mxu0 0
        %7011 = vmatprep.mubr.bf16.mxu0 0
        %7012 = vmatmul.mubr.bf16.gmra.mrb[0].mxu0 %v6977
        %v7013 = vpop.f32.mrb[0].mxu0
        %v7014 = vadd.f32 0.0, %v7013
        %v7015 = vpop.f32.mrb[0].mxu0
        %v7016 = vpop.f32.mrb[0].mxu0
        %v7017 = vadd.f32 0.0, %v7016
        %v7018 = vpop.f32.mrb[0].mxu0
        %7019 = vdwg.mxu0
        %7020 = vrot.lane.b32.xlu0 %v1272, 48
        %v7021 = vpop.permute.xlu0 %7020
        %v7024 = vsel %vm2074, %v6314, 0
        %7026 = vmatprep.subr.bf16.mxu0 0
        %7027 = vmatpush1.bf16.msra.mxu0 %v7021
        %7028 = vmatprep.subr.bf16.mxu0 0
        %7029 = vmatpush1.bf16.msra.mxu0 0
        %7030 = vmatprep.subr.bf16.mxu0 0
        %7031 = vmatpush1.bf16.msra.mxu0 0
        %7032 = vmatprep.subr.bf16.mxu0 0
        %7033 = vmatpush1.bf16.msra.mxu0 0
        %7034 = vmatprep.subr.bf16.mxu0 0
        %7035 = vmatpush1.bf16.msra.mxu0 0
        %7036 = vmatprep.subr.bf16.mxu0 0
        %7037 = vmatpush1.bf16.msra.mxu0 0
        %7038 = vmatprep.subr.bf16.mxu0 0
        %7039 = vmatpush1.bf16.msra.mxu0 0
        %7040 = vmatprep.subr.bf16.mxu0 0
        %7041 = vmatpush1.bf16.msra.mxu0 0
        %7042 = vmatprep.subr.bf16.mxu0 0
        %7043 = vmatpush1.bf16.msra.mxu0 0
        %7044 = vmatprep.subr.bf16.mxu0 0
        %7045 = vmatpush1.bf16.msra.mxu0 0
        %7046 = vmatprep.subr.bf16.mxu0 0
        %7047 = vmatpush1.bf16.msra.mxu0 0
        %7048 = vmatprep.subr.bf16.mxu0 0
        %7049 = vmatpush1.bf16.msra.mxu0 0
        %7050 = vmatprep.subr.bf16.mxu0 0
        %7051 = vmatpush1.bf16.msra.mxu0 0
        %7052 = vmatprep.subr.bf16.mxu0 0
        %7053 = vmatpush1.bf16.msra.mxu0 0
        %7054 = vmatprep.subr.bf16.mxu0 0
        %7055 = vmatpush1.bf16.msra.mxu0 0
        %7056 = vmatprep.subr.bf16.mxu0 0
        %7057 = vmatpush1.bf16.msra.mxu0 0
        %7058 = vmatprep.mubr.bf16.mxu0 0
        %7059 = vmatmul.mubr.bf16.gmra.mrb[0].mxu0 %v7024
        %v7060 = vpop.f32.mrb[0].mxu0
        %v7061 = vadd.f32 0.0, %v7060
        %v7062 = vpop.f32.mrb[0].mxu0
        %v7063 = vpop.f32.mrb[0].mxu0
        %v7064 = vadd.f32 0.0, %v7063
        %v7065 = vpop.f32.mrb[0].mxu0
        %7066 = vdwg.mxu0
        %7067 = vrot.lane.b32.xlu0 %v1257, 104
        %v7068 = vpop.permute.xlu0 %7067
        %7069 = vrot.lane.b32.xlu0 %v1257, 72
        %v7070 = vpop.permute.xlu0 %7069
        %v7072 = vsel %vm1276, %v7068, 0
        %v7075 = vsel %vm1276, %v7070, 0
        %7077 = vmatprep.subr.bf16.mxu0 0
        %7078 = vmatpush1.bf16.xpose.msra.mxu0 %v7075
        %7079 = vmatprep.subr.bf16.mxu0 0
        %7080 = vmatpush1.bf16.xpose.msra.mxu0 0
        %7081 = vmatprep.subr.bf16.mxu0 0
        %7082 = vmatpush1.bf16.xpose.msra.mxu0 0
        %7083 = vmatprep.subr.bf16.mxu0 0
        %7084 = vmatpush1.bf16.xpose.msra.mxu0 0
        %7085 = vmatprep.subr.bf16.mxu0 0
        %7086 = vmatpush1.bf16.xpose.msra.mxu0 0
        %7087 = vmatprep.subr.bf16.mxu0 0
        %7088 = vmatpush1.bf16.xpose.msra.mxu0 0
        %7089 = vmatprep.subr.bf16.mxu0 0
        %7090 = vmatpush1.bf16.xpose.msra.mxu0 0
        %7091 = vmatprep.subr.bf16.mxu0 0
        %7092 = vmatpush1.bf16.xpose.msra.mxu0 0
        %7093 = vmatprep.subr.bf16.mxu0 0
        %7094 = vmatpush1.bf16.xpose.msra.mxu0 0
        %7095 = vmatprep.subr.bf16.mxu0 0
        %7096 = vmatpush1.bf16.xpose.msra.mxu0 0
        %7097 = vmatprep.subr.bf16.mxu0 0
        %7098 = vmatpush1.bf16.xpose.msra.mxu0 0
        %7099 = vmatprep.subr.bf16.mxu0 0
        %7100 = vmatpush1.bf16.xpose.msra.mxu0 0
        %7101 = vmatprep.subr.bf16.mxu0 0
        %7102 = vmatpush1.bf16.xpose.msra.mxu0 0
        %7103 = vmatprep.subr.bf16.mxu0 0
        %7104 = vmatpush1.bf16.xpose.msra.mxu0 0
        %7105 = vmatprep.subr.bf16.mxu0 0
        %7106 = vmatpush1.bf16.xpose.msra.mxu0 0
        %7107 = vmatprep.subr.bf16.mxu0 0
        %7108 = vmatpush1.bf16.xpose.msra.mxu0 0
        %7109 = vmatprep.mubr.bf16.mxu0 0
        %7110 = vmatmul.mubr.bf16.gmra.mrb[0].mxu0 %v7072
        %v7111 = vpop.f32.mrb[0].mxu0
        %v7112 = vadd.f32 0.0, %v7111
        %v7113 = vpop.f32.mrb[0].mxu0
        %v7114 = vpop.f32.mrb[0].mxu0
        %v7115 = vadd.f32 0.0, %v7114
        %v7116 = vpop.f32.mrb[0].mxu0
        %7117 = vdwg.mxu0
        %7118 = vrot.lane.b32.xlu0 %v1258, 104
        %v7119 = vpop.permute.xlu0 %7118
        %7120 = vrot.lane.b32.xlu0 %v1258, 72
        %v7121 = vpop.permute.xlu0 %7120
        %v7123 = vsel %vm1276, %v7119, 0
        %v7126 = vsel %vm1276, %v7121, 0
        %7128 = vmatprep.subr.bf16.mxu0 0
        %7129 = vmatpush1.bf16.xpose.msra.mxu0 %v7126
        %7130 = vmatprep.subr.bf16.mxu0 0
        %7131 = vmatpush1.bf16.xpose.msra.mxu0 0
        %7132 = vmatprep.subr.bf16.mxu0 0
        %7133 = vmatpush1.bf16.xpose.msra.mxu0 0
        %7134 = vmatprep.subr.bf16.mxu0 0
        %7135 = vmatpush1.bf16.xpose.msra.mxu0 0
        %7136 = vmatprep.subr.bf16.mxu0 0
        %7137 = vmatpush1.bf16.xpose.msra.mxu0 0
        %7138 = vmatprep.subr.bf16.mxu0 0
        %7139 = vmatpush1.bf16.xpose.msra.mxu0 0
        %7140 = vmatprep.subr.bf16.mxu0 0
        %7141 = vmatpush1.bf16.xpose.msra.mxu0 0
        %7142 = vmatprep.subr.bf16.mxu0 0
        %7143 = vmatpush1.bf16.xpose.msra.mxu0 0
        %7144 = vmatprep.subr.bf16.mxu0 0
        %7145 = vmatpush1.bf16.xpose.msra.mxu0 0
        %7146 = vmatprep.subr.bf16.mxu0 0
        %7147 = vmatpush1.bf16.xpose.msra.mxu0 0
        %7148 = vmatprep.subr.bf16.mxu0 0
        %7149 = vmatpush1.bf16.xpose.msra.mxu0 0
        %7150 = vmatprep.subr.bf16.mxu0 0
        %7151 = vmatpush1.bf16.xpose.msra.mxu0 0
        %7152 = vmatprep.subr.bf16.mxu0 0
        %7153 = vmatpush1.bf16.xpose.msra.mxu0 0
        %7154 = vmatprep.subr.bf16.mxu0 0
        %7155 = vmatpush1.bf16.xpose.msra.mxu0 0
        %7156 = vmatprep.subr.bf16.mxu0 0
        %7157 = vmatpush1.bf16.xpose.msra.mxu0 0
        %7158 = vmatprep.subr.bf16.mxu0 0
        %7159 = vmatpush1.bf16.xpose.msra.mxu0 0
        %7160 = vmatprep.mubr.bf16.mxu0 0
        %7161 = vmatmul.mubr.bf16.gmra.mrb[0].mxu0 %v7123
        %v7162 = vpop.f32.mrb[0].mxu0
        %v7163 = vadd.f32 0.0, %v7162
        %v7164 = vpop.f32.mrb[0].mxu0
        %v7165 = vpop.f32.mrb[0].mxu0
        %v7166 = vadd.f32 0.0, %v7165
        %v7167 = vpop.f32.mrb[0].mxu0
        %7168 = vdwg.mxu0
        %7169 = vrot.lane.b32.xlu0 %v1259, 104
        %v7170 = vpop.permute.xlu0 %7169
        %7171 = vrot.lane.b32.xlu0 %v1259, 72
        %v7172 = vpop.permute.xlu0 %7171
        %v7174 = vsel %vm1276, %v7170, 0
        %v7177 = vsel %vm1276, %v7172, 0
        %7179 = vmatprep.subr.bf16.mxu0 0
        %7180 = vmatpush1.bf16.xpose.msra.mxu0 %v7177
        %7181 = vmatprep.subr.bf16.mxu0 0
        %7182 = vmatpush1.bf16.xpose.msra.mxu0 0
        %7183 = vmatprep.subr.bf16.mxu0 0
        %7184 = vmatpush1.bf16.xpose.msra.mxu0 0
        %7185 = vmatprep.subr.bf16.mxu0 0
        %7186 = vmatpush1.bf16.xpose.msra.mxu0 0
        %7187 = vmatprep.subr.bf16.mxu0 0
        %7188 = vmatpush1.bf16.xpose.msra.mxu0 0
        %7189 = vmatprep.subr.bf16.mxu0 0
        %7190 = vmatpush1.bf16.xpose.msra.mxu0 0
        %7191 = vmatprep.subr.bf16.mxu0 0
        %7192 = vmatpush1.bf16.xpose.msra.mxu0 0
        %7193 = vmatprep.subr.bf16.mxu0 0
        %7194 = vmatpush1.bf16.xpose.msra.mxu0 0
        %7195 = vmatprep.subr.bf16.mxu0 0
        %7196 = vmatpush1.bf16.xpose.msra.mxu0 0
        %7197 = vmatprep.subr.bf16.mxu0 0
        %7198 = vmatpush1.bf16.xpose.msra.mxu0 0
        %7199 = vmatprep.subr.bf16.mxu0 0
        %7200 = vmatpush1.bf16.xpose.msra.mxu0 0
        %7201 = vmatprep.subr.bf16.mxu0 0
        %7202 = vmatpush1.bf16.xpose.msra.mxu0 0
        %7203 = vmatprep.subr.bf16.mxu0 0
        %7204 = vmatpush1.bf16.xpose.msra.mxu0 0
        %7205 = vmatprep.subr.bf16.mxu0 0
        %7206 = vmatpush1.bf16.xpose.msra.mxu0 0
        %7207 = vmatprep.subr.bf16.mxu0 0
        %7208 = vmatpush1.bf16.xpose.msra.mxu0 0
        %7209 = vmatprep.subr.bf16.mxu0 0
        %7210 = vmatpush1.bf16.xpose.msra.mxu0 0
        %7211 = vmatprep.mubr.bf16.mxu0 0
        %7212 = vmatmul.mubr.bf16.gmra.mrb[0].mxu0 %v7174
        %v7213 = vpop.f32.mrb[0].mxu0
        %v7214 = vadd.f32 0.0, %v7213
        %v7215 = vpop.f32.mrb[0].mxu0
        %v7216 = vpop.f32.mrb[0].mxu0
        %v7217 = vadd.f32 0.0, %v7216
        %v7218 = vpop.f32.mrb[0].mxu0
        %7219 = vdwg.mxu0
        %7220 = vrot.lane.b32.xlu0 %v1260, 104
        %v7221 = vpop.permute.xlu0 %7220
        %7222 = vrot.lane.b32.xlu0 %v1260, 72
        %v7223 = vpop.permute.xlu0 %7222
        %v7225 = vsel %vm1276, %v7221, 0
        %v7228 = vsel %vm1276, %v7223, 0
        %7230 = vmatprep.subr.bf16.mxu0 0
        %7231 = vmatpush1.bf16.xpose.msra.mxu0 %v7228
        %7232 = vmatprep.subr.bf16.mxu0 0
        %7233 = vmatpush1.bf16.xpose.msra.mxu0 0
        %7234 = vmatprep.subr.bf16.mxu0 0
        %7235 = vmatpush1.bf16.xpose.msra.mxu0 0
        %7236 = vmatprep.subr.bf16.mxu0 0
        %7237 = vmatpush1.bf16.xpose.msra.mxu0 0
        %7238 = vmatprep.subr.bf16.mxu0 0
        %7239 = vmatpush1.bf16.xpose.msra.mxu0 0
        %7240 = vmatprep.subr.bf16.mxu0 0
        %7241 = vmatpush1.bf16.xpose.msra.mxu0 0
        %7242 = vmatprep.subr.bf16.mxu0 0
        %7243 = vmatpush1.bf16.xpose.msra.mxu0 0
        %7244 = vmatprep.subr.bf16.mxu0 0
        %7245 = vmatpush1.bf16.xpose.msra.mxu0 0
        %7246 = vmatprep.subr.bf16.mxu0 0
        %7247 = vmatpush1.bf16.xpose.msra.mxu0 0
        %7248 = vmatprep.subr.bf16.mxu0 0
        %7249 = vmatpush1.bf16.xpose.msra.mxu0 0
        %7250 = vmatprep.subr.bf16.mxu0 0
        %7251 = vmatpush1.bf16.xpose.msra.mxu0 0
        %7252 = vmatprep.subr.bf16.mxu0 0
        %7253 = vmatpush1.bf16.xpose.msra.mxu0 0
        %7254 = vmatprep.subr.bf16.mxu0 0
        %7255 = vmatpush1.bf16.xpose.msra.mxu0 0
        %7256 = vmatprep.subr.bf16.mxu0 0
        %7257 = vmatpush1.bf16.xpose.msra.mxu0 0
        %7258 = vmatprep.subr.bf16.mxu0 0
        %7259 = vmatpush1.bf16.xpose.msra.mxu0 0
        %7260 = vmatprep.subr.bf16.mxu0 0
        %7261 = vmatpush1.bf16.xpose.msra.mxu0 0
        %7262 = vmatprep.mubr.bf16.mxu0 0
        %7263 = vmatmul.mubr.bf16.gmra.mrb[0].mxu0 %v7225
        %v7264 = vpop.f32.mrb[0].mxu0
        %v7265 = vadd.f32 0.0, %v7264
        %v7266 = vpop.f32.mrb[0].mxu0
        %v7267 = vpop.f32.mrb[0].mxu0
        %v7268 = vadd.f32 0.0, %v7267
        %v7269 = vpop.f32.mrb[0].mxu0
        %7270 = vdwg.mxu0
        %7271 = vrot.lane.b32.xlu0 %v1261, 104
        %v7272 = vpop.permute.xlu0 %7271
        %7273 = vrot.lane.b32.xlu0 %v1261, 72
        %v7274 = vpop.permute.xlu0 %7273
        %v7276 = vsel %vm1276, %v7272, 0
        %v7279 = vsel %vm1276, %v7274, 0
        %7281 = vmatprep.subr.bf16.mxu0 0
        %7282 = vmatpush1.bf16.xpose.msra.mxu0 %v7279
        %7283 = vmatprep.subr.bf16.mxu0 0
        %7284 = vmatpush1.bf16.xpose.msra.mxu0 0
        %7285 = vmatprep.subr.bf16.mxu0 0
        %7286 = vmatpush1.bf16.xpose.msra.mxu0 0
        %7287 = vmatprep.subr.bf16.mxu0 0
        %7288 = vmatpush1.bf16.xpose.msra.mxu0 0
        %7289 = vmatprep.subr.bf16.mxu0 0
        %7290 = vmatpush1.bf16.xpose.msra.mxu0 0
        %7291 = vmatprep.subr.bf16.mxu0 0
        %7292 = vmatpush1.bf16.xpose.msra.mxu0 0
        %7293 = vmatprep.subr.bf16.mxu0 0
        %7294 = vmatpush1.bf16.xpose.msra.mxu0 0
        %7295 = vmatprep.subr.bf16.mxu0 0
        %7296 = vmatpush1.bf16.xpose.msra.mxu0 0
        %7297 = vmatprep.subr.bf16.mxu0 0
        %7298 = vmatpush1.bf16.xpose.msra.mxu0 0
        %7299 = vmatprep.subr.bf16.mxu0 0
        %7300 = vmatpush1.bf16.xpose.msra.mxu0 0
        %7301 = vmatprep.subr.bf16.mxu0 0
        %7302 = vmatpush1.bf16.xpose.msra.mxu0 0
        %7303 = vmatprep.subr.bf16.mxu0 0
        %7304 = vmatpush1.bf16.xpose.msra.mxu0 0
        %7305 = vmatprep.subr.bf16.mxu0 0
        %7306 = vmatpush1.bf16.xpose.msra.mxu0 0
        %7307 = vmatprep.subr.bf16.mxu0 0
        %7308 = vmatpush1.bf16.xpose.msra.mxu0 0
        %7309 = vmatprep.subr.bf16.mxu0 0
        %7310 = vmatpush1.bf16.xpose.msra.mxu0 0
        %7311 = vmatprep.subr.bf16.mxu0 0
        %7312 = vmatpush1.bf16.xpose.msra.mxu0 0
        %7313 = vmatprep.mubr.bf16.mxu0 0
        %7314 = vmatmul.mubr.bf16.gmra.mrb[0].mxu0 %v7276
        %v7315 = vpop.f32.mrb[0].mxu0
        %v7316 = vadd.f32 0.0, %v7315
        %v7317 = vpop.f32.mrb[0].mxu0
        %v7318 = vpop.f32.mrb[0].mxu0
        %v7319 = vadd.f32 0.0, %v7318
        %v7320 = vpop.f32.mrb[0].mxu0
        %7321 = vdwg.mxu0
        %7322 = vrot.lane.b32.xlu0 %v1262, 104
        %v7323 = vpop.permute.xlu0 %7322
        %7324 = vrot.lane.b32.xlu0 %v1262, 72
        %v7325 = vpop.permute.xlu0 %7324
        %v7327 = vsel %vm1276, %v7323, 0
        %v7330 = vsel %vm1276, %v7325, 0
        %7332 = vmatprep.subr.bf16.mxu0 0
        %7333 = vmatpush1.bf16.xpose.msra.mxu0 %v7330
        %7334 = vmatprep.subr.bf16.mxu0 0
        %7335 = vmatpush1.bf16.xpose.msra.mxu0 0
        %7336 = vmatprep.subr.bf16.mxu0 0
        %7337 = vmatpush1.bf16.xpose.msra.mxu0 0
        %7338 = vmatprep.subr.bf16.mxu0 0
        %7339 = vmatpush1.bf16.xpose.msra.mxu0 0
        %7340 = vmatprep.subr.bf16.mxu0 0
        %7341 = vmatpush1.bf16.xpose.msra.mxu0 0
        %7342 = vmatprep.subr.bf16.mxu0 0
        %7343 = vmatpush1.bf16.xpose.msra.mxu0 0
        %7344 = vmatprep.subr.bf16.mxu0 0
        %7345 = vmatpush1.bf16.xpose.msra.mxu0 0
        %7346 = vmatprep.subr.bf16.mxu0 0
        %7347 = vmatpush1.bf16.xpose.msra.mxu0 0
        %7348 = vmatprep.subr.bf16.mxu0 0
        %7349 = vmatpush1.bf16.xpose.msra.mxu0 0
        %7350 = vmatprep.subr.bf16.mxu0 0
        %7351 = vmatpush1.bf16.xpose.msra.mxu0 0
        %7352 = vmatprep.subr.bf16.mxu0 0
        %7353 = vmatpush1.bf16.xpose.msra.mxu0 0
        %7354 = vmatprep.subr.bf16.mxu0 0
        %7355 = vmatpush1.bf16.xpose.msra.mxu0 0
        %7356 = vmatprep.subr.bf16.mxu0 0
        %7357 = vmatpush1.bf16.xpose.msra.mxu0 0
        %7358 = vmatprep.subr.bf16.mxu0 0
        %7359 = vmatpush1.bf16.xpose.msra.mxu0 0
        %7360 = vmatprep.subr.bf16.mxu0 0
        %7361 = vmatpush1.bf16.xpose.msra.mxu0 0
        %7362 = vmatprep.subr.bf16.mxu0 0
        %7363 = vmatpush1.bf16.xpose.msra.mxu0 0
        %7364 = vmatprep.mubr.bf16.mxu0 0
        %7365 = vmatmul.mubr.bf16.gmra.mrb[0].mxu0 %v7327
        %v7366 = vpop.f32.mrb[0].mxu0
        %v7367 = vadd.f32 0.0, %v7366
        %v7368 = vpop.f32.mrb[0].mxu0
        %v7369 = vpop.f32.mrb[0].mxu0
        %v7370 = vadd.f32 0.0, %v7369
        %v7371 = vpop.f32.mrb[0].mxu0
        %7372 = vdwg.mxu0
        %7373 = vrot.lane.b32.xlu0 %v1263, 104
        %v7374 = vpop.permute.xlu0 %7373
        %7375 = vrot.lane.b32.xlu0 %v1263, 72
        %v7376 = vpop.permute.xlu0 %7375
        %v7378 = vsel %vm1276, %v7374, 0
        %v7381 = vsel %vm1276, %v7376, 0
        %7383 = vmatprep.subr.bf16.mxu0 0
        %7384 = vmatpush1.bf16.xpose.msra.mxu0 %v7381
        %7385 = vmatprep.subr.bf16.mxu0 0
        %7386 = vmatpush1.bf16.xpose.msra.mxu0 0
        %7387 = vmatprep.subr.bf16.mxu0 0
        %7388 = vmatpush1.bf16.xpose.msra.mxu0 0
        %7389 = vmatprep.subr.bf16.mxu0 0
        %7390 = vmatpush1.bf16.xpose.msra.mxu0 0
        %7391 = vmatprep.subr.bf16.mxu0 0
        %7392 = vmatpush1.bf16.xpose.msra.mxu0 0
        %7393 = vmatprep.subr.bf16.mxu0 0
        %7394 = vmatpush1.bf16.xpose.msra.mxu0 0
        %7395 = vmatprep.subr.bf16.mxu0 0
        %7396 = vmatpush1.bf16.xpose.msra.mxu0 0
        %7397 = vmatprep.subr.bf16.mxu0 0
        %7398 = vmatpush1.bf16.xpose.msra.mxu0 0
        %7399 = vmatprep.subr.bf16.mxu0 0
        %7400 = vmatpush1.bf16.xpose.msra.mxu0 0
        %7401 = vmatprep.subr.bf16.mxu0 0
        %7402 = vmatpush1.bf16.xpose.msra.mxu0 0
        %7403 = vmatprep.subr.bf16.mxu0 0
        %7404 = vmatpush1.bf16.xpose.msra.mxu0 0
        %7405 = vmatprep.subr.bf16.mxu0 0
        %7406 = vmatpush1.bf16.xpose.msra.mxu0 0
        %7407 = vmatprep.subr.bf16.mxu0 0
        %7408 = vmatpush1.bf16.xpose.msra.mxu0 0
        %7409 = vmatprep.subr.bf16.mxu0 0
        %7410 = vmatpush1.bf16.xpose.msra.mxu0 0
        %7411 = vmatprep.subr.bf16.mxu0 0
        %7412 = vmatpush1.bf16.xpose.msra.mxu0 0
        %7413 = vmatprep.subr.bf16.mxu0 0
        %7414 = vmatpush1.bf16.xpose.msra.mxu0 0
        %7415 = vmatprep.mubr.bf16.mxu0 0
        %7416 = vmatmul.mubr.bf16.gmra.mrb[0].mxu0 %v7378
        %v7417 = vpop.f32.mrb[0].mxu0
        %v7418 = vadd.f32 0.0, %v7417
        %v7419 = vpop.f32.mrb[0].mxu0
        %v7420 = vpop.f32.mrb[0].mxu0
        %v7421 = vadd.f32 0.0, %v7420
        %v7422 = vpop.f32.mrb[0].mxu0
        %7423 = vdwg.mxu0
        %7424 = vrot.lane.b32.xlu0 %v1264, 104
        %v7425 = vpop.permute.xlu0 %7424
        %7426 = vrot.lane.b32.xlu0 %v1264, 72
        %v7427 = vpop.permute.xlu0 %7426
        %v7429 = vsel %vm1276, %v7425, 0
        %v7432 = vsel %vm1276, %v7427, 0
        %7434 = vmatprep.subr.bf16.mxu0 0
        %7435 = vmatpush1.bf16.xpose.msra.mxu0 %v7432
        %7436 = vmatprep.subr.bf16.mxu0 0
        %7437 = vmatpush1.bf16.xpose.msra.mxu0 0
        %7438 = vmatprep.subr.bf16.mxu0 0
        %7439 = vmatpush1.bf16.xpose.msra.mxu0 0
        %7440 = vmatprep.subr.bf16.mxu0 0
        %7441 = vmatpush1.bf16.xpose.msra.mxu0 0
        %7442 = vmatprep.subr.bf16.mxu0 0
        %7443 = vmatpush1.bf16.xpose.msra.mxu0 0
        %7444 = vmatprep.subr.bf16.mxu0 0
        %7445 = vmatpush1.bf16.xpose.msra.mxu0 0
        %7446 = vmatprep.subr.bf16.mxu0 0
        %7447 = vmatpush1.bf16.xpose.msra.mxu0 0
        %7448 = vmatprep.subr.bf16.mxu0 0
        %7449 = vmatpush1.bf16.xpose.msra.mxu0 0
        %7450 = vmatprep.subr.bf16.mxu0 0
        %7451 = vmatpush1.bf16.xpose.msra.mxu0 0
        %7452 = vmatprep.subr.bf16.mxu0 0
        %7453 = vmatpush1.bf16.xpose.msra.mxu0 0
        %7454 = vmatprep.subr.bf16.mxu0 0
        %7455 = vmatpush1.bf16.xpose.msra.mxu0 0
        %7456 = vmatprep.subr.bf16.mxu0 0
        %7457 = vmatpush1.bf16.xpose.msra.mxu0 0
        %7458 = vmatprep.subr.bf16.mxu0 0
        %7459 = vmatpush1.bf16.xpose.msra.mxu0 0
        %7460 = vmatprep.subr.bf16.mxu0 0
        %7461 = vmatpush1.bf16.xpose.msra.mxu0 0
        %7462 = vmatprep.subr.bf16.mxu0 0
        %7463 = vmatpush1.bf16.xpose.msra.mxu0 0
        %7464 = vmatprep.subr.bf16.mxu0 0
        %7465 = vmatpush1.bf16.xpose.msra.mxu0 0
        %7466 = vmatprep.mubr.bf16.mxu0 0
        %7467 = vmatmul.mubr.bf16.gmra.mrb[0].mxu0 %v7429
        %v7468 = vpop.f32.mrb[0].mxu0
        %v7469 = vadd.f32 0.0, %v7468
        %v7470 = vpop.f32.mrb[0].mxu0
        %v7471 = vpop.f32.mrb[0].mxu0
        %v7472 = vadd.f32 0.0, %v7471
        %v7473 = vpop.f32.mrb[0].mxu0
        %7474 = vdwg.mxu0
        %7475 = vrot.lane.b32.xlu0 %v1265, 104
        %v7476 = vpop.permute.xlu0 %7475
        %7477 = vrot.lane.b32.xlu0 %v1265, 72
        %v7478 = vpop.permute.xlu0 %7477
        %v7480 = vsel %vm1276, %v7476, 0
        %v7483 = vsel %vm1276, %v7478, 0
        %7485 = vmatprep.subr.bf16.mxu0 0
        %7486 = vmatpush1.bf16.xpose.msra.mxu0 %v7483
        %7487 = vmatprep.subr.bf16.mxu0 0
        %7488 = vmatpush1.bf16.xpose.msra.mxu0 0
        %7489 = vmatprep.subr.bf16.mxu0 0
        %7490 = vmatpush1.bf16.xpose.msra.mxu0 0
        %7491 = vmatprep.subr.bf16.mxu0 0
        %7492 = vmatpush1.bf16.xpose.msra.mxu0 0
        %7493 = vmatprep.subr.bf16.mxu0 0
        %7494 = vmatpush1.bf16.xpose.msra.mxu0 0
        %7495 = vmatprep.subr.bf16.mxu0 0
        %7496 = vmatpush1.bf16.xpose.msra.mxu0 0
        %7497 = vmatprep.subr.bf16.mxu0 0
        %7498 = vmatpush1.bf16.xpose.msra.mxu0 0
        %7499 = vmatprep.subr.bf16.mxu0 0
        %7500 = vmatpush1.bf16.xpose.msra.mxu0 0
        %7501 = vmatprep.subr.bf16.mxu0 0
        %7502 = vmatpush1.bf16.xpose.msra.mxu0 0
        %7503 = vmatprep.subr.bf16.mxu0 0
        %7504 = vmatpush1.bf16.xpose.msra.mxu0 0
        %7505 = vmatprep.subr.bf16.mxu0 0
        %7506 = vmatpush1.bf16.xpose.msra.mxu0 0
        %7507 = vmatprep.subr.bf16.mxu0 0
        %7508 = vmatpush1.bf16.xpose.msra.mxu0 0
        %7509 = vmatprep.subr.bf16.mxu0 0
        %7510 = vmatpush1.bf16.xpose.msra.mxu0 0
        %7511 = vmatprep.subr.bf16.mxu0 0
        %7512 = vmatpush1.bf16.xpose.msra.mxu0 0
        %7513 = vmatprep.subr.bf16.mxu0 0
        %7514 = vmatpush1.bf16.xpose.msra.mxu0 0
        %7515 = vmatprep.subr.bf16.mxu0 0
        %7516 = vmatpush1.bf16.xpose.msra.mxu0 0
        %7517 = vmatprep.mubr.bf16.mxu0 0
        %7518 = vmatmul.mubr.bf16.gmra.mrb[0].mxu0 %v7480
        %v7519 = vpop.f32.mrb[0].mxu0
        %v7520 = vadd.f32 0.0, %v7519
        %v7521 = vpop.f32.mrb[0].mxu0
        %v7522 = vpop.f32.mrb[0].mxu0
        %v7523 = vadd.f32 0.0, %v7522
        %v7524 = vpop.f32.mrb[0].mxu0
        %7525 = vdwg.mxu0
        %7526 = vrot.lane.b32.xlu0 %v1266, 104
        %v7527 = vpop.permute.xlu0 %7526
        %7528 = vrot.lane.b32.xlu0 %v1266, 72
        %v7529 = vpop.permute.xlu0 %7528
        %v7531 = vsel %vm1276, %v7527, 0
        %v7534 = vsel %vm1276, %v7529, 0
        %7536 = vmatprep.subr.bf16.mxu0 0
        %7537 = vmatpush1.bf16.xpose.msra.mxu0 %v7534
        %7538 = vmatprep.subr.bf16.mxu0 0
        %7539 = vmatpush1.bf16.xpose.msra.mxu0 0
        %7540 = vmatprep.subr.bf16.mxu0 0
        %7541 = vmatpush1.bf16.xpose.msra.mxu0 0
        %7542 = vmatprep.subr.bf16.mxu0 0
        %7543 = vmatpush1.bf16.xpose.msra.mxu0 0
        %7544 = vmatprep.subr.bf16.mxu0 0
        %7545 = vmatpush1.bf16.xpose.msra.mxu0 0
        %7546 = vmatprep.subr.bf16.mxu0 0
        %7547 = vmatpush1.bf16.xpose.msra.mxu0 0
        %7548 = vmatprep.subr.bf16.mxu0 0
        %7549 = vmatpush1.bf16.xpose.msra.mxu0 0
        %7550 = vmatprep.subr.bf16.mxu0 0
        %7551 = vmatpush1.bf16.xpose.msra.mxu0 0
        %7552 = vmatprep.subr.bf16.mxu0 0
        %7553 = vmatpush1.bf16.xpose.msra.mxu0 0
        %7554 = vmatprep.subr.bf16.mxu0 0
        %7555 = vmatpush1.bf16.xpose.msra.mxu0 0
        %7556 = vmatprep.subr.bf16.mxu0 0
        %7557 = vmatpush1.bf16.xpose.msra.mxu0 0
        %7558 = vmatprep.subr.bf16.mxu0 0
        %7559 = vmatpush1.bf16.xpose.msra.mxu0 0
        %7560 = vmatprep.subr.bf16.mxu0 0
        %7561 = vmatpush1.bf16.xpose.msra.mxu0 0
        %7562 = vmatprep.subr.bf16.mxu0 0
        %7563 = vmatpush1.bf16.xpose.msra.mxu0 0
        %7564 = vmatprep.subr.bf16.mxu0 0
        %7565 = vmatpush1.bf16.xpose.msra.mxu0 0
        %7566 = vmatprep.subr.bf16.mxu0 0
        %7567 = vmatpush1.bf16.xpose.msra.mxu0 0
        %7568 = vmatprep.mubr.bf16.mxu0 0
        %7569 = vmatmul.mubr.bf16.gmra.mrb[0].mxu0 %v7531
        %v7570 = vpop.f32.mrb[0].mxu0
        %v7571 = vadd.f32 0.0, %v7570
        %v7572 = vpop.f32.mrb[0].mxu0
        %v7573 = vpop.f32.mrb[0].mxu0
        %v7574 = vadd.f32 0.0, %v7573
        %v7575 = vpop.f32.mrb[0].mxu0
        %7576 = vdwg.mxu0
        %7577 = vrot.lane.b32.xlu0 %v1267, 104
        %v7578 = vpop.permute.xlu0 %7577
        %7579 = vrot.lane.b32.xlu0 %v1267, 72
        %v7580 = vpop.permute.xlu0 %7579
        %v7582 = vsel %vm1276, %v7578, 0
        %v7585 = vsel %vm1276, %v7580, 0
        %7587 = vmatprep.subr.bf16.mxu0 0
        %7588 = vmatpush1.bf16.xpose.msra.mxu0 %v7585
        %7589 = vmatprep.subr.bf16.mxu0 0
        %7590 = vmatpush1.bf16.xpose.msra.mxu0 0
        %7591 = vmatprep.subr.bf16.mxu0 0
        %7592 = vmatpush1.bf16.xpose.msra.mxu0 0
        %7593 = vmatprep.subr.bf16.mxu0 0
        %7594 = vmatpush1.bf16.xpose.msra.mxu0 0
        %7595 = vmatprep.subr.bf16.mxu0 0
        %7596 = vmatpush1.bf16.xpose.msra.mxu0 0
        %7597 = vmatprep.subr.bf16.mxu0 0
        %7598 = vmatpush1.bf16.xpose.msra.mxu0 0
        %7599 = vmatprep.subr.bf16.mxu0 0
        %7600 = vmatpush1.bf16.xpose.msra.mxu0 0
        %7601 = vmatprep.subr.bf16.mxu0 0
        %7602 = vmatpush1.bf16.xpose.msra.mxu0 0
        %7603 = vmatprep.subr.bf16.mxu0 0
        %7604 = vmatpush1.bf16.xpose.msra.mxu0 0
        %7605 = vmatprep.subr.bf16.mxu0 0
        %7606 = vmatpush1.bf16.xpose.msra.mxu0 0
        %7607 = vmatprep.subr.bf16.mxu0 0
        %7608 = vmatpush1.bf16.xpose.msra.mxu0 0
        %7609 = vmatprep.subr.bf16.mxu0 0
        %7610 = vmatpush1.bf16.xpose.msra.mxu0 0
        %7611 = vmatprep.subr.bf16.mxu0 0
        %7612 = vmatpush1.bf16.xpose.msra.mxu0 0
        %7613 = vmatprep.subr.bf16.mxu0 0
        %7614 = vmatpush1.bf16.xpose.msra.mxu0 0
        %7615 = vmatprep.subr.bf16.mxu0 0
        %7616 = vmatpush1.bf16.xpose.msra.mxu0 0
        %7617 = vmatprep.subr.bf16.mxu0 0
        %7618 = vmatpush1.bf16.xpose.msra.mxu0 0
        %7619 = vmatprep.mubr.bf16.mxu0 0
        %7620 = vmatmul.mubr.bf16.gmra.mrb[0].mxu0 %v7582
        %v7621 = vpop.f32.mrb[0].mxu0
        %v7622 = vadd.f32 0.0, %v7621
        %v7623 = vpop.f32.mrb[0].mxu0
        %v7624 = vpop.f32.mrb[0].mxu0
        %v7625 = vadd.f32 0.0, %v7624
        %v7626 = vpop.f32.mrb[0].mxu0
        %7627 = vdwg.mxu0
        %7628 = vrot.lane.b32.xlu0 %v1268, 104
        %v7629 = vpop.permute.xlu0 %7628
        %7630 = vrot.lane.b32.xlu0 %v1268, 72
        %v7631 = vpop.permute.xlu0 %7630
        %v7633 = vsel %vm1276, %v7629, 0
        %v7636 = vsel %vm1276, %v7631, 0
        %7638 = vmatprep.subr.bf16.mxu0 0
        %7639 = vmatpush1.bf16.xpose.msra.mxu0 %v7636
        %7640 = vmatprep.subr.bf16.mxu0 0
        %7641 = vmatpush1.bf16.xpose.msra.mxu0 0
        %7642 = vmatprep.subr.bf16.mxu0 0
        %7643 = vmatpush1.bf16.xpose.msra.mxu0 0
        %7644 = vmatprep.subr.bf16.mxu0 0
        %7645 = vmatpush1.bf16.xpose.msra.mxu0 0
        %7646 = vmatprep.subr.bf16.mxu0 0
        %7647 = vmatpush1.bf16.xpose.msra.mxu0 0
        %7648 = vmatprep.subr.bf16.mxu0 0
        %7649 = vmatpush1.bf16.xpose.msra.mxu0 0
        %7650 = vmatprep.subr.bf16.mxu0 0
        %7651 = vmatpush1.bf16.xpose.msra.mxu0 0
        %7652 = vmatprep.subr.bf16.mxu0 0
        %7653 = vmatpush1.bf16.xpose.msra.mxu0 0
        %7654 = vmatprep.subr.bf16.mxu0 0
        %7655 = vmatpush1.bf16.xpose.msra.mxu0 0
        %7656 = vmatprep.subr.bf16.mxu0 0
        %7657 = vmatpush1.bf16.xpose.msra.mxu0 0
        %7658 = vmatprep.subr.bf16.mxu0 0
        %7659 = vmatpush1.bf16.xpose.msra.mxu0 0
        %7660 = vmatprep.subr.bf16.mxu0 0
        %7661 = vmatpush1.bf16.xpose.msra.mxu0 0
        %7662 = vmatprep.subr.bf16.mxu0 0
        %7663 = vmatpush1.bf16.xpose.msra.mxu0 0
        %7664 = vmatprep.subr.bf16.mxu0 0
        %7665 = vmatpush1.bf16.xpose.msra.mxu0 0
        %7666 = vmatprep.subr.bf16.mxu0 0
        %7667 = vmatpush1.bf16.xpose.msra.mxu0 0
        %7668 = vmatprep.subr.bf16.mxu0 0
        %7669 = vmatpush1.bf16.xpose.msra.mxu0 0
        %7670 = vmatprep.mubr.bf16.mxu0 0
        %7671 = vmatmul.mubr.bf16.gmra.mrb[0].mxu0 %v7633
        %v7672 = vpop.f32.mrb[0].mxu0
        %v7673 = vadd.f32 0.0, %v7672
        %v7674 = vpop.f32.mrb[0].mxu0
        %v7675 = vpop.f32.mrb[0].mxu0
        %v7676 = vadd.f32 0.0, %v7675
        %v7677 = vpop.f32.mrb[0].mxu0
        %7678 = vdwg.mxu0
        %7679 = vrot.lane.b32.xlu0 %v1269, 104
        %v7680 = vpop.permute.xlu0 %7679
        %7681 = vrot.lane.b32.xlu0 %v1269, 72
        %v7682 = vpop.permute.xlu0 %7681
        %v7684 = vsel %vm1276, %v7680, 0
        %v7687 = vsel %vm1276, %v7682, 0
        %7689 = vmatprep.subr.bf16.mxu0 0
        %7690 = vmatpush1.bf16.xpose.msra.mxu0 %v7687
        %7691 = vmatprep.subr.bf16.mxu0 0
        %7692 = vmatpush1.bf16.xpose.msra.mxu0 0
        %7693 = vmatprep.subr.bf16.mxu0 0
        %7694 = vmatpush1.bf16.xpose.msra.mxu0 0
        %7695 = vmatprep.subr.bf16.mxu0 0
        %7696 = vmatpush1.bf16.xpose.msra.mxu0 0
        %7697 = vmatprep.subr.bf16.mxu0 0
        %7698 = vmatpush1.bf16.xpose.msra.mxu0 0
        %7699 = vmatprep.subr.bf16.mxu0 0
        %7700 = vmatpush1.bf16.xpose.msra.mxu0 0
        %7701 = vmatprep.subr.bf16.mxu0 0
        %7702 = vmatpush1.bf16.xpose.msra.mxu0 0
        %7703 = vmatprep.subr.bf16.mxu0 0
        %7704 = vmatpush1.bf16.xpose.msra.mxu0 0
        %7705 = vmatprep.subr.bf16.mxu0 0
        %7706 = vmatpush1.bf16.xpose.msra.mxu0 0
        %7707 = vmatprep.subr.bf16.mxu0 0
        %7708 = vmatpush1.bf16.xpose.msra.mxu0 0
        %7709 = vmatprep.subr.bf16.mxu0 0
        %7710 = vmatpush1.bf16.xpose.msra.mxu0 0
        %7711 = vmatprep.subr.bf16.mxu0 0
        %7712 = vmatpush1.bf16.xpose.msra.mxu0 0
        %7713 = vmatprep.subr.bf16.mxu0 0
        %7714 = vmatpush1.bf16.xpose.msra.mxu0 0
        %7715 = vmatprep.subr.bf16.mxu0 0
        %7716 = vmatpush1.bf16.xpose.msra.mxu0 0
        %7717 = vmatprep.subr.bf16.mxu0 0
        %7718 = vmatpush1.bf16.xpose.msra.mxu0 0
        %7719 = vmatprep.subr.bf16.mxu0 0
        %7720 = vmatpush1.bf16.xpose.msra.mxu0 0
        %7721 = vmatprep.mubr.bf16.mxu0 0
        %7722 = vmatmul.mubr.bf16.gmra.mrb[0].mxu0 %v7684
        %v7723 = vpop.f32.mrb[0].mxu0
        %v7724 = vadd.f32 0.0, %v7723
        %v7725 = vpop.f32.mrb[0].mxu0
        %v7726 = vpop.f32.mrb[0].mxu0
        %v7727 = vadd.f32 0.0, %v7726
        %v7728 = vpop.f32.mrb[0].mxu0
        %7729 = vdwg.mxu0
        %7730 = vrot.lane.b32.xlu0 %v1270, 104
        %v7731 = vpop.permute.xlu0 %7730
        %7732 = vrot.lane.b32.xlu0 %v1270, 72
        %v7733 = vpop.permute.xlu0 %7732
        %v7735 = vsel %vm1276, %v7731, 0
        %v7738 = vsel %vm1276, %v7733, 0
        %7740 = vmatprep.subr.bf16.mxu0 0
        %7741 = vmatpush1.bf16.xpose.msra.mxu0 %v7738
        %7742 = vmatprep.subr.bf16.mxu0 0
        %7743 = vmatpush1.bf16.xpose.msra.mxu0 0
        %7744 = vmatprep.subr.bf16.mxu0 0
        %7745 = vmatpush1.bf16.xpose.msra.mxu0 0
        %7746 = vmatprep.subr.bf16.mxu0 0
        %7747 = vmatpush1.bf16.xpose.msra.mxu0 0
        %7748 = vmatprep.subr.bf16.mxu0 0
        %7749 = vmatpush1.bf16.xpose.msra.mxu0 0
        %7750 = vmatprep.subr.bf16.mxu0 0
        %7751 = vmatpush1.bf16.xpose.msra.mxu0 0
        %7752 = vmatprep.subr.bf16.mxu0 0
        %7753 = vmatpush1.bf16.xpose.msra.mxu0 0
        %7754 = vmatprep.subr.bf16.mxu0 0
        %7755 = vmatpush1.bf16.xpose.msra.mxu0 0
        %7756 = vmatprep.subr.bf16.mxu0 0
        %7757 = vmatpush1.bf16.xpose.msra.mxu0 0
        %7758 = vmatprep.subr.bf16.mxu0 0
        %7759 = vmatpush1.bf16.xpose.msra.mxu0 0
        %7760 = vmatprep.subr.bf16.mxu0 0
        %7761 = vmatpush1.bf16.xpose.msra.mxu0 0
        %7762 = vmatprep.subr.bf16.mxu0 0
        %7763 = vmatpush1.bf16.xpose.msra.mxu0 0
        %7764 = vmatprep.subr.bf16.mxu0 0
        %7765 = vmatpush1.bf16.xpose.msra.mxu0 0
        %7766 = vmatprep.subr.bf16.mxu0 0
        %7767 = vmatpush1.bf16.xpose.msra.mxu0 0
        %7768 = vmatprep.subr.bf16.mxu0 0
        %7769 = vmatpush1.bf16.xpose.msra.mxu0 0
        %7770 = vmatprep.subr.bf16.mxu0 0
        %7771 = vmatpush1.bf16.xpose.msra.mxu0 0
        %7772 = vmatprep.mubr.bf16.mxu0 0
        %7773 = vmatmul.mubr.bf16.gmra.mrb[0].mxu0 %v7735
        %v7774 = vpop.f32.mrb[0].mxu0
        %v7775 = vadd.f32 0.0, %v7774
        %v7776 = vpop.f32.mrb[0].mxu0
        %v7777 = vpop.f32.mrb[0].mxu0
        %v7778 = vadd.f32 0.0, %v7777
        %v7779 = vpop.f32.mrb[0].mxu0
        %7780 = vdwg.mxu0
        %7781 = vrot.lane.b32.xlu0 %v1271, 104
        %v7782 = vpop.permute.xlu0 %7781
        %7783 = vrot.lane.b32.xlu0 %v1271, 72
        %v7784 = vpop.permute.xlu0 %7783
        %v7786 = vsel %vm1276, %v7782, 0
        %v7789 = vsel %vm1276, %v7784, 0
        %7791 = vmatprep.subr.bf16.mxu0 0
        %7792 = vmatpush1.bf16.xpose.msra.mxu0 %v7789
        %7793 = vmatprep.subr.bf16.mxu0 0
        %7794 = vmatpush1.bf16.xpose.msra.mxu0 0
        %7795 = vmatprep.subr.bf16.mxu0 0
        %7796 = vmatpush1.bf16.xpose.msra.mxu0 0
        %7797 = vmatprep.subr.bf16.mxu0 0
        %7798 = vmatpush1.bf16.xpose.msra.mxu0 0
        %7799 = vmatprep.subr.bf16.mxu0 0
        %7800 = vmatpush1.bf16.xpose.msra.mxu0 0
        %7801 = vmatprep.subr.bf16.mxu0 0
        %7802 = vmatpush1.bf16.xpose.msra.mxu0 0
        %7803 = vmatprep.subr.bf16.mxu0 0
        %7804 = vmatpush1.bf16.xpose.msra.mxu0 0
        %7805 = vmatprep.subr.bf16.mxu0 0
        %7806 = vmatpush1.bf16.xpose.msra.mxu0 0
        %7807 = vmatprep.subr.bf16.mxu0 0
        %7808 = vmatpush1.bf16.xpose.msra.mxu0 0
        %7809 = vmatprep.subr.bf16.mxu0 0
        %7810 = vmatpush1.bf16.xpose.msra.mxu0 0
        %7811 = vmatprep.subr.bf16.mxu0 0
        %7812 = vmatpush1.bf16.xpose.msra.mxu0 0
        %7813 = vmatprep.subr.bf16.mxu0 0
        %7814 = vmatpush1.bf16.xpose.msra.mxu0 0
        %7815 = vmatprep.subr.bf16.mxu0 0
        %7816 = vmatpush1.bf16.xpose.msra.mxu0 0
        %7817 = vmatprep.subr.bf16.mxu0 0
        %7818 = vmatpush1.bf16.xpose.msra.mxu0 0
        %7819 = vmatprep.subr.bf16.mxu0 0
        %7820 = vmatpush1.bf16.xpose.msra.mxu0 0
        %7821 = vmatprep.subr.bf16.mxu0 0
        %7822 = vmatpush1.bf16.xpose.msra.mxu0 0
        %7823 = vmatprep.mubr.bf16.mxu0 0
        %7824 = vmatmul.mubr.bf16.gmra.mrb[0].mxu0 %v7786
        %v7825 = vpop.f32.mrb[0].mxu0
        %v7826 = vadd.f32 0.0, %v7825
        %v7827 = vpop.f32.mrb[0].mxu0
        %v7828 = vpop.f32.mrb[0].mxu0
        %v7829 = vadd.f32 0.0, %v7828
        %v7830 = vpop.f32.mrb[0].mxu0
        %7831 = vdwg.mxu0
        %7832 = vrot.lane.b32.xlu0 %v1272, 104
        %v7833 = vpop.permute.xlu0 %7832
        %7834 = vrot.lane.b32.xlu0 %v1272, 72
        %v7835 = vpop.permute.xlu0 %7834
        %v7837 = vsel %vm1276, %v7833, 0
        %v7840 = vsel %vm1276, %v7835, 0
        %7842 = vmatprep.subr.bf16.mxu0 0
        %7843 = vmatpush1.bf16.xpose.msra.mxu0 %v7840
        %7844 = vmatprep.subr.bf16.mxu0 0
        %7845 = vmatpush1.bf16.xpose.msra.mxu0 0
        %7846 = vmatprep.subr.bf16.mxu0 0
        %7847 = vmatpush1.bf16.xpose.msra.mxu0 0
        %7848 = vmatprep.subr.bf16.mxu0 0
        %7849 = vmatpush1.bf16.xpose.msra.mxu0 0
        %7850 = vmatprep.subr.bf16.mxu0 0
        %7851 = vmatpush1.bf16.xpose.msra.mxu0 0
        %7852 = vmatprep.subr.bf16.mxu0 0
        %7853 = vmatpush1.bf16.xpose.msra.mxu0 0
        %7854 = vmatprep.subr.bf16.mxu0 0
        %7855 = vmatpush1.bf16.xpose.msra.mxu0 0
        %7856 = vmatprep.subr.bf16.mxu0 0
        %7857 = vmatpush1.bf16.xpose.msra.mxu0 0
        %7858 = vmatprep.subr.bf16.mxu0 0
        %7859 = vmatpush1.bf16.xpose.msra.mxu0 0
        %7860 = vmatprep.subr.bf16.mxu0 0
        %7861 = vmatpush1.bf16.xpose.msra.mxu0 0
        %7862 = vmatprep.subr.bf16.mxu0 0
        %7863 = vmatpush1.bf16.xpose.msra.mxu0 0
        %7864 = vmatprep.subr.bf16.mxu0 0
        %7865 = vmatpush1.bf16.xpose.msra.mxu0 0
        %7866 = vmatprep.subr.bf16.mxu0 0
        %7867 = vmatpush1.bf16.xpose.msra.mxu0 0
        %7868 = vmatprep.subr.bf16.mxu0 0
        %7869 = vmatpush1.bf16.xpose.msra.mxu0 0
        %7870 = vmatprep.subr.bf16.mxu0 0
        %7871 = vmatpush1.bf16.xpose.msra.mxu0 0
        %7872 = vmatprep.subr.bf16.mxu0 0
        %7873 = vmatpush1.bf16.xpose.msra.mxu0 0
        %7874 = vmatprep.mubr.bf16.mxu0 0
        %7875 = vmatmul.mubr.bf16.gmra.mrb[0].mxu0 %v7837
        %v7876 = vpop.f32.mrb[0].mxu0
        %v7877 = vadd.f32 0.0, %v7876
        %v7878 = vpop.f32.mrb[0].mxu0
        %v7879 = vpop.f32.mrb[0].mxu0
        %v7880 = vadd.f32 0.0, %v7879
        %v7881 = vpop.f32.mrb[0].mxu0
        %7882 = vdwg.mxu0
        %v7883 = vsel %vm2074, %v7112, -inf
        %7884 = vmax.xlane.f32.xlu0 %v7883
        %v7885 = vpop.xlane.xlu0 %7884
        %v7886 = vsel %vm2074, %v7115, -inf
        %7887 = vmax.xlane.f32.xlu0 %v7886
        %v7888 = vpop.xlane.xlu0 %7887
        %v7889 = vsel %vm2074, %v7163, -inf
        %7890 = vmax.xlane.f32.xlu0 %v7889
        %v7891 = vpop.xlane.xlu0 %7890
        %v7892 = vsel %vm2074, %v7166, -inf
        %7893 = vmax.xlane.f32.xlu0 %v7892
        %v7894 = vpop.xlane.xlu0 %7893
        %v7895 = vsel %vm2074, %v7214, -inf
        %7896 = vmax.xlane.f32.xlu0 %v7895
        %v7897 = vpop.xlane.xlu0 %7896
        %v7898 = vsel %vm2074, %v7217, -inf
        %7899 = vmax.xlane.f32.xlu0 %v7898
        %v7900 = vpop.xlane.xlu0 %7899
        %v7901 = vsel %vm2074, %v7265, -inf
        %7902 = vmax.xlane.f32.xlu0 %v7901
        %v7903 = vpop.xlane.xlu0 %7902
        %v7904 = vsel %vm2074, %v7268, -inf
        %7905 = vmax.xlane.f32.xlu0 %v7904
        %v7906 = vpop.xlane.xlu0 %7905
        %v7907 = vsel %vm2074, %v7316, -inf
        %7908 = vmax.xlane.f32.xlu0 %v7907
        %v7909 = vpop.xlane.xlu0 %7908
        %v7910 = vsel %vm2074, %v7319, -inf
        %7911 = vmax.xlane.f32.xlu0 %v7910
        %v7912 = vpop.xlane.xlu0 %7911
        %v7913 = vsel %vm2074, %v7367, -inf
        %7914 = vmax.xlane.f32.xlu0 %v7913
        %v7915 = vpop.xlane.xlu0 %7914
        %v7916 = vsel %vm2074, %v7370, -inf
        %7917 = vmax.xlane.f32.xlu0 %v7916
        %v7918 = vpop.xlane.xlu0 %7917
        %v7919 = vsel %vm2074, %v7418, -inf
        %7920 = vmax.xlane.f32.xlu0 %v7919
        %v7921 = vpop.xlane.xlu0 %7920
        %v7922 = vsel %vm2074, %v7421, -inf
        %7923 = vmax.xlane.f32.xlu0 %v7922
        %v7924 = vpop.xlane.xlu0 %7923
        %v7925 = vsel %vm2074, %v7469, -inf
        %7926 = vmax.xlane.f32.xlu0 %v7925
        %v7927 = vpop.xlane.xlu0 %7926
        %v7928 = vsel %vm2074, %v7472, -inf
        %7929 = vmax.xlane.f32.xlu0 %v7928
        %v7930 = vpop.xlane.xlu0 %7929
        %v7931 = vsel %vm2074, %v7520, -inf
        %7932 = vmax.xlane.f32.xlu0 %v7931
        %v7933 = vpop.xlane.xlu0 %7932
        %v7934 = vsel %vm2074, %v7523, -inf
        %7935 = vmax.xlane.f32.xlu0 %v7934
        %v7936 = vpop.xlane.xlu0 %7935
        %v7937 = vsel %vm2074, %v7571, -inf
        %7938 = vmax.xlane.f32.xlu0 %v7937
        %v7939 = vpop.xlane.xlu0 %7938
        %v7940 = vsel %vm2074, %v7574, -inf
        %7941 = vmax.xlane.f32.xlu0 %v7940
        %v7942 = vpop.xlane.xlu0 %7941
        %v7943 = vsel %vm2074, %v7622, -inf
        %7944 = vmax.xlane.f32.xlu0 %v7943
        %v7945 = vpop.xlane.xlu0 %7944
        %v7946 = vsel %vm2074, %v7625, -inf
        %7947 = vmax.xlane.f32.xlu0 %v7946
        %v7948 = vpop.xlane.xlu0 %7947
        %v7949 = vsel %vm2074, %v7673, -inf
        %7950 = vmax.xlane.f32.xlu0 %v7949
        %v7951 = vpop.xlane.xlu0 %7950
        %v7952 = vsel %vm2074, %v7676, -inf
        %7953 = vmax.xlane.f32.xlu0 %v7952
        %v7954 = vpop.xlane.xlu0 %7953
        %v7955 = vsel %vm2074, %v7724, -inf
        %7956 = vmax.xlane.f32.xlu0 %v7955
        %v7957 = vpop.xlane.xlu0 %7956
        %v7958 = vsel %vm2074, %v7727, -inf
        %7959 = vmax.xlane.f32.xlu0 %v7958
        %v7960 = vpop.xlane.xlu0 %7959
        %v7961 = vsel %vm2074, %v7775, -inf
        %7962 = vmax.xlane.f32.xlu0 %v7961
        %v7963 = vpop.xlane.xlu0 %7962
        %v7964 = vsel %vm2074, %v7778, -inf
        %7965 = vmax.xlane.f32.xlu0 %v7964
        %v7966 = vpop.xlane.xlu0 %7965
        %v7967 = vsel %vm2074, %v7826, -inf
        %7968 = vmax.xlane.f32.xlu0 %v7967
        %v7969 = vpop.xlane.xlu0 %7968
        %v7970 = vsel %vm2074, %v7829, -inf
        %7971 = vmax.xlane.f32.xlu0 %v7970
        %v7972 = vpop.xlane.xlu0 %7971
        %v7973 = vsel %vm2074, %v7877, -inf
        %7974 = vmax.xlane.f32.xlu0 %v7973
        %v7975 = vpop.xlane.xlu0 %7974
        %v7976 = vsel %vm2074, %v7880, -inf
        %7977 = vmax.xlane.f32.xlu0 %v7976
        %v7978 = vpop.xlane.xlu0 %7977
        %v7979 = vsub.f32 %v7112, %v7885
        %v7980 = vsub.f32 %v7115, %v7888
        %v7981 = vsub.f32 %v7163, %v7891
        %v7982 = vsub.f32 %v7166, %v7894
        %v7983 = vsub.f32 %v7214, %v7897
        %v7984 = vsub.f32 %v7217, %v7900
        %v7985 = vsub.f32 %v7265, %v7903
        %v7986 = vsub.f32 %v7268, %v7906
        %v7987 = vsub.f32 %v7316, %v7909
        %v7988 = vsub.f32 %v7319, %v7912
        %v7989 = vsub.f32 %v7367, %v7915
        %v7990 = vsub.f32 %v7370, %v7918
        %v7991 = vsub.f32 %v7418, %v7921
        %v7992 = vsub.f32 %v7421, %v7924
        %v7993 = vsub.f32 %v7469, %v7927
        %v7994 = vsub.f32 %v7472, %v7930
        %v7995 = vsub.f32 %v7520, %v7933
        %v7996 = vsub.f32 %v7523, %v7936
        %v7997 = vsub.f32 %v7571, %v7939
        %v7998 = vsub.f32 %v7574, %v7942
        %v7999 = vsub.f32 %v7622, %v7945
        %v8000 = vsub.f32 %v7625, %v7948
        %v8001 = vsub.f32 %v7673, %v7951
        %v8002 = vsub.f32 %v7676, %v7954
        %v8003 = vsub.f32 %v7724, %v7957
        %v8004 = vsub.f32 %v7727, %v7960
        %v8005 = vsub.f32 %v7775, %v7963
        %v8006 = vsub.f32 %v7778, %v7966
        %v8007 = vsub.f32 %v7826, %v7969
        %v8008 = vsub.f32 %v7829, %v7972
        %v8009 = vsub.f32 %v7877, %v7975
        %v8010 = vsub.f32 %v7880, %v7978
        %v8011 = vmul.f32 %v7979, 1.442695
        %v8012 = vpow.pop %v8011
        %v8013 = vmul.f32 %v7980, 1.442695
        %v8014 = vpow.pop %v8013
        %v8015 = vmul.f32 %v7981, 1.442695
        %v8016 = vpow.pop %v8015
        %v8017 = vmul.f32 %v7982, 1.442695
        %v8018 = vpow.pop %v8017
        %v8019 = vmul.f32 %v7983, 1.442695
        %v8020 = vpow.pop %v8019
        %v8021 = vmul.f32 %v7984, 1.442695
        %v8022 = vpow.pop %v8021
        %v8023 = vmul.f32 %v7985, 1.442695
        %v8024 = vpow.pop %v8023
        %v8025 = vmul.f32 %v7986, 1.442695
        %v8026 = vpow.pop %v8025
        %v8027 = vmul.f32 %v7987, 1.442695
        %v8028 = vpow.pop %v8027
        %v8029 = vmul.f32 %v7988, 1.442695
        %v8030 = vpow.pop %v8029
        %v8031 = vmul.f32 %v7989, 1.442695
        %v8032 = vpow.pop %v8031
        %v8033 = vmul.f32 %v7990, 1.442695
        %v8034 = vpow.pop %v8033
        %v8035 = vmul.f32 %v7991, 1.442695
        %v8036 = vpow.pop %v8035
        %v8037 = vmul.f32 %v7992, 1.442695
        %v8038 = vpow.pop %v8037
        %v8039 = vmul.f32 %v7993, 1.442695
        %v8040 = vpow.pop %v8039
        %v8041 = vmul.f32 %v7994, 1.442695
        %v8042 = vpow.pop %v8041
        %v8043 = vmul.f32 %v7995, 1.442695
        %v8044 = vpow.pop %v8043
        %v8045 = vmul.f32 %v7996, 1.442695
        %v8046 = vpow.pop %v8045
        %v8047 = vmul.f32 %v7997, 1.442695
        %v8048 = vpow.pop %v8047
        %v8049 = vmul.f32 %v7998, 1.442695
        %v8050 = vpow.pop %v8049
        %v8051 = vmul.f32 %v7999, 1.442695
        %v8052 = vpow.pop %v8051
        %v8053 = vmul.f32 %v8000, 1.442695
        %v8054 = vpow.pop %v8053
        %v8055 = vmul.f32 %v8001, 1.442695
        %v8056 = vpow.pop %v8055
        %v8057 = vmul.f32 %v8002, 1.442695
        %v8058 = vpow.pop %v8057
        %v8059 = vmul.f32 %v8003, 1.442695
        %v8060 = vpow.pop %v8059
        %v8061 = vmul.f32 %v8004, 1.442695
        %v8062 = vpow.pop %v8061
        %v8063 = vmul.f32 %v8005, 1.442695
        %v8064 = vpow.pop %v8063
        %v8065 = vmul.f32 %v8006, 1.442695
        %v8066 = vpow.pop %v8065
        %v8067 = vmul.f32 %v8007, 1.442695
        %v8068 = vpow.pop %v8067
        %v8069 = vmul.f32 %v8008, 1.442695
        %v8070 = vpow.pop %v8069
        %v8071 = vmul.f32 %v8009, 1.442695
        %v8072 = vpow.pop %v8071
        %v8073 = vmul.f32 %v8010, 1.442695
        %v8074 = vpow.pop %v8073
        %v8075 = vsel %vm2074, %v8012, 0.0
        %8076 = vadd.xlane.f32.xlu0 %v8075
        %v8077 = vpop.xlane.xlu0 %8076
        %v8078 = vsel %vm2074, %v8014, 0.0
        %8079 = vadd.xlane.f32.xlu0 %v8078
        %v8080 = vpop.xlane.xlu0 %8079
        %v8081 = vsel %vm2074, %v8016, 0.0
        %8082 = vadd.xlane.f32.xlu0 %v8081
        %v8083 = vpop.xlane.xlu0 %8082
        %v8084 = vsel %vm2074, %v8018, 0.0
        %8085 = vadd.xlane.f32.xlu0 %v8084
        %v8086 = vpop.xlane.xlu0 %8085
        %v8087 = vsel %vm2074, %v8020, 0.0
        %8088 = vadd.xlane.f32.xlu0 %v8087
        %v8089 = vpop.xlane.xlu0 %8088
        %v8090 = vsel %vm2074, %v8022, 0.0
        %8091 = vadd.xlane.f32.xlu0 %v8090
        %v8092 = vpop.xlane.xlu0 %8091
        %v8093 = vsel %vm2074, %v8024, 0.0
        %8094 = vadd.xlane.f32.xlu0 %v8093
        %v8095 = vpop.xlane.xlu0 %8094
        %v8096 = vsel %vm2074, %v8026, 0.0
        %8097 = vadd.xlane.f32.xlu0 %v8096
        %v8098 = vpop.xlane.xlu0 %8097
        %v8099 = vsel %vm2074, %v8028, 0.0
        %8100 = vadd.xlane.f32.xlu0 %v8099
        %v8101 = vpop.xlane.xlu0 %8100
        %v8102 = vsel %vm2074, %v8030, 0.0
        %8103 = vadd.xlane.f32.xlu0 %v8102
        %v8104 = vpop.xlane.xlu0 %8103
        %v8105 = vsel %vm2074, %v8032, 0.0
        %8106 = vadd.xlane.f32.xlu0 %v8105
        %v8107 = vpop.xlane.xlu0 %8106
        %v8108 = vsel %vm2074, %v8034, 0.0
        %8109 = vadd.xlane.f32.xlu0 %v8108
        %v8110 = vpop.xlane.xlu0 %8109
        %v8111 = vsel %vm2074, %v8036, 0.0
        %8112 = vadd.xlane.f32.xlu0 %v8111
        %v8113 = vpop.xlane.xlu0 %8112
        %v8114 = vsel %vm2074, %v8038, 0.0
        %8115 = vadd.xlane.f32.xlu0 %v8114
        %v8116 = vpop.xlane.xlu0 %8115
        %v8117 = vsel %vm2074, %v8040, 0.0
        %8118 = vadd.xlane.f32.xlu0 %v8117
        %v8119 = vpop.xlane.xlu0 %8118
        %v8120 = vsel %vm2074, %v8042, 0.0
        %8121 = vadd.xlane.f32.xlu0 %v8120
        %v8122 = vpop.xlane.xlu0 %8121
        %v8123 = vsel %vm2074, %v8044, 0.0
        %8124 = vadd.xlane.f32.xlu0 %v8123
        %v8125 = vpop.xlane.xlu0 %8124
        %v8126 = vsel %vm2074, %v8046, 0.0
        %8127 = vadd.xlane.f32.xlu0 %v8126
        %v8128 = vpop.xlane.xlu0 %8127
        %v8129 = vsel %vm2074, %v8048, 0.0
        %8130 = vadd.xlane.f32.xlu0 %v8129
        %v8131 = vpop.xlane.xlu0 %8130
        %v8132 = vsel %vm2074, %v8050, 0.0
        %8133 = vadd.xlane.f32.xlu0 %v8132
        %v8134 = vpop.xlane.xlu0 %8133
        %v8135 = vsel %vm2074, %v8052, 0.0
        %8136 = vadd.xlane.f32.xlu0 %v8135
        %v8137 = vpop.xlane.xlu0 %8136
        %v8138 = vsel %vm2074, %v8054, 0.0
        %8139 = vadd.xlane.f32.xlu0 %v8138
        %v8140 = vpop.xlane.xlu0 %8139
        %v8141 = vsel %vm2074, %v8056, 0.0
        %8142 = vadd.xlane.f32.xlu0 %v8141
        %v8143 = vpop.xlane.xlu0 %8142
        %v8144 = vsel %vm2074, %v8058, 0.0
        %8145 = vadd.xlane.f32.xlu0 %v8144
        %v8146 = vpop.xlane.xlu0 %8145
        %v8147 = vsel %vm2074, %v8060, 0.0
        %8148 = vadd.xlane.f32.xlu0 %v8147
        %v8149 = vpop.xlane.xlu0 %8148
        %v8150 = vsel %vm2074, %v8062, 0.0
        %8151 = vadd.xlane.f32.xlu0 %v8150
        %v8152 = vpop.xlane.xlu0 %8151
        %v8153 = vsel %vm2074, %v8064, 0.0
        %8154 = vadd.xlane.f32.xlu0 %v8153
        %v8155 = vpop.xlane.xlu0 %8154
        %v8156 = vsel %vm2074, %v8066, 0.0
        %8157 = vadd.xlane.f32.xlu0 %v8156
        %v8158 = vpop.xlane.xlu0 %8157
        %v8159 = vsel %vm2074, %v8068, 0.0
        %8160 = vadd.xlane.f32.xlu0 %v8159
        %v8161 = vpop.xlane.xlu0 %8160
        %v8162 = vsel %vm2074, %v8070, 0.0
        %8163 = vadd.xlane.f32.xlu0 %v8162
        %v8164 = vpop.xlane.xlu0 %8163
        %v8165 = vsel %vm2074, %v8072, 0.0
        %8166 = vadd.xlane.f32.xlu0 %v8165
        %v8167 = vpop.xlane.xlu0 %8166
        %v8168 = vsel %vm2074, %v8074, 0.0
        %8169 = vadd.xlane.f32.xlu0 %v8168
        %v8170 = vpop.xlane.xlu0 %8169
        %v8171 = vrcp.pop %v8077
        %v8172 = vrcp.pop %v8080
        %v8173 = vrcp.pop %v8083
        %v8174 = vrcp.pop %v8086
        %v8175 = vrcp.pop %v8089
        %v8176 = vrcp.pop %v8092
        %v8177 = vrcp.pop %v8095
        %v8178 = vrcp.pop %v8098
        %v8179 = vrcp.pop %v8101
        %v8180 = vrcp.pop %v8104
        %v8181 = vrcp.pop %v8107
        %v8182 = vrcp.pop %v8110
        %v8183 = vrcp.pop %v8113
        %v8184 = vrcp.pop %v8116
        %v8185 = vrcp.pop %v8119
        %v8186 = vrcp.pop %v8122
        %v8187 = vrcp.pop %v8125
        %v8188 = vrcp.pop %v8128
        %v8189 = vrcp.pop %v8131
        %v8190 = vrcp.pop %v8134
        %v8191 = vrcp.pop %v8137
        %v8192 = vrcp.pop %v8140
        %v8193 = vrcp.pop %v8143
        %v8194 = vrcp.pop %v8146
        %v8195 = vrcp.pop %v8149
        %v8196 = vrcp.pop %v8152
        %v8197 = vrcp.pop %v8155
        %v8198 = vrcp.pop %v8158
        %v8199 = vrcp.pop %v8161
        %v8200 = vrcp.pop %v8164
        %v8201 = vrcp.pop %v8167
        %v8202 = vrcp.pop %v8170
        %v8203 = vmul.f32 %v8012, %v8171
        %v8204 = vmul.f32 %v8014, %v8172
        %v8205 = vmul.f32 %v8016, %v8173
        %v8206 = vmul.f32 %v8018, %v8174
        %v8207 = vmul.f32 %v8020, %v8175
        %v8208 = vmul.f32 %v8022, %v8176
        %v8209 = vmul.f32 %v8024, %v8177
        %v8210 = vmul.f32 %v8026, %v8178
        %v8211 = vmul.f32 %v8028, %v8179
        %v8212 = vmul.f32 %v8030, %v8180
        %v8213 = vmul.f32 %v8032, %v8181
        %v8214 = vmul.f32 %v8034, %v8182
        %v8215 = vmul.f32 %v8036, %v8183
        %v8216 = vmul.f32 %v8038, %v8184
        %v8217 = vmul.f32 %v8040, %v8185
        %v8218 = vmul.f32 %v8042, %v8186
        %v8219 = vmul.f32 %v8044, %v8187
        %v8220 = vmul.f32 %v8046, %v8188
        %v8221 = vmul.f32 %v8048, %v8189
        %v8222 = vmul.f32 %v8050, %v8190
        %v8223 = vmul.f32 %v8052, %v8191
        %v8224 = vmul.f32 %v8054, %v8192
        %v8225 = vmul.f32 %v8056, %v8193
        %v8226 = vmul.f32 %v8058, %v8194
        %v8227 = vmul.f32 %v8060, %v8195
        %v8228 = vmul.f32 %v8062, %v8196
        %v8229 = vmul.f32 %v8064, %v8197
        %v8230 = vmul.f32 %v8066, %v8198
        %v8231 = vmul.f32 %v8068, %v8199
        %v8232 = vmul.f32 %v8070, %v8200
        %v8233 = vmul.f32 %v8072, %v8201
        %v8234 = vmul.f32 %v8074, %v8202
        %v8235 = vpack.c.bf16 %v8204, %v8203
        %v8236 = vpack.c.bf16 %v8206, %v8205
        %v8237 = vpack.c.bf16 %v8208, %v8207
        %v8238 = vpack.c.bf16 %v8210, %v8209
        %v8239 = vpack.c.bf16 %v8212, %v8211
        %v8240 = vpack.c.bf16 %v8214, %v8213
        %v8241 = vpack.c.bf16 %v8216, %v8215
        %v8242 = vpack.c.bf16 %v8218, %v8217
        %v8243 = vpack.c.bf16 %v8220, %v8219
        %v8244 = vpack.c.bf16 %v8222, %v8221
        %v8245 = vpack.c.bf16 %v8224, %v8223
        %v8246 = vpack.c.bf16 %v8226, %v8225
        %v8247 = vpack.c.bf16 %v8228, %v8227
        %v8248 = vpack.c.bf16 %v8230, %v8229
        %v8249 = vpack.c.bf16 %v8232, %v8231
        %v8250 = vpack.c.bf16 %v8234, %v8233
        %8251 = vrot.lane.b32.xlu0 %v1257, 40
        %v8252 = vpop.permute.xlu0 %8251
        %v8255 = vsel %vm2074, %v8235, 0
        %8257 = vmatprep.subr.bf16.mxu0 0
        %8258 = vmatpush1.bf16.msra.mxu0 %v8252
        %8259 = vmatprep.subr.bf16.mxu0 0
        %8260 = vmatpush1.bf16.msra.mxu0 0
        %8261 = vmatprep.subr.bf16.mxu0 0
        %8262 = vmatpush1.bf16.msra.mxu0 0
        %8263 = vmatprep.subr.bf16.mxu0 0
        %8264 = vmatpush1.bf16.msra.mxu0 0
        %8265 = vmatprep.subr.bf16.mxu0 0
        %8266 = vmatpush1.bf16.msra.mxu0 0
        %8267 = vmatprep.subr.bf16.mxu0 0
        %8268 = vmatpush1.bf16.msra.mxu0 0
        %8269 = vmatprep.subr.bf16.mxu0 0
        %8270 = vmatpush1.bf16.msra.mxu0 0
        %8271 = vmatprep.subr.bf16.mxu0 0
        %8272 = vmatpush1.bf16.msra.mxu0 0
        %8273 = vmatprep.subr.bf16.mxu0 0
        %8274 = vmatpush1.bf16.msra.mxu0 0
        %8275 = vmatprep.subr.bf16.mxu0 0
        %8276 = vmatpush1.bf16.msra.mxu0 0
        %8277 = vmatprep.subr.bf16.mxu0 0
        %8278 = vmatpush1.bf16.msra.mxu0 0
        %8279 = vmatprep.subr.bf16.mxu0 0
        %8280 = vmatpush1.bf16.msra.mxu0 0
        %8281 = vmatprep.subr.bf16.mxu0 0
        %8282 = vmatpush1.bf16.msra.mxu0 0
        %8283 = vmatprep.subr.bf16.mxu0 0
        %8284 = vmatpush1.bf16.msra.mxu0 0
        %8285 = vmatprep.subr.bf16.mxu0 0
        %8286 = vmatpush1.bf16.msra.mxu0 0
        %8287 = vmatprep.subr.bf16.mxu0 0
        %8288 = vmatpush1.bf16.msra.mxu0 0
        %8289 = vmatprep.mubr.bf16.mxu0 0
        %8290 = vmatmul.mubr.bf16.gmra.mrb[0].mxu0 %v8255
        %v8291 = vpop.f32.mrb[0].mxu0
        %v8292 = vadd.f32 0.0, %v8291
        %v8293 = vpop.f32.mrb[0].mxu0
        %v8294 = vpop.f32.mrb[0].mxu0
        %v8295 = vadd.f32 0.0, %v8294
        %v8296 = vpop.f32.mrb[0].mxu0
        %8297 = vdwg.mxu0
        %8298 = vrot.lane.b32.xlu0 %v1258, 40
        %v8299 = vpop.permute.xlu0 %8298
        %v8302 = vsel %vm2074, %v8236, 0
        %8304 = vmatprep.subr.bf16.mxu0 0
        %8305 = vmatpush1.bf16.msra.mxu0 %v8299
        %8306 = vmatprep.subr.bf16.mxu0 0
        %8307 = vmatpush1.bf16.msra.mxu0 0
        %8308 = vmatprep.subr.bf16.mxu0 0
        %8309 = vmatpush1.bf16.msra.mxu0 0
        %8310 = vmatprep.subr.bf16.mxu0 0
        %8311 = vmatpush1.bf16.msra.mxu0 0
        %8312 = vmatprep.subr.bf16.mxu0 0
        %8313 = vmatpush1.bf16.msra.mxu0 0
        %8314 = vmatprep.subr.bf16.mxu0 0
        %8315 = vmatpush1.bf16.msra.mxu0 0
        %8316 = vmatprep.subr.bf16.mxu0 0
        %8317 = vmatpush1.bf16.msra.mxu0 0
        %8318 = vmatprep.subr.bf16.mxu0 0
        %8319 = vmatpush1.bf16.msra.mxu0 0
        %8320 = vmatprep.subr.bf16.mxu0 0
        %8321 = vmatpush1.bf16.msra.mxu0 0
        %8322 = vmatprep.subr.bf16.mxu0 0
        %8323 = vmatpush1.bf16.msra.mxu0 0
        %8324 = vmatprep.subr.bf16.mxu0 0
        %8325 = vmatpush1.bf16.msra.mxu0 0
        %8326 = vmatprep.subr.bf16.mxu0 0
        %8327 = vmatpush1.bf16.msra.mxu0 0
        %8328 = vmatprep.subr.bf16.mxu0 0
        %8329 = vmatpush1.bf16.msra.mxu0 0
        %8330 = vmatprep.subr.bf16.mxu0 0
        %8331 = vmatpush1.bf16.msra.mxu0 0
        %8332 = vmatprep.subr.bf16.mxu0 0
        %8333 = vmatpush1.bf16.msra.mxu0 0
        %8334 = vmatprep.subr.bf16.mxu0 0
        %8335 = vmatpush1.bf16.msra.mxu0 0
        %8336 = vmatprep.mubr.bf16.mxu0 0
        %8337 = vmatmul.mubr.bf16.gmra.mrb[0].mxu0 %v8302
        %v8338 = vpop.f32.mrb[0].mxu0
        %v8339 = vadd.f32 0.0, %v8338
        %v8340 = vpop.f32.mrb[0].mxu0
        %v8341 = vpop.f32.mrb[0].mxu0
        %v8342 = vadd.f32 0.0, %v8341
        %v8343 = vpop.f32.mrb[0].mxu0
        %8344 = vdwg.mxu0
        %8345 = vrot.lane.b32.xlu0 %v1259, 40
        %v8346 = vpop.permute.xlu0 %8345
        %v8349 = vsel %vm2074, %v8237, 0
        %8351 = vmatprep.subr.bf16.mxu0 0
        %8352 = vmatpush1.bf16.msra.mxu0 %v8346
        %8353 = vmatprep.subr.bf16.mxu0 0
        %8354 = vmatpush1.bf16.msra.mxu0 0
        %8355 = vmatprep.subr.bf16.mxu0 0
        %8356 = vmatpush1.bf16.msra.mxu0 0
        %8357 = vmatprep.subr.bf16.mxu0 0
        %8358 = vmatpush1.bf16.msra.mxu0 0
        %8359 = vmatprep.subr.bf16.mxu0 0
        %8360 = vmatpush1.bf16.msra.mxu0 0
        %8361 = vmatprep.subr.bf16.mxu0 0
        %8362 = vmatpush1.bf16.msra.mxu0 0
        %8363 = vmatprep.subr.bf16.mxu0 0
        %8364 = vmatpush1.bf16.msra.mxu0 0
        %8365 = vmatprep.subr.bf16.mxu0 0
        %8366 = vmatpush1.bf16.msra.mxu0 0
        %8367 = vmatprep.subr.bf16.mxu0 0
        %8368 = vmatpush1.bf16.msra.mxu0 0
        %8369 = vmatprep.subr.bf16.mxu0 0
        %8370 = vmatpush1.bf16.msra.mxu0 0
        %8371 = vmatprep.subr.bf16.mxu0 0
        %8372 = vmatpush1.bf16.msra.mxu0 0
        %8373 = vmatprep.subr.bf16.mxu0 0
        %8374 = vmatpush1.bf16.msra.mxu0 0
        %8375 = vmatprep.subr.bf16.mxu0 0
        %8376 = vmatpush1.bf16.msra.mxu0 0
        %8377 = vmatprep.subr.bf16.mxu0 0
        %8378 = vmatpush1.bf16.msra.mxu0 0
        %8379 = vmatprep.subr.bf16.mxu0 0
        %8380 = vmatpush1.bf16.msra.mxu0 0
        %8381 = vmatprep.subr.bf16.mxu0 0
        %8382 = vmatpush1.bf16.msra.mxu0 0
        %8383 = vmatprep.mubr.bf16.mxu0 0
        %8384 = vmatmul.mubr.bf16.gmra.mrb[0].mxu0 %v8349
        %v8385 = vpop.f32.mrb[0].mxu0
        %v8386 = vadd.f32 0.0, %v8385
        %v8387 = vpop.f32.mrb[0].mxu0
        %v8388 = vpop.f32.mrb[0].mxu0
        %v8389 = vadd.f32 0.0, %v8388
        %v8390 = vpop.f32.mrb[0].mxu0
        %8391 = vdwg.mxu0
        %8392 = vrot.lane.b32.xlu0 %v1260, 40
        %v8393 = vpop.permute.xlu0 %8392
        %v8396 = vsel %vm2074, %v8238, 0
        %8398 = vmatprep.subr.bf16.mxu0 0
        %8399 = vmatpush1.bf16.msra.mxu0 %v8393
        %8400 = vmatprep.subr.bf16.mxu0 0
        %8401 = vmatpush1.bf16.msra.mxu0 0
        %8402 = vmatprep.subr.bf16.mxu0 0
        %8403 = vmatpush1.bf16.msra.mxu0 0
        %8404 = vmatprep.subr.bf16.mxu0 0
        %8405 = vmatpush1.bf16.msra.mxu0 0
        %8406 = vmatprep.subr.bf16.mxu0 0
        %8407 = vmatpush1.bf16.msra.mxu0 0
        %8408 = vmatprep.subr.bf16.mxu0 0
        %8409 = vmatpush1.bf16.msra.mxu0 0
        %8410 = vmatprep.subr.bf16.mxu0 0
        %8411 = vmatpush1.bf16.msra.mxu0 0
        %8412 = vmatprep.subr.bf16.mxu0 0
        %8413 = vmatpush1.bf16.msra.mxu0 0
        %8414 = vmatprep.subr.bf16.mxu0 0
        %8415 = vmatpush1.bf16.msra.mxu0 0
        %8416 = vmatprep.subr.bf16.mxu0 0
        %8417 = vmatpush1.bf16.msra.mxu0 0
        %8418 = vmatprep.subr.bf16.mxu0 0
        %8419 = vmatpush1.bf16.msra.mxu0 0
        %8420 = vmatprep.subr.bf16.mxu0 0
        %8421 = vmatpush1.bf16.msra.mxu0 0
        %8422 = vmatprep.subr.bf16.mxu0 0
        %8423 = vmatpush1.bf16.msra.mxu0 0
        %8424 = vmatprep.subr.bf16.mxu0 0
        %8425 = vmatpush1.bf16.msra.mxu0 0
        %8426 = vmatprep.subr.bf16.mxu0 0
        %8427 = vmatpush1.bf16.msra.mxu0 0
        %8428 = vmatprep.subr.bf16.mxu0 0
        %8429 = vmatpush1.bf16.msra.mxu0 0
        %8430 = vmatprep.mubr.bf16.mxu0 0
        %8431 = vmatmul.mubr.bf16.gmra.mrb[0].mxu0 %v8396
        %v8432 = vpop.f32.mrb[0].mxu0
        %v8433 = vadd.f32 0.0, %v8432
        %v8434 = vpop.f32.mrb[0].mxu0
        %v8435 = vpop.f32.mrb[0].mxu0
        %v8436 = vadd.f32 0.0, %v8435
        %v8437 = vpop.f32.mrb[0].mxu0
        %8438 = vdwg.mxu0
        %8439 = vrot.lane.b32.xlu0 %v1261, 40
        %v8440 = vpop.permute.xlu0 %8439
        %v8443 = vsel %vm2074, %v8239, 0
        %8445 = vmatprep.subr.bf16.mxu0 0
        %8446 = vmatpush1.bf16.msra.mxu0 %v8440
        %8447 = vmatprep.subr.bf16.mxu0 0
        %8448 = vmatpush1.bf16.msra.mxu0 0
        %8449 = vmatprep.subr.bf16.mxu0 0
        %8450 = vmatpush1.bf16.msra.mxu0 0
        %8451 = vmatprep.subr.bf16.mxu0 0
        %8452 = vmatpush1.bf16.msra.mxu0 0
        %8453 = vmatprep.subr.bf16.mxu0 0
        %8454 = vmatpush1.bf16.msra.mxu0 0
        %8455 = vmatprep.subr.bf16.mxu0 0
        %8456 = vmatpush1.bf16.msra.mxu0 0
        %8457 = vmatprep.subr.bf16.mxu0 0
        %8458 = vmatpush1.bf16.msra.mxu0 0
        %8459 = vmatprep.subr.bf16.mxu0 0
        %8460 = vmatpush1.bf16.msra.mxu0 0
        %8461 = vmatprep.subr.bf16.mxu0 0
        %8462 = vmatpush1.bf16.msra.mxu0 0
        %8463 = vmatprep.subr.bf16.mxu0 0
        %8464 = vmatpush1.bf16.msra.mxu0 0
        %8465 = vmatprep.subr.bf16.mxu0 0
        %8466 = vmatpush1.bf16.msra.mxu0 0
        %8467 = vmatprep.subr.bf16.mxu0 0
        %8468 = vmatpush1.bf16.msra.mxu0 0
        %8469 = vmatprep.subr.bf16.mxu0 0
        %8470 = vmatpush1.bf16.msra.mxu0 0
        %8471 = vmatprep.subr.bf16.mxu0 0
        %8472 = vmatpush1.bf16.msra.mxu0 0
        %8473 = vmatprep.subr.bf16.mxu0 0
        %8474 = vmatpush1.bf16.msra.mxu0 0
        %8475 = vmatprep.subr.bf16.mxu0 0
        %8476 = vmatpush1.bf16.msra.mxu0 0
        %8477 = vmatprep.mubr.bf16.mxu0 0
        %8478 = vmatmul.mubr.bf16.gmra.mrb[0].mxu0 %v8443
        %v8479 = vpop.f32.mrb[0].mxu0
        %v8480 = vadd.f32 0.0, %v8479
        %v8481 = vpop.f32.mrb[0].mxu0
        %v8482 = vpop.f32.mrb[0].mxu0
        %v8483 = vadd.f32 0.0, %v8482
        %v8484 = vpop.f32.mrb[0].mxu0
        %8485 = vdwg.mxu0
        %8486 = vrot.lane.b32.xlu0 %v1262, 40
        %v8487 = vpop.permute.xlu0 %8486
        %v8490 = vsel %vm2074, %v8240, 0
        %8492 = vmatprep.subr.bf16.mxu0 0
        %8493 = vmatpush1.bf16.msra.mxu0 %v8487
        %8494 = vmatprep.subr.bf16.mxu0 0
        %8495 = vmatpush1.bf16.msra.mxu0 0
        %8496 = vmatprep.subr.bf16.mxu0 0
        %8497 = vmatpush1.bf16.msra.mxu0 0
        %8498 = vmatprep.subr.bf16.mxu0 0
        %8499 = vmatpush1.bf16.msra.mxu0 0
        %8500 = vmatprep.subr.bf16.mxu0 0
        %8501 = vmatpush1.bf16.msra.mxu0 0
        %8502 = vmatprep.subr.bf16.mxu0 0
        %8503 = vmatpush1.bf16.msra.mxu0 0
        %8504 = vmatprep.subr.bf16.mxu0 0
        %8505 = vmatpush1.bf16.msra.mxu0 0
        %8506 = vmatprep.subr.bf16.mxu0 0
        %8507 = vmatpush1.bf16.msra.mxu0 0
        %8508 = vmatprep.subr.bf16.mxu0 0
        %8509 = vmatpush1.bf16.msra.mxu0 0
        %8510 = vmatprep.subr.bf16.mxu0 0
        %8511 = vmatpush1.bf16.msra.mxu0 0
        %8512 = vmatprep.subr.bf16.mxu0 0
        %8513 = vmatpush1.bf16.msra.mxu0 0
        %8514 = vmatprep.subr.bf16.mxu0 0
        %8515 = vmatpush1.bf16.msra.mxu0 0
        %8516 = vmatprep.subr.bf16.mxu0 0
        %8517 = vmatpush1.bf16.msra.mxu0 0
        %8518 = vmatprep.subr.bf16.mxu0 0
        %8519 = vmatpush1.bf16.msra.mxu0 0
        %8520 = vmatprep.subr.bf16.mxu0 0
        %8521 = vmatpush1.bf16.msra.mxu0 0
        %8522 = vmatprep.subr.bf16.mxu0 0
        %8523 = vmatpush1.bf16.msra.mxu0 0
        %8524 = vmatprep.mubr.bf16.mxu0 0
        %8525 = vmatmul.mubr.bf16.gmra.mrb[0].mxu0 %v8490
        %v8526 = vpop.f32.mrb[0].mxu0
        %v8527 = vadd.f32 0.0, %v8526
        %v8528 = vpop.f32.mrb[0].mxu0
        %v8529 = vpop.f32.mrb[0].mxu0
        %v8530 = vadd.f32 0.0, %v8529
        %v8531 = vpop.f32.mrb[0].mxu0
        %8532 = vdwg.mxu0
        %8533 = vrot.lane.b32.xlu0 %v1263, 40
        %v8534 = vpop.permute.xlu0 %8533
        %v8537 = vsel %vm2074, %v8241, 0
        %8539 = vmatprep.subr.bf16.mxu0 0
        %8540 = vmatpush1.bf16.msra.mxu0 %v8534
        %8541 = vmatprep.subr.bf16.mxu0 0
        %8542 = vmatpush1.bf16.msra.mxu0 0
        %8543 = vmatprep.subr.bf16.mxu0 0
        %8544 = vmatpush1.bf16.msra.mxu0 0
        %8545 = vmatprep.subr.bf16.mxu0 0
        %8546 = vmatpush1.bf16.msra.mxu0 0
        %8547 = vmatprep.subr.bf16.mxu0 0
        %8548 = vmatpush1.bf16.msra.mxu0 0
        %8549 = vmatprep.subr.bf16.mxu0 0
        %8550 = vmatpush1.bf16.msra.mxu0 0
        %8551 = vmatprep.subr.bf16.mxu0 0
        %8552 = vmatpush1.bf16.msra.mxu0 0
        %8553 = vmatprep.subr.bf16.mxu0 0
        %8554 = vmatpush1.bf16.msra.mxu0 0
        %8555 = vmatprep.subr.bf16.mxu0 0
        %8556 = vmatpush1.bf16.msra.mxu0 0
        %8557 = vmatprep.subr.bf16.mxu0 0
        %8558 = vmatpush1.bf16.msra.mxu0 0
        %8559 = vmatprep.subr.bf16.mxu0 0
        %8560 = vmatpush1.bf16.msra.mxu0 0
        %8561 = vmatprep.subr.bf16.mxu0 0
        %8562 = vmatpush1.bf16.msra.mxu0 0
        %8563 = vmatprep.subr.bf16.mxu0 0
        %8564 = vmatpush1.bf16.msra.mxu0 0
        %8565 = vmatprep.subr.bf16.mxu0 0
        %8566 = vmatpush1.bf16.msra.mxu0 0
        %8567 = vmatprep.subr.bf16.mxu0 0
        %8568 = vmatpush1.bf16.msra.mxu0 0
        %8569 = vmatprep.subr.bf16.mxu0 0
        %8570 = vmatpush1.bf16.msra.mxu0 0
        %8571 = vmatprep.mubr.bf16.mxu0 0
        %8572 = vmatmul.mubr.bf16.gmra.mrb[0].mxu0 %v8537
        %v8573 = vpop.f32.mrb[0].mxu0
        %v8574 = vadd.f32 0.0, %v8573
        %v8575 = vpop.f32.mrb[0].mxu0
        %v8576 = vpop.f32.mrb[0].mxu0
        %v8577 = vadd.f32 0.0, %v8576
        %v8578 = vpop.f32.mrb[0].mxu0
        %8579 = vdwg.mxu0
        %8580 = vrot.lane.b32.xlu0 %v1264, 40
        %v8581 = vpop.permute.xlu0 %8580
        %v8584 = vsel %vm2074, %v8242, 0
        %8586 = vmatprep.subr.bf16.mxu0 0
        %8587 = vmatpush1.bf16.msra.mxu0 %v8581
        %8588 = vmatprep.subr.bf16.mxu0 0
        %8589 = vmatpush1.bf16.msra.mxu0 0
        %8590 = vmatprep.subr.bf16.mxu0 0
        %8591 = vmatpush1.bf16.msra.mxu0 0
        %8592 = vmatprep.subr.bf16.mxu0 0
        %8593 = vmatpush1.bf16.msra.mxu0 0
        %8594 = vmatprep.subr.bf16.mxu0 0
        %8595 = vmatpush1.bf16.msra.mxu0 0
        %8596 = vmatprep.subr.bf16.mxu0 0
        %8597 = vmatpush1.bf16.msra.mxu0 0
        %8598 = vmatprep.subr.bf16.mxu0 0
        %8599 = vmatpush1.bf16.msra.mxu0 0
        %8600 = vmatprep.subr.bf16.mxu0 0
        %8601 = vmatpush1.bf16.msra.mxu0 0
        %8602 = vmatprep.subr.bf16.mxu0 0
        %8603 = vmatpush1.bf16.msra.mxu0 0
        %8604 = vmatprep.subr.bf16.mxu0 0
        %8605 = vmatpush1.bf16.msra.mxu0 0
        %8606 = vmatprep.subr.bf16.mxu0 0
        %8607 = vmatpush1.bf16.msra.mxu0 0
        %8608 = vmatprep.subr.bf16.mxu0 0
        %8609 = vmatpush1.bf16.msra.mxu0 0
        %8610 = vmatprep.subr.bf16.mxu0 0
        %8611 = vmatpush1.bf16.msra.mxu0 0
        %8612 = vmatprep.subr.bf16.mxu0 0
        %8613 = vmatpush1.bf16.msra.mxu0 0
        %8614 = vmatprep.subr.bf16.mxu0 0
        %8615 = vmatpush1.bf16.msra.mxu0 0
        %8616 = vmatprep.subr.bf16.mxu0 0
        %8617 = vmatpush1.bf16.msra.mxu0 0
        %8618 = vmatprep.mubr.bf16.mxu0 0
        %8619 = vmatmul.mubr.bf16.gmra.mrb[0].mxu0 %v8584
        %v8620 = vpop.f32.mrb[0].mxu0
        %v8621 = vadd.f32 0.0, %v8620
        %v8622 = vpop.f32.mrb[0].mxu0
        %v8623 = vpop.f32.mrb[0].mxu0
        %v8624 = vadd.f32 0.0, %v8623
        %v8625 = vpop.f32.mrb[0].mxu0
        %8626 = vdwg.mxu0
        %8627 = vrot.lane.b32.xlu0 %v1265, 40
        %v8628 = vpop.permute.xlu0 %8627
        %v8631 = vsel %vm2074, %v8243, 0
        %8633 = vmatprep.subr.bf16.mxu0 0
        %8634 = vmatpush1.bf16.msra.mxu0 %v8628
        %8635 = vmatprep.subr.bf16.mxu0 0
        %8636 = vmatpush1.bf16.msra.mxu0 0
        %8637 = vmatprep.subr.bf16.mxu0 0
        %8638 = vmatpush1.bf16.msra.mxu0 0
        %8639 = vmatprep.subr.bf16.mxu0 0
        %8640 = vmatpush1.bf16.msra.mxu0 0
        %8641 = vmatprep.subr.bf16.mxu0 0
        %8642 = vmatpush1.bf16.msra.mxu0 0
        %8643 = vmatprep.subr.bf16.mxu0 0
        %8644 = vmatpush1.bf16.msra.mxu0 0
        %8645 = vmatprep.subr.bf16.mxu0 0
        %8646 = vmatpush1.bf16.msra.mxu0 0
        %8647 = vmatprep.subr.bf16.mxu0 0
        %8648 = vmatpush1.bf16.msra.mxu0 0
        %8649 = vmatprep.subr.bf16.mxu0 0
        %8650 = vmatpush1.bf16.msra.mxu0 0
        %8651 = vmatprep.subr.bf16.mxu0 0
        %8652 = vmatpush1.bf16.msra.mxu0 0
        %8653 = vmatprep.subr.bf16.mxu0 0
        %8654 = vmatpush1.bf16.msra.mxu0 0
        %8655 = vmatprep.subr.bf16.mxu0 0
        %8656 = vmatpush1.bf16.msra.mxu0 0
        %8657 = vmatprep.subr.bf16.mxu0 0
        %8658 = vmatpush1.bf16.msra.mxu0 0
        %8659 = vmatprep.subr.bf16.mxu0 0
        %8660 = vmatpush1.bf16.msra.mxu0 0
        %8661 = vmatprep.subr.bf16.mxu0 0
        %8662 = vmatpush1.bf16.msra.mxu0 0
        %8663 = vmatprep.subr.bf16.mxu0 0
        %8664 = vmatpush1.bf16.msra.mxu0 0
        %8665 = vmatprep.mubr.bf16.mxu0 0
        %8666 = vmatmul.mubr.bf16.gmra.mrb[0].mxu0 %v8631
        %v8667 = vpop.f32.mrb[0].mxu0
        %v8668 = vadd.f32 0.0, %v8667
        %v8669 = vpop.f32.mrb[0].mxu0
        %v8670 = vpop.f32.mrb[0].mxu0
        %v8671 = vadd.f32 0.0, %v8670
        %v8672 = vpop.f32.mrb[0].mxu0
        %8673 = vdwg.mxu0
        %8674 = vrot.lane.b32.xlu0 %v1266, 40
        %v8675 = vpop.permute.xlu0 %8674
        %v8678 = vsel %vm2074, %v8244, 0
        %8680 = vmatprep.subr.bf16.mxu0 0
        %8681 = vmatpush1.bf16.msra.mxu0 %v8675
        %8682 = vmatprep.subr.bf16.mxu0 0
        %8683 = vmatpush1.bf16.msra.mxu0 0
        %8684 = vmatprep.subr.bf16.mxu0 0
        %8685 = vmatpush1.bf16.msra.mxu0 0
        %8686 = vmatprep.subr.bf16.mxu0 0
        %8687 = vmatpush1.bf16.msra.mxu0 0
        %8688 = vmatprep.subr.bf16.mxu0 0
        %8689 = vmatpush1.bf16.msra.mxu0 0
        %8690 = vmatprep.subr.bf16.mxu0 0
        %8691 = vmatpush1.bf16.msra.mxu0 0
        %8692 = vmatprep.subr.bf16.mxu0 0
        %8693 = vmatpush1.bf16.msra.mxu0 0
        %8694 = vmatprep.subr.bf16.mxu0 0
        %8695 = vmatpush1.bf16.msra.mxu0 0
        %8696 = vmatprep.subr.bf16.mxu0 0
        %8697 = vmatpush1.bf16.msra.mxu0 0
        %8698 = vmatprep.subr.bf16.mxu0 0
        %8699 = vmatpush1.bf16.msra.mxu0 0
        %8700 = vmatprep.subr.bf16.mxu0 0
        %8701 = vmatpush1.bf16.msra.mxu0 0
        %8702 = vmatprep.subr.bf16.mxu0 0
        %8703 = vmatpush1.bf16.msra.mxu0 0
        %8704 = vmatprep.subr.bf16.mxu0 0
        %8705 = vmatpush1.bf16.msra.mxu0 0
        %8706 = vmatprep.subr.bf16.mxu0 0
        %8707 = vmatpush1.bf16.msra.mxu0 0
        %8708 = vmatprep.subr.bf16.mxu0 0
        %8709 = vmatpush1.bf16.msra.mxu0 0
        %8710 = vmatprep.subr.bf16.mxu0 0
        %8711 = vmatpush1.bf16.msra.mxu0 0
        %8712 = vmatprep.mubr.bf16.mxu0 0
        %8713 = vmatmul.mubr.bf16.gmra.mrb[0].mxu0 %v8678
        %v8714 = vpop.f32.mrb[0].mxu0
        %v8715 = vadd.f32 0.0, %v8714
        %v8716 = vpop.f32.mrb[0].mxu0
        %v8717 = vpop.f32.mrb[0].mxu0
        %v8718 = vadd.f32 0.0, %v8717
        %v8719 = vpop.f32.mrb[0].mxu0
        %8720 = vdwg.mxu0
        %8721 = vrot.lane.b32.xlu0 %v1267, 40
        %v8722 = vpop.permute.xlu0 %8721
        %v8725 = vsel %vm2074, %v8245, 0
        %8727 = vmatprep.subr.bf16.mxu0 0
        %8728 = vmatpush1.bf16.msra.mxu0 %v8722
        %8729 = vmatprep.subr.bf16.mxu0 0
        %8730 = vmatpush1.bf16.msra.mxu0 0
        %8731 = vmatprep.subr.bf16.mxu0 0
        %8732 = vmatpush1.bf16.msra.mxu0 0
        %8733 = vmatprep.subr.bf16.mxu0 0
        %8734 = vmatpush1.bf16.msra.mxu0 0
        %8735 = vmatprep.subr.bf16.mxu0 0
        %8736 = vmatpush1.bf16.msra.mxu0 0
        %8737 = vmatprep.subr.bf16.mxu0 0
        %8738 = vmatpush1.bf16.msra.mxu0 0
        %8739 = vmatprep.subr.bf16.mxu0 0
        %8740 = vmatpush1.bf16.msra.mxu0 0
        %8741 = vmatprep.subr.bf16.mxu0 0
        %8742 = vmatpush1.bf16.msra.mxu0 0
        %8743 = vmatprep.subr.bf16.mxu0 0
        %8744 = vmatpush1.bf16.msra.mxu0 0
        %8745 = vmatprep.subr.bf16.mxu0 0
        %8746 = vmatpush1.bf16.msra.mxu0 0
        %8747 = vmatprep.subr.bf16.mxu0 0
        %8748 = vmatpush1.bf16.msra.mxu0 0
        %8749 = vmatprep.subr.bf16.mxu0 0
        %8750 = vmatpush1.bf16.msra.mxu0 0
        %8751 = vmatprep.subr.bf16.mxu0 0
        %8752 = vmatpush1.bf16.msra.mxu0 0
        %8753 = vmatprep.subr.bf16.mxu0 0
        %8754 = vmatpush1.bf16.msra.mxu0 0
        %8755 = vmatprep.subr.bf16.mxu0 0
        %8756 = vmatpush1.bf16.msra.mxu0 0
        %8757 = vmatprep.subr.bf16.mxu0 0
        %8758 = vmatpush1.bf16.msra.mxu0 0
        %8759 = vmatprep.mubr.bf16.mxu0 0
        %8760 = vmatmul.mubr.bf16.gmra.mrb[0].mxu0 %v8725
        %v8761 = vpop.f32.mrb[0].mxu0
        %v8762 = vadd.f32 0.0, %v8761
        %v8763 = vpop.f32.mrb[0].mxu0
        %v8764 = vpop.f32.mrb[0].mxu0
        %v8765 = vadd.f32 0.0, %v8764
        %v8766 = vpop.f32.mrb[0].mxu0
        %8767 = vdwg.mxu0
        %8768 = vrot.lane.b32.xlu0 %v1268, 40
        %v8769 = vpop.permute.xlu0 %8768
        %v8772 = vsel %vm2074, %v8246, 0
        %8774 = vmatprep.subr.bf16.mxu0 0
        %8775 = vmatpush1.bf16.msra.mxu0 %v8769
        %8776 = vmatprep.subr.bf16.mxu0 0
        %8777 = vmatpush1.bf16.msra.mxu0 0
        %8778 = vmatprep.subr.bf16.mxu0 0
        %8779 = vmatpush1.bf16.msra.mxu0 0
        %8780 = vmatprep.subr.bf16.mxu0 0
        %8781 = vmatpush1.bf16.msra.mxu0 0
        %8782 = vmatprep.subr.bf16.mxu0 0
        %8783 = vmatpush1.bf16.msra.mxu0 0
        %8784 = vmatprep.subr.bf16.mxu0 0
        %8785 = vmatpush1.bf16.msra.mxu0 0
        %8786 = vmatprep.subr.bf16.mxu0 0
        %8787 = vmatpush1.bf16.msra.mxu0 0
        %8788 = vmatprep.subr.bf16.mxu0 0
        %8789 = vmatpush1.bf16.msra.mxu0 0
        %8790 = vmatprep.subr.bf16.mxu0 0
        %8791 = vmatpush1.bf16.msra.mxu0 0
        %8792 = vmatprep.subr.bf16.mxu0 0
        %8793 = vmatpush1.bf16.msra.mxu0 0
        %8794 = vmatprep.subr.bf16.mxu0 0
        %8795 = vmatpush1.bf16.msra.mxu0 0
        %8796 = vmatprep.subr.bf16.mxu0 0
        %8797 = vmatpush1.bf16.msra.mxu0 0
        %8798 = vmatprep.subr.bf16.mxu0 0
        %8799 = vmatpush1.bf16.msra.mxu0 0
        %8800 = vmatprep.subr.bf16.mxu0 0
        %8801 = vmatpush1.bf16.msra.mxu0 0
        %8802 = vmatprep.subr.bf16.mxu0 0
        %8803 = vmatpush1.bf16.msra.mxu0 0
        %8804 = vmatprep.subr.bf16.mxu0 0
        %8805 = vmatpush1.bf16.msra.mxu0 0
        %8806 = vmatprep.mubr.bf16.mxu0 0
        %8807 = vmatmul.mubr.bf16.gmra.mrb[0].mxu0 %v8772
        %v8808 = vpop.f32.mrb[0].mxu0
        %v8809 = vadd.f32 0.0, %v8808
        %v8810 = vpop.f32.mrb[0].mxu0
        %v8811 = vpop.f32.mrb[0].mxu0
        %v8812 = vadd.f32 0.0, %v8811
        %v8813 = vpop.f32.mrb[0].mxu0
        %8814 = vdwg.mxu0
        %8815 = vrot.lane.b32.xlu0 %v1269, 40
        %v8816 = vpop.permute.xlu0 %8815
        %v8819 = vsel %vm2074, %v8247, 0
        %8821 = vmatprep.subr.bf16.mxu0 0
        %8822 = vmatpush1.bf16.msra.mxu0 %v8816
        %8823 = vmatprep.subr.bf16.mxu0 0
        %8824 = vmatpush1.bf16.msra.mxu0 0
        %8825 = vmatprep.subr.bf16.mxu0 0
        %8826 = vmatpush1.bf16.msra.mxu0 0
        %8827 = vmatprep.subr.bf16.mxu0 0
        %8828 = vmatpush1.bf16.msra.mxu0 0
        %8829 = vmatprep.subr.bf16.mxu0 0
        %8830 = vmatpush1.bf16.msra.mxu0 0
        %8831 = vmatprep.subr.bf16.mxu0 0
        %8832 = vmatpush1.bf16.msra.mxu0 0
        %8833 = vmatprep.subr.bf16.mxu0 0
        %8834 = vmatpush1.bf16.msra.mxu0 0
        %8835 = vmatprep.subr.bf16.mxu0 0
        %8836 = vmatpush1.bf16.msra.mxu0 0
        %8837 = vmatprep.subr.bf16.mxu0 0
        %8838 = vmatpush1.bf16.msra.mxu0 0
        %8839 = vmatprep.subr.bf16.mxu0 0
        %8840 = vmatpush1.bf16.msra.mxu0 0
        %8841 = vmatprep.subr.bf16.mxu0 0
        %8842 = vmatpush1.bf16.msra.mxu0 0
        %8843 = vmatprep.subr.bf16.mxu0 0
        %8844 = vmatpush1.bf16.msra.mxu0 0
        %8845 = vmatprep.subr.bf16.mxu0 0
        %8846 = vmatpush1.bf16.msra.mxu0 0
        %8847 = vmatprep.subr.bf16.mxu0 0
        %8848 = vmatpush1.bf16.msra.mxu0 0
        %8849 = vmatprep.subr.bf16.mxu0 0
        %8850 = vmatpush1.bf16.msra.mxu0 0
        %8851 = vmatprep.subr.bf16.mxu0 0
        %8852 = vmatpush1.bf16.msra.mxu0 0
        %8853 = vmatprep.mubr.bf16.mxu0 0
        %8854 = vmatmul.mubr.bf16.gmra.mrb[0].mxu0 %v8819
        %v8855 = vpop.f32.mrb[0].mxu0
        %v8856 = vadd.f32 0.0, %v8855
        %v8857 = vpop.f32.mrb[0].mxu0
        %v8858 = vpop.f32.mrb[0].mxu0
        %v8859 = vadd.f32 0.0, %v8858
        %v8860 = vpop.f32.mrb[0].mxu0
        %8861 = vdwg.mxu0
        %8862 = vrot.lane.b32.xlu0 %v1270, 40
        %v8863 = vpop.permute.xlu0 %8862
        %v8866 = vsel %vm2074, %v8248, 0
        %8868 = vmatprep.subr.bf16.mxu0 0
        %8869 = vmatpush1.bf16.msra.mxu0 %v8863
        %8870 = vmatprep.subr.bf16.mxu0 0
        %8871 = vmatpush1.bf16.msra.mxu0 0
        %8872 = vmatprep.subr.bf16.mxu0 0
        %8873 = vmatpush1.bf16.msra.mxu0 0
        %8874 = vmatprep.subr.bf16.mxu0 0
        %8875 = vmatpush1.bf16.msra.mxu0 0
        %8876 = vmatprep.subr.bf16.mxu0 0
        %8877 = vmatpush1.bf16.msra.mxu0 0
        %8878 = vmatprep.subr.bf16.mxu0 0
        %8879 = vmatpush1.bf16.msra.mxu0 0
        %8880 = vmatprep.subr.bf16.mxu0 0
        %8881 = vmatpush1.bf16.msra.mxu0 0
        %8882 = vmatprep.subr.bf16.mxu0 0
        %8883 = vmatpush1.bf16.msra.mxu0 0
        %8884 = vmatprep.subr.bf16.mxu0 0
        %8885 = vmatpush1.bf16.msra.mxu0 0
        %8886 = vmatprep.subr.bf16.mxu0 0
        %8887 = vmatpush1.bf16.msra.mxu0 0
        %8888 = vmatprep.subr.bf16.mxu0 0
        %8889 = vmatpush1.bf16.msra.mxu0 0
        %8890 = vmatprep.subr.bf16.mxu0 0
        %8891 = vmatpush1.bf16.msra.mxu0 0
        %8892 = vmatprep.subr.bf16.mxu0 0
        %8893 = vmatpush1.bf16.msra.mxu0 0
        %8894 = vmatprep.subr.bf16.mxu0 0
        %8895 = vmatpush1.bf16.msra.mxu0 0
        %8896 = vmatprep.subr.bf16.mxu0 0
        %8897 = vmatpush1.bf16.msra.mxu0 0
        %8898 = vmatprep.subr.bf16.mxu0 0
        %8899 = vmatpush1.bf16.msra.mxu0 0
        %8900 = vmatprep.mubr.bf16.mxu0 0
        %8901 = vmatmul.mubr.bf16.gmra.mrb[0].mxu0 %v8866
        %v8902 = vpop.f32.mrb[0].mxu0
        %v8903 = vadd.f32 0.0, %v8902
        %v8904 = vpop.f32.mrb[0].mxu0
        %v8905 = vpop.f32.mrb[0].mxu0
        %v8906 = vadd.f32 0.0, %v8905
        %v8907 = vpop.f32.mrb[0].mxu0
        %8908 = vdwg.mxu0
        %8909 = vrot.lane.b32.xlu0 %v1271, 40
        %v8910 = vpop.permute.xlu0 %8909
        %v8913 = vsel %vm2074, %v8249, 0
        %8915 = vmatprep.subr.bf16.mxu0 0
        %8916 = vmatpush1.bf16.msra.mxu0 %v8910
        %8917 = vmatprep.subr.bf16.mxu0 0
        %8918 = vmatpush1.bf16.msra.mxu0 0
        %8919 = vmatprep.subr.bf16.mxu0 0
        %8920 = vmatpush1.bf16.msra.mxu0 0
        %8921 = vmatprep.subr.bf16.mxu0 0
        %8922 = vmatpush1.bf16.msra.mxu0 0
        %8923 = vmatprep.subr.bf16.mxu0 0
        %8924 = vmatpush1.bf16.msra.mxu0 0
        %8925 = vmatprep.subr.bf16.mxu0 0
        %8926 = vmatpush1.bf16.msra.mxu0 0
        %8927 = vmatprep.subr.bf16.mxu0 0
        %8928 = vmatpush1.bf16.msra.mxu0 0
        %8929 = vmatprep.subr.bf16.mxu0 0
        %8930 = vmatpush1.bf16.msra.mxu0 0
        %8931 = vmatprep.subr.bf16.mxu0 0
        %8932 = vmatpush1.bf16.msra.mxu0 0
        %8933 = vmatprep.subr.bf16.mxu0 0
        %8934 = vmatpush1.bf16.msra.mxu0 0
        %8935 = vmatprep.subr.bf16.mxu0 0
        %8936 = vmatpush1.bf16.msra.mxu0 0
        %8937 = vmatprep.subr.bf16.mxu0 0
        %8938 = vmatpush1.bf16.msra.mxu0 0
        %8939 = vmatprep.subr.bf16.mxu0 0
        %8940 = vmatpush1.bf16.msra.mxu0 0
        %8941 = vmatprep.subr.bf16.mxu0 0
        %8942 = vmatpush1.bf16.msra.mxu0 0
        %8943 = vmatprep.subr.bf16.mxu0 0
        %8944 = vmatpush1.bf16.msra.mxu0 0
        %8945 = vmatprep.subr.bf16.mxu0 0
        %8946 = vmatpush1.bf16.msra.mxu0 0
        %8947 = vmatprep.mubr.bf16.mxu0 0
        %8948 = vmatmul.mubr.bf16.gmra.mrb[0].mxu0 %v8913
        %v8949 = vpop.f32.mrb[0].mxu0
        %v8950 = vadd.f32 0.0, %v8949
        %v8951 = vpop.f32.mrb[0].mxu0
        %v8952 = vpop.f32.mrb[0].mxu0
        %v8953 = vadd.f32 0.0, %v8952
        %v8954 = vpop.f32.mrb[0].mxu0
        %8955 = vdwg.mxu0
        %8956 = vrot.lane.b32.xlu0 %v1272, 40
        %v8957 = vpop.permute.xlu0 %8956
        %v8960 = vsel %vm2074, %v8250, 0
        %8962 = vmatprep.subr.bf16.mxu0 0
        %8963 = vmatpush1.bf16.msra.mxu0 %v8957
        %8964 = vmatprep.subr.bf16.mxu0 0
        %8965 = vmatpush1.bf16.msra.mxu0 0
        %8966 = vmatprep.subr.bf16.mxu0 0
        %8967 = vmatpush1.bf16.msra.mxu0 0
        %8968 = vmatprep.subr.bf16.mxu0 0
        %8969 = vmatpush1.bf16.msra.mxu0 0
        %8970 = vmatprep.subr.bf16.mxu0 0
        %8971 = vmatpush1.bf16.msra.mxu0 0
        %8972 = vmatprep.subr.bf16.mxu0 0
        %8973 = vmatpush1.bf16.msra.mxu0 0
        %8974 = vmatprep.subr.bf16.mxu0 0
        %8975 = vmatpush1.bf16.msra.mxu0 0
        %8976 = vmatprep.subr.bf16.mxu0 0
        %8977 = vmatpush1.bf16.msra.mxu0 0
        %8978 = vmatprep.subr.bf16.mxu0 0
        %8979 = vmatpush1.bf16.msra.mxu0 0
        %8980 = vmatprep.subr.bf16.mxu0 0
        %8981 = vmatpush1.bf16.msra.mxu0 0
        %8982 = vmatprep.subr.bf16.mxu0 0
        %8983 = vmatpush1.bf16.msra.mxu0 0
        %8984 = vmatprep.subr.bf16.mxu0 0
        %8985 = vmatpush1.bf16.msra.mxu0 0
        %8986 = vmatprep.subr.bf16.mxu0 0
        %8987 = vmatpush1.bf16.msra.mxu0 0
        %8988 = vmatprep.subr.bf16.mxu0 0
        %8989 = vmatpush1.bf16.msra.mxu0 0
        %8990 = vmatprep.subr.bf16.mxu0 0
        %8991 = vmatpush1.bf16.msra.mxu0 0
        %8992 = vmatprep.subr.bf16.mxu0 0
        %8993 = vmatpush1.bf16.msra.mxu0 0
        %8994 = vmatprep.mubr.bf16.mxu0 0
        %8995 = vmatmul.mubr.bf16.gmra.mrb[0].mxu0 %v8960
        %v8996 = vpop.f32.mrb[0].mxu0
        %v8997 = vadd.f32 0.0, %v8996
        %v8998 = vpop.f32.mrb[0].mxu0
        %v8999 = vpop.f32.mrb[0].mxu0
        %v9000 = vadd.f32 0.0, %v8999
        %v9001 = vpop.f32.mrb[0].mxu0
        %9002 = vdwg.mxu0
        %9035 = vrot.lane.b32.xlu0 %v4420, 8
        %v9036 = vpop.permute.xlu0 %9035
        %9037 = vrot.lane.b32.xlu0 %v4423, 8
        %v9038 = vpop.permute.xlu0 %9037
        %9039 = vrot.lane.b32.xlu0 %v4467, 8
        %v9040 = vpop.permute.xlu0 %9039
        %9041 = vrot.lane.b32.xlu0 %v4470, 8
        %v9042 = vpop.permute.xlu0 %9041
        %9043 = vrot.lane.b32.xlu0 %v4514, 8
        %v9044 = vpop.permute.xlu0 %9043
        %9045 = vrot.lane.b32.xlu0 %v4517, 8
        %v9046 = vpop.permute.xlu0 %9045
        %9047 = vrot.lane.b32.xlu0 %v4561, 8
        %v9048 = vpop.permute.xlu0 %9047
        %9049 = vrot.lane.b32.xlu0 %v4564, 8
        %v9050 = vpop.permute.xlu0 %9049
        %9051 = vrot.lane.b32.xlu0 %v4608, 8
        %v9052 = vpop.permute.xlu0 %9051
        %9053 = vrot.lane.b32.xlu0 %v4611, 8
        %v9054 = vpop.permute.xlu0 %9053
        %9055 = vrot.lane.b32.xlu0 %v4655, 8
        %v9056 = vpop.permute.xlu0 %9055
        %9057 = vrot.lane.b32.xlu0 %v4658, 8
        %v9058 = vpop.permute.xlu0 %9057
        %9059 = vrot.lane.b32.xlu0 %v4702, 8
        %v9060 = vpop.permute.xlu0 %9059
        %9061 = vrot.lane.b32.xlu0 %v4705, 8
        %v9062 = vpop.permute.xlu0 %9061
        %9063 = vrot.lane.b32.xlu0 %v4749, 8
        %v9064 = vpop.permute.xlu0 %9063
        %9065 = vrot.lane.b32.xlu0 %v4752, 8
        %v9066 = vpop.permute.xlu0 %9065
        %9067 = vrot.lane.b32.xlu0 %v4796, 8
        %v9068 = vpop.permute.xlu0 %9067
        %9069 = vrot.lane.b32.xlu0 %v4799, 8
        %v9070 = vpop.permute.xlu0 %9069
        %9071 = vrot.lane.b32.xlu0 %v4843, 8
        %v9072 = vpop.permute.xlu0 %9071
        %9073 = vrot.lane.b32.xlu0 %v4846, 8
        %v9074 = vpop.permute.xlu0 %9073
        %9075 = vrot.lane.b32.xlu0 %v4890, 8
        %v9076 = vpop.permute.xlu0 %9075
        %9077 = vrot.lane.b32.xlu0 %v4893, 8
        %v9078 = vpop.permute.xlu0 %9077
        %9079 = vrot.lane.b32.xlu0 %v4937, 8
        %v9080 = vpop.permute.xlu0 %9079
        %9081 = vrot.lane.b32.xlu0 %v4940, 8
        %v9082 = vpop.permute.xlu0 %9081
        %9083 = vrot.lane.b32.xlu0 %v4984, 8
        %v9084 = vpop.permute.xlu0 %9083
        %9085 = vrot.lane.b32.xlu0 %v4987, 8
        %v9086 = vpop.permute.xlu0 %9085
        %9087 = vrot.lane.b32.xlu0 %v5031, 8
        %v9088 = vpop.permute.xlu0 %9087
        %9089 = vrot.lane.b32.xlu0 %v5034, 8
        %v9090 = vpop.permute.xlu0 %9089
        %9091 = vrot.lane.b32.xlu0 %v5078, 8
        %v9092 = vpop.permute.xlu0 %9091
        %9093 = vrot.lane.b32.xlu0 %v5081, 8
        %v9094 = vpop.permute.xlu0 %9093
        %9095 = vrot.lane.b32.xlu0 %v5125, 8
        %v9096 = vpop.permute.xlu0 %9095
        %9097 = vrot.lane.b32.xlu0 %v5128, 8
        %v9098 = vpop.permute.xlu0 %9097
        %9163 = vrot.lane.b32.xlu0 %v6356, 16
        %v9164 = vpop.permute.xlu0 %9163
        %9165 = vrot.lane.b32.xlu0 %v6359, 16
        %v9166 = vpop.permute.xlu0 %9165
        %9167 = vrot.lane.b32.xlu0 %v6403, 16
        %v9168 = vpop.permute.xlu0 %9167
        %9169 = vrot.lane.b32.xlu0 %v6406, 16
        %v9170 = vpop.permute.xlu0 %9169
        %9171 = vrot.lane.b32.xlu0 %v6450, 16
        %v9172 = vpop.permute.xlu0 %9171
        %9173 = vrot.lane.b32.xlu0 %v6453, 16
        %v9174 = vpop.permute.xlu0 %9173
        %9175 = vrot.lane.b32.xlu0 %v6497, 16
        %v9176 = vpop.permute.xlu0 %9175
        %9177 = vrot.lane.b32.xlu0 %v6500, 16
        %v9178 = vpop.permute.xlu0 %9177
        %9179 = vrot.lane.b32.xlu0 %v6544, 16
        %v9180 = vpop.permute.xlu0 %9179
        %9181 = vrot.lane.b32.xlu0 %v6547, 16
        %v9182 = vpop.permute.xlu0 %9181
        %9183 = vrot.lane.b32.xlu0 %v6591, 16
        %v9184 = vpop.permute.xlu0 %9183
        %9185 = vrot.lane.b32.xlu0 %v6594, 16
        %v9186 = vpop.permute.xlu0 %9185
        %9187 = vrot.lane.b32.xlu0 %v6638, 16
        %v9188 = vpop.permute.xlu0 %9187
        %9189 = vrot.lane.b32.xlu0 %v6641, 16
        %v9190 = vpop.permute.xlu0 %9189
        %9191 = vrot.lane.b32.xlu0 %v6685, 16
        %v9192 = vpop.permute.xlu0 %9191
        %9193 = vrot.lane.b32.xlu0 %v6688, 16
        %v9194 = vpop.permute.xlu0 %9193
        %9195 = vrot.lane.b32.xlu0 %v6732, 16
        %v9196 = vpop.permute.xlu0 %9195
        %9197 = vrot.lane.b32.xlu0 %v6735, 16
        %v9198 = vpop.permute.xlu0 %9197
        %9199 = vrot.lane.b32.xlu0 %v6779, 16
        %v9200 = vpop.permute.xlu0 %9199
        %9201 = vrot.lane.b32.xlu0 %v6782, 16
        %v9202 = vpop.permute.xlu0 %9201
        %9203 = vrot.lane.b32.xlu0 %v6826, 16
        %v9204 = vpop.permute.xlu0 %9203
        %9205 = vrot.lane.b32.xlu0 %v6829, 16
        %v9206 = vpop.permute.xlu0 %9205
        %9207 = vrot.lane.b32.xlu0 %v6873, 16
        %v9208 = vpop.permute.xlu0 %9207
        %9209 = vrot.lane.b32.xlu0 %v6876, 16
        %v9210 = vpop.permute.xlu0 %9209
        %9211 = vrot.lane.b32.xlu0 %v6920, 16
        %v9212 = vpop.permute.xlu0 %9211
        %9213 = vrot.lane.b32.xlu0 %v6923, 16
        %v9214 = vpop.permute.xlu0 %9213
        %9215 = vrot.lane.b32.xlu0 %v6967, 16
        %v9216 = vpop.permute.xlu0 %9215
        %9217 = vrot.lane.b32.xlu0 %v6970, 16
        %v9218 = vpop.permute.xlu0 %9217
        %9219 = vrot.lane.b32.xlu0 %v7014, 16
        %v9220 = vpop.permute.xlu0 %9219
        %9221 = vrot.lane.b32.xlu0 %v7017, 16
        %v9222 = vpop.permute.xlu0 %9221
        %9223 = vrot.lane.b32.xlu0 %v7061, 16
        %v9224 = vpop.permute.xlu0 %9223
        %9225 = vrot.lane.b32.xlu0 %v7064, 16
        %v9226 = vpop.permute.xlu0 %9225
        %9291 = vrot.lane.b32.xlu0 %v8292, 24
        %v9292 = vpop.permute.xlu0 %9291
        %9293 = vrot.lane.b32.xlu0 %v8295, 24
        %v9294 = vpop.permute.xlu0 %9293
        %9295 = vrot.lane.b32.xlu0 %v8339, 24
        %v9296 = vpop.permute.xlu0 %9295
        %9297 = vrot.lane.b32.xlu0 %v8342, 24
        %v9298 = vpop.permute.xlu0 %9297
        %9299 = vrot.lane.b32.xlu0 %v8386, 24
        %v9300 = vpop.permute.xlu0 %9299
        %9301 = vrot.lane.b32.xlu0 %v8389, 24
        %v9302 = vpop.permute.xlu0 %9301
        %9303 = vrot.lane.b32.xlu0 %v8433, 24
        %v9304 = vpop.permute.xlu0 %9303
        %9305 = vrot.lane.b32.xlu0 %v8436, 24
        %v9306 = vpop.permute.xlu0 %9305
        %9307 = vrot.lane.b32.xlu0 %v8480, 24
        %v9308 = vpop.permute.xlu0 %9307
        %9309 = vrot.lane.b32.xlu0 %v8483, 24
        %v9310 = vpop.permute.xlu0 %9309
        %9311 = vrot.lane.b32.xlu0 %v8527, 24
        %v9312 = vpop.permute.xlu0 %9311
        %9313 = vrot.lane.b32.xlu0 %v8530, 24
        %v9314 = vpop.permute.xlu0 %9313
        %9315 = vrot.lane.b32.xlu0 %v8574, 24
        %v9316 = vpop.permute.xlu0 %9315
        %9317 = vrot.lane.b32.xlu0 %v8577, 24
        %v9318 = vpop.permute.xlu0 %9317
        %9319 = vrot.lane.b32.xlu0 %v8621, 24
        %v9320 = vpop.permute.xlu0 %9319
        %9321 = vrot.lane.b32.xlu0 %v8624, 24
        %v9322 = vpop.permute.xlu0 %9321
        %9323 = vrot.lane.b32.xlu0 %v8668, 24
        %v9324 = vpop.permute.xlu0 %9323
        %9325 = vrot.lane.b32.xlu0 %v8671, 24
        %v9326 = vpop.permute.xlu0 %9325
        %9327 = vrot.lane.b32.xlu0 %v8715, 24
        %v9328 = vpop.permute.xlu0 %9327
        %9329 = vrot.lane.b32.xlu0 %v8718, 24
        %v9330 = vpop.permute.xlu0 %9329
        %9331 = vrot.lane.b32.xlu0 %v8762, 24
        %v9332 = vpop.permute.xlu0 %9331
        %9333 = vrot.lane.b32.xlu0 %v8765, 24
        %v9334 = vpop.permute.xlu0 %9333
        %9335 = vrot.lane.b32.xlu0 %v8809, 24
        %v9336 = vpop.permute.xlu0 %9335
        %9337 = vrot.lane.b32.xlu0 %v8812, 24
        %v9338 = vpop.permute.xlu0 %9337
        %9339 = vrot.lane.b32.xlu0 %v8856, 24
        %v9340 = vpop.permute.xlu0 %9339
        %9341 = vrot.lane.b32.xlu0 %v8859, 24
        %v9342 = vpop.permute.xlu0 %9341
        %9343 = vrot.lane.b32.xlu0 %v8903, 24
        %v9344 = vpop.permute.xlu0 %9343
        %9345 = vrot.lane.b32.xlu0 %v8906, 24
        %v9346 = vpop.permute.xlu0 %9345
        %9347 = vrot.lane.b32.xlu0 %v8950, 24
        %v9348 = vpop.permute.xlu0 %9347
        %9349 = vrot.lane.b32.xlu0 %v8953, 24
        %v9350 = vpop.permute.xlu0 %9349
        %9351 = vrot.lane.b32.xlu0 %v8997, 24
        %v9352 = vpop.permute.xlu0 %9351
        %9353 = vrot.lane.b32.xlu0 %v9000, 24
        %v9354 = vpop.permute.xlu0 %9353
        %v9387 = vsel %vm1276, %v2484, %v9036
        %v9388 = vsel %vm1276, %v2487, %v9038
        %v9389 = vsel %vm1276, %v2531, %v9040
        %v9390 = vsel %vm1276, %v2534, %v9042
        %v9391 = vsel %vm1276, %v2578, %v9044
        %v9392 = vsel %vm1276, %v2581, %v9046
        %v9393 = vsel %vm1276, %v2625, %v9048
        %v9394 = vsel %vm1276, %v2628, %v9050
        %v9395 = vsel %vm1276, %v2672, %v9052
        %v9396 = vsel %vm1276, %v2675, %v9054
        %v9397 = vsel %vm1276, %v2719, %v9056
        %v9398 = vsel %vm1276, %v2722, %v9058
        %v9399 = vsel %vm1276, %v2766, %v9060
        %v9400 = vsel %vm1276, %v2769, %v9062
        %v9401 = vsel %vm1276, %v2813, %v9064
        %v9402 = vsel %vm1276, %v2816, %v9066
        %v9403 = vsel %vm1276, %v2860, %v9068
        %v9404 = vsel %vm1276, %v2863, %v9070
        %v9405 = vsel %vm1276, %v2907, %v9072
        %v9406 = vsel %vm1276, %v2910, %v9074
        %v9407 = vsel %vm1276, %v2954, %v9076
        %v9408 = vsel %vm1276, %v2957, %v9078
        %v9409 = vsel %vm1276, %v3001, %v9080
        %v9410 = vsel %vm1276, %v3004, %v9082
        %v9411 = vsel %vm1276, %v3048, %v9084
        %v9412 = vsel %vm1276, %v3051, %v9086
        %v9413 = vsel %vm1276, %v3095, %v9088
        %v9414 = vsel %vm1276, %v3098, %v9090
        %v9415 = vsel %vm1276, %v3142, %v9092
        %v9416 = vsel %vm1276, %v3145, %v9094
        %v9417 = vsel %vm1276, %v3189, %v9096
        %v9418 = vsel %vm1276, %v3192, %v9098
        %v9419 = vsel %vm2074, %v9387, %v9164
        %v9420 = vsel %vm2074, %v9388, %v9166
        %v9421 = vsel %vm2074, %v9389, %v9168
        %v9422 = vsel %vm2074, %v9390, %v9170
        %v9423 = vsel %vm2074, %v9391, %v9172
        %v9424 = vsel %vm2074, %v9392, %v9174
        %v9425 = vsel %vm2074, %v9393, %v9176
        %v9426 = vsel %vm2074, %v9394, %v9178
        %v9427 = vsel %vm2074, %v9395, %v9180
        %v9428 = vsel %vm2074, %v9396, %v9182
        %v9429 = vsel %vm2074, %v9397, %v9184
        %v9430 = vsel %vm2074, %v9398, %v9186
        %v9431 = vsel %vm2074, %v9399, %v9188
        %v9432 = vsel %vm2074, %v9400, %v9190
        %v9433 = vsel %vm2074, %v9401, %v9192
        %v9434 = vsel %vm2074, %v9402, %v9194
        %v9435 = vsel %vm2074, %v9403, %v9196
        %v9436 = vsel %vm2074, %v9404, %v9198
        %v9437 = vsel %vm2074, %v9405, %v9200
        %v9438 = vsel %vm2074, %v9406, %v9202
        %v9439 = vsel %vm2074, %v9407, %v9204
        %v9440 = vsel %vm2074, %v9408, %v9206
        %v9441 = vsel %vm2074, %v9409, %v9208
        %v9442 = vsel %vm2074, %v9410, %v9210
        %v9443 = vsel %vm2074, %v9411, %v9212
        %v9444 = vsel %vm2074, %v9412, %v9214
        %v9445 = vsel %vm2074, %v9413, %v9216
        %v9446 = vsel %vm2074, %v9414, %v9218
        %v9447 = vsel %vm2074, %v9415, %v9220
        %v9448 = vsel %vm2074, %v9416, %v9222
        %v9449 = vsel %vm2074, %v9417, %v9224
        %v9450 = vsel %vm2074, %v9418, %v9226
        %vm9451 = vcmask 195584
        %v9452 = vsel %vm9451, %v9419, %v9292
        %v9453 = vsel %vm9451, %v9420, %v9294
        %v9454 = vsel %vm9451, %v9421, %v9296
        %v9455 = vsel %vm9451, %v9422, %v9298
        %v9456 = vsel %vm9451, %v9423, %v9300
        %v9457 = vsel %vm9451, %v9424, %v9302
        %v9458 = vsel %vm9451, %v9425, %v9304
        %v9459 = vsel %vm9451, %v9426, %v9306
        %v9460 = vsel %vm9451, %v9427, %v9308
        %v9461 = vsel %vm9451, %v9428, %v9310
        %v9462 = vsel %vm9451, %v9429, %v9312
        %v9463 = vsel %vm9451, %v9430, %v9314
        %v9464 = vsel %vm9451, %v9431, %v9316
        %v9465 = vsel %vm9451, %v9432, %v9318
        %v9466 = vsel %vm9451, %v9433, %v9320
        %v9467 = vsel %vm9451, %v9434, %v9322
        %v9468 = vsel %vm9451, %v9435, %v9324
        %v9469 = vsel %vm9451, %v9436, %v9326
        %v9470 = vsel %vm9451, %v9437, %v9328
        %v9471 = vsel %vm9451, %v9438, %v9330
        %v9472 = vsel %vm9451, %v9439, %v9332
        %v9473 = vsel %vm9451, %v9440, %v9334
        %v9474 = vsel %vm9451, %v9441, %v9336
        %v9475 = vsel %vm9451, %v9442, %v9338
        %v9476 = vsel %vm9451, %v9443, %v9340
        %v9477 = vsel %vm9451, %v9444, %v9342
        %v9478 = vsel %vm9451, %v9445, %v9344
        %v9479 = vsel %vm9451, %v9446, %v9346
        %v9480 = vsel %vm9451, %v9447, %v9348
        %v9481 = vsel %vm9451, %v9448, %v9350
        %v9482 = vsel %vm9451, %v9449, %v9352
        %v9483 = vsel %vm9451, %v9450, %v9354
        %9516 = vrot.lane.b32.xlu0 %v1194, 32
        %v9517 = vpop.permute.xlu0 %9516
        %9518 = vrot.lane.b32.xlu0 %v1196, 32
        %v9519 = vpop.permute.xlu0 %9518
        %9520 = vrot.lane.b32.xlu0 %v1198, 32
        %v9521 = vpop.permute.xlu0 %9520
        %9522 = vrot.lane.b32.xlu0 %v1200, 32
        %v9523 = vpop.permute.xlu0 %9522
        %9524 = vrot.lane.b32.xlu0 %v1202, 32
        %v9525 = vpop.permute.xlu0 %9524
        %9526 = vrot.lane.b32.xlu0 %v1204, 32
        %v9527 = vpop.permute.xlu0 %9526
        %9528 = vrot.lane.b32.xlu0 %v1206, 32
        %v9529 = vpop.permute.xlu0 %9528
        %9530 = vrot.lane.b32.xlu0 %v1208, 32
        %v9531 = vpop.permute.xlu0 %9530
        %9532 = vrot.lane.b32.xlu0 %v1210, 32
        %v9533 = vpop.permute.xlu0 %9532
        %9534 = vrot.lane.b32.xlu0 %v1212, 32
        %v9535 = vpop.permute.xlu0 %9534
        %9536 = vrot.lane.b32.xlu0 %v1214, 32
        %v9537 = vpop.permute.xlu0 %9536
        %9538 = vrot.lane.b32.xlu0 %v1216, 32
        %v9539 = vpop.permute.xlu0 %9538
        %9540 = vrot.lane.b32.xlu0 %v1218, 32
        %v9541 = vpop.permute.xlu0 %9540
        %9542 = vrot.lane.b32.xlu0 %v1220, 32
        %v9543 = vpop.permute.xlu0 %9542
        %9544 = vrot.lane.b32.xlu0 %v1222, 32
        %v9545 = vpop.permute.xlu0 %9544
        %9546 = vrot.lane.b32.xlu0 %v1224, 32
        %v9547 = vpop.permute.xlu0 %9546
        %9548 = vrot.lane.b32.xlu0 %v1226, 32
        %v9549 = vpop.permute.xlu0 %9548
        %9550 = vrot.lane.b32.xlu0 %v1228, 32
        %v9551 = vpop.permute.xlu0 %9550
        %9552 = vrot.lane.b32.xlu0 %v1230, 32
        %v9553 = vpop.permute.xlu0 %9552
        %9554 = vrot.lane.b32.xlu0 %v1232, 32
        %v9555 = vpop.permute.xlu0 %9554
        %9556 = vrot.lane.b32.xlu0 %v1234, 32
        %v9557 = vpop.permute.xlu0 %9556
        %9558 = vrot.lane.b32.xlu0 %v1236, 32
        %v9559 = vpop.permute.xlu0 %9558
        %9560 = vrot.lane.b32.xlu0 %v1238, 32
        %v9561 = vpop.permute.xlu0 %9560
        %9562 = vrot.lane.b32.xlu0 %v1240, 32
        %v9563 = vpop.permute.xlu0 %9562
        %9564 = vrot.lane.b32.xlu0 %v1242, 32
        %v9565 = vpop.permute.xlu0 %9564
        %9566 = vrot.lane.b32.xlu0 %v1244, 32
        %v9567 = vpop.permute.xlu0 %9566
        %9568 = vrot.lane.b32.xlu0 %v1246, 32
        %v9569 = vpop.permute.xlu0 %9568
        %9570 = vrot.lane.b32.xlu0 %v1248, 32
        %v9571 = vpop.permute.xlu0 %9570
        %9572 = vrot.lane.b32.xlu0 %v1250, 32
        %v9573 = vpop.permute.xlu0 %9572
        %9574 = vrot.lane.b32.xlu0 %v1252, 32
        %v9575 = vpop.permute.xlu0 %9574
        %9576 = vrot.lane.b32.xlu0 %v1254, 32
        %v9577 = vpop.permute.xlu0 %9576
        %9578 = vrot.lane.b32.xlu0 %v1256, 32
        %v9579 = vpop.permute.xlu0 %9578
        %v9612 = vmul.f32 %v9452, %v9517
        %v9613 = vmul.f32 %v9453, %v9519
        %v9614 = vmul.f32 %v9454, %v9521
        %v9615 = vmul.f32 %v9455, %v9523
        %v9616 = vmul.f32 %v9456, %v9525
        %v9617 = vmul.f32 %v9457, %v9527
        %v9618 = vmul.f32 %v9458, %v9529
        %v9619 = vmul.f32 %v9459, %v9531
        %v9620 = vmul.f32 %v9460, %v9533
        %v9621 = vmul.f32 %v9461, %v9535
        %v9622 = vmul.f32 %v9462, %v9537
        %v9623 = vmul.f32 %v9463, %v9539
        %v9624 = vmul.f32 %v9464, %v9541
        %v9625 = vmul.f32 %v9465, %v9543
        %v9626 = vmul.f32 %v9466, %v9545
        %v9627 = vmul.f32 %v9467, %v9547
        %v9628 = vmul.f32 %v9468, %v9549
        %v9629 = vmul.f32 %v9469, %v9551
        %v9630 = vmul.f32 %v9470, %v9553
        %v9631 = vmul.f32 %v9471, %v9555
        %v9632 = vmul.f32 %v9472, %v9557
        %v9633 = vmul.f32 %v9473, %v9559
        %v9634 = vmul.f32 %v9474, %v9561
        %v9635 = vmul.f32 %v9475, %v9563
        %v9636 = vmul.f32 %v9476, %v9565
        %v9637 = vmul.f32 %v9477, %v9567
        %v9638 = vmul.f32 %v9478, %v9569
        %v9639 = vmul.f32 %v9479, %v9571
        %v9640 = vmul.f32 %v9480, %v9573
        %v9641 = vmul.f32 %v9481, %v9575
        %v9642 = vmul.f32 %v9482, %v9577
        %v9643 = vmul.f32 %v9483, %v9579
        %v9644 = vpack.c.bf16 %v9613, %v9612
        %v9645 = vpack.c.bf16 %v9615, %v9614
        %v9646 = vpack.c.bf16 %v9617, %v9616
        %v9647 = vpack.c.bf16 %v9619, %v9618
        %v9648 = vpack.c.bf16 %v9621, %v9620
        %v9649 = vpack.c.bf16 %v9623, %v9622
        %v9650 = vpack.c.bf16 %v9625, %v9624
        %v9651 = vpack.c.bf16 %v9627, %v9626
        %v9652 = vpack.c.bf16 %v9629, %v9628
        %v9653 = vpack.c.bf16 %v9631, %v9630
        %v9654 = vpack.c.bf16 %v9633, %v9632
        %v9655 = vpack.c.bf16 %v9635, %v9634
        %v9656 = vpack.c.bf16 %v9637, %v9636
        %v9657 = vpack.c.bf16 %v9639, %v9638
        %v9658 = vpack.c.bf16 %v9641, %v9640
        %v9659 = vpack.c.bf16 %v9643, %v9642
        %v9660 = vld [vmem:[%s5] sm:$0xf]
        %v9661 = vld [vmem:[%s5 + $0x4] sm:$0xf]
        %v9662 = vld [vmem:[%s5 + $0x8] sm:$0xf]
        %v9663 = vld [vmem:[%s5 + $0xc] sm:$0xf]
        %v9664 = vld [vmem:[%s6] sm:$0x1]
        %v9666 = vlaneseq
        %v9667 = vshrl.u32 %v9666, 7
        %v9668 = vsub.s32 0, %v9667
        %v9669 = vrot.slane %v9664, %v9668
        %v9675 = vunpack.c.l.b16 %v9660
        %v9676 = vunpack.c.l.b16 %v9661
        %v9677 = vunpack.c.l.b16 %v9662
        %v9678 = vunpack.c.l.b16 %v9663
        %v9679 = vpack.c.b16 %v9676, %v9675
        %v9680 = vpack.c.b16 %v9678, %v9677
        %vm9683 = vcmask 261120
        %v9685 = vsel %vm9683, %v9644, 0
        %v9688 = vsel %vm9683, %v9645, 0
        %v9691 = vsel %vm9683, %v9646, 0
        %v9694 = vsel %vm9683, %v9647, 0
        %v9697 = vsel %vm9683, %v9648, 0
        %v9700 = vsel %vm9683, %v9649, 0
        %v9703 = vsel %vm9683, %v9650, 0
        %v9706 = vsel %vm9683, %v9651, 0
        %v9709 = vsel %vm9683, %v9652, 0
        %v9712 = vsel %vm9683, %v9653, 0
        %v9715 = vsel %vm9683, %v9654, 0
        %v9718 = vsel %vm9683, %v9655, 0
        %v9721 = vsel %vm9683, %v9656, 0
        %v9724 = vsel %vm9683, %v9657, 0
        %v9727 = vsel %vm9683, %v9658, 0
        %v9730 = vsel %vm9683, %v9659, 0
        %9732 = vmatprep.subr.bf16.mxu0 0
        %9733 = vmatpush1.bf16.msra.mxu0 %v9679
        %9734 = vmatprep.subr.bf16.mxu0 0
        %9735 = vmatpush1.bf16.msra.mxu0 %v9680
        %9736 = vmatprep.subr.bf16.mxu0 0
        %9737 = vmatpush1.bf16.msra.mxu0 0
        %9738 = vmatprep.subr.bf16.mxu0 0
        %9739 = vmatpush1.bf16.msra.mxu0 0
        %9740 = vmatprep.subr.bf16.mxu0 0
        %9741 = vmatpush1.bf16.msra.mxu0 0
        %9742 = vmatprep.subr.bf16.mxu0 0
        %9743 = vmatpush1.bf16.msra.mxu0 0
        %9744 = vmatprep.subr.bf16.mxu0 0
        %9745 = vmatpush1.bf16.msra.mxu0 0
        %9746 = vmatprep.subr.bf16.mxu0 0
        %9747 = vmatpush1.bf16.msra.mxu0 0
        %9748 = vmatprep.subr.bf16.mxu0 0
        %9749 = vmatpush1.bf16.msra.mxu0 0
        %9750 = vmatprep.subr.bf16.mxu0 0
        %9751 = vmatpush1.bf16.msra.mxu0 0
        %9752 = vmatprep.subr.bf16.mxu0 0
        %9753 = vmatpush1.bf16.msra.mxu0 0
        %9754 = vmatprep.subr.bf16.mxu0 0
        %9755 = vmatpush1.bf16.msra.mxu0 0
        %9756 = vmatprep.subr.bf16.mxu0 0
        %9757 = vmatpush1.bf16.msra.mxu0 0
        %9758 = vmatprep.subr.bf16.mxu0 0
        %9759 = vmatpush1.bf16.msra.mxu0 0
        %9760 = vmatprep.subr.bf16.mxu0 0
        %9761 = vmatpush1.bf16.msra.mxu0 0
        %9762 = vmatprep.subr.bf16.mxu0 0
        %9763 = vmatpush1.bf16.msra.mxu0 0
        %9764 = vmatprep.mubr.bf16.mxu0 0
        %9765 = vmatmul.mubr.bf16.gmra.mrb[0].mxu0 %v9685
        %v9766 = vpop.f32.mrb[0].mxu0
        %v9767 = vadd.f32 %v9669, %v9766
        %v9768 = vpop.f32.mrb[0].mxu0
        %v9769 = vpop.f32.mrb[0].mxu0
        %v9770 = vadd.f32 %v9669, %v9769
        %v9771 = vpop.f32.mrb[0].mxu0
        %9772 = vmatprep.mubr.bf16.mxu0 0
        %9773 = vmatmul.mubr.bf16.gmra.mrb[0].mxu0 %v9688
        %v9774 = vpop.f32.mrb[0].mxu0
        %v9775 = vadd.f32 %v9669, %v9774
        %v9776 = vpop.f32.mrb[0].mxu0
        %v9777 = vpop.f32.mrb[0].mxu0
        %v9778 = vadd.f32 %v9669, %v9777
        %v9779 = vpop.f32.mrb[0].mxu0
        %9780 = vmatprep.mubr.bf16.mxu0 0
        %9781 = vmatmul.mubr.bf16.gmra.mrb[0].mxu0 %v9691
        %v9782 = vpop.f32.mrb[0].mxu0
        %v9783 = vadd.f32 %v9669, %v9782
        %v9784 = vpop.f32.mrb[0].mxu0
        %v9785 = vpop.f32.mrb[0].mxu0
        %v9786 = vadd.f32 %v9669, %v9785
        %v9787 = vpop.f32.mrb[0].mxu0
        %9788 = vmatprep.mubr.bf16.mxu0 0
        %9789 = vmatmul.mubr.bf16.gmra.mrb[0].mxu0 %v9694
        %v9790 = vpop.f32.mrb[0].mxu0
        %v9791 = vadd.f32 %v9669, %v9790
        %v9792 = vpop.f32.mrb[0].mxu0
        %v9793 = vpop.f32.mrb[0].mxu0
        %v9794 = vadd.f32 %v9669, %v9793
        %v9795 = vpop.f32.mrb[0].mxu0
        %9796 = vmatprep.mubr.bf16.mxu0 0
        %9797 = vmatmul.mubr.bf16.gmra.mrb[0].mxu0 %v9697
        %v9798 = vpop.f32.mrb[0].mxu0
        %v9799 = vadd.f32 %v9669, %v9798
        %v9800 = vpop.f32.mrb[0].mxu0
        %v9801 = vpop.f32.mrb[0].mxu0
        %v9802 = vadd.f32 %v9669, %v9801
        %v9803 = vpop.f32.mrb[0].mxu0
        %9804 = vmatprep.mubr.bf16.mxu0 0
        %9805 = vmatmul.mubr.bf16.gmra.mrb[0].mxu0 %v9700
        %v9806 = vpop.f32.mrb[0].mxu0
        %v9807 = vadd.f32 %v9669, %v9806
        %v9808 = vpop.f32.mrb[0].mxu0
        %v9809 = vpop.f32.mrb[0].mxu0
        %v9810 = vadd.f32 %v9669, %v9809
        %v9811 = vpop.f32.mrb[0].mxu0
        %9812 = vmatprep.mubr.bf16.mxu0 0
        %9813 = vmatmul.mubr.bf16.gmra.mrb[0].mxu0 %v9703
        %v9814 = vpop.f32.mrb[0].mxu0
        %v9815 = vadd.f32 %v9669, %v9814
        %v9816 = vpop.f32.mrb[0].mxu0
        %v9817 = vpop.f32.mrb[0].mxu0
        %v9818 = vadd.f32 %v9669, %v9817
        %v9819 = vpop.f32.mrb[0].mxu0
        %9820 = vmatprep.mubr.bf16.mxu0 0
        %9821 = vmatmul.mubr.bf16.gmra.mrb[0].mxu0 %v9706
        %v9822 = vpop.f32.mrb[0].mxu0
        %v9823 = vadd.f32 %v9669, %v9822
        %v9824 = vpop.f32.mrb[0].mxu0
        %v9825 = vpop.f32.mrb[0].mxu0
        %v9826 = vadd.f32 %v9669, %v9825
        %v9827 = vpop.f32.mrb[0].mxu0
        %9828 = vmatprep.mubr.bf16.mxu0 0
        %9829 = vmatmul.mubr.bf16.gmra.mrb[0].mxu0 %v9709
        %v9830 = vpop.f32.mrb[0].mxu0
        %v9831 = vadd.f32 %v9669, %v9830
        %v9832 = vpop.f32.mrb[0].mxu0
        %v9833 = vpop.f32.mrb[0].mxu0
        %v9834 = vadd.f32 %v9669, %v9833
        %v9835 = vpop.f32.mrb[0].mxu0
        %9836 = vmatprep.mubr.bf16.mxu0 0
        %9837 = vmatmul.mubr.bf16.gmra.mrb[0].mxu0 %v9712
        %v9838 = vpop.f32.mrb[0].mxu0
        %v9839 = vadd.f32 %v9669, %v9838
        %v9840 = vpop.f32.mrb[0].mxu0
        %v9841 = vpop.f32.mrb[0].mxu0
        %v9842 = vadd.f32 %v9669, %v9841
        %v9843 = vpop.f32.mrb[0].mxu0
        %9844 = vmatprep.mubr.bf16.mxu0 0
        %9845 = vmatmul.mubr.bf16.gmra.mrb[0].mxu0 %v9715
        %v9846 = vpop.f32.mrb[0].mxu0
        %v9847 = vadd.f32 %v9669, %v9846
        %v9848 = vpop.f32.mrb[0].mxu0
        %v9849 = vpop.f32.mrb[0].mxu0
        %v9850 = vadd.f32 %v9669, %v9849
        %v9851 = vpop.f32.mrb[0].mxu0
        %9852 = vmatprep.mubr.bf16.mxu0 0
        %9853 = vmatmul.mubr.bf16.gmra.mrb[0].mxu0 %v9718
        %v9854 = vpop.f32.mrb[0].mxu0
        %v9855 = vadd.f32 %v9669, %v9854
        %v9856 = vpop.f32.mrb[0].mxu0
        %v9857 = vpop.f32.mrb[0].mxu0
        %v9858 = vadd.f32 %v9669, %v9857
        %v9859 = vpop.f32.mrb[0].mxu0
        %9860 = vmatprep.mubr.bf16.mxu0 0
        %9861 = vmatmul.mubr.bf16.gmra.mrb[0].mxu0 %v9721
        %v9862 = vpop.f32.mrb[0].mxu0
        %v9863 = vadd.f32 %v9669, %v9862
        %v9864 = vpop.f32.mrb[0].mxu0
        %v9865 = vpop.f32.mrb[0].mxu0
        %v9866 = vadd.f32 %v9669, %v9865
        %v9867 = vpop.f32.mrb[0].mxu0
        %9868 = vmatprep.mubr.bf16.mxu0 0
        %9869 = vmatmul.mubr.bf16.gmra.mrb[0].mxu0 %v9724
        %v9870 = vpop.f32.mrb[0].mxu0
        %v9871 = vadd.f32 %v9669, %v9870
        %v9872 = vpop.f32.mrb[0].mxu0
        %v9873 = vpop.f32.mrb[0].mxu0
        %v9874 = vadd.f32 %v9669, %v9873
        %v9875 = vpop.f32.mrb[0].mxu0
        %9876 = vmatprep.mubr.bf16.mxu0 0
        %9877 = vmatmul.mubr.bf16.gmra.mrb[0].mxu0 %v9727
        %v9878 = vpop.f32.mrb[0].mxu0
        %v9879 = vadd.f32 %v9669, %v9878
        %v9880 = vpop.f32.mrb[0].mxu0
        %v9881 = vpop.f32.mrb[0].mxu0
        %v9882 = vadd.f32 %v9669, %v9881
        %v9883 = vpop.f32.mrb[0].mxu0
        %9884 = vmatprep.mubr.bf16.mxu0 0
        %9885 = vmatmul.mubr.bf16.gmra.mrb[0].mxu0 %v9730
        %v9886 = vpop.f32.mrb[0].mxu0
        %v9887 = vadd.f32 %v9669, %v9886
        %v9888 = vpop.f32.mrb[0].mxu0
        %v9889 = vpop.f32.mrb[0].mxu0
        %v9890 = vadd.f32 %v9669, %v9889
        %v9891 = vpop.f32.mrb[0].mxu0
        %9892 = vdwg.mxu0
        %9893 = vst [vmem:[%s274] sm:$0xff] %v9767
        %9894 = vst [vmem:[%s274 + $0x8] sm:$0xff] %v9770
        %9895 = vst [vmem:[%s274 + $0x10] sm:$0xff] %v9775
        %9896 = vst [vmem:[%s274 + $0x18] sm:$0xff] %v9778
        %9897 = vst [vmem:[%s274 + $0x20] sm:$0xff] %v9783
        %9898 = vst [vmem:[%s274 + $0x28] sm:$0xff] %v9786
        %9899 = vst [vmem:[%s274 + $0x30] sm:$0xff] %v9791
        %9900 = vst [vmem:[%s274 + $0x38] sm:$0xff] %v9794
        %9901 = vst [vmem:[%s274 + $0x40] sm:$0xff] %v9799
        %9902 = vst [vmem:[%s274 + $0x48] sm:$0xff] %v9802
        %9903 = vst [vmem:[%s274 + $0x50] sm:$0xff] %v9807
        %9904 = vst [vmem:[%s274 + $0x58] sm:$0xff] %v9810
        %9905 = vst [vmem:[%s274 + $0x60] sm:$0xff] %v9815
        %9906 = vst [vmem:[%s274 + $0x68] sm:$0xff] %v9818
        %9907 = vst [vmem:[%s274 + $0x70] sm:$0xff] %v9823
        %9908 = vst [vmem:[%s274 + $0x78] sm:$0xff] %v9826
        %9909 = vst [vmem:[%s274 + $0x80] sm:$0xff] %v9831
        %9910 = vst [vmem:[%s274 + $0x88] sm:$0xff] %v9834
        %9911 = vst [vmem:[%s274 + $0x90] sm:$0xff] %v9839
        %9912 = vst [vmem:[%s274 + $0x98] sm:$0xff] %v9842
        %9913 = vst [vmem:[%s274 + $0xa0] sm:$0xff] %v9847
        %9914 = vst [vmem:[%s274 + $0xa8] sm:$0xff] %v9850
        %9915 = vst [vmem:[%s274 + $0xb0] sm:$0xff] %v9855
        %9916 = vst [vmem:[%s274 + $0xb8] sm:$0xff] %v9858
        %9917 = vst [vmem:[%s274 + $0xc0] sm:$0xff] %v9863
        %9918 = vst [vmem:[%s274 + $0xc8] sm:$0xff] %v9866
        %9919 = vst [vmem:[%s274 + $0xd0] sm:$0xff] %v9871
        %9920 = vst [vmem:[%s274 + $0xd8] sm:$0xff] %v9874
        %9921 = vst [vmem:[%s274 + $0xe0] sm:$0xff] %v9879
        %9922 = vst [vmem:[%s274 + $0xe8] sm:$0xff] %v9882
        %9923 = vst [vmem:[%s274 + $0xf0] sm:$0xff] %v9887
        %9924 = vst [vmem:[%s274 + $0xf8] sm:$0xff] %v9890
        %s9925 = sand.u32 %s181, 1
        %s9926 = scalar_lea.sflag [#allocation3], %s9925
        %s9927 = sand.u32 %s181, 1
        %s9928 = smul.addr %s9927, 256
        %s9929 = scalar_lea.vmem [#allocation2], %s9928
        // Predicated region
        $region49: #{axial_attention_pallas.1} parent=47 // pred_check
          %p9930 = pneg %p191
        $region50: #{axial_attention_pallas.1} parent=47 // pred_check_branch
          %9932 = sbr.rel (%p9930) target = $region52
        $region51: #{axial_attention_pallas.1} parent=47 // pred_region
          %s9933 = smul.u32 16, %s21
          %s9935 = ssub.s32 4096, 4096
          %9936 = vsyncadd %s9926, %s9935
          %s9937 = smul.addr %s9933, 2
          %s9938 = smul.addr %s9937, 128
          %s9939 = scalar_lea.hbm %s7, %s9938
          %s9940 = sshll.u32 %s9929, 4
          %s9941 = int_to_ptr.vmem [resolvable:$true] %s9940
          %9946 = dma.vmem_to_hbm [thread:$0]  %s9941, 4096, %s9939, %s9926, 128, 128, 8
        $region52: #{axial_attention_pallas.1} parent=47 // pred_fallthru
          _
      $region48: #{axial_attention_pallas.1} parent=5 // pred_fallthru
        _
      %p9947 = scmp.le.s32.totalorder 2, %s16
      // Predicated region
      $region53: #{axial_attention_pallas.1} parent=5 // pred_check
        %p9948 = pneg %p9947
      $region54: #{axial_attention_pallas.1} parent=5 // pred_check_branch
        %9950 = sbr.rel (%p9948) target = $region56
      $region55: #{axial_attention_pallas.1} parent=5 // pred_region
        %s9951 = ssub.s32 %s16, 2
        // Predicated region
        $region57: #{axial_attention_pallas.1} parent=55 // pred_check
          %p9952 = pneg %p197
        $region58: #{axial_attention_pallas.1} parent=55 // pred_check_branch
          %9954 = sbr.rel (%p9952) target = $region60
        $region59: #{axial_attention_pallas.1} parent=55 // pred_region
          %s9955 = sand.u32 %s182, 1
          %s9956 = scalar_lea.sflag [#allocation3], %s9955
          %s9957 = sand.u32 %s182, 1
          %s9958 = smul.addr %s9957, 256
          %s9959 = scalar_lea.vmem [#allocation2], %s9958
          %9960 = dma.done %s9956, 4096
        $region60: #{axial_attention_pallas.1} parent=55 // pred_fallthru
          _
      $region56: #{axial_attention_pallas.1} parent=5 // pred_fallthru
        _
    $region6: #{axial_attention_pallas.1} parent=1 // loop_footer
      %s20 = sadd.s32 1, %s16
    $region7: #{axial_attention_pallas.1} parent=1 // loop_footer_branch
      %15 = sbr.rel target = $region3
    $region8: #{axial_attention_pallas.1} parent=1 // loop_exit
      _
    %9961 = vsyncpa [#allocation3], 1
    %s9962 = scalar_lea.sflag [#allocation3], 1
    %9963 = vsyncpa %s9962, 1

</llo_original>
